<compile_context>
chip_gen: v5e
topology: v5e:2x2
jax: 0.10.0
libtpu: 0.0.40
codegen_flags: <defaults>
</compile_context>

<pallas_src>
import jax
import jax.numpy as jnp
from jax import lax
from jax.experimental import pallas as pl
from jax.experimental.pallas import tpu as pltpu


def _bottleneck_kernel(x_ref, w1_ref, b1_ref, w2_ref, b2_ref, w3_ref, b3_ref,
                       o_ref):
    B, H, W, Cin = x_ref.shape
    width = w1_ref.shape[1]
    Cout = w3_ref.shape[1]
    bf16 = jnp.bfloat16
    M = B * H * W

    x2d_b = x_ref[...].reshape(M, Cin)               # bf16 (HBM I/O dtype)

    # ---- conv1 (1x1, BN scale pre-folded) + bias + ReLU (f32 epilogue) ----
    h1 = jnp.dot(x2d_b, w1_ref[...], preferred_element_type=jnp.float32)
    h1 = jnp.maximum(h1 + b1_ref[...], 0.0)
    h1 = h1.reshape(B, H, W, width)                  # f32

    # ---- conv2 (3x3, stride 1, pad 1) ----
    # W-direction +/-1 shifts on the XLU via roll; zero the wrapped edge column
    # with an iota mask (matches pad=1 zero padding).
    w_ids = lax.broadcasted_iota(jnp.int32, (B, H, W, width), 2)
    left = jnp.where(w_ids == 0, 0.0, pltpu.roll(h1, 1, axis=2))       # x[h, w-1]
    right = jnp.where(w_ids == W - 1, 0.0,
                      pltpu.roll(h1, W - 1, axis=2))                   # x[h, w+1]

    # Channel concat order [left, mid, right] == kw = 0,1,2 of the HWIO flatten.
    row_cat = jnp.concatenate(
        [left.astype(bf16), h1.astype(bf16), right.astype(bf16)],
        axis=-1)                                                       # (B,H,W,3w)

    # H-direction +/-1 shifts: major-axis (layout-free) concats per image.
    zrow = jnp.zeros((B, 1, W, 3 * width), bf16)
    top = jnp.concatenate([zrow, row_cat[:, :H - 1]], axis=1)          # x[h-1, ...]
    bot = jnp.concatenate([row_cat[:, 1:], zrow], axis=1)              # x[h+1, ...]

    top2d = top.reshape(M, 3 * width)
    mid2d = row_cat.reshape(M, 3 * width)
    bot2d = bot.reshape(M, 3 * width)

    # Three accumulating K=3*width matmuls (kh = 0,1,2), f32 accumulator.
    # w2_ref is (3, 3*width, width) with rows flattened (kw-major, then cin).
    h2 = jnp.dot(top2d, w2_ref[0], preferred_element_type=jnp.float32)
    h2 = h2 + jnp.dot(mid2d, w2_ref[1], preferred_element_type=jnp.float32)
    h2 = h2 + jnp.dot(bot2d, w2_ref[2], preferred_element_type=jnp.float32)
    h2 = jnp.maximum(h2 + b2_ref[...], 0.0).astype(bf16)

    # ---- conv3 (1x1, BN scale pre-folded) + bias + residual + ReLU ----
    h3 = jnp.dot(h2, w3_ref[...], preferred_element_type=jnp.float32)
    out = jnp.maximum(h3 + b3_ref[...] + x2d_b.astype(jnp.float32), 0.0)
    o_ref[...] = out.reshape(B, H, W, Cout).astype(o_ref.dtype)


def _pick_block_batch(n):
    """Images per grid step: prefer M >= 512 rows while keeping >= 4 steps."""
    for b in (4, 2):
        if n % b == 0 and n // b >= 4:
            return b
    return 1


def bottleneck_forward(x, params, *, block_batch=None, out_dtype=jnp.bfloat16):
    """x: (N, H, W, Cin) float32 or bfloat16; params as from make_params."""
    N, H, W, Cin = x.shape
    w1, s1, b1, w2, s2, b2, w3, s3, b3 = params
    width = w1.shape[1]
    Cout = w3.shape[1]
    assert Cin == Cout, "downsample is None => inplanes must equal planes*4"

    B = _pick_block_batch(N) if block_batch is None else block_batch
    assert N % B == 0

    # bf16 HBM I/O: halve DMA bytes (the kernel is HBM-bound at this size).
    x_b = x.astype(jnp.bfloat16)

    # Fold BN scales into the conv weights (output-channel axis) and cast the
    # matmul operands to bf16; biases stay f32 for the VPU epilogues.
    w1f = (w1 * s1.reshape(1, width)).astype(jnp.bfloat16)              # (Cin, width)
    w2f = ((w2 * s2.reshape(1, 1, 1, width))
           .reshape(3, 3 * width, width).astype(jnp.bfloat16))          # (3, 3w, w)
    w3f = (w3 * s3.reshape(1, Cout)).astype(jnp.bfloat16)               # (width, Cout)
    b1f = b1.reshape(1, width).astype(jnp.float32)
    b2f = b2.reshape(1, width).astype(jnp.float32)
    b3f = b3.reshape(1, Cout).astype(jnp.float32)

    return pl.pallas_call(
        _bottleneck_kernel,
        out_shape=jax.ShapeDtypeStruct((N, H, W, Cout), out_dtype),
        grid_spec=pltpu.PrefetchScalarGridSpec(
            num_scalar_prefetch=0,
            grid=(N // B,),                  # B images per step: M = B*H*W rows
            in_specs=[
                pl.BlockSpec((B, H, W, Cin), lambda n: (n, 0, 0, 0)),
                pl.BlockSpec((Cin, width), lambda n: (0, 0)),
                pl.BlockSpec((1, width), lambda n: (0, 0)),
                pl.BlockSpec((3, 3 * width, width), lambda n: (0, 0, 0)),
                pl.BlockSpec((1, width), lambda n: (0, 0)),
                pl.BlockSpec((width, Cout), lambda n: (0, 0)),
                pl.BlockSpec((1, Cout), lambda n: (0, 0)),
            ],
            out_specs=pl.BlockSpec((B, H, W, Cout), lambda n: (n, 0, 0, 0)),
        ),
        compiler_params=pltpu.CompilerParams(
            # Batch blocks are independent -> shard across v7x's two cores.
            dimension_semantics=("parallel",),
            # ~6-7 MiB/step at B=2; 32 MiB fits v5e/v6e/v7x with headroom.
            vmem_limit_bytes=32 * 1024 * 1024),
    )(x_b, w1f, b1f, w2f, b2f, w3f, b3f)


def make_params(key, inplanes, planes, base_width=64, groups=1):
    """Deterministic synthetic weights matching the module's shapes (f32)."""
    width = int(planes * (base_width / 64.0)) * groups
    cout = planes * 4                      # Bottleneck.expansion == 4
    ks = jax.random.split(key, 15)
    eps = 1e-5

    def conv_w(k, cin, co, kh, kw):
        fan_in = cin * kh * kw
        return (jax.random.normal(k, (kh, kw, cin, co), jnp.float32)
                / jnp.sqrt(fan_in))

    w1 = conv_w(ks[0], inplanes, width, 1, 1)[0, 0]        # (Cin, width)
    w2 = conv_w(ks[1], width, width, 3, 3)                 # (3,3,width,width) HWIO
    w3 = conv_w(ks[2], width, cout, 1, 1)[0, 0]            # (width, Cout)

    def bn_fold(kg, kb, km, kv, c):
        gamma = 1.0 + 0.1 * jax.random.normal(kg, (c,), jnp.float32)
        beta = 0.1 * jax.random.normal(kb, (c,), jnp.float32)
        mean = 0.1 * jax.random.normal(km, (c,), jnp.float32)
        var = 1.0 + 0.5 * jax.random.uniform(kv, (c,), jnp.float32)
        scale = gamma / jnp.sqrt(var + eps)
        bias = beta - mean * scale
        return scale.reshape(1, c), bias.reshape(1, c)

    s1, b1 = bn_fold(ks[3], ks[4], ks[5], ks[6], width)
    s2, b2 = bn_fold(ks[7], ks[8], ks[9], ks[10], width)
    s3, b3 = bn_fold(ks[11], ks[12], ks[13], ks[14], cout)
    return (w1, s1, b1, w2, s2, b2, w3, s3, b3)


def bottleneck_reference(x, params):
    """Pure-JAX f32 reference (NHWC, module semantics) for correctness."""
    w1, s1, b1, w2, s2, b2, w3, s3, b3 = params

    def bn(h, s, b):
        return h * s.reshape(1, 1, 1, -1) + b.reshape(1, 1, 1, -1)

    h = jnp.einsum('nhwc,co->nhwo', x, w1, precision=lax.Precision.HIGHEST)
    h = jax.nn.relu(bn(h, s1, b1))
    h = lax.conv_general_dilated(
        h, w2, window_strides=(1, 1), padding=((1, 1), (1, 1)),
        dimension_numbers=('NHWC', 'HWIO', 'NHWC'),
        precision=lax.Precision.HIGHEST)
    h = jax.nn.relu(bn(h, s2, b2))
    h = jnp.einsum('nhwc,co->nhwo', h, w3, precision=lax.Precision.HIGHEST)
    h = bn(h, s3, b3)
    return jax.nn.relu(h + x)


if __name__ == "__main__":
    key = jax.random.PRNGKey(0)
    kx, kp = jax.random.split(key)

    # ResNet-50 "layer"-style Bottleneck: inplanes == planes*4 (downsample is
    # None) and lane-aligned channels (width=128, Cout=512).  N=8 so the
    # wrapper picks B=2 images/step -> 4 grid steps (2 per v7x TensorCore).
    inplanes, planes = 512, 128
    N, H, W = 8, 16, 16

    x = jax.random.normal(kx, (N, H, W, inplanes), jnp.float32)
    params = make_params(kp, inplanes, planes)

    out = jax.block_until_ready(bottleneck_forward(x, params))

    # Reference is evaluated on the same bf16-rounded input the kernel sees
    # (the residual identity is bf16-rounded by the bf16 HBM I/O change).
    x_for_ref = x.astype(jnp.bfloat16).astype(jnp.float32)
    ref = jax.block_until_ready(bottleneck_reference(x_for_ref, params))

    assert out.shape == (N, H, W, planes * 4), out.shape
    assert bool(jnp.all(jnp.isfinite(out)))
    # Tolerance covers bf16 matmul operands (f32 accumulation over K up to
    # 3*384) plus bf16 output rounding vs. the full-f32 reference; outputs O(1).
    max_err = float(jnp.max(jnp.abs(out.astype(jnp.float32) - ref)))
    assert max_err < 1e-1, f"max abs err {max_err}"

    print("KERNEL_OK")
</pallas_src>

<mosaic_0001>
module attributes {stable_mosaic.version = 11 : i64} {
  func.func @_bottleneck_kernel(%arg0: i32, %arg1: memref<2x16x16x512xbf16, #tpu.memory_space<vmem>>, %arg2: memref<512x128xbf16, #tpu.memory_space<vmem>>, %arg3: memref<1x128xf32, #tpu.memory_space<vmem>>, %arg4: memref<3x384x128xbf16, #tpu.memory_space<vmem>>, %arg5: memref<1x128xf32, #tpu.memory_space<vmem>>, %arg6: memref<128x512xbf16, #tpu.memory_space<vmem>>, %arg7: memref<1x512xf32, #tpu.memory_space<vmem>>, %arg8: memref<2x16x16x512xbf16, #tpu.memory_space<vmem>>) attributes {dimension_semantics = [#tpu.dimension_semantics<parallel>], iteration_bounds = array<i64: 4>, scalar_prefetch = 0 : i64, scratch_operands = 0 : i64, tpu.core_type = #tpu.core_type<tc>, window_params = [{transform_indices = @transform_0, window_bounds = array<i64: 2, 16, 16, 512>}, {pipeline_mode = #tpu.pipeline_mode<synchronous>, transform_indices = @transform_1, window_bounds = array<i64: 512, 128>}, {pipeline_mode = #tpu.pipeline_mode<synchronous>, transform_indices = @transform_2, window_bounds = array<i64: 1, 128>}, {pipeline_mode = #tpu.pipeline_mode<synchronous>, transform_indices = @transform_3, window_bounds = array<i64: 3, 384, 128>}, {pipeline_mode = #tpu.pipeline_mode<synchronous>, transform_indices = @transform_4, window_bounds = array<i64: 1, 128>}, {pipeline_mode = #tpu.pipeline_mode<synchronous>, transform_indices = @transform_5, window_bounds = array<i64: 128, 512>}, {pipeline_mode = #tpu.pipeline_mode<synchronous>, transform_indices = @transform_6, window_bounds = array<i64: 1, 512>}, {transform_indices = @transform_7, window_bounds = array<i64: 2, 16, 16, 512>}]} {
    %c0 = arith.constant 0 : index
    %c0_0 = arith.constant 0 : index
    %c0_1 = arith.constant 0 : index
    %c0_2 = arith.constant 0 : index
    %0 = vector.load %arg1[%c0, %c0_0, %c0_1, %c0_2] : memref<2x16x16x512xbf16, #tpu.memory_space<vmem>>, vector<2x16x16x512xbf16>
    %1 = vector.shape_cast %0 : vector<2x16x16x512xbf16> to vector<512x512xbf16>
    %c0_3 = arith.constant 0 : index
    %c0_4 = arith.constant 0 : index
    %2 = vector.load %arg2[%c0_3, %c0_4] : memref<512x128xbf16, #tpu.memory_space<vmem>>, vector<512x128xbf16>
    %cst = arith.constant dense<0.000000e+00> : vector<512x128xf32>
    %3 = tpu.matmul %1, %2, %cst {dimension_numbers = #tpu.dot_dimension_numbers<[1], [0], [0], [1], [0, 0, 1, 1], [], []>} : vector<512x512xbf16>, vector<512x128xbf16>, vector<512x128xf32> -> vector<512x128xf32>
    %c0_5 = arith.constant 0 : index
    %c0_6 = arith.constant 0 : index
    %4 = vector.load %arg3[%c0_5, %c0_6] : memref<1x128xf32, #tpu.memory_space<vmem>>, vector<1x128xf32>
    %5 = vector.broadcast %4 : vector<1x128xf32> to vector<512x128xf32>
    %6 = arith.addf %3, %5 : vector<512x128xf32>
    %cst_7 = arith.constant 0.000000e+00 : f32
    %7 = vector.broadcast %cst_7 : f32 to vector<512x128xf32>
    %8 = arith.maximumf %6, %7 : vector<512x128xf32>
    %9 = vector.shape_cast %8 : vector<512x128xf32> to vector<2x16x16x128xf32>
    %10 = tpu.iota {dimensions = array<i32: 2>} : vector<2x16x16x128xi32>
    %c0_i32 = arith.constant 0 : i32
    %11 = vector.broadcast %c0_i32 : i32 to vector<2x16x16x128xi32>
    %12 = arith.cmpi eq, %10, %11 : vector<2x16x16x128xi32>
    %c1_i32 = arith.constant 1 : i32
    %13 = tpu.dynamic_rotate %9 by %c1_i32 dim 2 : vector<2x16x16x128xf32>, i32 -> vector<2x16x16x128xf32>
    %cst_8 = arith.constant 0.000000e+00 : f32
    %14 = vector.broadcast %cst_8 : f32 to vector<2x16x16x128xf32>
    %15 = arith.select %12, %14, %13 : vector<2x16x16x128xi1>, vector<2x16x16x128xf32>
    %c15_i32 = arith.constant 15 : i32
    %16 = vector.broadcast %c15_i32 : i32 to vector<2x16x16x128xi32>
    %17 = arith.cmpi eq, %10, %16 : vector<2x16x16x128xi32>
    %c15_i32_9 = arith.constant 15 : i32
    %18 = tpu.dynamic_rotate %9 by %c15_i32_9 dim 2 : vector<2x16x16x128xf32>, i32 -> vector<2x16x16x128xf32>
    %cst_10 = arith.constant 0.000000e+00 : f32
    %19 = vector.broadcast %cst_10 : f32 to vector<2x16x16x128xf32>
    %20 = arith.select %17, %19, %18 : vector<2x16x16x128xi1>, vector<2x16x16x128xf32>
    %21 = arith.truncf %15 : vector<2x16x16x128xf32> to vector<2x16x16x128xbf16>
    %22 = arith.truncf %9 : vector<2x16x16x128xf32> to vector<2x16x16x128xbf16>
    %23 = arith.truncf %20 : vector<2x16x16x128xf32> to vector<2x16x16x128xbf16>
    %24 = tpu.concatenate %21, %22, %23 in 3 : vector<2x16x16x128xbf16>, vector<2x16x16x128xbf16>, vector<2x16x16x128xbf16> -> vector<2x16x16x384xbf16>
    %cst_11 = arith.constant 0.000000e+00 : bf16
    %25 = vector.broadcast %cst_11 : bf16 to vector<2x1x16x384xbf16>
    %26 = vector.extract_strided_slice %24 {offsets = [0, 0, 0, 0], sizes = [2, 15, 16, 384], strides = [1, 1, 1, 1]} : vector<2x16x16x384xbf16> to vector<2x15x16x384xbf16>
    %27 = tpu.concatenate %25, %26 in 1 : vector<2x1x16x384xbf16>, vector<2x15x16x384xbf16> -> vector<2x16x16x384xbf16>
    %28 = vector.extract_strided_slice %24 {offsets = [0, 1, 0, 0], sizes = [2, 15, 16, 384], strides = [1, 1, 1, 1]} : vector<2x16x16x384xbf16> to vector<2x15x16x384xbf16>
    %29 = tpu.concatenate %28, %25 in 1 : vector<2x15x16x384xbf16>, vector<2x1x16x384xbf16> -> vector<2x16x16x384xbf16>
    %30 = vector.shape_cast %27 : vector<2x16x16x384xbf16> to vector<512x384xbf16>
    %31 = vector.shape_cast %24 : vector<2x16x16x384xbf16> to vector<512x384xbf16>
    %32 = vector.shape_cast %29 : vector<2x16x16x384xbf16> to vector<512x384xbf16>
    %c0_12 = arith.constant 0 : index
    %c0_13 = arith.constant 0 : index
    %c0_14 = arith.constant 0 : index
    %33 = vector.load %arg4[%c0_12, %c0_13, %c0_14] : memref<3x384x128xbf16, #tpu.memory_space<vmem>>, vector<1x384x128xbf16>
    %34 = vector.shape_cast %33 : vector<1x384x128xbf16> to vector<384x128xbf16>
    %cst_15 = arith.constant dense<0.000000e+00> : vector<512x128xf32>
    %35 = tpu.matmul %30, %34, %cst_15 {dimension_numbers = #tpu.dot_dimension_numbers<[1], [0], [0], [1], [0, 0, 1, 1], [], []>} : vector<512x384xbf16>, vector<384x128xbf16>, vector<512x128xf32> -> vector<512x128xf32>
    %c1 = arith.constant 1 : index
    %c0_16 = arith.constant 0 : index
    %c0_17 = arith.constant 0 : index
    %36 = vector.load %arg4[%c1, %c0_16, %c0_17] : memref<3x384x128xbf16, #tpu.memory_space<vmem>>, vector<1x384x128xbf16>
    %37 = vector.shape_cast %36 : vector<1x384x128xbf16> to vector<384x128xbf16>
    %cst_18 = arith.constant dense<0.000000e+00> : vector<512x128xf32>
    %38 = tpu.matmul %31, %37, %cst_18 {dimension_numbers = #tpu.dot_dimension_numbers<[1], [0], [0], [1], [0, 0, 1, 1], [], []>} : vector<512x384xbf16>, vector<384x128xbf16>, vector<512x128xf32> -> vector<512x128xf32>
    %39 = arith.addf %35, %38 : vector<512x128xf32>
    %c2 = arith.constant 2 : index
    %c0_19 = arith.constant 0 : index
    %c0_20 = arith.constant 0 : index
    %40 = vector.load %arg4[%c2, %c0_19, %c0_20] : memref<3x384x128xbf16, #tpu.memory_space<vmem>>, vector<1x384x128xbf16>
    %41 = vector.shape_cast %40 : vector<1x384x128xbf16> to vector<384x128xbf16>
    %cst_21 = arith.constant dense<0.000000e+00> : vector<512x128xf32>
    %42 = tpu.matmul %32, %41, %cst_21 {dimension_numbers = #tpu.dot_dimension_numbers<[1], [0], [0], [1], [0, 0, 1, 1], [], []>} : vector<512x384xbf16>, vector<384x128xbf16>, vector<512x128xf32> -> vector<512x128xf32>
    %43 = arith.addf %39, %42 : vector<512x128xf32>
    %c0_22 = arith.constant 0 : index
    %c0_23 = arith.constant 0 : index
    %44 = vector.load %arg5[%c0_22, %c0_23] : memref<1x128xf32, #tpu.memory_space<vmem>>, vector<1x128xf32>
    %45 = vector.broadcast %44 : vector<1x128xf32> to vector<512x128xf32>
    %46 = arith.addf %43, %45 : vector<512x128xf32>
    %cst_24 = arith.constant 0.000000e+00 : f32
    %47 = vector.broadcast %cst_24 : f32 to vector<512x128xf32>
    %48 = arith.maximumf %46, %47 : vector<512x128xf32>
    %49 = arith.truncf %48 : vector<512x128xf32> to vector<512x128xbf16>
    %c0_25 = arith.constant 0 : index
    %c0_26 = arith.constant 0 : index
    %50 = vector.load %arg6[%c0_25, %c0_26] : memref<128x512xbf16, #tpu.memory_space<vmem>>, vector<128x512xbf16>
    %cst_27 = arith.constant dense<0.000000e+00> : vector<512x512xf32>
    %51 = tpu.matmul %49, %50, %cst_27 {dimension_numbers = #tpu.dot_dimension_numbers<[1], [0], [0], [1], [0, 0, 1, 1], [], []>} : vector<512x128xbf16>, vector<128x512xbf16>, vector<512x512xf32> -> vector<512x512xf32>
    %c0_28 = arith.constant 0 : index
    %c0_29 = arith.constant 0 : index
    %52 = vector.load %arg7[%c0_28, %c0_29] : memref<1x512xf32, #tpu.memory_space<vmem>>, vector<1x512xf32>
    %53 = vector.broadcast %52 : vector<1x512xf32> to vector<512x512xf32>
    %54 = arith.addf %51, %53 : vector<512x512xf32>
    %55 = arith.extf %1 : vector<512x512xbf16> to vector<512x512xf32>
    %56 = arith.addf %54, %55 : vector<512x512xf32>
    %cst_30 = arith.constant 0.000000e+00 : f32
    %57 = vector.broadcast %cst_30 : f32 to vector<512x512xf32>
    %58 = arith.maximumf %56, %57 : vector<512x512xf32>
    %59 = vector.shape_cast %58 : vector<512x512xf32> to vector<2x16x16x512xf32>
    %60 = arith.truncf %59 : vector<2x16x16x512xf32> to vector<2x16x16x512xbf16>
    %c0_31 = arith.constant 0 : index
    %c0_32 = arith.constant 0 : index
    %c0_33 = arith.constant 0 : index
    %c0_34 = arith.constant 0 : index
    %61 = vector.load %arg8[%c0_31, %c0_32, %c0_33, %c0_34] : memref<2x16x16x512xbf16, #tpu.memory_space<vmem>>, vector<2x16x16x512xbf16>
    tpu.vector_store %arg8[%c0_31, %c0_32, %c0_33, %c0_34], %60 {strides = array<i32>} : memref<2x16x16x512xbf16, #tpu.memory_space<vmem>>, vector<2x16x16x512xbf16>,
    return
  }
  func.func @transform_0(%arg0: i32) -> (i32, i32, i32, i32) {
    %c0_i32 = arith.constant 0 : i32
    %c0_i32_0 = arith.constant 0 : i32
    %c0_i32_1 = arith.constant 0 : i32
    %c0_i32_2 = arith.constant 0 : i32
    return %arg0, %c0_i32, %c0_i32_0, %c0_i32_1 : i32, i32, i32, i32
  }
  func.func @transform_1(%arg0: i32) -> (i32, i32) {
    %c0_i32 = arith.constant 0 : i32
    %c0_i32_0 = arith.constant 0 : i32
    %c0_i32_1 = arith.constant 0 : i32
    return %c0_i32, %c0_i32_0 : i32, i32
  }
  func.func @transform_2(%arg0: i32) -> (i32, i32) {
    %c0_i32 = arith.constant 0 : i32
    %c0_i32_0 = arith.constant 0 : i32
    %c0_i32_1 = arith.constant 0 : i32
    return %c0_i32, %c0_i32_0 : i32, i32
  }
  func.func @transform_3(%arg0: i32) -> (i32, i32, i32) {
    %c0_i32 = arith.constant 0 : i32
    %c0_i32_0 = arith.constant 0 : i32
    %c0_i32_1 = arith.constant 0 : i32
    %c0_i32_2 = arith.constant 0 : i32
    return %c0_i32, %c0_i32_0, %c0_i32_1 : i32, i32, i32
  }
  func.func @transform_4(%arg0: i32) -> (i32, i32) {
    %c0_i32 = arith.constant 0 : i32
    %c0_i32_0 = arith.constant 0 : i32
    %c0_i32_1 = arith.constant 0 : i32
    return %c0_i32, %c0_i32_0 : i32, i32
  }
  func.func @transform_5(%arg0: i32) -> (i32, i32) {
    %c0_i32 = arith.constant 0 : i32
    %c0_i32_0 = arith.constant 0 : i32
    %c0_i32_1 = arith.constant 0 : i32
    return %c0_i32, %c0_i32_0 : i32, i32
  }
  func.func @transform_6(%arg0: i32) -> (i32, i32) {
    %c0_i32 = arith.constant 0 : i32
    %c0_i32_0 = arith.constant 0 : i32
    %c0_i32_1 = arith.constant 0 : i32
    return %c0_i32, %c0_i32_0 : i32, i32
  }
  func.func @transform_7(%arg0: i32) -> (i32, i32, i32, i32) {
    %c0_i32 = arith.constant 0 : i32
    %c0_i32_0 = arith.constant 0 : i32
    %c0_i32_1 = arith.constant 0 : i32
    %c0_i32_2 = arith.constant 0 : i32
    return %arg0, %c0_i32, %c0_i32_0, %c0_i32_1 : i32, i32, i32, i32
  }
}

</mosaic_0001>

<llo_original>
// kernel: tpu_custom_call.1
$region0: #{tpu_custom_call.1}
  #allocation0 [shape = 'u32[]', space=smem, size = 0x4, offset = 0x4, fixed_abs, tag = 'smem constant byte address 0x4 - core index']
  #allocation1 [shape = 'u32[72,128]{1,0:T(1,128)}', space=vmem, size = 0x9000, scoped, tag = 'internal scratch']
  %s0 = inlined_call_operand.hbm [shape: bf16[8,16,16,512], index: 0, kind: input, shape index: {}]
  %s1 = inlined_call_operand.hbm [shape: bf16[512,128], index: 1, kind: input, shape index: {}]
  %s2 = inlined_call_operand.hbm [shape: f32[1,128], index: 2, kind: input, shape index: {}]
  %s3 = inlined_call_operand.hbm [shape: bf16[3,384,128], index: 3, kind: input, shape index: {}]
  %s4 = inlined_call_operand.hbm [shape: f32[1,128], index: 4, kind: input, shape index: {}]
  %s5 = inlined_call_operand.hbm [shape: bf16[128,512], index: 5, kind: input, shape index: {}]
  %s6 = inlined_call_operand.hbm [shape: f32[1,512], index: 6, kind: input, shape index: {}]
  %s7 = inlined_call_operand.hbm [shape: bf16[8,16,16,512], index: 7, kind: output, shape index: {}]
  %s8 = sld [smem:[#allocation0]]
  $region89: #{tpu_custom_call.1} parent=0
    _
  %s10 = ssub.s32 1, %s8
  %s11 = scalar_select 0, %s10, %s8
  $region1: #{tpu_custom_call.1} parent=0
    #allocation2 [shape = 'u8[1048576]{0}', space=vmem, size = 0x100000, scoped, tag = 'input window, operand 0']
    #allocation3 [shape = 's32[2]{0}', space=sflag, size = 0x8, scoped, tag = 'scoped memory for tpu_custom_call.1']
    #allocation4 [shape = 's32[2]{0}', space=sflag, size = 0x8, scoped, tag = 'scoped memory for tpu_custom_call.1']
    #allocation5 [shape = 'u8[131072]{0}', space=vmem, size = 0x20000, scoped, tag = 'input window, operand 1, single buffered']
    #allocation6 [shape = 's32[1]{0}', space=sflag, size = 0x4, scoped, tag = 'scoped memory for tpu_custom_call.1']
    #allocation7 [shape = 'u8[512]{0}', space=vmem, size = 0x400, scoped, tag = 'input window, operand 2, single buffered']
    #allocation8 [shape = 'u8[294912]{0}', space=vmem, size = 0x48000, scoped, tag = 'input window, operand 3, single buffered']
    #allocation9 [shape = 's32[1]{0}', space=sflag, size = 0x4, scoped, tag = 'scoped memory for tpu_custom_call.1']
    #allocation10 [shape = 'u8[512]{0}', space=vmem, size = 0x400, scoped, tag = 'input window, operand 4, single buffered']
    #allocation11 [shape = 'u8[131072]{0}', space=vmem, size = 0x20000, scoped, tag = 'input window, operand 5, single buffered']
    #allocation12 [shape = 's32[1]{0}', space=sflag, size = 0x4, scoped, tag = 'scoped memory for tpu_custom_call.1']
    #allocation13 [shape = 'u8[2048]{0}', space=vmem, size = 0x800, scoped, tag = 'input window, operand 6, single buffered']
    #allocation14 [shape = 'u8[1048576]{0}', space=vmem, size = 0x100000, scoped, tag = 'output window, operand 0']
    %12 = vsyncpa [#allocation3], 0
    %s13 = scalar_lea.sflag [#allocation3], 1
    %14 = vsyncpa %s13, 0
    %15 = vsyncpa [#allocation6], 0
    %16 = vsyncpa [#allocation9], 0
    %17 = vsyncpa [#allocation12], 0
    %18 = vsyncpa [#allocation4], 0
    %s19 = scalar_lea.sflag [#allocation4], 1
    %20 = vsyncpa %s19, 0
    loop: start=0, step=1, limit=6
    $region2: #{tpu_custom_call.1} parent=1 // loop_pre_header
      _
    $region3: #{tpu_custom_call.1} parent=1 // loop_header
      %s22 = sphi 0, %s26
      %p23 = scmp.ge.s32.totalorder %s22, 6
      %s32 = sphi 0, %s34
      %s35 = sphi 0, %s32
      %s36 = sphi 0, %s35
      %s52 = sphi 0, %s36
      %s56 = sphi 0, %s56
      %s58 = sphi 0, %s56
      %s59 = sphi 0, %s58
      %s73 = sphi 0, %s59
      %s77 = sphi 0, %s77
      %s79 = sphi 0, %s77
      %s80 = sphi 0, %s79
      %s94 = sphi 0, %s80
      %s98 = sphi 0, %s98
      %s100 = sphi 0, %s98
      %s101 = sphi 0, %s100
      %s115 = sphi 0, %s101
      %s119 = sphi 0, %s119
      %s121 = sphi 0, %s119
      %s122 = sphi 0, %s121
      %s136 = sphi 0, %s122
      %s140 = sphi 0, %s140
      %s142 = sphi 0, %s140
      %s143 = sphi 0, %s142
      %s157 = sphi 0, %s143
      %s161 = sphi 0, %s161
      %s163 = sphi 0, %s161
      %s164 = sphi 0, %s163
      %s178 = sphi 0, %s164
      %s184 = sphi 0, %s186
      %s187 = sphi 0, %s184
      %s188 = sphi 0, %s187
      %s204 = sphi 0, %s188
    $region4: #{tpu_custom_call.1} parent=1 // loop_header_branch
      %25 = sbr.rel (%p23) target = $region8
    $region5: #{tpu_custom_call.1} parent=1 // loop_body
      %s27 = ssub.s32 %s22, 1
      %s28 = ssub.s32 %s22, 2
      %s29 = sadd.s32 %s22, 1
      %s30 = ssub.s32 %s22, %s29
      %p31 = scmp.eq.s32.totalorder %s30, 0
      %s33 = sadd.s32 %s32, 1
      %s34 = scalar_select %p31, %s32, %s33
      %p37 = pneg %p31
      %p38 = scmp.eq.s32.totalorder %s22, 3
      %p39 = por %p37, %p38
      %p40 = scmp.ne.s32.totalorder %s32, %s35
      %p41 = scmp.eq.s32.totalorder %s22, 0
      %p42 = por %p40, %p41
      %p43 = scmp.ne.s32.totalorder %s32, %s35
      %p44 = scmp.eq.s32.totalorder %s27, 3
      %p45 = por %p43, %p44
      %p46 = scmp.ne.s32.totalorder %s35, %s36
      %p47 = scmp.eq.s32.totalorder %s27, 0
      %p48 = por %p46, %p47
      %p49 = scmp.ne.s32.totalorder %s35, %s36
      %p50 = scmp.eq.s32.totalorder %s28, 3
      %p51 = por %p49, %p50
      %p53 = scmp.ne.s32.totalorder %s36, %s52
      %p54 = scmp.eq.s32.totalorder %s28, 0
      %p55 = por %p53, %p54
      %s57 = sadd.s32 %s56, 1
      %p60 = scmp.eq.s32.totalorder %s22, 3
      %p61 = scmp.ne.s32.totalorder %s56, %s58
      %p62 = scmp.eq.s32.totalorder %s22, 0
      %p63 = por %p61, %p62
      %p64 = scmp.ne.s32.totalorder %s56, %s58
      %p65 = scmp.eq.s32.totalorder %s27, 3
      %p66 = por %p64, %p65
      %p67 = scmp.ne.s32.totalorder %s58, %s59
      %p68 = scmp.eq.s32.totalorder %s27, 0
      %p69 = por %p67, %p68
      %p70 = scmp.ne.s32.totalorder %s58, %s59
      %p71 = scmp.eq.s32.totalorder %s28, 3
      %p72 = por %p70, %p71
      %p74 = scmp.ne.s32.totalorder %s59, %s73
      %p75 = scmp.eq.s32.totalorder %s28, 0
      %p76 = por %p74, %p75
      %s78 = sadd.s32 %s77, 1
      %p81 = scmp.eq.s32.totalorder %s22, 3
      %p82 = scmp.ne.s32.totalorder %s77, %s79
      %p83 = scmp.eq.s32.totalorder %s22, 0
      %p84 = por %p82, %p83
      %p85 = scmp.ne.s32.totalorder %s77, %s79
      %p86 = scmp.eq.s32.totalorder %s27, 3
      %p87 = por %p85, %p86
      %p88 = scmp.ne.s32.totalorder %s79, %s80
      %p89 = scmp.eq.s32.totalorder %s27, 0
      %p90 = por %p88, %p89
      %p91 = scmp.ne.s32.totalorder %s79, %s80
      %p92 = scmp.eq.s32.totalorder %s28, 3
      %p93 = por %p91, %p92
      %p95 = scmp.ne.s32.totalorder %s80, %s94
      %p96 = scmp.eq.s32.totalorder %s28, 0
      %p97 = por %p95, %p96
      %s99 = sadd.s32 %s98, 1
      %p102 = scmp.eq.s32.totalorder %s22, 3
      %p103 = scmp.ne.s32.totalorder %s98, %s100
      %p104 = scmp.eq.s32.totalorder %s22, 0
      %p105 = por %p103, %p104
      %p106 = scmp.ne.s32.totalorder %s98, %s100
      %p107 = scmp.eq.s32.totalorder %s27, 3
      %p108 = por %p106, %p107
      %p109 = scmp.ne.s32.totalorder %s100, %s101
      %p110 = scmp.eq.s32.totalorder %s27, 0
      %p111 = por %p109, %p110
      %p112 = scmp.ne.s32.totalorder %s100, %s101
      %p113 = scmp.eq.s32.totalorder %s28, 3
      %p114 = por %p112, %p113
      %p116 = scmp.ne.s32.totalorder %s101, %s115
      %p117 = scmp.eq.s32.totalorder %s28, 0
      %p118 = por %p116, %p117
      %s120 = sadd.s32 %s119, 1
      %p123 = scmp.eq.s32.totalorder %s22, 3
      %p124 = scmp.ne.s32.totalorder %s119, %s121
      %p125 = scmp.eq.s32.totalorder %s22, 0
      %p126 = por %p124, %p125
      %p127 = scmp.ne.s32.totalorder %s119, %s121
      %p128 = scmp.eq.s32.totalorder %s27, 3
      %p129 = por %p127, %p128
      %p130 = scmp.ne.s32.totalorder %s121, %s122
      %p131 = scmp.eq.s32.totalorder %s27, 0
      %p132 = por %p130, %p131
      %p133 = scmp.ne.s32.totalorder %s121, %s122
      %p134 = scmp.eq.s32.totalorder %s28, 3
      %p135 = por %p133, %p134
      %p137 = scmp.ne.s32.totalorder %s122, %s136
      %p138 = scmp.eq.s32.totalorder %s28, 0
      %p139 = por %p137, %p138
      %s141 = sadd.s32 %s140, 1
      %p144 = scmp.eq.s32.totalorder %s22, 3
      %p145 = scmp.ne.s32.totalorder %s140, %s142
      %p146 = scmp.eq.s32.totalorder %s22, 0
      %p147 = por %p145, %p146
      %p148 = scmp.ne.s32.totalorder %s140, %s142
      %p149 = scmp.eq.s32.totalorder %s27, 3
      %p150 = por %p148, %p149
      %p151 = scmp.ne.s32.totalorder %s142, %s143
      %p152 = scmp.eq.s32.totalorder %s27, 0
      %p153 = por %p151, %p152
      %p154 = scmp.ne.s32.totalorder %s142, %s143
      %p155 = scmp.eq.s32.totalorder %s28, 3
      %p156 = por %p154, %p155
      %p158 = scmp.ne.s32.totalorder %s143, %s157
      %p159 = scmp.eq.s32.totalorder %s28, 0
      %p160 = por %p158, %p159
      %s162 = sadd.s32 %s161, 1
      %p165 = scmp.eq.s32.totalorder %s22, 3
      %p166 = scmp.ne.s32.totalorder %s161, %s163
      %p167 = scmp.eq.s32.totalorder %s22, 0
      %p168 = por %p166, %p167
      %p169 = scmp.ne.s32.totalorder %s161, %s163
      %p170 = scmp.eq.s32.totalorder %s27, 3
      %p171 = por %p169, %p170
      %p172 = scmp.ne.s32.totalorder %s163, %s164
      %p173 = scmp.eq.s32.totalorder %s27, 0
      %p174 = por %p172, %p173
      %p175 = scmp.ne.s32.totalorder %s163, %s164
      %p176 = scmp.eq.s32.totalorder %s28, 3
      %p177 = por %p175, %p176
      %p179 = scmp.ne.s32.totalorder %s164, %s178
      %p180 = scmp.eq.s32.totalorder %s28, 0
      %p181 = por %p179, %p180
      %s182 = ssub.s32 %s22, %s29
      %p183 = scmp.eq.s32.totalorder %s182, 0
      %s185 = sadd.s32 %s184, 1
      %s186 = scalar_select %p183, %s184, %s185
      %p189 = pneg %p183
      %p190 = scmp.eq.s32.totalorder %s22, 3
      %p191 = por %p189, %p190
      %p192 = scmp.ne.s32.totalorder %s184, %s187
      %p193 = scmp.eq.s32.totalorder %s22, 0
      %p194 = por %p192, %p193
      %p195 = scmp.ne.s32.totalorder %s184, %s187
      %p196 = scmp.eq.s32.totalorder %s27, 3
      %p197 = por %p195, %p196
      %p198 = scmp.ne.s32.totalorder %s187, %s188
      %p199 = scmp.eq.s32.totalorder %s27, 0
      %p200 = por %p198, %p199
      %p201 = scmp.ne.s32.totalorder %s187, %s188
      %p202 = scmp.eq.s32.totalorder %s28, 3
      %p203 = por %p201, %p202
      %p205 = scmp.ne.s32.totalorder %s188, %s204
      %p206 = scmp.eq.s32.totalorder %s28, 0
      %p207 = por %p205, %p206
      %p208 = scmp.le.s32.totalorder 1, %s22
      %p209 = scmp.lt.s32.totalorder %s22, 5
      %p210 = pnand %p208, %p209
      %p211 = pneg %p210
      // Predicated region
      $region9: #{tpu_custom_call.1} parent=5 // pred_check
        _
      $region10: #{tpu_custom_call.1} parent=5 // pred_check_branch
        %213 = sbr.rel (%p210) target = $region12
      $region11: #{tpu_custom_call.1} parent=5 // pred_region
        %s214 = ssub.s32 %s22, 1
        // Predicated region
        $region13: #{tpu_custom_call.1} parent=11 // pred_check
          %p215 = pneg %p69
        $region14: #{tpu_custom_call.1} parent=11 // pred_check_branch
          %217 = sbr.rel (%p215) target = $region16
        $region15: #{tpu_custom_call.1} parent=11 // pred_region
          %219 = vsyncadd [#allocation6], 0
          %s220 = sshll.u32 %s1, 4
          %s221 = int_to_ptr.hbm [resolvable:$true] %s220
          %s222 = sshll.u32 [#allocation5], 4
          %s223 = int_to_ptr.vmem [resolvable:$true] %s222
          %228 = dma.hbm_to_vmem [thread:$0]  %s221, 4096, %s223, [#allocation6], 64, 64, 4
        $region16: #{tpu_custom_call.1} parent=11 // pred_fallthru
          _
        // Predicated region
        $region17: #{tpu_custom_call.1} parent=11 // pred_check
          %p229 = pneg %p90
        $region18: #{tpu_custom_call.1} parent=11 // pred_check_branch
          %231 = sbr.rel (%p229) target = $region20
        $region19: #{tpu_custom_call.1} parent=11 // pred_region
          %233 = vsyncadd [#allocation6], 0
          %s235 = sshll.u32 %s2, 4
          %s236 = int_to_ptr.hbm [resolvable:$true] %s235
          %s237 = sshll.u32 [#allocation7], 4
          %s238 = int_to_ptr.vmem [resolvable:$true] %s237
          %240 = dma.hbm_to_vmem [thread:$0]  %s236, 16, %s238, [#allocation6]
        $region20: #{tpu_custom_call.1} parent=11 // pred_fallthru
          _
        // Predicated region
        $region21: #{tpu_custom_call.1} parent=11 // pred_check
          %p241 = pneg %p111
        $region22: #{tpu_custom_call.1} parent=11 // pred_check_branch
          %243 = sbr.rel (%p241) target = $region24
        $region23: #{tpu_custom_call.1} parent=11 // pred_region
          %245 = vsyncadd [#allocation9], 0
          %s246 = sshll.u32 %s3, 4
          %s247 = int_to_ptr.hbm [resolvable:$true] %s246
          %s248 = sshll.u32 [#allocation8], 4
          %s249 = int_to_ptr.vmem [resolvable:$true] %s248
          %254 = dma.hbm_to_vmem [thread:$0]  %s247, 9216, %s249, [#allocation9], 64, 64, 4
        $region24: #{tpu_custom_call.1} parent=11 // pred_fallthru
          _
        // Predicated region
        $region25: #{tpu_custom_call.1} parent=11 // pred_check
          %p255 = pneg %p132
        $region26: #{tpu_custom_call.1} parent=11 // pred_check_branch
          %257 = sbr.rel (%p255) target = $region28
        $region27: #{tpu_custom_call.1} parent=11 // pred_region
          %259 = vsyncadd [#allocation9], 0
          %s261 = sshll.u32 %s4, 4
          %s262 = int_to_ptr.hbm [resolvable:$true] %s261
          %s263 = sshll.u32 [#allocation10], 4
          %s264 = int_to_ptr.vmem [resolvable:$true] %s263
          %266 = dma.hbm_to_vmem [thread:$0]  %s262, 16, %s264, [#allocation9]
        $region28: #{tpu_custom_call.1} parent=11 // pred_fallthru
          _
        // Predicated region
        $region29: #{tpu_custom_call.1} parent=11 // pred_check
          %p267 = pneg %p153
        $region30: #{tpu_custom_call.1} parent=11 // pred_check_branch
          %269 = sbr.rel (%p267) target = $region32
        $region31: #{tpu_custom_call.1} parent=11 // pred_region
          %271 = vsyncadd [#allocation12], 0
          %s272 = sshll.u32 %s5, 4
          %s273 = int_to_ptr.hbm [resolvable:$true] %s272
          %s274 = sshll.u32 [#allocation11], 4
          %s275 = int_to_ptr.vmem [resolvable:$true] %s274
          %280 = dma.hbm_to_vmem [thread:$0]  %s273, 4096, %s275, [#allocation12], 256, 256, 16
        $region32: #{tpu_custom_call.1} parent=11 // pred_fallthru
          _
        // Predicated region
        $region33: #{tpu_custom_call.1} parent=11 // pred_check
          %p281 = pneg %p174
        $region34: #{tpu_custom_call.1} parent=11 // pred_check_branch
          %283 = sbr.rel (%p281) target = $region36
        $region35: #{tpu_custom_call.1} parent=11 // pred_region
          %285 = vsyncadd [#allocation12], 0
          %s287 = sshll.u32 %s6, 4
          %s288 = int_to_ptr.hbm [resolvable:$true] %s287
          %s289 = sshll.u32 [#allocation13], 4
          %s290 = int_to_ptr.vmem [resolvable:$true] %s289
          %292 = dma.hbm_to_vmem [thread:$0]  %s288, 64, %s290, [#allocation12]
        $region36: #{tpu_custom_call.1} parent=11 // pred_fallthru
          _
      $region12: #{tpu_custom_call.1} parent=5 // pred_fallthru
        _
      %p293 = scmp.lt.s32.totalorder %s22, 4
      // Predicated region
      $region37: #{tpu_custom_call.1} parent=5 // pred_check
        %p294 = pneg %p293
      $region38: #{tpu_custom_call.1} parent=5 // pred_check_branch
        %296 = sbr.rel (%p294) target = $region40
      $region39: #{tpu_custom_call.1} parent=5 // pred_region
        // Predicated region
        $region41: #{tpu_custom_call.1} parent=39 // pred_check
          %p297 = pneg %p42
        $region42: #{tpu_custom_call.1} parent=39 // pred_check_branch
          %299 = sbr.rel (%p297) target = $region44
        $region43: #{tpu_custom_call.1} parent=39 // pred_region
          %s300 = sand.u32 %s32, 1
          %s301 = scalar_lea.sflag [#allocation3], %s300
          %s302 = sand.u32 %s32, 1
          %s303 = smul.addr %s302, 1024
          %s304 = scalar_lea.vmem [#allocation2], %s303
          %s305 = smul.u32 2, %s22
          %307 = vsyncadd %s301, 0
          %s308 = smul.addr %s305, 128
          %s309 = smul.addr %s308, 4
          %s310 = scalar_lea.hbm %s0, %s309
          %s311 = sshll.u32 %s310, 4
          %s312 = int_to_ptr.hbm [resolvable:$true] %s311
          %s313 = sshll.u32 %s304, 4
          %s314 = int_to_ptr.vmem [resolvable:$true] %s313
          %319 = dma.hbm_to_vmem [thread:$0]  %s312, 16384, %s314, %s301, 256, 256, 16
        $region44: #{tpu_custom_call.1} parent=39 // pred_fallthru
          _
      $region40: #{tpu_custom_call.1} parent=5 // pred_fallthru
        _
      %p320 = scmp.le.s32.totalorder 1, %s22
      %p321 = scmp.lt.s32.totalorder %s22, 5
      %p322 = pnand %p320, %p321
      %p323 = pneg %p322
      // Predicated region
      $region45: #{tpu_custom_call.1} parent=5 // pred_check
        _
      $region46: #{tpu_custom_call.1} parent=5 // pred_check_branch
        %325 = sbr.rel (%p322) target = $region48
      $region47: #{tpu_custom_call.1} parent=5 // pred_region
        %s326 = ssub.s32 %s22, 1
        %s327 = sand.u32 %s35, 1
        %s328 = scalar_lea.sflag [#allocation3], %s327
        %s329 = sand.u32 %s35, 1
        %s330 = smul.addr %s329, 1024
        %s331 = scalar_lea.vmem [#allocation2], %s330
        // Predicated region
        $region49: #{tpu_custom_call.1} parent=47 // pred_check
          %p332 = pneg %p48
        $region50: #{tpu_custom_call.1} parent=47 // pred_check_branch
          %334 = sbr.rel (%p332) target = $region52
        $region51: #{tpu_custom_call.1} parent=47 // pred_region
          %336 = dma.done %s328, 16384
        $region52: #{tpu_custom_call.1} parent=47 // pred_fallthru
          _
        // Predicated region
        $region53: #{tpu_custom_call.1} parent=47 // pred_check
          %p337 = pneg %p69
        $region54: #{tpu_custom_call.1} parent=47 // pred_check_branch
          %339 = sbr.rel (%p337) target = $region56
        $region55: #{tpu_custom_call.1} parent=47 // pred_region
          %341 = dma.done [#allocation6], 4096
        $region56: #{tpu_custom_call.1} parent=47 // pred_fallthru
          _
        // Predicated region
        $region57: #{tpu_custom_call.1} parent=47 // pred_check
          %p342 = pneg %p90
        $region58: #{tpu_custom_call.1} parent=47 // pred_check_branch
          %344 = sbr.rel (%p342) target = $region60
        $region59: #{tpu_custom_call.1} parent=47 // pred_region
          %346 = dma.done [#allocation6], 16
        $region60: #{tpu_custom_call.1} parent=47 // pred_fallthru
          _
        // Predicated region
        $region61: #{tpu_custom_call.1} parent=47 // pred_check
          %p347 = pneg %p111
        $region62: #{tpu_custom_call.1} parent=47 // pred_check_branch
          %349 = sbr.rel (%p347) target = $region64
        $region63: #{tpu_custom_call.1} parent=47 // pred_region
          %351 = dma.done [#allocation9], 9216
        $region64: #{tpu_custom_call.1} parent=47 // pred_fallthru
          _
        // Predicated region
        $region65: #{tpu_custom_call.1} parent=47 // pred_check
          %p352 = pneg %p132
        $region66: #{tpu_custom_call.1} parent=47 // pred_check_branch
          %354 = sbr.rel (%p352) target = $region68
        $region67: #{tpu_custom_call.1} parent=47 // pred_region
          %356 = dma.done [#allocation9], 16
        $region68: #{tpu_custom_call.1} parent=47 // pred_fallthru
          _
        // Predicated region
        $region69: #{tpu_custom_call.1} parent=47 // pred_check
          %p357 = pneg %p153
        $region70: #{tpu_custom_call.1} parent=47 // pred_check_branch
          %359 = sbr.rel (%p357) target = $region72
        $region71: #{tpu_custom_call.1} parent=47 // pred_region
          %361 = dma.done [#allocation12], 4096
        $region72: #{tpu_custom_call.1} parent=47 // pred_fallthru
          _
        // Predicated region
        $region73: #{tpu_custom_call.1} parent=47 // pred_check
          %p362 = pneg %p174
        $region74: #{tpu_custom_call.1} parent=47 // pred_check_branch
          %364 = sbr.rel (%p362) target = $region76
        $region75: #{tpu_custom_call.1} parent=47 // pred_region
          %366 = dma.done [#allocation12], 64
        $region76: #{tpu_custom_call.1} parent=47 // pred_fallthru
          _
        %s367 = sand.u32 %s35, 1
        %s368 = scalar_lea.sflag [#allocation3], %s367
        %s369 = sand.u32 %s35, 1
        %s370 = smul.addr %s369, 1024
        %s371 = scalar_lea.vmem [#allocation2], %s370
        %p372 = pneg %p48
        %p373 = pneg %p45
        %p374 = pneg %p69
        %p375 = pneg %p66
        %p376 = pneg %p90
        %p377 = pneg %p87
        %p378 = pneg %p111
        %p379 = pneg %p108
        %p380 = pneg %p132
        %p381 = pneg %p129
        %p382 = pneg %p153
        %p383 = pneg %p150
        %p384 = pneg %p174
        %p385 = pneg %p171
        %p386 = pneg %p200
        %p387 = pneg %p197
        %s388 = sand.u32 %s187, 1
        %s389 = scalar_lea.sflag [#allocation4], %s388
        %s390 = sand.u32 %s187, 1
        %s391 = smul.addr %s390, 1024
        %s392 = scalar_lea.vmem [#allocation14], %s391
        %s393 = smul.u32 2, %s27
        %s394 = smul.u32 2, %s27
        %v396 = vld [vmem:[%s331] sm:$0xff]
        %v397 = vld [vmem:[%s331 + $0x8] sm:$0xff]
        %v398 = vld [vmem:[%s331 + $0x10] sm:$0xff]
        %v399 = vld [vmem:[%s331 + $0x18] sm:$0xff]
        %v400 = vld [vmem:[%s331 + $0x20] sm:$0xff]
        %v401 = vld [vmem:[%s331 + $0x28] sm:$0xff]
        %v402 = vld [vmem:[%s331 + $0x30] sm:$0xff]
        %v403 = vld [vmem:[%s331 + $0x38] sm:$0xff]
        %v404 = vld [vmem:[%s331 + $0x40] sm:$0xff]
        %v405 = vld [vmem:[%s331 + $0x48] sm:$0xff]
        %v406 = vld [vmem:[%s331 + $0x50] sm:$0xff]
        %v407 = vld [vmem:[%s331 + $0x58] sm:$0xff]
        %v408 = vld [vmem:[%s331 + $0x60] sm:$0xff]
        %v409 = vld [vmem:[%s331 + $0x68] sm:$0xff]
        %v410 = vld [vmem:[%s331 + $0x70] sm:$0xff]
        %v411 = vld [vmem:[%s331 + $0x78] sm:$0xff]
        %v412 = vld [vmem:[%s331 + $0x80] sm:$0xff]
        %v413 = vld [vmem:[%s331 + $0x88] sm:$0xff]
        %v414 = vld [vmem:[%s331 + $0x90] sm:$0xff]
        %v415 = vld [vmem:[%s331 + $0x98] sm:$0xff]
        %v416 = vld [vmem:[%s331 + $0xa0] sm:$0xff]
        %v417 = vld [vmem:[%s331 + $0xa8] sm:$0xff]
        %v418 = vld [vmem:[%s331 + $0xb0] sm:$0xff]
        %v419 = vld [vmem:[%s331 + $0xb8] sm:$0xff]
        %v420 = vld [vmem:[%s331 + $0xc0] sm:$0xff]
        %v421 = vld [vmem:[%s331 + $0xc8] sm:$0xff]
        %v422 = vld [vmem:[%s331 + $0xd0] sm:$0xff]
        %v423 = vld [vmem:[%s331 + $0xd8] sm:$0xff]
        %v424 = vld [vmem:[%s331 + $0xe0] sm:$0xff]
        %v425 = vld [vmem:[%s331 + $0xe8] sm:$0xff]
        %v426 = vld [vmem:[%s331 + $0xf0] sm:$0xff]
        %v427 = vld [vmem:[%s331 + $0xf8] sm:$0xff]
        %v428 = vld [vmem:[%s331 + $0x100] sm:$0xff]
        %v429 = vld [vmem:[%s331 + $0x108] sm:$0xff]
        %v430 = vld [vmem:[%s331 + $0x110] sm:$0xff]
        %v431 = vld [vmem:[%s331 + $0x118] sm:$0xff]
        %v432 = vld [vmem:[%s331 + $0x120] sm:$0xff]
        %v433 = vld [vmem:[%s331 + $0x128] sm:$0xff]
        %v434 = vld [vmem:[%s331 + $0x130] sm:$0xff]
        %v435 = vld [vmem:[%s331 + $0x138] sm:$0xff]
        %v436 = vld [vmem:[%s331 + $0x140] sm:$0xff]
        %v437 = vld [vmem:[%s331 + $0x148] sm:$0xff]
        %v438 = vld [vmem:[%s331 + $0x150] sm:$0xff]
        %v439 = vld [vmem:[%s331 + $0x158] sm:$0xff]
        %v440 = vld [vmem:[%s331 + $0x160] sm:$0xff]
        %v441 = vld [vmem:[%s331 + $0x168] sm:$0xff]
        %v442 = vld [vmem:[%s331 + $0x170] sm:$0xff]
        %v443 = vld [vmem:[%s331 + $0x178] sm:$0xff]
        %v444 = vld [vmem:[%s331 + $0x180] sm:$0xff]
        %v445 = vld [vmem:[%s331 + $0x188] sm:$0xff]
        %v446 = vld [vmem:[%s331 + $0x190] sm:$0xff]
        %v447 = vld [vmem:[%s331 + $0x198] sm:$0xff]
        %v448 = vld [vmem:[%s331 + $0x1a0] sm:$0xff]
        %v449 = vld [vmem:[%s331 + $0x1a8] sm:$0xff]
        %v450 = vld [vmem:[%s331 + $0x1b0] sm:$0xff]
        %v451 = vld [vmem:[%s331 + $0x1b8] sm:$0xff]
        %v452 = vld [vmem:[%s331 + $0x1c0] sm:$0xff]
        %v453 = vld [vmem:[%s331 + $0x1c8] sm:$0xff]
        %v454 = vld [vmem:[%s331 + $0x1d0] sm:$0xff]
        %v455 = vld [vmem:[%s331 + $0x1d8] sm:$0xff]
        %v456 = vld [vmem:[%s331 + $0x1e0] sm:$0xff]
        %v457 = vld [vmem:[%s331 + $0x1e8] sm:$0xff]
        %v458 = vld [vmem:[%s331 + $0x1f0] sm:$0xff]
        %v459 = vld [vmem:[%s331 + $0x1f8] sm:$0xff]
        %v460 = vld [vmem:[%s331 + $0x200] sm:$0xff]
        %v461 = vld [vmem:[%s331 + $0x208] sm:$0xff]
        %v462 = vld [vmem:[%s331 + $0x210] sm:$0xff]
        %v463 = vld [vmem:[%s331 + $0x218] sm:$0xff]
        %v464 = vld [vmem:[%s331 + $0x220] sm:$0xff]
        %v465 = vld [vmem:[%s331 + $0x228] sm:$0xff]
        %v466 = vld [vmem:[%s331 + $0x230] sm:$0xff]
        %v467 = vld [vmem:[%s331 + $0x238] sm:$0xff]
        %v468 = vld [vmem:[%s331 + $0x240] sm:$0xff]
        %v469 = vld [vmem:[%s331 + $0x248] sm:$0xff]
        %v470 = vld [vmem:[%s331 + $0x250] sm:$0xff]
        %v471 = vld [vmem:[%s331 + $0x258] sm:$0xff]
        %v472 = vld [vmem:[%s331 + $0x260] sm:$0xff]
        %v473 = vld [vmem:[%s331 + $0x268] sm:$0xff]
        %v474 = vld [vmem:[%s331 + $0x270] sm:$0xff]
        %v475 = vld [vmem:[%s331 + $0x278] sm:$0xff]
        %v476 = vld [vmem:[%s331 + $0x280] sm:$0xff]
        %v477 = vld [vmem:[%s331 + $0x288] sm:$0xff]
        %v478 = vld [vmem:[%s331 + $0x290] sm:$0xff]
        %v479 = vld [vmem:[%s331 + $0x298] sm:$0xff]
        %v480 = vld [vmem:[%s331 + $0x2a0] sm:$0xff]
        %v481 = vld [vmem:[%s331 + $0x2a8] sm:$0xff]
        %v482 = vld [vmem:[%s331 + $0x2b0] sm:$0xff]
        %v483 = vld [vmem:[%s331 + $0x2b8] sm:$0xff]
        %v484 = vld [vmem:[%s331 + $0x2c0] sm:$0xff]
        %v485 = vld [vmem:[%s331 + $0x2c8] sm:$0xff]
        %v486 = vld [vmem:[%s331 + $0x2d0] sm:$0xff]
        %v487 = vld [vmem:[%s331 + $0x2d8] sm:$0xff]
        %v488 = vld [vmem:[%s331 + $0x2e0] sm:$0xff]
        %v489 = vld [vmem:[%s331 + $0x2e8] sm:$0xff]
        %v490 = vld [vmem:[%s331 + $0x2f0] sm:$0xff]
        %v491 = vld [vmem:[%s331 + $0x2f8] sm:$0xff]
        %v492 = vld [vmem:[%s331 + $0x300] sm:$0xff]
        %v493 = vld [vmem:[%s331 + $0x308] sm:$0xff]
        %v494 = vld [vmem:[%s331 + $0x310] sm:$0xff]
        %v495 = vld [vmem:[%s331 + $0x318] sm:$0xff]
        %v496 = vld [vmem:[%s331 + $0x320] sm:$0xff]
        %v497 = vld [vmem:[%s331 + $0x328] sm:$0xff]
        %v498 = vld [vmem:[%s331 + $0x330] sm:$0xff]
        %v499 = vld [vmem:[%s331 + $0x338] sm:$0xff]
        %v500 = vld [vmem:[%s331 + $0x340] sm:$0xff]
        %v501 = vld [vmem:[%s331 + $0x348] sm:$0xff]
        %v502 = vld [vmem:[%s331 + $0x350] sm:$0xff]
        %v503 = vld [vmem:[%s331 + $0x358] sm:$0xff]
        %v504 = vld [vmem:[%s331 + $0x360] sm:$0xff]
        %v505 = vld [vmem:[%s331 + $0x368] sm:$0xff]
        %v506 = vld [vmem:[%s331 + $0x370] sm:$0xff]
        %v507 = vld [vmem:[%s331 + $0x378] sm:$0xff]
        %v508 = vld [vmem:[%s331 + $0x380] sm:$0xff]
        %v509 = vld [vmem:[%s331 + $0x388] sm:$0xff]
        %v510 = vld [vmem:[%s331 + $0x390] sm:$0xff]
        %v511 = vld [vmem:[%s331 + $0x398] sm:$0xff]
        %v512 = vld [vmem:[%s331 + $0x3a0] sm:$0xff]
        %v513 = vld [vmem:[%s331 + $0x3a8] sm:$0xff]
        %v514 = vld [vmem:[%s331 + $0x3b0] sm:$0xff]
        %v515 = vld [vmem:[%s331 + $0x3b8] sm:$0xff]
        %v516 = vld [vmem:[%s331 + $0x3c0] sm:$0xff]
        %v517 = vld [vmem:[%s331 + $0x3c8] sm:$0xff]
        %v518 = vld [vmem:[%s331 + $0x3d0] sm:$0xff]
        %v519 = vld [vmem:[%s331 + $0x3d8] sm:$0xff]
        %v520 = vld [vmem:[%s331 + $0x3e0] sm:$0xff]
        %v521 = vld [vmem:[%s331 + $0x3e8] sm:$0xff]
        %v522 = vld [vmem:[%s331 + $0x3f0] sm:$0xff]
        %v523 = vld [vmem:[%s331 + $0x3f8] sm:$0xff]
        %v524 = vld [vmem:[#allocation5] sm:$0xf]
        %v525 = vld [vmem:[#allocation5 + $0x4] sm:$0xf]
        %v526 = vld [vmem:[#allocation5 + $0x8] sm:$0xf]
        %v527 = vld [vmem:[#allocation5 + $0xc] sm:$0xf]
        %v528 = vld [vmem:[#allocation5 + $0x10] sm:$0xf]
        %v529 = vld [vmem:[#allocation5 + $0x14] sm:$0xf]
        %v530 = vld [vmem:[#allocation5 + $0x18] sm:$0xf]
        %v531 = vld [vmem:[#allocation5 + $0x1c] sm:$0xf]
        %v532 = vld [vmem:[#allocation5 + $0x20] sm:$0xf]
        %v533 = vld [vmem:[#allocation5 + $0x24] sm:$0xf]
        %v534 = vld [vmem:[#allocation5 + $0x28] sm:$0xf]
        %v535 = vld [vmem:[#allocation5 + $0x2c] sm:$0xf]
        %v536 = vld [vmem:[#allocation5 + $0x30] sm:$0xf]
        %v537 = vld [vmem:[#allocation5 + $0x34] sm:$0xf]
        %v538 = vld [vmem:[#allocation5 + $0x38] sm:$0xf]
        %v539 = vld [vmem:[#allocation5 + $0x3c] sm:$0xf]
        %v540 = vld [vmem:[#allocation5 + $0x40] sm:$0xf]
        %v541 = vld [vmem:[#allocation5 + $0x44] sm:$0xf]
        %v542 = vld [vmem:[#allocation5 + $0x48] sm:$0xf]
        %v543 = vld [vmem:[#allocation5 + $0x4c] sm:$0xf]
        %v544 = vld [vmem:[#allocation5 + $0x50] sm:$0xf]
        %v545 = vld [vmem:[#allocation5 + $0x54] sm:$0xf]
        %v546 = vld [vmem:[#allocation5 + $0x58] sm:$0xf]
        %v547 = vld [vmem:[#allocation5 + $0x5c] sm:$0xf]
        %v548 = vld [vmem:[#allocation5 + $0x60] sm:$0xf]
        %v549 = vld [vmem:[#allocation5 + $0x64] sm:$0xf]
        %v550 = vld [vmem:[#allocation5 + $0x68] sm:$0xf]
        %v551 = vld [vmem:[#allocation5 + $0x6c] sm:$0xf]
        %v552 = vld [vmem:[#allocation5 + $0x70] sm:$0xf]
        %v553 = vld [vmem:[#allocation5 + $0x74] sm:$0xf]
        %v554 = vld [vmem:[#allocation5 + $0x78] sm:$0xf]
        %v555 = vld [vmem:[#allocation5 + $0x7c] sm:$0xf]
        %v556 = vld [vmem:[#allocation5 + $0x80] sm:$0xf]
        %v557 = vld [vmem:[#allocation5 + $0x84] sm:$0xf]
        %v558 = vld [vmem:[#allocation5 + $0x88] sm:$0xf]
        %v559 = vld [vmem:[#allocation5 + $0x8c] sm:$0xf]
        %v560 = vld [vmem:[#allocation5 + $0x90] sm:$0xf]
        %v561 = vld [vmem:[#allocation5 + $0x94] sm:$0xf]
        %v562 = vld [vmem:[#allocation5 + $0x98] sm:$0xf]
        %v563 = vld [vmem:[#allocation5 + $0x9c] sm:$0xf]
        %v564 = vld [vmem:[#allocation5 + $0xa0] sm:$0xf]
        %v565 = vld [vmem:[#allocation5 + $0xa4] sm:$0xf]
        %v566 = vld [vmem:[#allocation5 + $0xa8] sm:$0xf]
        %v567 = vld [vmem:[#allocation5 + $0xac] sm:$0xf]
        %v568 = vld [vmem:[#allocation5 + $0xb0] sm:$0xf]
        %v569 = vld [vmem:[#allocation5 + $0xb4] sm:$0xf]
        %v570 = vld [vmem:[#allocation5 + $0xb8] sm:$0xf]
        %v571 = vld [vmem:[#allocation5 + $0xbc] sm:$0xf]
        %v572 = vld [vmem:[#allocation5 + $0xc0] sm:$0xf]
        %v573 = vld [vmem:[#allocation5 + $0xc4] sm:$0xf]
        %v574 = vld [vmem:[#allocation5 + $0xc8] sm:$0xf]
        %v575 = vld [vmem:[#allocation5 + $0xcc] sm:$0xf]
        %v576 = vld [vmem:[#allocation5 + $0xd0] sm:$0xf]
        %v577 = vld [vmem:[#allocation5 + $0xd4] sm:$0xf]
        %v578 = vld [vmem:[#allocation5 + $0xd8] sm:$0xf]
        %v579 = vld [vmem:[#allocation5 + $0xdc] sm:$0xf]
        %v580 = vld [vmem:[#allocation5 + $0xe0] sm:$0xf]
        %v581 = vld [vmem:[#allocation5 + $0xe4] sm:$0xf]
        %v582 = vld [vmem:[#allocation5 + $0xe8] sm:$0xf]
        %v583 = vld [vmem:[#allocation5 + $0xec] sm:$0xf]
        %v584 = vld [vmem:[#allocation5 + $0xf0] sm:$0xf]
        %v585 = vld [vmem:[#allocation5 + $0xf4] sm:$0xf]
        %v586 = vld [vmem:[#allocation5 + $0xf8] sm:$0xf]
        %v587 = vld [vmem:[#allocation5 + $0xfc] sm:$0xf]
        %v588 = vld [vmem:[#allocation7] sm:$0x1]
        %v590 = vperm.slane %v588, 0
        %v720 = vunpack.c.l.b16 %v396
        %v721 = vunpack.c.h.b16 %v396
        %v722 = vunpack.c.l.b16 %v397
        %v723 = vunpack.c.h.b16 %v397
        %v724 = vunpack.c.l.b16 %v398
        %v725 = vunpack.c.h.b16 %v398
        %v726 = vunpack.c.l.b16 %v399
        %v727 = vunpack.c.h.b16 %v399
        %v728 = vunpack.c.l.b16 %v400
        %v729 = vunpack.c.h.b16 %v400
        %v730 = vunpack.c.l.b16 %v401
        %v731 = vunpack.c.h.b16 %v401
        %v732 = vunpack.c.l.b16 %v402
        %v733 = vunpack.c.h.b16 %v402
        %v734 = vunpack.c.l.b16 %v403
        %v735 = vunpack.c.h.b16 %v403
        %v736 = vunpack.c.l.b16 %v404
        %v737 = vunpack.c.h.b16 %v404
        %v738 = vunpack.c.l.b16 %v405
        %v739 = vunpack.c.h.b16 %v405
        %v740 = vunpack.c.l.b16 %v406
        %v741 = vunpack.c.h.b16 %v406
        %v742 = vunpack.c.l.b16 %v407
        %v743 = vunpack.c.h.b16 %v407
        %v744 = vunpack.c.l.b16 %v408
        %v745 = vunpack.c.h.b16 %v408
        %v746 = vunpack.c.l.b16 %v409
        %v747 = vunpack.c.h.b16 %v409
        %v748 = vunpack.c.l.b16 %v410
        %v749 = vunpack.c.h.b16 %v410
        %v750 = vunpack.c.l.b16 %v411
        %v751 = vunpack.c.h.b16 %v411
        %v752 = vunpack.c.l.b16 %v412
        %v753 = vunpack.c.h.b16 %v412
        %v754 = vunpack.c.l.b16 %v413
        %v755 = vunpack.c.h.b16 %v413
        %v756 = vunpack.c.l.b16 %v414
        %v757 = vunpack.c.h.b16 %v414
        %v758 = vunpack.c.l.b16 %v415
        %v759 = vunpack.c.h.b16 %v415
        %v760 = vunpack.c.l.b16 %v416
        %v761 = vunpack.c.h.b16 %v416
        %v762 = vunpack.c.l.b16 %v417
        %v763 = vunpack.c.h.b16 %v417
        %v764 = vunpack.c.l.b16 %v418
        %v765 = vunpack.c.h.b16 %v418
        %v766 = vunpack.c.l.b16 %v419
        %v767 = vunpack.c.h.b16 %v419
        %v768 = vunpack.c.l.b16 %v420
        %v769 = vunpack.c.h.b16 %v420
        %v770 = vunpack.c.l.b16 %v421
        %v771 = vunpack.c.h.b16 %v421
        %v772 = vunpack.c.l.b16 %v422
        %v773 = vunpack.c.h.b16 %v422
        %v774 = vunpack.c.l.b16 %v423
        %v775 = vunpack.c.h.b16 %v423
        %v776 = vunpack.c.l.b16 %v424
        %v777 = vunpack.c.h.b16 %v424
        %v778 = vunpack.c.l.b16 %v425
        %v779 = vunpack.c.h.b16 %v425
        %v780 = vunpack.c.l.b16 %v426
        %v781 = vunpack.c.h.b16 %v426
        %v782 = vunpack.c.l.b16 %v427
        %v783 = vunpack.c.h.b16 %v427
        %v784 = vunpack.c.l.b16 %v428
        %v785 = vunpack.c.h.b16 %v428
        %v786 = vunpack.c.l.b16 %v429
        %v787 = vunpack.c.h.b16 %v429
        %v788 = vunpack.c.l.b16 %v430
        %v789 = vunpack.c.h.b16 %v430
        %v790 = vunpack.c.l.b16 %v431
        %v791 = vunpack.c.h.b16 %v431
        %v792 = vunpack.c.l.b16 %v432
        %v793 = vunpack.c.h.b16 %v432
        %v794 = vunpack.c.l.b16 %v433
        %v795 = vunpack.c.h.b16 %v433
        %v796 = vunpack.c.l.b16 %v434
        %v797 = vunpack.c.h.b16 %v434
        %v798 = vunpack.c.l.b16 %v435
        %v799 = vunpack.c.h.b16 %v435
        %v800 = vunpack.c.l.b16 %v436
        %v801 = vunpack.c.h.b16 %v436
        %v802 = vunpack.c.l.b16 %v437
        %v803 = vunpack.c.h.b16 %v437
        %v804 = vunpack.c.l.b16 %v438
        %v805 = vunpack.c.h.b16 %v438
        %v806 = vunpack.c.l.b16 %v439
        %v807 = vunpack.c.h.b16 %v439
        %v808 = vunpack.c.l.b16 %v440
        %v809 = vunpack.c.h.b16 %v440
        %v810 = vunpack.c.l.b16 %v441
        %v811 = vunpack.c.h.b16 %v441
        %v812 = vunpack.c.l.b16 %v442
        %v813 = vunpack.c.h.b16 %v442
        %v814 = vunpack.c.l.b16 %v443
        %v815 = vunpack.c.h.b16 %v443
        %v816 = vunpack.c.l.b16 %v444
        %v817 = vunpack.c.h.b16 %v444
        %v818 = vunpack.c.l.b16 %v445
        %v819 = vunpack.c.h.b16 %v445
        %v820 = vunpack.c.l.b16 %v446
        %v821 = vunpack.c.h.b16 %v446
        %v822 = vunpack.c.l.b16 %v447
        %v823 = vunpack.c.h.b16 %v447
        %v824 = vunpack.c.l.b16 %v448
        %v825 = vunpack.c.h.b16 %v448
        %v826 = vunpack.c.l.b16 %v449
        %v827 = vunpack.c.h.b16 %v449
        %v828 = vunpack.c.l.b16 %v450
        %v829 = vunpack.c.h.b16 %v450
        %v830 = vunpack.c.l.b16 %v451
        %v831 = vunpack.c.h.b16 %v451
        %v832 = vunpack.c.l.b16 %v452
        %v833 = vunpack.c.h.b16 %v452
        %v834 = vunpack.c.l.b16 %v453
        %v835 = vunpack.c.h.b16 %v453
        %v836 = vunpack.c.l.b16 %v454
        %v837 = vunpack.c.h.b16 %v454
        %v838 = vunpack.c.l.b16 %v455
        %v839 = vunpack.c.h.b16 %v455
        %v840 = vunpack.c.l.b16 %v456
        %v841 = vunpack.c.h.b16 %v456
        %v842 = vunpack.c.l.b16 %v457
        %v843 = vunpack.c.h.b16 %v457
        %v844 = vunpack.c.l.b16 %v458
        %v845 = vunpack.c.h.b16 %v458
        %v846 = vunpack.c.l.b16 %v459
        %v847 = vunpack.c.h.b16 %v459
        %v848 = vunpack.c.l.b16 %v460
        %v849 = vunpack.c.h.b16 %v460
        %v850 = vunpack.c.l.b16 %v461
        %v851 = vunpack.c.h.b16 %v461
        %v852 = vunpack.c.l.b16 %v462
        %v853 = vunpack.c.h.b16 %v462
        %v854 = vunpack.c.l.b16 %v463
        %v855 = vunpack.c.h.b16 %v463
        %v856 = vunpack.c.l.b16 %v464
        %v857 = vunpack.c.h.b16 %v464
        %v858 = vunpack.c.l.b16 %v465
        %v859 = vunpack.c.h.b16 %v465
        %v860 = vunpack.c.l.b16 %v466
        %v861 = vunpack.c.h.b16 %v466
        %v862 = vunpack.c.l.b16 %v467
        %v863 = vunpack.c.h.b16 %v467
        %v864 = vunpack.c.l.b16 %v468
        %v865 = vunpack.c.h.b16 %v468
        %v866 = vunpack.c.l.b16 %v469
        %v867 = vunpack.c.h.b16 %v469
        %v868 = vunpack.c.l.b16 %v470
        %v869 = vunpack.c.h.b16 %v470
        %v870 = vunpack.c.l.b16 %v471
        %v871 = vunpack.c.h.b16 %v471
        %v872 = vunpack.c.l.b16 %v472
        %v873 = vunpack.c.h.b16 %v472
        %v874 = vunpack.c.l.b16 %v473
        %v875 = vunpack.c.h.b16 %v473
        %v876 = vunpack.c.l.b16 %v474
        %v877 = vunpack.c.h.b16 %v474
        %v878 = vunpack.c.l.b16 %v475
        %v879 = vunpack.c.h.b16 %v475
        %v880 = vunpack.c.l.b16 %v476
        %v881 = vunpack.c.h.b16 %v476
        %v882 = vunpack.c.l.b16 %v477
        %v883 = vunpack.c.h.b16 %v477
        %v884 = vunpack.c.l.b16 %v478
        %v885 = vunpack.c.h.b16 %v478
        %v886 = vunpack.c.l.b16 %v479
        %v887 = vunpack.c.h.b16 %v479
        %v888 = vunpack.c.l.b16 %v480
        %v889 = vunpack.c.h.b16 %v480
        %v890 = vunpack.c.l.b16 %v481
        %v891 = vunpack.c.h.b16 %v481
        %v892 = vunpack.c.l.b16 %v482
        %v893 = vunpack.c.h.b16 %v482
        %v894 = vunpack.c.l.b16 %v483
        %v895 = vunpack.c.h.b16 %v483
        %v896 = vunpack.c.l.b16 %v484
        %v897 = vunpack.c.h.b16 %v484
        %v898 = vunpack.c.l.b16 %v485
        %v899 = vunpack.c.h.b16 %v485
        %v900 = vunpack.c.l.b16 %v486
        %v901 = vunpack.c.h.b16 %v486
        %v902 = vunpack.c.l.b16 %v487
        %v903 = vunpack.c.h.b16 %v487
        %v904 = vunpack.c.l.b16 %v488
        %v905 = vunpack.c.h.b16 %v488
        %v906 = vunpack.c.l.b16 %v489
        %v907 = vunpack.c.h.b16 %v489
        %v908 = vunpack.c.l.b16 %v490
        %v909 = vunpack.c.h.b16 %v490
        %v910 = vunpack.c.l.b16 %v491
        %v911 = vunpack.c.h.b16 %v491
        %v912 = vunpack.c.l.b16 %v492
        %v913 = vunpack.c.h.b16 %v492
        %v914 = vunpack.c.l.b16 %v493
        %v915 = vunpack.c.h.b16 %v493
        %v916 = vunpack.c.l.b16 %v494
        %v917 = vunpack.c.h.b16 %v494
        %v918 = vunpack.c.l.b16 %v495
        %v919 = vunpack.c.h.b16 %v495
        %v920 = vunpack.c.l.b16 %v496
        %v921 = vunpack.c.h.b16 %v496
        %v922 = vunpack.c.l.b16 %v497
        %v923 = vunpack.c.h.b16 %v497
        %v924 = vunpack.c.l.b16 %v498
        %v925 = vunpack.c.h.b16 %v498
        %v926 = vunpack.c.l.b16 %v499
        %v927 = vunpack.c.h.b16 %v499
        %v928 = vunpack.c.l.b16 %v500
        %v929 = vunpack.c.h.b16 %v500
        %v930 = vunpack.c.l.b16 %v501
        %v931 = vunpack.c.h.b16 %v501
        %v932 = vunpack.c.l.b16 %v502
        %v933 = vunpack.c.h.b16 %v502
        %v934 = vunpack.c.l.b16 %v503
        %v935 = vunpack.c.h.b16 %v503
        %v936 = vunpack.c.l.b16 %v504
        %v937 = vunpack.c.h.b16 %v504
        %v938 = vunpack.c.l.b16 %v505
        %v939 = vunpack.c.h.b16 %v505
        %v940 = vunpack.c.l.b16 %v506
        %v941 = vunpack.c.h.b16 %v506
        %v942 = vunpack.c.l.b16 %v507
        %v943 = vunpack.c.h.b16 %v507
        %v944 = vunpack.c.l.b16 %v508
        %v945 = vunpack.c.h.b16 %v508
        %v946 = vunpack.c.l.b16 %v509
        %v947 = vunpack.c.h.b16 %v509
        %v948 = vunpack.c.l.b16 %v510
        %v949 = vunpack.c.h.b16 %v510
        %v950 = vunpack.c.l.b16 %v511
        %v951 = vunpack.c.h.b16 %v511
        %v952 = vunpack.c.l.b16 %v512
        %v953 = vunpack.c.h.b16 %v512
        %v954 = vunpack.c.l.b16 %v513
        %v955 = vunpack.c.h.b16 %v513
        %v956 = vunpack.c.l.b16 %v514
        %v957 = vunpack.c.h.b16 %v514
        %v958 = vunpack.c.l.b16 %v515
        %v959 = vunpack.c.h.b16 %v515
        %v960 = vunpack.c.l.b16 %v516
        %v961 = vunpack.c.h.b16 %v516
        %v962 = vunpack.c.l.b16 %v517
        %v963 = vunpack.c.h.b16 %v517
        %v964 = vunpack.c.l.b16 %v518
        %v965 = vunpack.c.h.b16 %v518
        %v966 = vunpack.c.l.b16 %v519
        %v967 = vunpack.c.h.b16 %v519
        %v968 = vunpack.c.l.b16 %v520
        %v969 = vunpack.c.h.b16 %v520
        %v970 = vunpack.c.l.b16 %v521
        %v971 = vunpack.c.h.b16 %v521
        %v972 = vunpack.c.l.b16 %v522
        %v973 = vunpack.c.h.b16 %v522
        %v974 = vunpack.c.l.b16 %v523
        %v975 = vunpack.c.h.b16 %v523
        %v976 = vpack.c.b16 %v724, %v720
        %v977 = vpack.c.b16 %v725, %v721
        %v978 = vpack.c.b16 %v726, %v722
        %v979 = vpack.c.b16 %v727, %v723
        %v980 = vpack.c.b16 %v732, %v728
        %v981 = vpack.c.b16 %v733, %v729
        %v982 = vpack.c.b16 %v734, %v730
        %v983 = vpack.c.b16 %v735, %v731
        %v984 = vpack.c.b16 %v740, %v736
        %v985 = vpack.c.b16 %v741, %v737
        %v986 = vpack.c.b16 %v742, %v738
        %v987 = vpack.c.b16 %v743, %v739
        %v988 = vpack.c.b16 %v748, %v744
        %v989 = vpack.c.b16 %v749, %v745
        %v990 = vpack.c.b16 %v750, %v746
        %v991 = vpack.c.b16 %v751, %v747
        %v992 = vpack.c.b16 %v756, %v752
        %v993 = vpack.c.b16 %v757, %v753
        %v994 = vpack.c.b16 %v758, %v754
        %v995 = vpack.c.b16 %v759, %v755
        %v996 = vpack.c.b16 %v764, %v760
        %v997 = vpack.c.b16 %v765, %v761
        %v998 = vpack.c.b16 %v766, %v762
        %v999 = vpack.c.b16 %v767, %v763
        %v1000 = vpack.c.b16 %v772, %v768
        %v1001 = vpack.c.b16 %v773, %v769
        %v1002 = vpack.c.b16 %v774, %v770
        %v1003 = vpack.c.b16 %v775, %v771
        %v1004 = vpack.c.b16 %v780, %v776
        %v1005 = vpack.c.b16 %v781, %v777
        %v1006 = vpack.c.b16 %v782, %v778
        %v1007 = vpack.c.b16 %v783, %v779
        %v1008 = vpack.c.b16 %v788, %v784
        %v1009 = vpack.c.b16 %v789, %v785
        %v1010 = vpack.c.b16 %v790, %v786
        %v1011 = vpack.c.b16 %v791, %v787
        %v1012 = vpack.c.b16 %v796, %v792
        %v1013 = vpack.c.b16 %v797, %v793
        %v1014 = vpack.c.b16 %v798, %v794
        %v1015 = vpack.c.b16 %v799, %v795
        %v1016 = vpack.c.b16 %v804, %v800
        %v1017 = vpack.c.b16 %v805, %v801
        %v1018 = vpack.c.b16 %v806, %v802
        %v1019 = vpack.c.b16 %v807, %v803
        %v1020 = vpack.c.b16 %v812, %v808
        %v1021 = vpack.c.b16 %v813, %v809
        %v1022 = vpack.c.b16 %v814, %v810
        %v1023 = vpack.c.b16 %v815, %v811
        %v1024 = vpack.c.b16 %v820, %v816
        %v1025 = vpack.c.b16 %v821, %v817
        %v1026 = vpack.c.b16 %v822, %v818
        %v1027 = vpack.c.b16 %v823, %v819
        %v1028 = vpack.c.b16 %v828, %v824
        %v1029 = vpack.c.b16 %v829, %v825
        %v1030 = vpack.c.b16 %v830, %v826
        %v1031 = vpack.c.b16 %v831, %v827
        %v1032 = vpack.c.b16 %v836, %v832
        %v1033 = vpack.c.b16 %v837, %v833
        %v1034 = vpack.c.b16 %v838, %v834
        %v1035 = vpack.c.b16 %v839, %v835
        %v1036 = vpack.c.b16 %v844, %v840
        %v1037 = vpack.c.b16 %v845, %v841
        %v1038 = vpack.c.b16 %v846, %v842
        %v1039 = vpack.c.b16 %v847, %v843
        %v1040 = vpack.c.b16 %v852, %v848
        %v1041 = vpack.c.b16 %v853, %v849
        %v1042 = vpack.c.b16 %v854, %v850
        %v1043 = vpack.c.b16 %v855, %v851
        %v1044 = vpack.c.b16 %v860, %v856
        %v1045 = vpack.c.b16 %v861, %v857
        %v1046 = vpack.c.b16 %v862, %v858
        %v1047 = vpack.c.b16 %v863, %v859
        %v1048 = vpack.c.b16 %v868, %v864
        %v1049 = vpack.c.b16 %v869, %v865
        %v1050 = vpack.c.b16 %v870, %v866
        %v1051 = vpack.c.b16 %v871, %v867
        %v1052 = vpack.c.b16 %v876, %v872
        %v1053 = vpack.c.b16 %v877, %v873
        %v1054 = vpack.c.b16 %v878, %v874
        %v1055 = vpack.c.b16 %v879, %v875
        %v1056 = vpack.c.b16 %v884, %v880
        %v1057 = vpack.c.b16 %v885, %v881
        %v1058 = vpack.c.b16 %v886, %v882
        %v1059 = vpack.c.b16 %v887, %v883
        %v1060 = vpack.c.b16 %v892, %v888
        %v1061 = vpack.c.b16 %v893, %v889
        %v1062 = vpack.c.b16 %v894, %v890
        %v1063 = vpack.c.b16 %v895, %v891
        %v1064 = vpack.c.b16 %v900, %v896
        %v1065 = vpack.c.b16 %v901, %v897
        %v1066 = vpack.c.b16 %v902, %v898
        %v1067 = vpack.c.b16 %v903, %v899
        %v1068 = vpack.c.b16 %v908, %v904
        %v1069 = vpack.c.b16 %v909, %v905
        %v1070 = vpack.c.b16 %v910, %v906
        %v1071 = vpack.c.b16 %v911, %v907
        %v1072 = vpack.c.b16 %v916, %v912
        %v1073 = vpack.c.b16 %v917, %v913
        %v1074 = vpack.c.b16 %v918, %v914
        %v1075 = vpack.c.b16 %v919, %v915
        %v1076 = vpack.c.b16 %v924, %v920
        %v1077 = vpack.c.b16 %v925, %v921
        %v1078 = vpack.c.b16 %v926, %v922
        %v1079 = vpack.c.b16 %v927, %v923
        %v1080 = vpack.c.b16 %v932, %v928
        %v1081 = vpack.c.b16 %v933, %v929
        %v1082 = vpack.c.b16 %v934, %v930
        %v1083 = vpack.c.b16 %v935, %v931
        %v1084 = vpack.c.b16 %v940, %v936
        %v1085 = vpack.c.b16 %v941, %v937
        %v1086 = vpack.c.b16 %v942, %v938
        %v1087 = vpack.c.b16 %v943, %v939
        %v1088 = vpack.c.b16 %v948, %v944
        %v1089 = vpack.c.b16 %v949, %v945
        %v1090 = vpack.c.b16 %v950, %v946
        %v1091 = vpack.c.b16 %v951, %v947
        %v1092 = vpack.c.b16 %v956, %v952
        %v1093 = vpack.c.b16 %v957, %v953
        %v1094 = vpack.c.b16 %v958, %v954
        %v1095 = vpack.c.b16 %v959, %v955
        %v1096 = vpack.c.b16 %v964, %v960
        %v1097 = vpack.c.b16 %v965, %v961
        %v1098 = vpack.c.b16 %v966, %v962
        %v1099 = vpack.c.b16 %v967, %v963
        %v1100 = vpack.c.b16 %v972, %v968
        %v1101 = vpack.c.b16 %v973, %v969
        %v1102 = vpack.c.b16 %v974, %v970
        %v1103 = vpack.c.b16 %v975, %v971
        %v1296 = vunpack.c.l.b16 %v524
        %v1297 = vunpack.c.l.b16 %v525
        %v1298 = vunpack.c.l.b16 %v526
        %v1299 = vunpack.c.l.b16 %v527
        %v1300 = vunpack.c.l.b16 %v528
        %v1301 = vunpack.c.l.b16 %v529
        %v1302 = vunpack.c.l.b16 %v530
        %v1303 = vunpack.c.l.b16 %v531
        %v1304 = vunpack.c.l.b16 %v532
        %v1305 = vunpack.c.l.b16 %v533
        %v1306 = vunpack.c.l.b16 %v534
        %v1307 = vunpack.c.l.b16 %v535
        %v1308 = vunpack.c.l.b16 %v536
        %v1309 = vunpack.c.l.b16 %v537
        %v1310 = vunpack.c.l.b16 %v538
        %v1311 = vunpack.c.l.b16 %v539
        %v1312 = vunpack.c.l.b16 %v540
        %v1313 = vunpack.c.l.b16 %v541
        %v1314 = vunpack.c.l.b16 %v542
        %v1315 = vunpack.c.l.b16 %v543
        %v1316 = vunpack.c.l.b16 %v544
        %v1317 = vunpack.c.l.b16 %v545
        %v1318 = vunpack.c.l.b16 %v546
        %v1319 = vunpack.c.l.b16 %v547
        %v1320 = vunpack.c.l.b16 %v548
        %v1321 = vunpack.c.l.b16 %v549
        %v1322 = vunpack.c.l.b16 %v550
        %v1323 = vunpack.c.l.b16 %v551
        %v1324 = vunpack.c.l.b16 %v552
        %v1325 = vunpack.c.l.b16 %v553
        %v1326 = vunpack.c.l.b16 %v554
        %v1327 = vunpack.c.l.b16 %v555
        %v1328 = vunpack.c.l.b16 %v556
        %v1329 = vunpack.c.l.b16 %v557
        %v1330 = vunpack.c.l.b16 %v558
        %v1331 = vunpack.c.l.b16 %v559
        %v1332 = vunpack.c.l.b16 %v560
        %v1333 = vunpack.c.l.b16 %v561
        %v1334 = vunpack.c.l.b16 %v562
        %v1335 = vunpack.c.l.b16 %v563
        %v1336 = vunpack.c.l.b16 %v564
        %v1337 = vunpack.c.l.b16 %v565
        %v1338 = vunpack.c.l.b16 %v566
        %v1339 = vunpack.c.l.b16 %v567
        %v1340 = vunpack.c.l.b16 %v568
        %v1341 = vunpack.c.l.b16 %v569
        %v1342 = vunpack.c.l.b16 %v570
        %v1343 = vunpack.c.l.b16 %v571
        %v1344 = vunpack.c.l.b16 %v572
        %v1345 = vunpack.c.l.b16 %v573
        %v1346 = vunpack.c.l.b16 %v574
        %v1347 = vunpack.c.l.b16 %v575
        %v1348 = vunpack.c.l.b16 %v576
        %v1349 = vunpack.c.l.b16 %v577
        %v1350 = vunpack.c.l.b16 %v578
        %v1351 = vunpack.c.l.b16 %v579
        %v1352 = vunpack.c.l.b16 %v580
        %v1353 = vunpack.c.l.b16 %v581
        %v1354 = vunpack.c.l.b16 %v582
        %v1355 = vunpack.c.l.b16 %v583
        %v1356 = vunpack.c.l.b16 %v584
        %v1357 = vunpack.c.l.b16 %v585
        %v1358 = vunpack.c.l.b16 %v586
        %v1359 = vunpack.c.l.b16 %v587
        %v1360 = vpack.c.b16 %v1297, %v1296
        %v1361 = vpack.c.b16 %v1299, %v1298
        %v1362 = vpack.c.b16 %v1301, %v1300
        %v1363 = vpack.c.b16 %v1303, %v1302
        %v1364 = vpack.c.b16 %v1305, %v1304
        %v1365 = vpack.c.b16 %v1307, %v1306
        %v1366 = vpack.c.b16 %v1309, %v1308
        %v1367 = vpack.c.b16 %v1311, %v1310
        %v1368 = vpack.c.b16 %v1313, %v1312
        %v1369 = vpack.c.b16 %v1315, %v1314
        %v1370 = vpack.c.b16 %v1317, %v1316
        %v1371 = vpack.c.b16 %v1319, %v1318
        %v1372 = vpack.c.b16 %v1321, %v1320
        %v1373 = vpack.c.b16 %v1323, %v1322
        %v1374 = vpack.c.b16 %v1325, %v1324
        %v1375 = vpack.c.b16 %v1327, %v1326
        %v1376 = vpack.c.b16 %v1329, %v1328
        %v1377 = vpack.c.b16 %v1331, %v1330
        %v1378 = vpack.c.b16 %v1333, %v1332
        %v1379 = vpack.c.b16 %v1335, %v1334
        %v1380 = vpack.c.b16 %v1337, %v1336
        %v1381 = vpack.c.b16 %v1339, %v1338
        %v1382 = vpack.c.b16 %v1341, %v1340
        %v1383 = vpack.c.b16 %v1343, %v1342
        %v1384 = vpack.c.b16 %v1345, %v1344
        %v1385 = vpack.c.b16 %v1347, %v1346
        %v1386 = vpack.c.b16 %v1349, %v1348
        %v1387 = vpack.c.b16 %v1351, %v1350
        %v1388 = vpack.c.b16 %v1353, %v1352
        %v1389 = vpack.c.b16 %v1355, %v1354
        %v1390 = vpack.c.b16 %v1357, %v1356
        %v1391 = vpack.c.b16 %v1359, %v1358
        %1424 = vmatpush.bf16.msra.mxu0 %v1367
        %1425 = vmatpush.bf16.msra.mxu0 %v1366
        %1426 = vmatpush.bf16.msra.mxu0 %v1365
        %1427 = vmatpush.bf16.msra.mxu0 %v1364
        %1428 = vmatpush.bf16.msra.mxu0 %v1363
        %1429 = vmatpush.bf16.msra.mxu0 %v1362
        %1430 = vmatpush.bf16.msra.mxu0 %v1361
        %1431 = vmatpush.bf16.msra.mxu0 %v1360
        %1432 = vmatmul.bf16.gmra.mxu0 %v976
        %v1433 = vpop.f32.mrf.mxu0
        %v1434 = vadd.f32 %v590, %v1433
        %v1435 = vpop.f32.mrf.mxu0
        %v1436 = vadd.f32 %v590, %v1435
        %1437 = vmatmul.bf16.gmra.mxu0 %v980
        %v1438 = vpop.f32.mrf.mxu0
        %v1439 = vadd.f32 %v590, %v1438
        %v1440 = vpop.f32.mrf.mxu0
        %v1441 = vadd.f32 %v590, %v1440
        %1442 = vmatmul.bf16.gmra.mxu0 %v984
        %v1443 = vpop.f32.mrf.mxu0
        %v1444 = vadd.f32 %v590, %v1443
        %v1445 = vpop.f32.mrf.mxu0
        %v1446 = vadd.f32 %v590, %v1445
        %1447 = vmatmul.bf16.gmra.mxu0 %v988
        %v1448 = vpop.f32.mrf.mxu0
        %v1449 = vadd.f32 %v590, %v1448
        %v1450 = vpop.f32.mrf.mxu0
        %v1451 = vadd.f32 %v590, %v1450
        %1452 = vmatmul.bf16.gmra.mxu0 %v992
        %v1453 = vpop.f32.mrf.mxu0
        %v1454 = vadd.f32 %v590, %v1453
        %v1455 = vpop.f32.mrf.mxu0
        %v1456 = vadd.f32 %v590, %v1455
        %1457 = vmatmul.bf16.gmra.mxu0 %v996
        %v1458 = vpop.f32.mrf.mxu0
        %v1459 = vadd.f32 %v590, %v1458
        %v1460 = vpop.f32.mrf.mxu0
        %v1461 = vadd.f32 %v590, %v1460
        %1462 = vmatmul.bf16.gmra.mxu0 %v1000
        %v1463 = vpop.f32.mrf.mxu0
        %v1464 = vadd.f32 %v590, %v1463
        %v1465 = vpop.f32.mrf.mxu0
        %v1466 = vadd.f32 %v590, %v1465
        %1467 = vmatmul.bf16.gmra.mxu0 %v1004
        %v1468 = vpop.f32.mrf.mxu0
        %v1469 = vadd.f32 %v590, %v1468
        %v1470 = vpop.f32.mrf.mxu0
        %v1471 = vadd.f32 %v590, %v1470
        %1472 = vmatmul.bf16.gmra.mxu0 %v1008
        %v1473 = vpop.f32.mrf.mxu0
        %v1474 = vadd.f32 %v590, %v1473
        %v1475 = vpop.f32.mrf.mxu0
        %v1476 = vadd.f32 %v590, %v1475
        %1477 = vmatmul.bf16.gmra.mxu0 %v1012
        %v1478 = vpop.f32.mrf.mxu0
        %v1479 = vadd.f32 %v590, %v1478
        %v1480 = vpop.f32.mrf.mxu0
        %v1481 = vadd.f32 %v590, %v1480
        %1482 = vmatmul.bf16.gmra.mxu0 %v1016
        %v1483 = vpop.f32.mrf.mxu0
        %v1484 = vadd.f32 %v590, %v1483
        %v1485 = vpop.f32.mrf.mxu0
        %v1486 = vadd.f32 %v590, %v1485
        %1487 = vmatmul.bf16.gmra.mxu0 %v1020
        %v1488 = vpop.f32.mrf.mxu0
        %v1489 = vadd.f32 %v590, %v1488
        %v1490 = vpop.f32.mrf.mxu0
        %v1491 = vadd.f32 %v590, %v1490
        %1492 = vmatmul.bf16.gmra.mxu0 %v1024
        %v1493 = vpop.f32.mrf.mxu0
        %v1494 = vadd.f32 %v590, %v1493
        %v1495 = vpop.f32.mrf.mxu0
        %v1496 = vadd.f32 %v590, %v1495
        %1497 = vmatmul.bf16.gmra.mxu0 %v1028
        %v1498 = vpop.f32.mrf.mxu0
        %v1499 = vadd.f32 %v590, %v1498
        %v1500 = vpop.f32.mrf.mxu0
        %v1501 = vadd.f32 %v590, %v1500
        %1502 = vmatmul.bf16.gmra.mxu0 %v1032
        %v1503 = vpop.f32.mrf.mxu0
        %v1504 = vadd.f32 %v590, %v1503
        %v1505 = vpop.f32.mrf.mxu0
        %v1506 = vadd.f32 %v590, %v1505
        %1507 = vmatmul.bf16.gmra.mxu0 %v1036
        %v1508 = vpop.f32.mrf.mxu0
        %v1509 = vadd.f32 %v590, %v1508
        %v1510 = vpop.f32.mrf.mxu0
        %v1511 = vadd.f32 %v590, %v1510
        %1512 = vmatmul.bf16.gmra.mxu0 %v1040
        %v1513 = vpop.f32.mrf.mxu0
        %v1514 = vadd.f32 %v590, %v1513
        %v1515 = vpop.f32.mrf.mxu0
        %v1516 = vadd.f32 %v590, %v1515
        %1517 = vmatmul.bf16.gmra.mxu0 %v1044
        %v1518 = vpop.f32.mrf.mxu0
        %v1519 = vadd.f32 %v590, %v1518
        %v1520 = vpop.f32.mrf.mxu0
        %v1521 = vadd.f32 %v590, %v1520
        %1522 = vmatmul.bf16.gmra.mxu0 %v1048
        %v1523 = vpop.f32.mrf.mxu0
        %v1524 = vadd.f32 %v590, %v1523
        %v1525 = vpop.f32.mrf.mxu0
        %v1526 = vadd.f32 %v590, %v1525
        %1527 = vmatmul.bf16.gmra.mxu0 %v1052
        %v1528 = vpop.f32.mrf.mxu0
        %v1529 = vadd.f32 %v590, %v1528
        %v1530 = vpop.f32.mrf.mxu0
        %v1531 = vadd.f32 %v590, %v1530
        %1532 = vmatmul.bf16.gmra.mxu0 %v1056
        %v1533 = vpop.f32.mrf.mxu0
        %v1534 = vadd.f32 %v590, %v1533
        %v1535 = vpop.f32.mrf.mxu0
        %v1536 = vadd.f32 %v590, %v1535
        %1537 = vmatmul.bf16.gmra.mxu0 %v1060
        %v1538 = vpop.f32.mrf.mxu0
        %v1539 = vadd.f32 %v590, %v1538
        %v1540 = vpop.f32.mrf.mxu0
        %v1541 = vadd.f32 %v590, %v1540
        %1542 = vmatmul.bf16.gmra.mxu0 %v1064
        %v1543 = vpop.f32.mrf.mxu0
        %v1544 = vadd.f32 %v590, %v1543
        %v1545 = vpop.f32.mrf.mxu0
        %v1546 = vadd.f32 %v590, %v1545
        %1547 = vmatmul.bf16.gmra.mxu0 %v1068
        %v1548 = vpop.f32.mrf.mxu0
        %v1549 = vadd.f32 %v590, %v1548
        %v1550 = vpop.f32.mrf.mxu0
        %v1551 = vadd.f32 %v590, %v1550
        %1552 = vmatmul.bf16.gmra.mxu0 %v1072
        %v1553 = vpop.f32.mrf.mxu0
        %v1554 = vadd.f32 %v590, %v1553
        %v1555 = vpop.f32.mrf.mxu0
        %v1556 = vadd.f32 %v590, %v1555
        %1557 = vmatmul.bf16.gmra.mxu0 %v1076
        %v1558 = vpop.f32.mrf.mxu0
        %v1559 = vadd.f32 %v590, %v1558
        %v1560 = vpop.f32.mrf.mxu0
        %v1561 = vadd.f32 %v590, %v1560
        %1562 = vmatmul.bf16.gmra.mxu0 %v1080
        %v1563 = vpop.f32.mrf.mxu0
        %v1564 = vadd.f32 %v590, %v1563
        %v1565 = vpop.f32.mrf.mxu0
        %v1566 = vadd.f32 %v590, %v1565
        %1567 = vmatmul.bf16.gmra.mxu0 %v1084
        %v1568 = vpop.f32.mrf.mxu0
        %v1569 = vadd.f32 %v590, %v1568
        %v1570 = vpop.f32.mrf.mxu0
        %v1571 = vadd.f32 %v590, %v1570
        %1572 = vmatmul.bf16.gmra.mxu0 %v1088
        %v1573 = vpop.f32.mrf.mxu0
        %v1574 = vadd.f32 %v590, %v1573
        %v1575 = vpop.f32.mrf.mxu0
        %v1576 = vadd.f32 %v590, %v1575
        %1577 = vmatmul.bf16.gmra.mxu0 %v1092
        %v1578 = vpop.f32.mrf.mxu0
        %v1579 = vadd.f32 %v590, %v1578
        %v1580 = vpop.f32.mrf.mxu0
        %v1581 = vadd.f32 %v590, %v1580
        %1582 = vmatmul.bf16.gmra.mxu0 %v1096
        %v1583 = vpop.f32.mrf.mxu0
        %v1584 = vadd.f32 %v590, %v1583
        %v1585 = vpop.f32.mrf.mxu0
        %v1586 = vadd.f32 %v590, %v1585
        %1587 = vmatmul.bf16.gmra.mxu0 %v1100
        %v1588 = vpop.f32.mrf.mxu0
        %v1589 = vadd.f32 %v590, %v1588
        %v1590 = vpop.f32.mrf.mxu0
        %v1591 = vadd.f32 %v590, %v1590
        %1592 = vdwg.mxu0
        %1593 = vmatpush.bf16.msra.mxu0 %v1375
        %1594 = vmatpush.bf16.msra.mxu0 %v1374
        %1595 = vmatpush.bf16.msra.mxu0 %v1373
        %1596 = vmatpush.bf16.msra.mxu0 %v1372
        %1597 = vmatpush.bf16.msra.mxu0 %v1371
        %1598 = vmatpush.bf16.msra.mxu0 %v1370
        %1599 = vmatpush.bf16.msra.mxu0 %v1369
        %1600 = vmatpush.bf16.msra.mxu0 %v1368
        %1601 = vmatmul.bf16.gmra.mxu0 %v977
        %v1602 = vpop.f32.mrf.mxu0
        %v1603 = vadd.f32 %v1434, %v1602
        %v1604 = vpop.f32.mrf.mxu0
        %v1605 = vadd.f32 %v1436, %v1604
        %1606 = vmatmul.bf16.gmra.mxu0 %v981
        %v1607 = vpop.f32.mrf.mxu0
        %v1608 = vadd.f32 %v1439, %v1607
        %v1609 = vpop.f32.mrf.mxu0
        %v1610 = vadd.f32 %v1441, %v1609
        %1611 = vmatmul.bf16.gmra.mxu0 %v985
        %v1612 = vpop.f32.mrf.mxu0
        %v1613 = vadd.f32 %v1444, %v1612
        %v1614 = vpop.f32.mrf.mxu0
        %v1615 = vadd.f32 %v1446, %v1614
        %1616 = vmatmul.bf16.gmra.mxu0 %v989
        %v1617 = vpop.f32.mrf.mxu0
        %v1618 = vadd.f32 %v1449, %v1617
        %v1619 = vpop.f32.mrf.mxu0
        %v1620 = vadd.f32 %v1451, %v1619
        %1621 = vmatmul.bf16.gmra.mxu0 %v993
        %v1622 = vpop.f32.mrf.mxu0
        %v1623 = vadd.f32 %v1454, %v1622
        %v1624 = vpop.f32.mrf.mxu0
        %v1625 = vadd.f32 %v1456, %v1624
        %1626 = vmatmul.bf16.gmra.mxu0 %v997
        %v1627 = vpop.f32.mrf.mxu0
        %v1628 = vadd.f32 %v1459, %v1627
        %v1629 = vpop.f32.mrf.mxu0
        %v1630 = vadd.f32 %v1461, %v1629
        %1631 = vmatmul.bf16.gmra.mxu0 %v1001
        %v1632 = vpop.f32.mrf.mxu0
        %v1633 = vadd.f32 %v1464, %v1632
        %v1634 = vpop.f32.mrf.mxu0
        %v1635 = vadd.f32 %v1466, %v1634
        %1636 = vmatmul.bf16.gmra.mxu0 %v1005
        %v1637 = vpop.f32.mrf.mxu0
        %v1638 = vadd.f32 %v1469, %v1637
        %v1639 = vpop.f32.mrf.mxu0
        %v1640 = vadd.f32 %v1471, %v1639
        %1641 = vmatmul.bf16.gmra.mxu0 %v1009
        %v1642 = vpop.f32.mrf.mxu0
        %v1643 = vadd.f32 %v1474, %v1642
        %v1644 = vpop.f32.mrf.mxu0
        %v1645 = vadd.f32 %v1476, %v1644
        %1646 = vmatmul.bf16.gmra.mxu0 %v1013
        %v1647 = vpop.f32.mrf.mxu0
        %v1648 = vadd.f32 %v1479, %v1647
        %v1649 = vpop.f32.mrf.mxu0
        %v1650 = vadd.f32 %v1481, %v1649
        %1651 = vmatmul.bf16.gmra.mxu0 %v1017
        %v1652 = vpop.f32.mrf.mxu0
        %v1653 = vadd.f32 %v1484, %v1652
        %v1654 = vpop.f32.mrf.mxu0
        %v1655 = vadd.f32 %v1486, %v1654
        %1656 = vmatmul.bf16.gmra.mxu0 %v1021
        %v1657 = vpop.f32.mrf.mxu0
        %v1658 = vadd.f32 %v1489, %v1657
        %v1659 = vpop.f32.mrf.mxu0
        %v1660 = vadd.f32 %v1491, %v1659
        %1661 = vmatmul.bf16.gmra.mxu0 %v1025
        %v1662 = vpop.f32.mrf.mxu0
        %v1663 = vadd.f32 %v1494, %v1662
        %v1664 = vpop.f32.mrf.mxu0
        %v1665 = vadd.f32 %v1496, %v1664
        %1666 = vmatmul.bf16.gmra.mxu0 %v1029
        %v1667 = vpop.f32.mrf.mxu0
        %v1668 = vadd.f32 %v1499, %v1667
        %v1669 = vpop.f32.mrf.mxu0
        %v1670 = vadd.f32 %v1501, %v1669
        %1671 = vmatmul.bf16.gmra.mxu0 %v1033
        %v1672 = vpop.f32.mrf.mxu0
        %v1673 = vadd.f32 %v1504, %v1672
        %v1674 = vpop.f32.mrf.mxu0
        %v1675 = vadd.f32 %v1506, %v1674
        %1676 = vmatmul.bf16.gmra.mxu0 %v1037
        %v1677 = vpop.f32.mrf.mxu0
        %v1678 = vadd.f32 %v1509, %v1677
        %v1679 = vpop.f32.mrf.mxu0
        %v1680 = vadd.f32 %v1511, %v1679
        %1681 = vmatmul.bf16.gmra.mxu0 %v1041
        %v1682 = vpop.f32.mrf.mxu0
        %v1683 = vadd.f32 %v1514, %v1682
        %v1684 = vpop.f32.mrf.mxu0
        %v1685 = vadd.f32 %v1516, %v1684
        %1686 = vmatmul.bf16.gmra.mxu0 %v1045
        %v1687 = vpop.f32.mrf.mxu0
        %v1688 = vadd.f32 %v1519, %v1687
        %v1689 = vpop.f32.mrf.mxu0
        %v1690 = vadd.f32 %v1521, %v1689
        %1691 = vmatmul.bf16.gmra.mxu0 %v1049
        %v1692 = vpop.f32.mrf.mxu0
        %v1693 = vadd.f32 %v1524, %v1692
        %v1694 = vpop.f32.mrf.mxu0
        %v1695 = vadd.f32 %v1526, %v1694
        %1696 = vmatmul.bf16.gmra.mxu0 %v1053
        %v1697 = vpop.f32.mrf.mxu0
        %v1698 = vadd.f32 %v1529, %v1697
        %v1699 = vpop.f32.mrf.mxu0
        %v1700 = vadd.f32 %v1531, %v1699
        %1701 = vmatmul.bf16.gmra.mxu0 %v1057
        %v1702 = vpop.f32.mrf.mxu0
        %v1703 = vadd.f32 %v1534, %v1702
        %v1704 = vpop.f32.mrf.mxu0
        %v1705 = vadd.f32 %v1536, %v1704
        %1706 = vmatmul.bf16.gmra.mxu0 %v1061
        %v1707 = vpop.f32.mrf.mxu0
        %v1708 = vadd.f32 %v1539, %v1707
        %v1709 = vpop.f32.mrf.mxu0
        %v1710 = vadd.f32 %v1541, %v1709
        %1711 = vmatmul.bf16.gmra.mxu0 %v1065
        %v1712 = vpop.f32.mrf.mxu0
        %v1713 = vadd.f32 %v1544, %v1712
        %v1714 = vpop.f32.mrf.mxu0
        %v1715 = vadd.f32 %v1546, %v1714
        %1716 = vmatmul.bf16.gmra.mxu0 %v1069
        %v1717 = vpop.f32.mrf.mxu0
        %v1718 = vadd.f32 %v1549, %v1717
        %v1719 = vpop.f32.mrf.mxu0
        %v1720 = vadd.f32 %v1551, %v1719
        %1721 = vmatmul.bf16.gmra.mxu0 %v1073
        %v1722 = vpop.f32.mrf.mxu0
        %v1723 = vadd.f32 %v1554, %v1722
        %v1724 = vpop.f32.mrf.mxu0
        %v1725 = vadd.f32 %v1556, %v1724
        %1726 = vmatmul.bf16.gmra.mxu0 %v1077
        %v1727 = vpop.f32.mrf.mxu0
        %v1728 = vadd.f32 %v1559, %v1727
        %v1729 = vpop.f32.mrf.mxu0
        %v1730 = vadd.f32 %v1561, %v1729
        %1731 = vmatmul.bf16.gmra.mxu0 %v1081
        %v1732 = vpop.f32.mrf.mxu0
        %v1733 = vadd.f32 %v1564, %v1732
        %v1734 = vpop.f32.mrf.mxu0
        %v1735 = vadd.f32 %v1566, %v1734
        %1736 = vmatmul.bf16.gmra.mxu0 %v1085
        %v1737 = vpop.f32.mrf.mxu0
        %v1738 = vadd.f32 %v1569, %v1737
        %v1739 = vpop.f32.mrf.mxu0
        %v1740 = vadd.f32 %v1571, %v1739
        %1741 = vmatmul.bf16.gmra.mxu0 %v1089
        %v1742 = vpop.f32.mrf.mxu0
        %v1743 = vadd.f32 %v1574, %v1742
        %v1744 = vpop.f32.mrf.mxu0
        %v1745 = vadd.f32 %v1576, %v1744
        %1746 = vmatmul.bf16.gmra.mxu0 %v1093
        %v1747 = vpop.f32.mrf.mxu0
        %v1748 = vadd.f32 %v1579, %v1747
        %v1749 = vpop.f32.mrf.mxu0
        %v1750 = vadd.f32 %v1581, %v1749
        %1751 = vmatmul.bf16.gmra.mxu0 %v1097
        %v1752 = vpop.f32.mrf.mxu0
        %v1753 = vadd.f32 %v1584, %v1752
        %v1754 = vpop.f32.mrf.mxu0
        %v1755 = vadd.f32 %v1586, %v1754
        %1756 = vmatmul.bf16.gmra.mxu0 %v1101
        %v1757 = vpop.f32.mrf.mxu0
        %v1758 = vadd.f32 %v1589, %v1757
        %v1759 = vpop.f32.mrf.mxu0
        %v1760 = vadd.f32 %v1591, %v1759
        %1761 = vdwg.mxu0
        %1762 = vmatpush.bf16.msra.mxu0 %v1383
        %1763 = vmatpush.bf16.msra.mxu0 %v1382
        %1764 = vmatpush.bf16.msra.mxu0 %v1381
        %1765 = vmatpush.bf16.msra.mxu0 %v1380
        %1766 = vmatpush.bf16.msra.mxu0 %v1379
        %1767 = vmatpush.bf16.msra.mxu0 %v1378
        %1768 = vmatpush.bf16.msra.mxu0 %v1377
        %1769 = vmatpush.bf16.msra.mxu0 %v1376
        %1770 = vmatmul.bf16.gmra.mxu0 %v978
        %v1771 = vpop.f32.mrf.mxu0
        %v1772 = vadd.f32 %v1603, %v1771
        %v1773 = vpop.f32.mrf.mxu0
        %v1774 = vadd.f32 %v1605, %v1773
        %1775 = vmatmul.bf16.gmra.mxu0 %v982
        %v1776 = vpop.f32.mrf.mxu0
        %v1777 = vadd.f32 %v1608, %v1776
        %v1778 = vpop.f32.mrf.mxu0
        %v1779 = vadd.f32 %v1610, %v1778
        %1780 = vmatmul.bf16.gmra.mxu0 %v986
        %v1781 = vpop.f32.mrf.mxu0
        %v1782 = vadd.f32 %v1613, %v1781
        %v1783 = vpop.f32.mrf.mxu0
        %v1784 = vadd.f32 %v1615, %v1783
        %1785 = vmatmul.bf16.gmra.mxu0 %v990
        %v1786 = vpop.f32.mrf.mxu0
        %v1787 = vadd.f32 %v1618, %v1786
        %v1788 = vpop.f32.mrf.mxu0
        %v1789 = vadd.f32 %v1620, %v1788
        %1790 = vmatmul.bf16.gmra.mxu0 %v994
        %v1791 = vpop.f32.mrf.mxu0
        %v1792 = vadd.f32 %v1623, %v1791
        %v1793 = vpop.f32.mrf.mxu0
        %v1794 = vadd.f32 %v1625, %v1793
        %1795 = vmatmul.bf16.gmra.mxu0 %v998
        %v1796 = vpop.f32.mrf.mxu0
        %v1797 = vadd.f32 %v1628, %v1796
        %v1798 = vpop.f32.mrf.mxu0
        %v1799 = vadd.f32 %v1630, %v1798
        %1800 = vmatmul.bf16.gmra.mxu0 %v1002
        %v1801 = vpop.f32.mrf.mxu0
        %v1802 = vadd.f32 %v1633, %v1801
        %v1803 = vpop.f32.mrf.mxu0
        %v1804 = vadd.f32 %v1635, %v1803
        %1805 = vmatmul.bf16.gmra.mxu0 %v1006
        %v1806 = vpop.f32.mrf.mxu0
        %v1807 = vadd.f32 %v1638, %v1806
        %v1808 = vpop.f32.mrf.mxu0
        %v1809 = vadd.f32 %v1640, %v1808
        %1810 = vmatmul.bf16.gmra.mxu0 %v1010
        %v1811 = vpop.f32.mrf.mxu0
        %v1812 = vadd.f32 %v1643, %v1811
        %v1813 = vpop.f32.mrf.mxu0
        %v1814 = vadd.f32 %v1645, %v1813
        %1815 = vmatmul.bf16.gmra.mxu0 %v1014
        %v1816 = vpop.f32.mrf.mxu0
        %v1817 = vadd.f32 %v1648, %v1816
        %v1818 = vpop.f32.mrf.mxu0
        %v1819 = vadd.f32 %v1650, %v1818
        %1820 = vmatmul.bf16.gmra.mxu0 %v1018
        %v1821 = vpop.f32.mrf.mxu0
        %v1822 = vadd.f32 %v1653, %v1821
        %v1823 = vpop.f32.mrf.mxu0
        %v1824 = vadd.f32 %v1655, %v1823
        %1825 = vmatmul.bf16.gmra.mxu0 %v1022
        %v1826 = vpop.f32.mrf.mxu0
        %v1827 = vadd.f32 %v1658, %v1826
        %v1828 = vpop.f32.mrf.mxu0
        %v1829 = vadd.f32 %v1660, %v1828
        %1830 = vmatmul.bf16.gmra.mxu0 %v1026
        %v1831 = vpop.f32.mrf.mxu0
        %v1832 = vadd.f32 %v1663, %v1831
        %v1833 = vpop.f32.mrf.mxu0
        %v1834 = vadd.f32 %v1665, %v1833
        %1835 = vmatmul.bf16.gmra.mxu0 %v1030
        %v1836 = vpop.f32.mrf.mxu0
        %v1837 = vadd.f32 %v1668, %v1836
        %v1838 = vpop.f32.mrf.mxu0
        %v1839 = vadd.f32 %v1670, %v1838
        %1840 = vmatmul.bf16.gmra.mxu0 %v1034
        %v1841 = vpop.f32.mrf.mxu0
        %v1842 = vadd.f32 %v1673, %v1841
        %v1843 = vpop.f32.mrf.mxu0
        %v1844 = vadd.f32 %v1675, %v1843
        %1845 = vmatmul.bf16.gmra.mxu0 %v1038
        %v1846 = vpop.f32.mrf.mxu0
        %v1847 = vadd.f32 %v1678, %v1846
        %v1848 = vpop.f32.mrf.mxu0
        %v1849 = vadd.f32 %v1680, %v1848
        %1850 = vmatmul.bf16.gmra.mxu0 %v1042
        %v1851 = vpop.f32.mrf.mxu0
        %v1852 = vadd.f32 %v1683, %v1851
        %v1853 = vpop.f32.mrf.mxu0
        %v1854 = vadd.f32 %v1685, %v1853
        %1855 = vmatmul.bf16.gmra.mxu0 %v1046
        %v1856 = vpop.f32.mrf.mxu0
        %v1857 = vadd.f32 %v1688, %v1856
        %v1858 = vpop.f32.mrf.mxu0
        %v1859 = vadd.f32 %v1690, %v1858
        %1860 = vmatmul.bf16.gmra.mxu0 %v1050
        %v1861 = vpop.f32.mrf.mxu0
        %v1862 = vadd.f32 %v1693, %v1861
        %v1863 = vpop.f32.mrf.mxu0
        %v1864 = vadd.f32 %v1695, %v1863
        %1865 = vmatmul.bf16.gmra.mxu0 %v1054
        %v1866 = vpop.f32.mrf.mxu0
        %v1867 = vadd.f32 %v1698, %v1866
        %v1868 = vpop.f32.mrf.mxu0
        %v1869 = vadd.f32 %v1700, %v1868
        %1870 = vmatmul.bf16.gmra.mxu0 %v1058
        %v1871 = vpop.f32.mrf.mxu0
        %v1872 = vadd.f32 %v1703, %v1871
        %v1873 = vpop.f32.mrf.mxu0
        %v1874 = vadd.f32 %v1705, %v1873
        %1875 = vmatmul.bf16.gmra.mxu0 %v1062
        %v1876 = vpop.f32.mrf.mxu0
        %v1877 = vadd.f32 %v1708, %v1876
        %v1878 = vpop.f32.mrf.mxu0
        %v1879 = vadd.f32 %v1710, %v1878
        %1880 = vmatmul.bf16.gmra.mxu0 %v1066
        %v1881 = vpop.f32.mrf.mxu0
        %v1882 = vadd.f32 %v1713, %v1881
        %v1883 = vpop.f32.mrf.mxu0
        %v1884 = vadd.f32 %v1715, %v1883
        %1885 = vmatmul.bf16.gmra.mxu0 %v1070
        %v1886 = vpop.f32.mrf.mxu0
        %v1887 = vadd.f32 %v1718, %v1886
        %v1888 = vpop.f32.mrf.mxu0
        %v1889 = vadd.f32 %v1720, %v1888
        %1890 = vmatmul.bf16.gmra.mxu0 %v1074
        %v1891 = vpop.f32.mrf.mxu0
        %v1892 = vadd.f32 %v1723, %v1891
        %v1893 = vpop.f32.mrf.mxu0
        %v1894 = vadd.f32 %v1725, %v1893
        %1895 = vmatmul.bf16.gmra.mxu0 %v1078
        %v1896 = vpop.f32.mrf.mxu0
        %v1897 = vadd.f32 %v1728, %v1896
        %v1898 = vpop.f32.mrf.mxu0
        %v1899 = vadd.f32 %v1730, %v1898
        %1900 = vmatmul.bf16.gmra.mxu0 %v1082
        %v1901 = vpop.f32.mrf.mxu0
        %v1902 = vadd.f32 %v1733, %v1901
        %v1903 = vpop.f32.mrf.mxu0
        %v1904 = vadd.f32 %v1735, %v1903
        %1905 = vmatmul.bf16.gmra.mxu0 %v1086
        %v1906 = vpop.f32.mrf.mxu0
        %v1907 = vadd.f32 %v1738, %v1906
        %v1908 = vpop.f32.mrf.mxu0
        %v1909 = vadd.f32 %v1740, %v1908
        %1910 = vmatmul.bf16.gmra.mxu0 %v1090
        %v1911 = vpop.f32.mrf.mxu0
        %v1912 = vadd.f32 %v1743, %v1911
        %v1913 = vpop.f32.mrf.mxu0
        %v1914 = vadd.f32 %v1745, %v1913
        %1915 = vmatmul.bf16.gmra.mxu0 %v1094
        %v1916 = vpop.f32.mrf.mxu0
        %v1917 = vadd.f32 %v1748, %v1916
        %v1918 = vpop.f32.mrf.mxu0
        %v1919 = vadd.f32 %v1750, %v1918
        %1920 = vmatmul.bf16.gmra.mxu0 %v1098
        %v1921 = vpop.f32.mrf.mxu0
        %v1922 = vadd.f32 %v1753, %v1921
        %v1923 = vpop.f32.mrf.mxu0
        %v1924 = vadd.f32 %v1755, %v1923
        %1925 = vmatmul.bf16.gmra.mxu0 %v1102
        %v1926 = vpop.f32.mrf.mxu0
        %v1927 = vadd.f32 %v1758, %v1926
        %v1928 = vpop.f32.mrf.mxu0
        %v1929 = vadd.f32 %v1760, %v1928
        %1930 = vdwg.mxu0
        %1931 = vmatpush.bf16.msra.mxu0 %v1391
        %1932 = vmatpush.bf16.msra.mxu0 %v1390
        %1933 = vmatpush.bf16.msra.mxu0 %v1389
        %1934 = vmatpush.bf16.msra.mxu0 %v1388
        %1935 = vmatpush.bf16.msra.mxu0 %v1387
        %1936 = vmatpush.bf16.msra.mxu0 %v1386
        %1937 = vmatpush.bf16.msra.mxu0 %v1385
        %1938 = vmatpush.bf16.msra.mxu0 %v1384
        %1939 = vmatmul.bf16.gmra.mxu0 %v979
        %v1940 = vpop.f32.mrf.mxu0
        %v1941 = vadd.f32 %v1772, %v1940
        %v1942 = vpop.f32.mrf.mxu0
        %v1943 = vadd.f32 %v1774, %v1942
        %1944 = vmatmul.bf16.gmra.mxu0 %v983
        %v1945 = vpop.f32.mrf.mxu0
        %v1946 = vadd.f32 %v1777, %v1945
        %v1947 = vpop.f32.mrf.mxu0
        %v1948 = vadd.f32 %v1779, %v1947
        %1949 = vmatmul.bf16.gmra.mxu0 %v987
        %v1950 = vpop.f32.mrf.mxu0
        %v1951 = vadd.f32 %v1782, %v1950
        %v1952 = vpop.f32.mrf.mxu0
        %v1953 = vadd.f32 %v1784, %v1952
        %1954 = vmatmul.bf16.gmra.mxu0 %v991
        %v1955 = vpop.f32.mrf.mxu0
        %v1956 = vadd.f32 %v1787, %v1955
        %v1957 = vpop.f32.mrf.mxu0
        %v1958 = vadd.f32 %v1789, %v1957
        %1959 = vmatmul.bf16.gmra.mxu0 %v995
        %v1960 = vpop.f32.mrf.mxu0
        %v1961 = vadd.f32 %v1792, %v1960
        %v1962 = vpop.f32.mrf.mxu0
        %v1963 = vadd.f32 %v1794, %v1962
        %1964 = vmatmul.bf16.gmra.mxu0 %v999
        %v1965 = vpop.f32.mrf.mxu0
        %v1966 = vadd.f32 %v1797, %v1965
        %v1967 = vpop.f32.mrf.mxu0
        %v1968 = vadd.f32 %v1799, %v1967
        %1969 = vmatmul.bf16.gmra.mxu0 %v1003
        %v1970 = vpop.f32.mrf.mxu0
        %v1971 = vadd.f32 %v1802, %v1970
        %v1972 = vpop.f32.mrf.mxu0
        %v1973 = vadd.f32 %v1804, %v1972
        %1974 = vmatmul.bf16.gmra.mxu0 %v1007
        %v1975 = vpop.f32.mrf.mxu0
        %v1976 = vadd.f32 %v1807, %v1975
        %v1977 = vpop.f32.mrf.mxu0
        %v1978 = vadd.f32 %v1809, %v1977
        %1979 = vmatmul.bf16.gmra.mxu0 %v1011
        %v1980 = vpop.f32.mrf.mxu0
        %v1981 = vadd.f32 %v1812, %v1980
        %v1982 = vpop.f32.mrf.mxu0
        %v1983 = vadd.f32 %v1814, %v1982
        %1984 = vmatmul.bf16.gmra.mxu0 %v1015
        %v1985 = vpop.f32.mrf.mxu0
        %v1986 = vadd.f32 %v1817, %v1985
        %v1987 = vpop.f32.mrf.mxu0
        %v1988 = vadd.f32 %v1819, %v1987
        %1989 = vmatmul.bf16.gmra.mxu0 %v1019
        %v1990 = vpop.f32.mrf.mxu0
        %v1991 = vadd.f32 %v1822, %v1990
        %v1992 = vpop.f32.mrf.mxu0
        %v1993 = vadd.f32 %v1824, %v1992
        %1994 = vmatmul.bf16.gmra.mxu0 %v1023
        %v1995 = vpop.f32.mrf.mxu0
        %v1996 = vadd.f32 %v1827, %v1995
        %v1997 = vpop.f32.mrf.mxu0
        %v1998 = vadd.f32 %v1829, %v1997
        %1999 = vmatmul.bf16.gmra.mxu0 %v1027
        %v2000 = vpop.f32.mrf.mxu0
        %v2001 = vadd.f32 %v1832, %v2000
        %v2002 = vpop.f32.mrf.mxu0
        %v2003 = vadd.f32 %v1834, %v2002
        %2004 = vmatmul.bf16.gmra.mxu0 %v1031
        %v2005 = vpop.f32.mrf.mxu0
        %v2006 = vadd.f32 %v1837, %v2005
        %v2007 = vpop.f32.mrf.mxu0
        %v2008 = vadd.f32 %v1839, %v2007
        %2009 = vmatmul.bf16.gmra.mxu0 %v1035
        %v2010 = vpop.f32.mrf.mxu0
        %v2011 = vadd.f32 %v1842, %v2010
        %v2012 = vpop.f32.mrf.mxu0
        %v2013 = vadd.f32 %v1844, %v2012
        %2014 = vmatmul.bf16.gmra.mxu0 %v1039
        %v2015 = vpop.f32.mrf.mxu0
        %v2016 = vadd.f32 %v1847, %v2015
        %v2017 = vpop.f32.mrf.mxu0
        %v2018 = vadd.f32 %v1849, %v2017
        %2019 = vmatmul.bf16.gmra.mxu0 %v1043
        %v2020 = vpop.f32.mrf.mxu0
        %v2021 = vadd.f32 %v1852, %v2020
        %v2022 = vpop.f32.mrf.mxu0
        %v2023 = vadd.f32 %v1854, %v2022
        %2024 = vmatmul.bf16.gmra.mxu0 %v1047
        %v2025 = vpop.f32.mrf.mxu0
        %v2026 = vadd.f32 %v1857, %v2025
        %v2027 = vpop.f32.mrf.mxu0
        %v2028 = vadd.f32 %v1859, %v2027
        %2029 = vmatmul.bf16.gmra.mxu0 %v1051
        %v2030 = vpop.f32.mrf.mxu0
        %v2031 = vadd.f32 %v1862, %v2030
        %v2032 = vpop.f32.mrf.mxu0
        %v2033 = vadd.f32 %v1864, %v2032
        %2034 = vmatmul.bf16.gmra.mxu0 %v1055
        %v2035 = vpop.f32.mrf.mxu0
        %v2036 = vadd.f32 %v1867, %v2035
        %v2037 = vpop.f32.mrf.mxu0
        %v2038 = vadd.f32 %v1869, %v2037
        %2039 = vmatmul.bf16.gmra.mxu0 %v1059
        %v2040 = vpop.f32.mrf.mxu0
        %v2041 = vadd.f32 %v1872, %v2040
        %v2042 = vpop.f32.mrf.mxu0
        %v2043 = vadd.f32 %v1874, %v2042
        %2044 = vmatmul.bf16.gmra.mxu0 %v1063
        %v2045 = vpop.f32.mrf.mxu0
        %v2046 = vadd.f32 %v1877, %v2045
        %v2047 = vpop.f32.mrf.mxu0
        %v2048 = vadd.f32 %v1879, %v2047
        %2049 = vmatmul.bf16.gmra.mxu0 %v1067
        %v2050 = vpop.f32.mrf.mxu0
        %v2051 = vadd.f32 %v1882, %v2050
        %v2052 = vpop.f32.mrf.mxu0
        %v2053 = vadd.f32 %v1884, %v2052
        %2054 = vmatmul.bf16.gmra.mxu0 %v1071
        %v2055 = vpop.f32.mrf.mxu0
        %v2056 = vadd.f32 %v1887, %v2055
        %v2057 = vpop.f32.mrf.mxu0
        %v2058 = vadd.f32 %v1889, %v2057
        %2059 = vmatmul.bf16.gmra.mxu0 %v1075
        %v2060 = vpop.f32.mrf.mxu0
        %v2061 = vadd.f32 %v1892, %v2060
        %v2062 = vpop.f32.mrf.mxu0
        %v2063 = vadd.f32 %v1894, %v2062
        %2064 = vmatmul.bf16.gmra.mxu0 %v1079
        %v2065 = vpop.f32.mrf.mxu0
        %v2066 = vadd.f32 %v1897, %v2065
        %v2067 = vpop.f32.mrf.mxu0
        %v2068 = vadd.f32 %v1899, %v2067
        %2069 = vmatmul.bf16.gmra.mxu0 %v1083
        %v2070 = vpop.f32.mrf.mxu0
        %v2071 = vadd.f32 %v1902, %v2070
        %v2072 = vpop.f32.mrf.mxu0
        %v2073 = vadd.f32 %v1904, %v2072
        %2074 = vmatmul.bf16.gmra.mxu0 %v1087
        %v2075 = vpop.f32.mrf.mxu0
        %v2076 = vadd.f32 %v1907, %v2075
        %v2077 = vpop.f32.mrf.mxu0
        %v2078 = vadd.f32 %v1909, %v2077
        %2079 = vmatmul.bf16.gmra.mxu0 %v1091
        %v2080 = vpop.f32.mrf.mxu0
        %v2081 = vadd.f32 %v1912, %v2080
        %v2082 = vpop.f32.mrf.mxu0
        %v2083 = vadd.f32 %v1914, %v2082
        %2084 = vmatmul.bf16.gmra.mxu0 %v1095
        %v2085 = vpop.f32.mrf.mxu0
        %v2086 = vadd.f32 %v1917, %v2085
        %v2087 = vpop.f32.mrf.mxu0
        %v2088 = vadd.f32 %v1919, %v2087
        %2089 = vmatmul.bf16.gmra.mxu0 %v1099
        %v2090 = vpop.f32.mrf.mxu0
        %v2091 = vadd.f32 %v1922, %v2090
        %v2092 = vpop.f32.mrf.mxu0
        %v2093 = vadd.f32 %v1924, %v2092
        %2094 = vmatmul.bf16.gmra.mxu0 %v1103
        %v2095 = vpop.f32.mrf.mxu0
        %v2096 = vadd.f32 %v1927, %v2095
        %v2097 = vpop.f32.mrf.mxu0
        %v2098 = vadd.f32 %v1929, %v2097
        %2099 = vdwg.mxu0
        %v2100 = vmax.f32 %v1941, 0.0
        %v2101 = vmax.f32 %v1943, 0.0
        %v2102 = vmax.f32 %v1946, 0.0
        %v2103 = vmax.f32 %v1948, 0.0
        %v2104 = vmax.f32 %v1951, 0.0
        %v2105 = vmax.f32 %v1953, 0.0
        %v2106 = vmax.f32 %v1956, 0.0
        %v2107 = vmax.f32 %v1958, 0.0
        %v2108 = vmax.f32 %v1961, 0.0
        %v2109 = vmax.f32 %v1963, 0.0
        %v2110 = vmax.f32 %v1966, 0.0
        %v2111 = vmax.f32 %v1968, 0.0
        %v2112 = vmax.f32 %v1971, 0.0
        %v2113 = vmax.f32 %v1973, 0.0
        %v2114 = vmax.f32 %v1976, 0.0
        %v2115 = vmax.f32 %v1978, 0.0
        %v2116 = vmax.f32 %v1981, 0.0
        %v2117 = vmax.f32 %v1983, 0.0
        %v2118 = vmax.f32 %v1986, 0.0
        %v2119 = vmax.f32 %v1988, 0.0
        %v2120 = vmax.f32 %v1991, 0.0
        %v2121 = vmax.f32 %v1993, 0.0
        %v2122 = vmax.f32 %v1996, 0.0
        %v2123 = vmax.f32 %v1998, 0.0
        %v2124 = vmax.f32 %v2001, 0.0
        %v2125 = vmax.f32 %v2003, 0.0
        %v2126 = vmax.f32 %v2006, 0.0
        %v2127 = vmax.f32 %v2008, 0.0
        %v2128 = vmax.f32 %v2011, 0.0
        %v2129 = vmax.f32 %v2013, 0.0
        %v2130 = vmax.f32 %v2016, 0.0
        %v2131 = vmax.f32 %v2018, 0.0
        %v2132 = vmax.f32 %v2021, 0.0
        %v2133 = vmax.f32 %v2023, 0.0
        %v2134 = vmax.f32 %v2026, 0.0
        %v2135 = vmax.f32 %v2028, 0.0
        %v2136 = vmax.f32 %v2031, 0.0
        %v2137 = vmax.f32 %v2033, 0.0
        %v2138 = vmax.f32 %v2036, 0.0
        %v2139 = vmax.f32 %v2038, 0.0
        %v2140 = vmax.f32 %v2041, 0.0
        %v2141 = vmax.f32 %v2043, 0.0
        %v2142 = vmax.f32 %v2046, 0.0
        %v2143 = vmax.f32 %v2048, 0.0
        %v2144 = vmax.f32 %v2051, 0.0
        %v2145 = vmax.f32 %v2053, 0.0
        %v2146 = vmax.f32 %v2056, 0.0
        %v2147 = vmax.f32 %v2058, 0.0
        %v2148 = vmax.f32 %v2061, 0.0
        %v2149 = vmax.f32 %v2063, 0.0
        %v2150 = vmax.f32 %v2066, 0.0
        %v2151 = vmax.f32 %v2068, 0.0
        %v2152 = vmax.f32 %v2071, 0.0
        %v2153 = vmax.f32 %v2073, 0.0
        %v2154 = vmax.f32 %v2076, 0.0
        %v2155 = vmax.f32 %v2078, 0.0
        %v2156 = vmax.f32 %v2081, 0.0
        %v2157 = vmax.f32 %v2083, 0.0
        %v2158 = vmax.f32 %v2086, 0.0
        %v2159 = vmax.f32 %v2088, 0.0
        %v2160 = vmax.f32 %v2091, 0.0
        %v2161 = vmax.f32 %v2093, 0.0
        %v2162 = vmax.f32 %v2096, 0.0
        %v2163 = vmax.f32 %v2098, 0.0
        %v2164 = vlaneseq
        %v2165 = vshrl.u32 %v2164, 7
        %v2166 = vadd.s32 %v2165, 8
        %vm2167 = vcmp.eq.s32.totalorder %v2165, 0
        %vm2168 = vcmp.eq.s32.totalorder %v2166, 0
        %v2169 = vrot.slane %v2100, 7
        %v2170 = vrot.slane %v2102, 7
        %v2171 = vrot.slane %v2104, 7
        %v2172 = vrot.slane %v2106, 7
        %v2173 = vrot.slane %v2108, 7
        %v2174 = vrot.slane %v2110, 7
        %v2175 = vrot.slane %v2112, 7
        %v2176 = vrot.slane %v2114, 7
        %v2177 = vrot.slane %v2116, 7
        %v2178 = vrot.slane %v2118, 7
        %v2179 = vrot.slane %v2120, 7
        %v2180 = vrot.slane %v2122, 7
        %v2181 = vrot.slane %v2124, 7
        %v2182 = vrot.slane %v2126, 7
        %v2183 = vrot.slane %v2128, 7
        %v2184 = vrot.slane %v2130, 7
        %v2185 = vrot.slane %v2132, 7
        %v2186 = vrot.slane %v2134, 7
        %v2187 = vrot.slane %v2136, 7
        %v2188 = vrot.slane %v2138, 7
        %v2189 = vrot.slane %v2140, 7
        %v2190 = vrot.slane %v2142, 7
        %v2191 = vrot.slane %v2144, 7
        %v2192 = vrot.slane %v2146, 7
        %v2193 = vrot.slane %v2148, 7
        %v2194 = vrot.slane %v2150, 7
        %v2195 = vrot.slane %v2152, 7
        %v2196 = vrot.slane %v2154, 7
        %v2197 = vrot.slane %v2156, 7
        %v2198 = vrot.slane %v2158, 7
        %v2199 = vrot.slane %v2160, 7
        %v2200 = vrot.slane %v2162, 7
        %v2201 = vrot.slane %v2101, 7
        %v2202 = vrot.slane %v2103, 7
        %v2203 = vrot.slane %v2105, 7
        %v2204 = vrot.slane %v2107, 7
        %v2205 = vrot.slane %v2109, 7
        %v2206 = vrot.slane %v2111, 7
        %v2207 = vrot.slane %v2113, 7
        %v2208 = vrot.slane %v2115, 7
        %v2209 = vrot.slane %v2117, 7
        %v2210 = vrot.slane %v2119, 7
        %v2211 = vrot.slane %v2121, 7
        %v2212 = vrot.slane %v2123, 7
        %v2213 = vrot.slane %v2125, 7
        %v2214 = vrot.slane %v2127, 7
        %v2215 = vrot.slane %v2129, 7
        %v2216 = vrot.slane %v2131, 7
        %v2217 = vrot.slane %v2133, 7
        %v2218 = vrot.slane %v2135, 7
        %v2219 = vrot.slane %v2137, 7
        %v2220 = vrot.slane %v2139, 7
        %v2221 = vrot.slane %v2141, 7
        %v2222 = vrot.slane %v2143, 7
        %v2223 = vrot.slane %v2145, 7
        %v2224 = vrot.slane %v2147, 7
        %v2225 = vrot.slane %v2149, 7
        %v2226 = vrot.slane %v2151, 7
        %v2227 = vrot.slane %v2153, 7
        %v2228 = vrot.slane %v2155, 7
        %v2229 = vrot.slane %v2157, 7
        %v2230 = vrot.slane %v2159, 7
        %v2231 = vrot.slane %v2161, 7
        %v2232 = vrot.slane %v2163, 7
        %vm2233 = vcmp.lt.s32.totalorder %v2165, 1
        %v2234 = vsel %vm2233, %v2169, %v2201
        %v2235 = vsel %vm2233, %v2170, %v2202
        %v2236 = vsel %vm2233, %v2171, %v2203
        %v2237 = vsel %vm2233, %v2172, %v2204
        %v2238 = vsel %vm2233, %v2173, %v2205
        %v2239 = vsel %vm2233, %v2174, %v2206
        %v2240 = vsel %vm2233, %v2175, %v2207
        %v2241 = vsel %vm2233, %v2176, %v2208
        %v2242 = vsel %vm2233, %v2177, %v2209
        %v2243 = vsel %vm2233, %v2178, %v2210
        %v2244 = vsel %vm2233, %v2179, %v2211
        %v2245 = vsel %vm2233, %v2180, %v2212
        %v2246 = vsel %vm2233, %v2181, %v2213
        %v2247 = vsel %vm2233, %v2182, %v2214
        %v2248 = vsel %vm2233, %v2183, %v2215
        %v2249 = vsel %vm2233, %v2184, %v2216
        %v2250 = vsel %vm2233, %v2185, %v2217
        %v2251 = vsel %vm2233, %v2186, %v2218
        %v2252 = vsel %vm2233, %v2187, %v2219
        %v2253 = vsel %vm2233, %v2188, %v2220
        %v2254 = vsel %vm2233, %v2189, %v2221
        %v2255 = vsel %vm2233, %v2190, %v2222
        %v2256 = vsel %vm2233, %v2191, %v2223
        %v2257 = vsel %vm2233, %v2192, %v2224
        %v2258 = vsel %vm2233, %v2193, %v2225
        %v2259 = vsel %vm2233, %v2194, %v2226
        %v2260 = vsel %vm2233, %v2195, %v2227
        %v2261 = vsel %vm2233, %v2196, %v2228
        %v2262 = vsel %vm2233, %v2197, %v2229
        %v2263 = vsel %vm2233, %v2198, %v2230
        %v2264 = vsel %vm2233, %v2199, %v2231
        %v2265 = vsel %vm2233, %v2200, %v2232
        %v2266 = vsel %vm2233, %v2201, %v2169
        %v2267 = vsel %vm2233, %v2202, %v2170
        %v2268 = vsel %vm2233, %v2203, %v2171
        %v2269 = vsel %vm2233, %v2204, %v2172
        %v2270 = vsel %vm2233, %v2205, %v2173
        %v2271 = vsel %vm2233, %v2206, %v2174
        %v2272 = vsel %vm2233, %v2207, %v2175
        %v2273 = vsel %vm2233, %v2208, %v2176
        %v2274 = vsel %vm2233, %v2209, %v2177
        %v2275 = vsel %vm2233, %v2210, %v2178
        %v2276 = vsel %vm2233, %v2211, %v2179
        %v2277 = vsel %vm2233, %v2212, %v2180
        %v2278 = vsel %vm2233, %v2213, %v2181
        %v2279 = vsel %vm2233, %v2214, %v2182
        %v2280 = vsel %vm2233, %v2215, %v2183
        %v2281 = vsel %vm2233, %v2216, %v2184
        %v2282 = vsel %vm2233, %v2217, %v2185
        %v2283 = vsel %vm2233, %v2218, %v2186
        %v2284 = vsel %vm2233, %v2219, %v2187
        %v2285 = vsel %vm2233, %v2220, %v2188
        %v2286 = vsel %vm2233, %v2221, %v2189
        %v2287 = vsel %vm2233, %v2222, %v2190
        %v2288 = vsel %vm2233, %v2223, %v2191
        %v2289 = vsel %vm2233, %v2224, %v2192
        %v2290 = vsel %vm2233, %v2225, %v2193
        %v2291 = vsel %vm2233, %v2226, %v2194
        %v2292 = vsel %vm2233, %v2227, %v2195
        %v2293 = vsel %vm2233, %v2228, %v2196
        %v2294 = vsel %vm2233, %v2229, %v2197
        %v2295 = vsel %vm2233, %v2230, %v2198
        %v2296 = vsel %vm2233, %v2231, %v2199
        %v2297 = vsel %vm2233, %v2232, %v2200
        %v2298 = vsel %vm2167, 0.0, %v2266
        %v2299 = vsel %vm2168, 0.0, %v2234
        %v2300 = vsel %vm2167, 0.0, %v2267
        %v2301 = vsel %vm2168, 0.0, %v2235
        %v2302 = vsel %vm2167, 0.0, %v2268
        %v2303 = vsel %vm2168, 0.0, %v2236
        %v2304 = vsel %vm2167, 0.0, %v2269
        %v2305 = vsel %vm2168, 0.0, %v2237
        %v2306 = vsel %vm2167, 0.0, %v2270
        %v2307 = vsel %vm2168, 0.0, %v2238
        %v2308 = vsel %vm2167, 0.0, %v2271
        %v2309 = vsel %vm2168, 0.0, %v2239
        %v2310 = vsel %vm2167, 0.0, %v2272
        %v2311 = vsel %vm2168, 0.0, %v2240
        %v2312 = vsel %vm2167, 0.0, %v2273
        %v2313 = vsel %vm2168, 0.0, %v2241
        %v2314 = vsel %vm2167, 0.0, %v2274
        %v2315 = vsel %vm2168, 0.0, %v2242
        %v2316 = vsel %vm2167, 0.0, %v2275
        %v2317 = vsel %vm2168, 0.0, %v2243
        %v2318 = vsel %vm2167, 0.0, %v2276
        %v2319 = vsel %vm2168, 0.0, %v2244
        %v2320 = vsel %vm2167, 0.0, %v2277
        %v2321 = vsel %vm2168, 0.0, %v2245
        %v2322 = vsel %vm2167, 0.0, %v2278
        %v2323 = vsel %vm2168, 0.0, %v2246
        %v2324 = vsel %vm2167, 0.0, %v2279
        %v2325 = vsel %vm2168, 0.0, %v2247
        %v2326 = vsel %vm2167, 0.0, %v2280
        %v2327 = vsel %vm2168, 0.0, %v2248
        %v2328 = vsel %vm2167, 0.0, %v2281
        %v2329 = vsel %vm2168, 0.0, %v2249
        %v2330 = vsel %vm2167, 0.0, %v2282
        %v2331 = vsel %vm2168, 0.0, %v2250
        %v2332 = vsel %vm2167, 0.0, %v2283
        %v2333 = vsel %vm2168, 0.0, %v2251
        %v2334 = vsel %vm2167, 0.0, %v2284
        %v2335 = vsel %vm2168, 0.0, %v2252
        %v2336 = vsel %vm2167, 0.0, %v2285
        %v2337 = vsel %vm2168, 0.0, %v2253
        %v2338 = vsel %vm2167, 0.0, %v2286
        %v2339 = vsel %vm2168, 0.0, %v2254
        %v2340 = vsel %vm2167, 0.0, %v2287
        %v2341 = vsel %vm2168, 0.0, %v2255
        %v2342 = vsel %vm2167, 0.0, %v2288
        %v2343 = vsel %vm2168, 0.0, %v2256
        %v2344 = vsel %vm2167, 0.0, %v2289
        %v2345 = vsel %vm2168, 0.0, %v2257
        %v2346 = vsel %vm2167, 0.0, %v2290
        %v2347 = vsel %vm2168, 0.0, %v2258
        %v2348 = vsel %vm2167, 0.0, %v2291
        %v2349 = vsel %vm2168, 0.0, %v2259
        %v2350 = vsel %vm2167, 0.0, %v2292
        %v2351 = vsel %vm2168, 0.0, %v2260
        %v2352 = vsel %vm2167, 0.0, %v2293
        %v2353 = vsel %vm2168, 0.0, %v2261
        %v2354 = vsel %vm2167, 0.0, %v2294
        %v2355 = vsel %vm2168, 0.0, %v2262
        %v2356 = vsel %vm2167, 0.0, %v2295
        %v2357 = vsel %vm2168, 0.0, %v2263
        %v2358 = vsel %vm2167, 0.0, %v2296
        %v2359 = vsel %vm2168, 0.0, %v2264
        %v2360 = vsel %vm2167, 0.0, %v2297
        %v2361 = vsel %vm2168, 0.0, %v2265
        %vm2362 = vcmp.eq.s32.totalorder %v2165, 15
        %vm2363 = vcmp.eq.s32.totalorder %v2166, 15
        %v2364 = vrot.slane %v2100, 1
        %v2365 = vrot.slane %v2102, 1
        %v2366 = vrot.slane %v2104, 1
        %v2367 = vrot.slane %v2106, 1
        %v2368 = vrot.slane %v2108, 1
        %v2369 = vrot.slane %v2110, 1
        %v2370 = vrot.slane %v2112, 1
        %v2371 = vrot.slane %v2114, 1
        %v2372 = vrot.slane %v2116, 1
        %v2373 = vrot.slane %v2118, 1
        %v2374 = vrot.slane %v2120, 1
        %v2375 = vrot.slane %v2122, 1
        %v2376 = vrot.slane %v2124, 1
        %v2377 = vrot.slane %v2126, 1
        %v2378 = vrot.slane %v2128, 1
        %v2379 = vrot.slane %v2130, 1
        %v2380 = vrot.slane %v2132, 1
        %v2381 = vrot.slane %v2134, 1
        %v2382 = vrot.slane %v2136, 1
        %v2383 = vrot.slane %v2138, 1
        %v2384 = vrot.slane %v2140, 1
        %v2385 = vrot.slane %v2142, 1
        %v2386 = vrot.slane %v2144, 1
        %v2387 = vrot.slane %v2146, 1
        %v2388 = vrot.slane %v2148, 1
        %v2389 = vrot.slane %v2150, 1
        %v2390 = vrot.slane %v2152, 1
        %v2391 = vrot.slane %v2154, 1
        %v2392 = vrot.slane %v2156, 1
        %v2393 = vrot.slane %v2158, 1
        %v2394 = vrot.slane %v2160, 1
        %v2395 = vrot.slane %v2162, 1
        %v2396 = vrot.slane %v2101, 1
        %v2397 = vrot.slane %v2103, 1
        %v2398 = vrot.slane %v2105, 1
        %v2399 = vrot.slane %v2107, 1
        %v2400 = vrot.slane %v2109, 1
        %v2401 = vrot.slane %v2111, 1
        %v2402 = vrot.slane %v2113, 1
        %v2403 = vrot.slane %v2115, 1
        %v2404 = vrot.slane %v2117, 1
        %v2405 = vrot.slane %v2119, 1
        %v2406 = vrot.slane %v2121, 1
        %v2407 = vrot.slane %v2123, 1
        %v2408 = vrot.slane %v2125, 1
        %v2409 = vrot.slane %v2127, 1
        %v2410 = vrot.slane %v2129, 1
        %v2411 = vrot.slane %v2131, 1
        %v2412 = vrot.slane %v2133, 1
        %v2413 = vrot.slane %v2135, 1
        %v2414 = vrot.slane %v2137, 1
        %v2415 = vrot.slane %v2139, 1
        %v2416 = vrot.slane %v2141, 1
        %v2417 = vrot.slane %v2143, 1
        %v2418 = vrot.slane %v2145, 1
        %v2419 = vrot.slane %v2147, 1
        %v2420 = vrot.slane %v2149, 1
        %v2421 = vrot.slane %v2151, 1
        %v2422 = vrot.slane %v2153, 1
        %v2423 = vrot.slane %v2155, 1
        %v2424 = vrot.slane %v2157, 1
        %v2425 = vrot.slane %v2159, 1
        %v2426 = vrot.slane %v2161, 1
        %v2427 = vrot.slane %v2163, 1
        %vm2428 = vcmp.lt.s32.totalorder %v2165, 7
        %v2429 = vsel %vm2428, %v2364, %v2396
        %v2430 = vsel %vm2428, %v2365, %v2397
        %v2431 = vsel %vm2428, %v2366, %v2398
        %v2432 = vsel %vm2428, %v2367, %v2399
        %v2433 = vsel %vm2428, %v2368, %v2400
        %v2434 = vsel %vm2428, %v2369, %v2401
        %v2435 = vsel %vm2428, %v2370, %v2402
        %v2436 = vsel %vm2428, %v2371, %v2403
        %v2437 = vsel %vm2428, %v2372, %v2404
        %v2438 = vsel %vm2428, %v2373, %v2405
        %v2439 = vsel %vm2428, %v2374, %v2406
        %v2440 = vsel %vm2428, %v2375, %v2407
        %v2441 = vsel %vm2428, %v2376, %v2408
        %v2442 = vsel %vm2428, %v2377, %v2409
        %v2443 = vsel %vm2428, %v2378, %v2410
        %v2444 = vsel %vm2428, %v2379, %v2411
        %v2445 = vsel %vm2428, %v2380, %v2412
        %v2446 = vsel %vm2428, %v2381, %v2413
        %v2447 = vsel %vm2428, %v2382, %v2414
        %v2448 = vsel %vm2428, %v2383, %v2415
        %v2449 = vsel %vm2428, %v2384, %v2416
        %v2450 = vsel %vm2428, %v2385, %v2417
        %v2451 = vsel %vm2428, %v2386, %v2418
        %v2452 = vsel %vm2428, %v2387, %v2419
        %v2453 = vsel %vm2428, %v2388, %v2420
        %v2454 = vsel %vm2428, %v2389, %v2421
        %v2455 = vsel %vm2428, %v2390, %v2422
        %v2456 = vsel %vm2428, %v2391, %v2423
        %v2457 = vsel %vm2428, %v2392, %v2424
        %v2458 = vsel %vm2428, %v2393, %v2425
        %v2459 = vsel %vm2428, %v2394, %v2426
        %v2460 = vsel %vm2428, %v2395, %v2427
        %v2461 = vsel %vm2428, %v2396, %v2364
        %v2462 = vsel %vm2428, %v2397, %v2365
        %v2463 = vsel %vm2428, %v2398, %v2366
        %v2464 = vsel %vm2428, %v2399, %v2367
        %v2465 = vsel %vm2428, %v2400, %v2368
        %v2466 = vsel %vm2428, %v2401, %v2369
        %v2467 = vsel %vm2428, %v2402, %v2370
        %v2468 = vsel %vm2428, %v2403, %v2371
        %v2469 = vsel %vm2428, %v2404, %v2372
        %v2470 = vsel %vm2428, %v2405, %v2373
        %v2471 = vsel %vm2428, %v2406, %v2374
        %v2472 = vsel %vm2428, %v2407, %v2375
        %v2473 = vsel %vm2428, %v2408, %v2376
        %v2474 = vsel %vm2428, %v2409, %v2377
        %v2475 = vsel %vm2428, %v2410, %v2378
        %v2476 = vsel %vm2428, %v2411, %v2379
        %v2477 = vsel %vm2428, %v2412, %v2380
        %v2478 = vsel %vm2428, %v2413, %v2381
        %v2479 = vsel %vm2428, %v2414, %v2382
        %v2480 = vsel %vm2428, %v2415, %v2383
        %v2481 = vsel %vm2428, %v2416, %v2384
        %v2482 = vsel %vm2428, %v2417, %v2385
        %v2483 = vsel %vm2428, %v2418, %v2386
        %v2484 = vsel %vm2428, %v2419, %v2387
        %v2485 = vsel %vm2428, %v2420, %v2388
        %v2486 = vsel %vm2428, %v2421, %v2389
        %v2487 = vsel %vm2428, %v2422, %v2390
        %v2488 = vsel %vm2428, %v2423, %v2391
        %v2489 = vsel %vm2428, %v2424, %v2392
        %v2490 = vsel %vm2428, %v2425, %v2393
        %v2491 = vsel %vm2428, %v2426, %v2394
        %v2492 = vsel %vm2428, %v2427, %v2395
        %v2493 = vsel %vm2362, 0.0, %v2429
        %v2494 = vsel %vm2363, 0.0, %v2461
        %v2495 = vsel %vm2362, 0.0, %v2430
        %v2496 = vsel %vm2363, 0.0, %v2462
        %v2497 = vsel %vm2362, 0.0, %v2431
        %v2498 = vsel %vm2363, 0.0, %v2463
        %v2499 = vsel %vm2362, 0.0, %v2432
        %v2500 = vsel %vm2363, 0.0, %v2464
        %v2501 = vsel %vm2362, 0.0, %v2433
        %v2502 = vsel %vm2363, 0.0, %v2465
        %v2503 = vsel %vm2362, 0.0, %v2434
        %v2504 = vsel %vm2363, 0.0, %v2466
        %v2505 = vsel %vm2362, 0.0, %v2435
        %v2506 = vsel %vm2363, 0.0, %v2467
        %v2507 = vsel %vm2362, 0.0, %v2436
        %v2508 = vsel %vm2363, 0.0, %v2468
        %v2509 = vsel %vm2362, 0.0, %v2437
        %v2510 = vsel %vm2363, 0.0, %v2469
        %v2511 = vsel %vm2362, 0.0, %v2438
        %v2512 = vsel %vm2363, 0.0, %v2470
        %v2513 = vsel %vm2362, 0.0, %v2439
        %v2514 = vsel %vm2363, 0.0, %v2471
        %v2515 = vsel %vm2362, 0.0, %v2440
        %v2516 = vsel %vm2363, 0.0, %v2472
        %v2517 = vsel %vm2362, 0.0, %v2441
        %v2518 = vsel %vm2363, 0.0, %v2473
        %v2519 = vsel %vm2362, 0.0, %v2442
        %v2520 = vsel %vm2363, 0.0, %v2474
        %v2521 = vsel %vm2362, 0.0, %v2443
        %v2522 = vsel %vm2363, 0.0, %v2475
        %v2523 = vsel %vm2362, 0.0, %v2444
        %v2524 = vsel %vm2363, 0.0, %v2476
        %v2525 = vsel %vm2362, 0.0, %v2445
        %v2526 = vsel %vm2363, 0.0, %v2477
        %v2527 = vsel %vm2362, 0.0, %v2446
        %v2528 = vsel %vm2363, 0.0, %v2478
        %v2529 = vsel %vm2362, 0.0, %v2447
        %v2530 = vsel %vm2363, 0.0, %v2479
        %v2531 = vsel %vm2362, 0.0, %v2448
        %v2532 = vsel %vm2363, 0.0, %v2480
        %v2533 = vsel %vm2362, 0.0, %v2449
        %v2534 = vsel %vm2363, 0.0, %v2481
        %v2535 = vsel %vm2362, 0.0, %v2450
        %v2536 = vsel %vm2363, 0.0, %v2482
        %v2537 = vsel %vm2362, 0.0, %v2451
        %v2538 = vsel %vm2363, 0.0, %v2483
        %v2539 = vsel %vm2362, 0.0, %v2452
        %v2540 = vsel %vm2363, 0.0, %v2484
        %v2541 = vsel %vm2362, 0.0, %v2453
        %v2542 = vsel %vm2363, 0.0, %v2485
        %v2543 = vsel %vm2362, 0.0, %v2454
        %v2544 = vsel %vm2363, 0.0, %v2486
        %v2545 = vsel %vm2362, 0.0, %v2455
        %v2546 = vsel %vm2363, 0.0, %v2487
        %v2547 = vsel %vm2362, 0.0, %v2456
        %v2548 = vsel %vm2363, 0.0, %v2488
        %v2549 = vsel %vm2362, 0.0, %v2457
        %v2550 = vsel %vm2363, 0.0, %v2489
        %v2551 = vsel %vm2362, 0.0, %v2458
        %v2552 = vsel %vm2363, 0.0, %v2490
        %v2553 = vsel %vm2362, 0.0, %v2459
        %v2554 = vsel %vm2363, 0.0, %v2491
        %v2555 = vsel %vm2362, 0.0, %v2460
        %v2556 = vsel %vm2363, 0.0, %v2492
        %v2557 = vpack.c.bf16 %v2298, %v2298
        %v2558 = vpack.c.bf16 %v2299, %v2299
        %v2559 = vpack.c.bf16 %v2300, %v2300
        %v2560 = vpack.c.bf16 %v2301, %v2301
        %v2561 = vpack.c.bf16 %v2302, %v2302
        %v2562 = vpack.c.bf16 %v2303, %v2303
        %v2563 = vpack.c.bf16 %v2304, %v2304
        %v2564 = vpack.c.bf16 %v2305, %v2305
        %v2565 = vpack.c.bf16 %v2306, %v2306
        %v2566 = vpack.c.bf16 %v2307, %v2307
        %v2567 = vpack.c.bf16 %v2308, %v2308
        %v2568 = vpack.c.bf16 %v2309, %v2309
        %v2569 = vpack.c.bf16 %v2310, %v2310
        %v2570 = vpack.c.bf16 %v2311, %v2311
        %v2571 = vpack.c.bf16 %v2312, %v2312
        %v2572 = vpack.c.bf16 %v2313, %v2313
        %v2573 = vpack.c.bf16 %v2314, %v2314
        %v2574 = vpack.c.bf16 %v2315, %v2315
        %v2575 = vpack.c.bf16 %v2316, %v2316
        %v2576 = vpack.c.bf16 %v2317, %v2317
        %v2577 = vpack.c.bf16 %v2318, %v2318
        %v2578 = vpack.c.bf16 %v2319, %v2319
        %v2579 = vpack.c.bf16 %v2320, %v2320
        %v2580 = vpack.c.bf16 %v2321, %v2321
        %v2581 = vpack.c.bf16 %v2322, %v2322
        %v2582 = vpack.c.bf16 %v2323, %v2323
        %v2583 = vpack.c.bf16 %v2324, %v2324
        %v2584 = vpack.c.bf16 %v2325, %v2325
        %v2585 = vpack.c.bf16 %v2326, %v2326
        %v2586 = vpack.c.bf16 %v2327, %v2327
        %v2587 = vpack.c.bf16 %v2328, %v2328
        %v2588 = vpack.c.bf16 %v2329, %v2329
        %v2589 = vpack.c.bf16 %v2330, %v2330
        %v2590 = vpack.c.bf16 %v2331, %v2331
        %v2591 = vpack.c.bf16 %v2332, %v2332
        %v2592 = vpack.c.bf16 %v2333, %v2333
        %v2593 = vpack.c.bf16 %v2334, %v2334
        %v2594 = vpack.c.bf16 %v2335, %v2335
        %v2595 = vpack.c.bf16 %v2336, %v2336
        %v2596 = vpack.c.bf16 %v2337, %v2337
        %v2597 = vpack.c.bf16 %v2338, %v2338
        %v2598 = vpack.c.bf16 %v2339, %v2339
        %v2599 = vpack.c.bf16 %v2340, %v2340
        %v2600 = vpack.c.bf16 %v2341, %v2341
        %v2601 = vpack.c.bf16 %v2342, %v2342
        %v2602 = vpack.c.bf16 %v2343, %v2343
        %v2603 = vpack.c.bf16 %v2344, %v2344
        %v2604 = vpack.c.bf16 %v2345, %v2345
        %v2605 = vpack.c.bf16 %v2346, %v2346
        %v2606 = vpack.c.bf16 %v2347, %v2347
        %v2607 = vpack.c.bf16 %v2348, %v2348
        %v2608 = vpack.c.bf16 %v2349, %v2349
        %v2609 = vpack.c.bf16 %v2350, %v2350
        %v2610 = vpack.c.bf16 %v2351, %v2351
        %v2611 = vpack.c.bf16 %v2352, %v2352
        %v2612 = vpack.c.bf16 %v2353, %v2353
        %v2613 = vpack.c.bf16 %v2354, %v2354
        %v2614 = vpack.c.bf16 %v2355, %v2355
        %v2615 = vpack.c.bf16 %v2356, %v2356
        %v2616 = vpack.c.bf16 %v2357, %v2357
        %v2617 = vpack.c.bf16 %v2358, %v2358
        %v2618 = vpack.c.bf16 %v2359, %v2359
        %v2619 = vpack.c.bf16 %v2360, %v2360
        %v2620 = vpack.c.bf16 %v2361, %v2361
        %v2621 = vpack.c.bf16 %v2100, %v2100
        %v2622 = vpack.c.bf16 %v2101, %v2101
        %v2623 = vpack.c.bf16 %v2102, %v2102
        %v2624 = vpack.c.bf16 %v2103, %v2103
        %v2625 = vpack.c.bf16 %v2104, %v2104
        %v2626 = vpack.c.bf16 %v2105, %v2105
        %v2627 = vpack.c.bf16 %v2106, %v2106
        %v2628 = vpack.c.bf16 %v2107, %v2107
        %v2629 = vpack.c.bf16 %v2108, %v2108
        %v2630 = vpack.c.bf16 %v2109, %v2109
        %v2631 = vpack.c.bf16 %v2110, %v2110
        %v2632 = vpack.c.bf16 %v2111, %v2111
        %v2633 = vpack.c.bf16 %v2112, %v2112
        %v2634 = vpack.c.bf16 %v2113, %v2113
        %v2635 = vpack.c.bf16 %v2114, %v2114
        %v2636 = vpack.c.bf16 %v2115, %v2115
        %v2637 = vpack.c.bf16 %v2116, %v2116
        %v2638 = vpack.c.bf16 %v2117, %v2117
        %v2639 = vpack.c.bf16 %v2118, %v2118
        %v2640 = vpack.c.bf16 %v2119, %v2119
        %v2641 = vpack.c.bf16 %v2120, %v2120
        %v2642 = vpack.c.bf16 %v2121, %v2121
        %v2643 = vpack.c.bf16 %v2122, %v2122
        %v2644 = vpack.c.bf16 %v2123, %v2123
        %v2645 = vpack.c.bf16 %v2124, %v2124
        %v2646 = vpack.c.bf16 %v2125, %v2125
        %v2647 = vpack.c.bf16 %v2126, %v2126
        %v2648 = vpack.c.bf16 %v2127, %v2127
        %v2649 = vpack.c.bf16 %v2128, %v2128
        %v2650 = vpack.c.bf16 %v2129, %v2129
        %v2651 = vpack.c.bf16 %v2130, %v2130
        %v2652 = vpack.c.bf16 %v2131, %v2131
        %v2653 = vpack.c.bf16 %v2132, %v2132
        %v2654 = vpack.c.bf16 %v2133, %v2133
        %v2655 = vpack.c.bf16 %v2134, %v2134
        %v2656 = vpack.c.bf16 %v2135, %v2135
        %v2657 = vpack.c.bf16 %v2136, %v2136
        %v2658 = vpack.c.bf16 %v2137, %v2137
        %v2659 = vpack.c.bf16 %v2138, %v2138
        %v2660 = vpack.c.bf16 %v2139, %v2139
        %v2661 = vpack.c.bf16 %v2140, %v2140
        %v2662 = vpack.c.bf16 %v2141, %v2141
        %v2663 = vpack.c.bf16 %v2142, %v2142
        %v2664 = vpack.c.bf16 %v2143, %v2143
        %v2665 = vpack.c.bf16 %v2144, %v2144
        %v2666 = vpack.c.bf16 %v2145, %v2145
        %v2667 = vpack.c.bf16 %v2146, %v2146
        %v2668 = vpack.c.bf16 %v2147, %v2147
        %v2669 = vpack.c.bf16 %v2148, %v2148
        %v2670 = vpack.c.bf16 %v2149, %v2149
        %v2671 = vpack.c.bf16 %v2150, %v2150
        %v2672 = vpack.c.bf16 %v2151, %v2151
        %v2673 = vpack.c.bf16 %v2152, %v2152
        %v2674 = vpack.c.bf16 %v2153, %v2153
        %v2675 = vpack.c.bf16 %v2154, %v2154
        %v2676 = vpack.c.bf16 %v2155, %v2155
        %v2677 = vpack.c.bf16 %v2156, %v2156
        %v2678 = vpack.c.bf16 %v2157, %v2157
        %v2679 = vpack.c.bf16 %v2158, %v2158
        %v2680 = vpack.c.bf16 %v2159, %v2159
        %v2681 = vpack.c.bf16 %v2160, %v2160
        %v2682 = vpack.c.bf16 %v2161, %v2161
        %v2683 = vpack.c.bf16 %v2162, %v2162
        %v2684 = vpack.c.bf16 %v2163, %v2163
        %v2685 = vpack.c.bf16 %v2493, %v2493
        %v2686 = vpack.c.bf16 %v2494, %v2494
        %v2687 = vpack.c.bf16 %v2495, %v2495
        %v2688 = vpack.c.bf16 %v2496, %v2496
        %v2689 = vpack.c.bf16 %v2497, %v2497
        %v2690 = vpack.c.bf16 %v2498, %v2498
        %v2691 = vpack.c.bf16 %v2499, %v2499
        %v2692 = vpack.c.bf16 %v2500, %v2500
        %v2693 = vpack.c.bf16 %v2501, %v2501
        %v2694 = vpack.c.bf16 %v2502, %v2502
        %v2695 = vpack.c.bf16 %v2503, %v2503
        %v2696 = vpack.c.bf16 %v2504, %v2504
        %v2697 = vpack.c.bf16 %v2505, %v2505
        %v2698 = vpack.c.bf16 %v2506, %v2506
        %v2699 = vpack.c.bf16 %v2507, %v2507
        %v2700 = vpack.c.bf16 %v2508, %v2508
        %v2701 = vpack.c.bf16 %v2509, %v2509
        %v2702 = vpack.c.bf16 %v2510, %v2510
        %v2703 = vpack.c.bf16 %v2511, %v2511
        %v2704 = vpack.c.bf16 %v2512, %v2512
        %v2705 = vpack.c.bf16 %v2513, %v2513
        %v2706 = vpack.c.bf16 %v2514, %v2514
        %v2707 = vpack.c.bf16 %v2515, %v2515
        %v2708 = vpack.c.bf16 %v2516, %v2516
        %v2709 = vpack.c.bf16 %v2517, %v2517
        %v2710 = vpack.c.bf16 %v2518, %v2518
        %v2711 = vpack.c.bf16 %v2519, %v2519
        %v2712 = vpack.c.bf16 %v2520, %v2520
        %v2713 = vpack.c.bf16 %v2521, %v2521
        %v2714 = vpack.c.bf16 %v2522, %v2522
        %v2715 = vpack.c.bf16 %v2523, %v2523
        %v2716 = vpack.c.bf16 %v2524, %v2524
        %v2717 = vpack.c.bf16 %v2525, %v2525
        %v2718 = vpack.c.bf16 %v2526, %v2526
        %v2719 = vpack.c.bf16 %v2527, %v2527
        %v2720 = vpack.c.bf16 %v2528, %v2528
        %v2721 = vpack.c.bf16 %v2529, %v2529
        %v2722 = vpack.c.bf16 %v2530, %v2530
        %v2723 = vpack.c.bf16 %v2531, %v2531
        %v2724 = vpack.c.bf16 %v2532, %v2532
        %v2725 = vpack.c.bf16 %v2533, %v2533
        %v2726 = vpack.c.bf16 %v2534, %v2534
        %v2727 = vpack.c.bf16 %v2535, %v2535
        %v2728 = vpack.c.bf16 %v2536, %v2536
        %v2729 = vpack.c.bf16 %v2537, %v2537
        %v2730 = vpack.c.bf16 %v2538, %v2538
        %v2731 = vpack.c.bf16 %v2539, %v2539
        %v2732 = vpack.c.bf16 %v2540, %v2540
        %v2733 = vpack.c.bf16 %v2541, %v2541
        %v2734 = vpack.c.bf16 %v2542, %v2542
        %v2735 = vpack.c.bf16 %v2543, %v2543
        %v2736 = vpack.c.bf16 %v2544, %v2544
        %v2737 = vpack.c.bf16 %v2545, %v2545
        %v2738 = vpack.c.bf16 %v2546, %v2546
        %v2739 = vpack.c.bf16 %v2547, %v2547
        %v2740 = vpack.c.bf16 %v2548, %v2548
        %v2741 = vpack.c.bf16 %v2549, %v2549
        %v2742 = vpack.c.bf16 %v2550, %v2550
        %v2743 = vpack.c.bf16 %v2551, %v2551
        %v2744 = vpack.c.bf16 %v2552, %v2552
        %v2745 = vpack.c.bf16 %v2553, %v2553
        %v2746 = vpack.c.bf16 %v2554, %v2554
        %v2747 = vpack.c.bf16 %v2555, %v2555
        %v2748 = vpack.c.bf16 %v2556, %v2556
        %v2813 = vunpack.c.l.b16 %v2557
        %v2814 = vunpack.c.l.b16 %v2558
        %v2815 = vunpack.c.l.b16 %v2559
        %v2816 = vunpack.c.l.b16 %v2560
        %v2817 = vunpack.c.l.b16 %v2561
        %v2818 = vunpack.c.l.b16 %v2562
        %v2819 = vunpack.c.l.b16 %v2563
        %v2820 = vunpack.c.l.b16 %v2564
        %v2821 = vunpack.c.l.b16 %v2565
        %v2822 = vunpack.c.l.b16 %v2566
        %v2823 = vunpack.c.l.b16 %v2567
        %v2824 = vunpack.c.l.b16 %v2568
        %v2825 = vunpack.c.l.b16 %v2569
        %v2826 = vunpack.c.l.b16 %v2570
        %v2827 = vunpack.c.l.b16 %v2571
        %v2828 = vunpack.c.l.b16 %v2572
        %v2829 = vunpack.c.l.b16 %v2573
        %v2830 = vunpack.c.l.b16 %v2574
        %v2831 = vunpack.c.l.b16 %v2575
        %v2832 = vunpack.c.l.b16 %v2576
        %v2833 = vunpack.c.l.b16 %v2577
        %v2834 = vunpack.c.l.b16 %v2578
        %v2835 = vunpack.c.l.b16 %v2579
        %v2836 = vunpack.c.l.b16 %v2580
        %v2837 = vunpack.c.l.b16 %v2581
        %v2838 = vunpack.c.l.b16 %v2582
        %v2839 = vunpack.c.l.b16 %v2583
        %v2840 = vunpack.c.l.b16 %v2584
        %v2841 = vunpack.c.l.b16 %v2585
        %v2842 = vunpack.c.l.b16 %v2586
        %v2843 = vunpack.c.l.b16 %v2587
        %v2844 = vunpack.c.l.b16 %v2588
        %v2845 = vunpack.c.l.b16 %v2589
        %v2846 = vunpack.c.l.b16 %v2590
        %v2847 = vunpack.c.l.b16 %v2591
        %v2848 = vunpack.c.l.b16 %v2592
        %v2849 = vunpack.c.l.b16 %v2593
        %v2850 = vunpack.c.l.b16 %v2594
        %v2851 = vunpack.c.l.b16 %v2595
        %v2852 = vunpack.c.l.b16 %v2596
        %v2853 = vunpack.c.l.b16 %v2597
        %v2854 = vunpack.c.l.b16 %v2598
        %v2855 = vunpack.c.l.b16 %v2599
        %v2856 = vunpack.c.l.b16 %v2600
        %v2857 = vunpack.c.l.b16 %v2601
        %v2858 = vunpack.c.l.b16 %v2602
        %v2859 = vunpack.c.l.b16 %v2603
        %v2860 = vunpack.c.l.b16 %v2604
        %v2861 = vunpack.c.l.b16 %v2605
        %v2862 = vunpack.c.l.b16 %v2606
        %v2863 = vunpack.c.l.b16 %v2607
        %v2864 = vunpack.c.l.b16 %v2608
        %v2865 = vunpack.c.l.b16 %v2609
        %v2866 = vunpack.c.l.b16 %v2610
        %v2867 = vunpack.c.l.b16 %v2611
        %v2868 = vunpack.c.l.b16 %v2612
        %v2869 = vunpack.c.l.b16 %v2613
        %v2870 = vunpack.c.l.b16 %v2614
        %v2871 = vunpack.c.l.b16 %v2615
        %v2872 = vunpack.c.l.b16 %v2616
        %v2873 = vunpack.c.l.b16 %v2617
        %v2874 = vunpack.c.l.b16 %v2618
        %v2875 = vunpack.c.l.b16 %v2619
        %v2876 = vunpack.c.l.b16 %v2620
        %v2877 = vpack.c.b16 %v2814, %v2813
        %v2878 = vpack.c.b16 %v2816, %v2815
        %v2879 = vpack.c.b16 %v2818, %v2817
        %v2880 = vpack.c.b16 %v2820, %v2819
        %v2881 = vpack.c.b16 %v2822, %v2821
        %v2882 = vpack.c.b16 %v2824, %v2823
        %v2883 = vpack.c.b16 %v2826, %v2825
        %v2884 = vpack.c.b16 %v2828, %v2827
        %v2885 = vpack.c.b16 %v2830, %v2829
        %v2886 = vpack.c.b16 %v2832, %v2831
        %v2887 = vpack.c.b16 %v2834, %v2833
        %v2888 = vpack.c.b16 %v2836, %v2835
        %v2889 = vpack.c.b16 %v2838, %v2837
        %v2890 = vpack.c.b16 %v2840, %v2839
        %v2891 = vpack.c.b16 %v2842, %v2841
        %v2892 = vpack.c.b16 %v2844, %v2843
        %v2893 = vpack.c.b16 %v2846, %v2845
        %v2894 = vpack.c.b16 %v2848, %v2847
        %v2895 = vpack.c.b16 %v2850, %v2849
        %v2896 = vpack.c.b16 %v2852, %v2851
        %v2897 = vpack.c.b16 %v2854, %v2853
        %v2898 = vpack.c.b16 %v2856, %v2855
        %v2899 = vpack.c.b16 %v2858, %v2857
        %v2900 = vpack.c.b16 %v2860, %v2859
        %v2901 = vpack.c.b16 %v2862, %v2861
        %v2902 = vpack.c.b16 %v2864, %v2863
        %v2903 = vpack.c.b16 %v2866, %v2865
        %v2904 = vpack.c.b16 %v2868, %v2867
        %v2905 = vpack.c.b16 %v2870, %v2869
        %v2906 = vpack.c.b16 %v2872, %v2871
        %v2907 = vpack.c.b16 %v2874, %v2873
        %v2908 = vpack.c.b16 %v2876, %v2875
        %v3005 = vunpack.c.l.b16 %v2621
        %v3006 = vunpack.c.l.b16 %v2622
        %v3007 = vunpack.c.l.b16 %v2623
        %v3008 = vunpack.c.l.b16 %v2624
        %v3009 = vunpack.c.l.b16 %v2625
        %v3010 = vunpack.c.l.b16 %v2626
        %v3011 = vunpack.c.l.b16 %v2627
        %v3012 = vunpack.c.l.b16 %v2628
        %v3013 = vunpack.c.l.b16 %v2629
        %v3014 = vunpack.c.l.b16 %v2630
        %v3015 = vunpack.c.l.b16 %v2631
        %v3016 = vunpack.c.l.b16 %v2632
        %v3017 = vunpack.c.l.b16 %v2633
        %v3018 = vunpack.c.l.b16 %v2634
        %v3019 = vunpack.c.l.b16 %v2635
        %v3020 = vunpack.c.l.b16 %v2636
        %v3021 = vunpack.c.l.b16 %v2637
        %v3022 = vunpack.c.l.b16 %v2638
        %v3023 = vunpack.c.l.b16 %v2639
        %v3024 = vunpack.c.l.b16 %v2640
        %v3025 = vunpack.c.l.b16 %v2641
        %v3026 = vunpack.c.l.b16 %v2642
        %v3027 = vunpack.c.l.b16 %v2643
        %v3028 = vunpack.c.l.b16 %v2644
        %v3029 = vunpack.c.l.b16 %v2645
        %v3030 = vunpack.c.l.b16 %v2646
        %v3031 = vunpack.c.l.b16 %v2647
        %v3032 = vunpack.c.l.b16 %v2648
        %v3033 = vunpack.c.l.b16 %v2649
        %v3034 = vunpack.c.l.b16 %v2650
        %v3035 = vunpack.c.l.b16 %v2651
        %v3036 = vunpack.c.l.b16 %v2652
        %v3037 = vunpack.c.l.b16 %v2653
        %v3038 = vunpack.c.l.b16 %v2654
        %v3039 = vunpack.c.l.b16 %v2655
        %v3040 = vunpack.c.l.b16 %v2656
        %v3041 = vunpack.c.l.b16 %v2657
        %v3042 = vunpack.c.l.b16 %v2658
        %v3043 = vunpack.c.l.b16 %v2659
        %v3044 = vunpack.c.l.b16 %v2660
        %v3045 = vunpack.c.l.b16 %v2661
        %v3046 = vunpack.c.l.b16 %v2662
        %v3047 = vunpack.c.l.b16 %v2663
        %v3048 = vunpack.c.l.b16 %v2664
        %v3049 = vunpack.c.l.b16 %v2665
        %v3050 = vunpack.c.l.b16 %v2666
        %v3051 = vunpack.c.l.b16 %v2667
        %v3052 = vunpack.c.l.b16 %v2668
        %v3053 = vunpack.c.l.b16 %v2669
        %v3054 = vunpack.c.l.b16 %v2670
        %v3055 = vunpack.c.l.b16 %v2671
        %v3056 = vunpack.c.l.b16 %v2672
        %v3057 = vunpack.c.l.b16 %v2673
        %v3058 = vunpack.c.l.b16 %v2674
        %v3059 = vunpack.c.l.b16 %v2675
        %v3060 = vunpack.c.l.b16 %v2676
        %v3061 = vunpack.c.l.b16 %v2677
        %v3062 = vunpack.c.l.b16 %v2678
        %v3063 = vunpack.c.l.b16 %v2679
        %v3064 = vunpack.c.l.b16 %v2680
        %v3065 = vunpack.c.l.b16 %v2681
        %v3066 = vunpack.c.l.b16 %v2682
        %v3067 = vunpack.c.l.b16 %v2683
        %v3068 = vunpack.c.l.b16 %v2684
        %v3069 = vpack.c.b16 %v3006, %v3005
        %v3070 = vpack.c.b16 %v3008, %v3007
        %v3071 = vpack.c.b16 %v3010, %v3009
        %v3072 = vpack.c.b16 %v3012, %v3011
        %v3073 = vpack.c.b16 %v3014, %v3013
        %v3074 = vpack.c.b16 %v3016, %v3015
        %v3075 = vpack.c.b16 %v3018, %v3017
        %v3076 = vpack.c.b16 %v3020, %v3019
        %v3077 = vpack.c.b16 %v3022, %v3021
        %v3078 = vpack.c.b16 %v3024, %v3023
        %v3079 = vpack.c.b16 %v3026, %v3025
        %v3080 = vpack.c.b16 %v3028, %v3027
        %v3081 = vpack.c.b16 %v3030, %v3029
        %v3082 = vpack.c.b16 %v3032, %v3031
        %v3083 = vpack.c.b16 %v3034, %v3033
        %v3084 = vpack.c.b16 %v3036, %v3035
        %v3085 = vpack.c.b16 %v3038, %v3037
        %v3086 = vpack.c.b16 %v3040, %v3039
        %v3087 = vpack.c.b16 %v3042, %v3041
        %v3088 = vpack.c.b16 %v3044, %v3043
        %v3089 = vpack.c.b16 %v3046, %v3045
        %v3090 = vpack.c.b16 %v3048, %v3047
        %v3091 = vpack.c.b16 %v3050, %v3049
        %v3092 = vpack.c.b16 %v3052, %v3051
        %v3093 = vpack.c.b16 %v3054, %v3053
        %v3094 = vpack.c.b16 %v3056, %v3055
        %v3095 = vpack.c.b16 %v3058, %v3057
        %v3096 = vpack.c.b16 %v3060, %v3059
        %v3097 = vpack.c.b16 %v3062, %v3061
        %v3098 = vpack.c.b16 %v3064, %v3063
        %v3099 = vpack.c.b16 %v3066, %v3065
        %v3100 = vpack.c.b16 %v3068, %v3067
        %v3197 = vunpack.c.l.b16 %v2685
        %v3198 = vunpack.c.l.b16 %v2686
        %v3199 = vunpack.c.l.b16 %v2687
        %v3200 = vunpack.c.l.b16 %v2688
        %v3201 = vunpack.c.l.b16 %v2689
        %v3202 = vunpack.c.l.b16 %v2690
        %v3203 = vunpack.c.l.b16 %v2691
        %v3204 = vunpack.c.l.b16 %v2692
        %v3205 = vunpack.c.l.b16 %v2693
        %v3206 = vunpack.c.l.b16 %v2694
        %v3207 = vunpack.c.l.b16 %v2695
        %v3208 = vunpack.c.l.b16 %v2696
        %v3209 = vunpack.c.l.b16 %v2697
        %v3210 = vunpack.c.l.b16 %v2698
        %v3211 = vunpack.c.l.b16 %v2699
        %v3212 = vunpack.c.l.b16 %v2700
        %v3213 = vunpack.c.l.b16 %v2701
        %v3214 = vunpack.c.l.b16 %v2702
        %v3215 = vunpack.c.l.b16 %v2703
        %v3216 = vunpack.c.l.b16 %v2704
        %v3217 = vunpack.c.l.b16 %v2705
        %v3218 = vunpack.c.l.b16 %v2706
        %v3219 = vunpack.c.l.b16 %v2707
        %v3220 = vunpack.c.l.b16 %v2708
        %v3221 = vunpack.c.l.b16 %v2709
        %v3222 = vunpack.c.l.b16 %v2710
        %v3223 = vunpack.c.l.b16 %v2711
        %v3224 = vunpack.c.l.b16 %v2712
        %v3225 = vunpack.c.l.b16 %v2713
        %v3226 = vunpack.c.l.b16 %v2714
        %v3227 = vunpack.c.l.b16 %v2715
        %v3228 = vunpack.c.l.b16 %v2716
        %v3229 = vunpack.c.l.b16 %v2717
        %v3230 = vunpack.c.l.b16 %v2718
        %v3231 = vunpack.c.l.b16 %v2719
        %v3232 = vunpack.c.l.b16 %v2720
        %v3233 = vunpack.c.l.b16 %v2721
        %v3234 = vunpack.c.l.b16 %v2722
        %v3235 = vunpack.c.l.b16 %v2723
        %v3236 = vunpack.c.l.b16 %v2724
        %v3237 = vunpack.c.l.b16 %v2725
        %v3238 = vunpack.c.l.b16 %v2726
        %v3239 = vunpack.c.l.b16 %v2727
        %v3240 = vunpack.c.l.b16 %v2728
        %v3241 = vunpack.c.l.b16 %v2729
        %v3242 = vunpack.c.l.b16 %v2730
        %v3243 = vunpack.c.l.b16 %v2731
        %v3244 = vunpack.c.l.b16 %v2732
        %v3245 = vunpack.c.l.b16 %v2733
        %v3246 = vunpack.c.l.b16 %v2734
        %v3247 = vunpack.c.l.b16 %v2735
        %v3248 = vunpack.c.l.b16 %v2736
        %v3249 = vunpack.c.l.b16 %v2737
        %v3250 = vunpack.c.l.b16 %v2738
        %v3251 = vunpack.c.l.b16 %v2739
        %v3252 = vunpack.c.l.b16 %v2740
        %v3253 = vunpack.c.l.b16 %v2741
        %v3254 = vunpack.c.l.b16 %v2742
        %v3255 = vunpack.c.l.b16 %v2743
        %v3256 = vunpack.c.l.b16 %v2744
        %v3257 = vunpack.c.l.b16 %v2745
        %v3258 = vunpack.c.l.b16 %v2746
        %v3259 = vunpack.c.l.b16 %v2747
        %v3260 = vunpack.c.l.b16 %v2748
        %v3261 = vpack.c.b16 %v3198, %v3197
        %v3262 = vpack.c.b16 %v3200, %v3199
        %v3263 = vpack.c.b16 %v3202, %v3201
        %v3264 = vpack.c.b16 %v3204, %v3203
        %v3265 = vpack.c.b16 %v3206, %v3205
        %v3266 = vpack.c.b16 %v3208, %v3207
        %v3267 = vpack.c.b16 %v3210, %v3209
        %v3268 = vpack.c.b16 %v3212, %v3211
        %v3269 = vpack.c.b16 %v3214, %v3213
        %v3270 = vpack.c.b16 %v3216, %v3215
        %v3271 = vpack.c.b16 %v3218, %v3217
        %v3272 = vpack.c.b16 %v3220, %v3219
        %v3273 = vpack.c.b16 %v3222, %v3221
        %v3274 = vpack.c.b16 %v3224, %v3223
        %v3275 = vpack.c.b16 %v3226, %v3225
        %v3276 = vpack.c.b16 %v3228, %v3227
        %v3277 = vpack.c.b16 %v3230, %v3229
        %v3278 = vpack.c.b16 %v3232, %v3231
        %v3279 = vpack.c.b16 %v3234, %v3233
        %v3280 = vpack.c.b16 %v3236, %v3235
        %v3281 = vpack.c.b16 %v3238, %v3237
        %v3282 = vpack.c.b16 %v3240, %v3239
        %v3283 = vpack.c.b16 %v3242, %v3241
        %v3284 = vpack.c.b16 %v3244, %v3243
        %v3285 = vpack.c.b16 %v3246, %v3245
        %v3286 = vpack.c.b16 %v3248, %v3247
        %v3287 = vpack.c.b16 %v3250, %v3249
        %v3288 = vpack.c.b16 %v3252, %v3251
        %v3289 = vpack.c.b16 %v3254, %v3253
        %v3290 = vpack.c.b16 %v3256, %v3255
        %v3291 = vpack.c.b16 %v3258, %v3257
        %v3292 = vpack.c.b16 %v3260, %v3259
        %v3325 = vld [vmem:[#allocation8] sm:$0xf]
        %v3326 = vld [vmem:[#allocation8 + $0x4] sm:$0xf]
        %v3327 = vld [vmem:[#allocation8 + $0x8] sm:$0xf]
        %v3328 = vld [vmem:[#allocation8 + $0xc] sm:$0xf]
        %v3329 = vld [vmem:[#allocation8 + $0x10] sm:$0xf]
        %v3330 = vld [vmem:[#allocation8 + $0x14] sm:$0xf]
        %v3331 = vld [vmem:[#allocation8 + $0x18] sm:$0xf]
        %v3332 = vld [vmem:[#allocation8 + $0x1c] sm:$0xf]
        %v3333 = vld [vmem:[#allocation8 + $0x20] sm:$0xf]
        %v3334 = vld [vmem:[#allocation8 + $0x24] sm:$0xf]
        %v3335 = vld [vmem:[#allocation8 + $0x28] sm:$0xf]
        %v3336 = vld [vmem:[#allocation8 + $0x2c] sm:$0xf]
        %v3337 = vld [vmem:[#allocation8 + $0x30] sm:$0xf]
        %v3338 = vld [vmem:[#allocation8 + $0x34] sm:$0xf]
        %v3339 = vld [vmem:[#allocation8 + $0x38] sm:$0xf]
        %v3340 = vld [vmem:[#allocation8 + $0x3c] sm:$0xf]
        %v3341 = vld [vmem:[#allocation8 + $0x40] sm:$0xf]
        %v3342 = vld [vmem:[#allocation8 + $0x44] sm:$0xf]
        %v3343 = vld [vmem:[#allocation8 + $0x48] sm:$0xf]
        %v3344 = vld [vmem:[#allocation8 + $0x4c] sm:$0xf]
        %v3345 = vld [vmem:[#allocation8 + $0x50] sm:$0xf]
        %v3346 = vld [vmem:[#allocation8 + $0x54] sm:$0xf]
        %v3347 = vld [vmem:[#allocation8 + $0x58] sm:$0xf]
        %v3348 = vld [vmem:[#allocation8 + $0x5c] sm:$0xf]
        %v3349 = vld [vmem:[#allocation8 + $0x60] sm:$0xf]
        %v3350 = vld [vmem:[#allocation8 + $0x64] sm:$0xf]
        %v3351 = vld [vmem:[#allocation8 + $0x68] sm:$0xf]
        %v3352 = vld [vmem:[#allocation8 + $0x6c] sm:$0xf]
        %v3353 = vld [vmem:[#allocation8 + $0x70] sm:$0xf]
        %v3354 = vld [vmem:[#allocation8 + $0x74] sm:$0xf]
        %v3355 = vld [vmem:[#allocation8 + $0x78] sm:$0xf]
        %v3356 = vld [vmem:[#allocation8 + $0x7c] sm:$0xf]
        %v3357 = vld [vmem:[#allocation8 + $0x80] sm:$0xf]
        %v3358 = vld [vmem:[#allocation8 + $0x84] sm:$0xf]
        %v3359 = vld [vmem:[#allocation8 + $0x88] sm:$0xf]
        %v3360 = vld [vmem:[#allocation8 + $0x8c] sm:$0xf]
        %v3361 = vld [vmem:[#allocation8 + $0x90] sm:$0xf]
        %v3362 = vld [vmem:[#allocation8 + $0x94] sm:$0xf]
        %v3363 = vld [vmem:[#allocation8 + $0x98] sm:$0xf]
        %v3364 = vld [vmem:[#allocation8 + $0x9c] sm:$0xf]
        %v3365 = vld [vmem:[#allocation8 + $0xa0] sm:$0xf]
        %v3366 = vld [vmem:[#allocation8 + $0xa4] sm:$0xf]
        %v3367 = vld [vmem:[#allocation8 + $0xa8] sm:$0xf]
        %v3368 = vld [vmem:[#allocation8 + $0xac] sm:$0xf]
        %v3369 = vld [vmem:[#allocation8 + $0xb0] sm:$0xf]
        %v3370 = vld [vmem:[#allocation8 + $0xb4] sm:$0xf]
        %v3371 = vld [vmem:[#allocation8 + $0xb8] sm:$0xf]
        %v3372 = vld [vmem:[#allocation8 + $0xbc] sm:$0xf]
        %s3373 = scalar_lea.vmem [#allocation8], 192
        %v3374 = vld [vmem:[%s3373] sm:$0xf]
        %v3375 = vld [vmem:[%s3373 + $0x4] sm:$0xf]
        %v3376 = vld [vmem:[%s3373 + $0x8] sm:$0xf]
        %v3377 = vld [vmem:[%s3373 + $0xc] sm:$0xf]
        %v3378 = vld [vmem:[%s3373 + $0x10] sm:$0xf]
        %v3379 = vld [vmem:[%s3373 + $0x14] sm:$0xf]
        %v3380 = vld [vmem:[%s3373 + $0x18] sm:$0xf]
        %v3381 = vld [vmem:[%s3373 + $0x1c] sm:$0xf]
        %v3382 = vld [vmem:[%s3373 + $0x20] sm:$0xf]
        %v3383 = vld [vmem:[%s3373 + $0x24] sm:$0xf]
        %v3384 = vld [vmem:[%s3373 + $0x28] sm:$0xf]
        %v3385 = vld [vmem:[%s3373 + $0x2c] sm:$0xf]
        %v3386 = vld [vmem:[%s3373 + $0x30] sm:$0xf]
        %v3387 = vld [vmem:[%s3373 + $0x34] sm:$0xf]
        %v3388 = vld [vmem:[%s3373 + $0x38] sm:$0xf]
        %v3389 = vld [vmem:[%s3373 + $0x3c] sm:$0xf]
        %v3390 = vld [vmem:[%s3373 + $0x40] sm:$0xf]
        %v3391 = vld [vmem:[%s3373 + $0x44] sm:$0xf]
        %v3392 = vld [vmem:[%s3373 + $0x48] sm:$0xf]
        %v3393 = vld [vmem:[%s3373 + $0x4c] sm:$0xf]
        %v3394 = vld [vmem:[%s3373 + $0x50] sm:$0xf]
        %v3395 = vld [vmem:[%s3373 + $0x54] sm:$0xf]
        %v3396 = vld [vmem:[%s3373 + $0x58] sm:$0xf]
        %v3397 = vld [vmem:[%s3373 + $0x5c] sm:$0xf]
        %v3398 = vld [vmem:[%s3373 + $0x60] sm:$0xf]
        %v3399 = vld [vmem:[%s3373 + $0x64] sm:$0xf]
        %v3400 = vld [vmem:[%s3373 + $0x68] sm:$0xf]
        %v3401 = vld [vmem:[%s3373 + $0x6c] sm:$0xf]
        %v3402 = vld [vmem:[%s3373 + $0x70] sm:$0xf]
        %v3403 = vld [vmem:[%s3373 + $0x74] sm:$0xf]
        %v3404 = vld [vmem:[%s3373 + $0x78] sm:$0xf]
        %v3405 = vld [vmem:[%s3373 + $0x7c] sm:$0xf]
        %v3406 = vld [vmem:[%s3373 + $0x80] sm:$0xf]
        %v3407 = vld [vmem:[%s3373 + $0x84] sm:$0xf]
        %v3408 = vld [vmem:[%s3373 + $0x88] sm:$0xf]
        %v3409 = vld [vmem:[%s3373 + $0x8c] sm:$0xf]
        %v3410 = vld [vmem:[%s3373 + $0x90] sm:$0xf]
        %v3411 = vld [vmem:[%s3373 + $0x94] sm:$0xf]
        %v3412 = vld [vmem:[%s3373 + $0x98] sm:$0xf]
        %v3413 = vld [vmem:[%s3373 + $0x9c] sm:$0xf]
        %v3414 = vld [vmem:[%s3373 + $0xa0] sm:$0xf]
        %v3415 = vld [vmem:[%s3373 + $0xa4] sm:$0xf]
        %v3416 = vld [vmem:[%s3373 + $0xa8] sm:$0xf]
        %v3417 = vld [vmem:[%s3373 + $0xac] sm:$0xf]
        %v3418 = vld [vmem:[%s3373 + $0xb0] sm:$0xf]
        %v3419 = vld [vmem:[%s3373 + $0xb4] sm:$0xf]
        %v3420 = vld [vmem:[%s3373 + $0xb8] sm:$0xf]
        %v3421 = vld [vmem:[%s3373 + $0xbc] sm:$0xf]
        %v3470 = vunpack.c.l.b16 %v3374
        %v3471 = vunpack.c.l.b16 %v3375
        %v3472 = vunpack.c.l.b16 %v3376
        %v3473 = vunpack.c.l.b16 %v3377
        %v3474 = vunpack.c.l.b16 %v3378
        %v3475 = vunpack.c.l.b16 %v3379
        %v3476 = vunpack.c.l.b16 %v3380
        %v3477 = vunpack.c.l.b16 %v3381
        %v3478 = vunpack.c.l.b16 %v3382
        %v3479 = vunpack.c.l.b16 %v3383
        %v3480 = vunpack.c.l.b16 %v3384
        %v3481 = vunpack.c.l.b16 %v3385
        %v3482 = vunpack.c.l.b16 %v3386
        %v3483 = vunpack.c.l.b16 %v3387
        %v3484 = vunpack.c.l.b16 %v3388
        %v3485 = vunpack.c.l.b16 %v3389
        %v3486 = vunpack.c.l.b16 %v3390
        %v3487 = vunpack.c.l.b16 %v3391
        %v3488 = vunpack.c.l.b16 %v3392
        %v3489 = vunpack.c.l.b16 %v3393
        %v3490 = vunpack.c.l.b16 %v3394
        %v3491 = vunpack.c.l.b16 %v3395
        %v3492 = vunpack.c.l.b16 %v3396
        %v3493 = vunpack.c.l.b16 %v3397
        %v3494 = vunpack.c.l.b16 %v3398
        %v3495 = vunpack.c.l.b16 %v3399
        %v3496 = vunpack.c.l.b16 %v3400
        %v3497 = vunpack.c.l.b16 %v3401
        %v3498 = vunpack.c.l.b16 %v3402
        %v3499 = vunpack.c.l.b16 %v3403
        %v3500 = vunpack.c.l.b16 %v3404
        %v3501 = vunpack.c.l.b16 %v3405
        %v3502 = vunpack.c.l.b16 %v3406
        %v3503 = vunpack.c.l.b16 %v3407
        %v3504 = vunpack.c.l.b16 %v3408
        %v3505 = vunpack.c.l.b16 %v3409
        %v3506 = vunpack.c.l.b16 %v3410
        %v3507 = vunpack.c.l.b16 %v3411
        %v3508 = vunpack.c.l.b16 %v3412
        %v3509 = vunpack.c.l.b16 %v3413
        %v3510 = vunpack.c.l.b16 %v3414
        %v3511 = vunpack.c.l.b16 %v3415
        %v3512 = vunpack.c.l.b16 %v3416
        %v3513 = vunpack.c.l.b16 %v3417
        %v3514 = vunpack.c.l.b16 %v3418
        %v3515 = vunpack.c.l.b16 %v3419
        %v3516 = vunpack.c.l.b16 %v3420
        %v3517 = vunpack.c.l.b16 %v3421
        %v3518 = vpack.c.b16 %v3471, %v3470
        %v3519 = vpack.c.b16 %v3473, %v3472
        %v3520 = vpack.c.b16 %v3475, %v3474
        %v3521 = vpack.c.b16 %v3477, %v3476
        %v3522 = vpack.c.b16 %v3479, %v3478
        %v3523 = vpack.c.b16 %v3481, %v3480
        %v3524 = vpack.c.b16 %v3483, %v3482
        %v3525 = vpack.c.b16 %v3485, %v3484
        %v3526 = vpack.c.b16 %v3487, %v3486
        %v3527 = vpack.c.b16 %v3489, %v3488
        %v3528 = vpack.c.b16 %v3491, %v3490
        %v3529 = vpack.c.b16 %v3493, %v3492
        %v3530 = vpack.c.b16 %v3495, %v3494
        %v3531 = vpack.c.b16 %v3497, %v3496
        %v3532 = vpack.c.b16 %v3499, %v3498
        %v3533 = vpack.c.b16 %v3501, %v3500
        %v3534 = vpack.c.b16 %v3503, %v3502
        %v3535 = vpack.c.b16 %v3505, %v3504
        %v3536 = vpack.c.b16 %v3507, %v3506
        %v3537 = vpack.c.b16 %v3509, %v3508
        %v3538 = vpack.c.b16 %v3511, %v3510
        %v3539 = vpack.c.b16 %v3513, %v3512
        %v3540 = vpack.c.b16 %v3515, %v3514
        %v3541 = vpack.c.b16 %v3517, %v3516
        %3566 = vmatpush.bf16.msra.mxu0 %v3525
        %3567 = vmatpush.bf16.msra.mxu0 %v3524
        %3568 = vmatpush.bf16.msra.mxu0 %v3523
        %3569 = vmatpush.bf16.msra.mxu0 %v3522
        %3570 = vmatpush.bf16.msra.mxu0 %v3521
        %3571 = vmatpush.bf16.msra.mxu0 %v3520
        %3572 = vmatpush.bf16.msra.mxu0 %v3519
        %3573 = vmatpush.bf16.msra.mxu0 %v3518
        %3574 = vmatmul.bf16.gmra.mxu0 %v2877
        %v3575 = vpop.f32.mrf.mxu0
        %v3576 = vadd.f32 0.0, %v3575
        %v3577 = vpop.f32.mrf.mxu0
        %v3578 = vadd.f32 0.0, %v3577
        %3579 = vmatmul.bf16.gmra.mxu0 %v2878
        %v3580 = vpop.f32.mrf.mxu0
        %v3581 = vadd.f32 0.0, %v3580
        %v3582 = vpop.f32.mrf.mxu0
        %v3583 = vadd.f32 0.0, %v3582
        %3584 = vmatmul.bf16.gmra.mxu0 %v2879
        %v3585 = vpop.f32.mrf.mxu0
        %v3586 = vadd.f32 0.0, %v3585
        %v3587 = vpop.f32.mrf.mxu0
        %v3588 = vadd.f32 0.0, %v3587
        %3589 = vmatmul.bf16.gmra.mxu0 %v2880
        %v3590 = vpop.f32.mrf.mxu0
        %v3591 = vadd.f32 0.0, %v3590
        %v3592 = vpop.f32.mrf.mxu0
        %v3593 = vadd.f32 0.0, %v3592
        %3594 = vmatmul.bf16.gmra.mxu0 %v2881
        %v3595 = vpop.f32.mrf.mxu0
        %v3596 = vadd.f32 0.0, %v3595
        %v3597 = vpop.f32.mrf.mxu0
        %v3598 = vadd.f32 0.0, %v3597
        %3599 = vmatmul.bf16.gmra.mxu0 %v2882
        %v3600 = vpop.f32.mrf.mxu0
        %v3601 = vadd.f32 0.0, %v3600
        %v3602 = vpop.f32.mrf.mxu0
        %v3603 = vadd.f32 0.0, %v3602
        %3604 = vmatmul.bf16.gmra.mxu0 %v2883
        %v3605 = vpop.f32.mrf.mxu0
        %v3606 = vadd.f32 0.0, %v3605
        %v3607 = vpop.f32.mrf.mxu0
        %v3608 = vadd.f32 0.0, %v3607
        %3609 = vmatmul.bf16.gmra.mxu0 %v2884
        %v3610 = vpop.f32.mrf.mxu0
        %v3611 = vadd.f32 0.0, %v3610
        %v3612 = vpop.f32.mrf.mxu0
        %v3613 = vadd.f32 0.0, %v3612
        %3614 = vmatmul.bf16.gmra.mxu0 %v2885
        %v3615 = vpop.f32.mrf.mxu0
        %v3616 = vadd.f32 0.0, %v3615
        %v3617 = vpop.f32.mrf.mxu0
        %v3618 = vadd.f32 0.0, %v3617
        %3619 = vmatmul.bf16.gmra.mxu0 %v2886
        %v3620 = vpop.f32.mrf.mxu0
        %v3621 = vadd.f32 0.0, %v3620
        %v3622 = vpop.f32.mrf.mxu0
        %v3623 = vadd.f32 0.0, %v3622
        %3624 = vmatmul.bf16.gmra.mxu0 %v2887
        %v3625 = vpop.f32.mrf.mxu0
        %v3626 = vadd.f32 0.0, %v3625
        %v3627 = vpop.f32.mrf.mxu0
        %v3628 = vadd.f32 0.0, %v3627
        %3629 = vmatmul.bf16.gmra.mxu0 %v2888
        %v3630 = vpop.f32.mrf.mxu0
        %v3631 = vadd.f32 0.0, %v3630
        %v3632 = vpop.f32.mrf.mxu0
        %v3633 = vadd.f32 0.0, %v3632
        %3634 = vmatmul.bf16.gmra.mxu0 %v2889
        %v3635 = vpop.f32.mrf.mxu0
        %v3636 = vadd.f32 0.0, %v3635
        %v3637 = vpop.f32.mrf.mxu0
        %v3638 = vadd.f32 0.0, %v3637
        %3639 = vmatmul.bf16.gmra.mxu0 %v2890
        %v3640 = vpop.f32.mrf.mxu0
        %v3641 = vadd.f32 0.0, %v3640
        %v3642 = vpop.f32.mrf.mxu0
        %v3643 = vadd.f32 0.0, %v3642
        %3644 = vmatmul.bf16.gmra.mxu0 %v2891
        %v3645 = vpop.f32.mrf.mxu0
        %v3646 = vadd.f32 0.0, %v3645
        %v3647 = vpop.f32.mrf.mxu0
        %v3648 = vadd.f32 0.0, %v3647
        %3649 = vmatmul.bf16.gmra.mxu0 %v2892
        %v3650 = vpop.f32.mrf.mxu0
        %v3651 = vadd.f32 0.0, %v3650
        %v3652 = vpop.f32.mrf.mxu0
        %v3653 = vadd.f32 0.0, %v3652
        %3654 = vmatmul.bf16.gmra.mxu0 %v2893
        %v3655 = vpop.f32.mrf.mxu0
        %v3656 = vadd.f32 0.0, %v3655
        %v3657 = vpop.f32.mrf.mxu0
        %v3658 = vadd.f32 0.0, %v3657
        %3659 = vmatmul.bf16.gmra.mxu0 %v2894
        %v3660 = vpop.f32.mrf.mxu0
        %v3661 = vadd.f32 0.0, %v3660
        %v3662 = vpop.f32.mrf.mxu0
        %v3663 = vadd.f32 0.0, %v3662
        %3664 = vmatmul.bf16.gmra.mxu0 %v2895
        %v3665 = vpop.f32.mrf.mxu0
        %v3666 = vadd.f32 0.0, %v3665
        %v3667 = vpop.f32.mrf.mxu0
        %v3668 = vadd.f32 0.0, %v3667
        %3669 = vmatmul.bf16.gmra.mxu0 %v2896
        %v3670 = vpop.f32.mrf.mxu0
        %v3671 = vadd.f32 0.0, %v3670
        %v3672 = vpop.f32.mrf.mxu0
        %v3673 = vadd.f32 0.0, %v3672
        %3674 = vmatmul.bf16.gmra.mxu0 %v2897
        %v3675 = vpop.f32.mrf.mxu0
        %v3676 = vadd.f32 0.0, %v3675
        %v3677 = vpop.f32.mrf.mxu0
        %v3678 = vadd.f32 0.0, %v3677
        %3679 = vmatmul.bf16.gmra.mxu0 %v2898
        %v3680 = vpop.f32.mrf.mxu0
        %v3681 = vadd.f32 0.0, %v3680
        %v3682 = vpop.f32.mrf.mxu0
        %v3683 = vadd.f32 0.0, %v3682
        %3684 = vmatmul.bf16.gmra.mxu0 %v2899
        %v3685 = vpop.f32.mrf.mxu0
        %v3686 = vadd.f32 0.0, %v3685
        %v3687 = vpop.f32.mrf.mxu0
        %v3688 = vadd.f32 0.0, %v3687
        %3689 = vmatmul.bf16.gmra.mxu0 %v2900
        %v3690 = vpop.f32.mrf.mxu0
        %v3691 = vadd.f32 0.0, %v3690
        %v3692 = vpop.f32.mrf.mxu0
        %v3693 = vadd.f32 0.0, %v3692
        %3694 = vmatmul.bf16.gmra.mxu0 %v2901
        %v3695 = vpop.f32.mrf.mxu0
        %v3696 = vadd.f32 0.0, %v3695
        %v3697 = vpop.f32.mrf.mxu0
        %v3698 = vadd.f32 0.0, %v3697
        %3699 = vmatmul.bf16.gmra.mxu0 %v2902
        %v3700 = vpop.f32.mrf.mxu0
        %v3701 = vadd.f32 0.0, %v3700
        %v3702 = vpop.f32.mrf.mxu0
        %v3703 = vadd.f32 0.0, %v3702
        %3704 = vmatmul.bf16.gmra.mxu0 %v2903
        %v3705 = vpop.f32.mrf.mxu0
        %v3706 = vadd.f32 0.0, %v3705
        %v3707 = vpop.f32.mrf.mxu0
        %v3708 = vadd.f32 0.0, %v3707
        %3709 = vmatmul.bf16.gmra.mxu0 %v2904
        %v3710 = vpop.f32.mrf.mxu0
        %v3711 = vadd.f32 0.0, %v3710
        %v3712 = vpop.f32.mrf.mxu0
        %v3713 = vadd.f32 0.0, %v3712
        %3714 = vmatmul.bf16.gmra.mxu0 %v2905
        %v3715 = vpop.f32.mrf.mxu0
        %v3716 = vadd.f32 0.0, %v3715
        %v3717 = vpop.f32.mrf.mxu0
        %v3718 = vadd.f32 0.0, %v3717
        %3719 = vmatmul.bf16.gmra.mxu0 %v2906
        %v3720 = vpop.f32.mrf.mxu0
        %v3721 = vadd.f32 0.0, %v3720
        %v3722 = vpop.f32.mrf.mxu0
        %v3723 = vadd.f32 0.0, %v3722
        %3724 = vmatmul.bf16.gmra.mxu0 %v2907
        %v3725 = vpop.f32.mrf.mxu0
        %v3726 = vadd.f32 0.0, %v3725
        %v3727 = vpop.f32.mrf.mxu0
        %v3728 = vadd.f32 0.0, %v3727
        %3729 = vmatmul.bf16.gmra.mxu0 %v2908
        %v3730 = vpop.f32.mrf.mxu0
        %v3731 = vadd.f32 0.0, %v3730
        %v3732 = vpop.f32.mrf.mxu0
        %v3733 = vadd.f32 0.0, %v3732
        %3734 = vdwg.mxu0
        %3735 = vmatpush.bf16.msra.mxu0 %v3533
        %3736 = vmatpush.bf16.msra.mxu0 %v3532
        %3737 = vmatpush.bf16.msra.mxu0 %v3531
        %3738 = vmatpush.bf16.msra.mxu0 %v3530
        %3739 = vmatpush.bf16.msra.mxu0 %v3529
        %3740 = vmatpush.bf16.msra.mxu0 %v3528
        %3741 = vmatpush.bf16.msra.mxu0 %v3527
        %3742 = vmatpush.bf16.msra.mxu0 %v3526
        %3743 = vmatmul.bf16.gmra.mxu0 %v3069
        %v3744 = vpop.f32.mrf.mxu0
        %v3745 = vadd.f32 %v3576, %v3744
        %v3746 = vpop.f32.mrf.mxu0
        %v3747 = vadd.f32 %v3578, %v3746
        %3748 = vmatmul.bf16.gmra.mxu0 %v3070
        %v3749 = vpop.f32.mrf.mxu0
        %v3750 = vadd.f32 %v3581, %v3749
        %v3751 = vpop.f32.mrf.mxu0
        %v3752 = vadd.f32 %v3583, %v3751
        %3753 = vmatmul.bf16.gmra.mxu0 %v3071
        %v3754 = vpop.f32.mrf.mxu0
        %v3755 = vadd.f32 %v3586, %v3754
        %v3756 = vpop.f32.mrf.mxu0
        %v3757 = vadd.f32 %v3588, %v3756
        %3758 = vmatmul.bf16.gmra.mxu0 %v3072
        %v3759 = vpop.f32.mrf.mxu0
        %v3760 = vadd.f32 %v3591, %v3759
        %v3761 = vpop.f32.mrf.mxu0
        %v3762 = vadd.f32 %v3593, %v3761
        %3763 = vmatmul.bf16.gmra.mxu0 %v3073
        %v3764 = vpop.f32.mrf.mxu0
        %v3765 = vadd.f32 %v3596, %v3764
        %v3766 = vpop.f32.mrf.mxu0
        %v3767 = vadd.f32 %v3598, %v3766
        %3768 = vmatmul.bf16.gmra.mxu0 %v3074
        %v3769 = vpop.f32.mrf.mxu0
        %v3770 = vadd.f32 %v3601, %v3769
        %v3771 = vpop.f32.mrf.mxu0
        %v3772 = vadd.f32 %v3603, %v3771
        %3773 = vmatmul.bf16.gmra.mxu0 %v3075
        %v3774 = vpop.f32.mrf.mxu0
        %v3775 = vadd.f32 %v3606, %v3774
        %v3776 = vpop.f32.mrf.mxu0
        %v3777 = vadd.f32 %v3608, %v3776
        %3778 = vmatmul.bf16.gmra.mxu0 %v3076
        %v3779 = vpop.f32.mrf.mxu0
        %v3780 = vadd.f32 %v3611, %v3779
        %v3781 = vpop.f32.mrf.mxu0
        %v3782 = vadd.f32 %v3613, %v3781
        %3783 = vmatmul.bf16.gmra.mxu0 %v3077
        %v3784 = vpop.f32.mrf.mxu0
        %v3785 = vadd.f32 %v3616, %v3784
        %v3786 = vpop.f32.mrf.mxu0
        %v3787 = vadd.f32 %v3618, %v3786
        %3788 = vmatmul.bf16.gmra.mxu0 %v3078
        %v3789 = vpop.f32.mrf.mxu0
        %v3790 = vadd.f32 %v3621, %v3789
        %v3791 = vpop.f32.mrf.mxu0
        %v3792 = vadd.f32 %v3623, %v3791
        %3793 = vmatmul.bf16.gmra.mxu0 %v3079
        %v3794 = vpop.f32.mrf.mxu0
        %v3795 = vadd.f32 %v3626, %v3794
        %v3796 = vpop.f32.mrf.mxu0
        %v3797 = vadd.f32 %v3628, %v3796
        %3798 = vmatmul.bf16.gmra.mxu0 %v3080
        %v3799 = vpop.f32.mrf.mxu0
        %v3800 = vadd.f32 %v3631, %v3799
        %v3801 = vpop.f32.mrf.mxu0
        %v3802 = vadd.f32 %v3633, %v3801
        %3803 = vmatmul.bf16.gmra.mxu0 %v3081
        %v3804 = vpop.f32.mrf.mxu0
        %v3805 = vadd.f32 %v3636, %v3804
        %v3806 = vpop.f32.mrf.mxu0
        %v3807 = vadd.f32 %v3638, %v3806
        %3808 = vmatmul.bf16.gmra.mxu0 %v3082
        %v3809 = vpop.f32.mrf.mxu0
        %v3810 = vadd.f32 %v3641, %v3809
        %v3811 = vpop.f32.mrf.mxu0
        %v3812 = vadd.f32 %v3643, %v3811
        %3813 = vmatmul.bf16.gmra.mxu0 %v3083
        %v3814 = vpop.f32.mrf.mxu0
        %v3815 = vadd.f32 %v3646, %v3814
        %v3816 = vpop.f32.mrf.mxu0
        %v3817 = vadd.f32 %v3648, %v3816
        %3818 = vmatmul.bf16.gmra.mxu0 %v3084
        %v3819 = vpop.f32.mrf.mxu0
        %v3820 = vadd.f32 %v3651, %v3819
        %v3821 = vpop.f32.mrf.mxu0
        %v3822 = vadd.f32 %v3653, %v3821
        %3823 = vmatmul.bf16.gmra.mxu0 %v3085
        %v3824 = vpop.f32.mrf.mxu0
        %v3825 = vadd.f32 %v3656, %v3824
        %v3826 = vpop.f32.mrf.mxu0
        %v3827 = vadd.f32 %v3658, %v3826
        %3828 = vmatmul.bf16.gmra.mxu0 %v3086
        %v3829 = vpop.f32.mrf.mxu0
        %v3830 = vadd.f32 %v3661, %v3829
        %v3831 = vpop.f32.mrf.mxu0
        %v3832 = vadd.f32 %v3663, %v3831
        %3833 = vmatmul.bf16.gmra.mxu0 %v3087
        %v3834 = vpop.f32.mrf.mxu0
        %v3835 = vadd.f32 %v3666, %v3834
        %v3836 = vpop.f32.mrf.mxu0
        %v3837 = vadd.f32 %v3668, %v3836
        %3838 = vmatmul.bf16.gmra.mxu0 %v3088
        %v3839 = vpop.f32.mrf.mxu0
        %v3840 = vadd.f32 %v3671, %v3839
        %v3841 = vpop.f32.mrf.mxu0
        %v3842 = vadd.f32 %v3673, %v3841
        %3843 = vmatmul.bf16.gmra.mxu0 %v3089
        %v3844 = vpop.f32.mrf.mxu0
        %v3845 = vadd.f32 %v3676, %v3844
        %v3846 = vpop.f32.mrf.mxu0
        %v3847 = vadd.f32 %v3678, %v3846
        %3848 = vmatmul.bf16.gmra.mxu0 %v3090
        %v3849 = vpop.f32.mrf.mxu0
        %v3850 = vadd.f32 %v3681, %v3849
        %v3851 = vpop.f32.mrf.mxu0
        %v3852 = vadd.f32 %v3683, %v3851
        %3853 = vmatmul.bf16.gmra.mxu0 %v3091
        %v3854 = vpop.f32.mrf.mxu0
        %v3855 = vadd.f32 %v3686, %v3854
        %v3856 = vpop.f32.mrf.mxu0
        %v3857 = vadd.f32 %v3688, %v3856
        %3858 = vmatmul.bf16.gmra.mxu0 %v3092
        %v3859 = vpop.f32.mrf.mxu0
        %v3860 = vadd.f32 %v3691, %v3859
        %v3861 = vpop.f32.mrf.mxu0
        %v3862 = vadd.f32 %v3693, %v3861
        %3863 = vmatmul.bf16.gmra.mxu0 %v3093
        %v3864 = vpop.f32.mrf.mxu0
        %v3865 = vadd.f32 %v3696, %v3864
        %v3866 = vpop.f32.mrf.mxu0
        %v3867 = vadd.f32 %v3698, %v3866
        %3868 = vmatmul.bf16.gmra.mxu0 %v3094
        %v3869 = vpop.f32.mrf.mxu0
        %v3870 = vadd.f32 %v3701, %v3869
        %v3871 = vpop.f32.mrf.mxu0
        %v3872 = vadd.f32 %v3703, %v3871
        %3873 = vmatmul.bf16.gmra.mxu0 %v3095
        %v3874 = vpop.f32.mrf.mxu0
        %v3875 = vadd.f32 %v3706, %v3874
        %v3876 = vpop.f32.mrf.mxu0
        %v3877 = vadd.f32 %v3708, %v3876
        %3878 = vmatmul.bf16.gmra.mxu0 %v3096
        %v3879 = vpop.f32.mrf.mxu0
        %v3880 = vadd.f32 %v3711, %v3879
        %v3881 = vpop.f32.mrf.mxu0
        %v3882 = vadd.f32 %v3713, %v3881
        %3883 = vmatmul.bf16.gmra.mxu0 %v3097
        %v3884 = vpop.f32.mrf.mxu0
        %v3885 = vadd.f32 %v3716, %v3884
        %v3886 = vpop.f32.mrf.mxu0
        %v3887 = vadd.f32 %v3718, %v3886
        %3888 = vmatmul.bf16.gmra.mxu0 %v3098
        %v3889 = vpop.f32.mrf.mxu0
        %v3890 = vadd.f32 %v3721, %v3889
        %v3891 = vpop.f32.mrf.mxu0
        %v3892 = vadd.f32 %v3723, %v3891
        %3893 = vmatmul.bf16.gmra.mxu0 %v3099
        %v3894 = vpop.f32.mrf.mxu0
        %v3895 = vadd.f32 %v3726, %v3894
        %v3896 = vpop.f32.mrf.mxu0
        %v3897 = vadd.f32 %v3728, %v3896
        %3898 = vmatmul.bf16.gmra.mxu0 %v3100
        %v3899 = vpop.f32.mrf.mxu0
        %v3900 = vadd.f32 %v3731, %v3899
        %v3901 = vpop.f32.mrf.mxu0
        %v3902 = vadd.f32 %v3733, %v3901
        %3903 = vdwg.mxu0
        %3904 = vmatpush.bf16.msra.mxu0 %v3541
        %3905 = vmatpush.bf16.msra.mxu0 %v3540
        %3906 = vmatpush.bf16.msra.mxu0 %v3539
        %3907 = vmatpush.bf16.msra.mxu0 %v3538
        %3908 = vmatpush.bf16.msra.mxu0 %v3537
        %3909 = vmatpush.bf16.msra.mxu0 %v3536
        %3910 = vmatpush.bf16.msra.mxu0 %v3535
        %3911 = vmatpush.bf16.msra.mxu0 %v3534
        %3912 = vmatmul.bf16.gmra.mxu0 %v3261
        %v3913 = vpop.f32.mrf.mxu0
        %v3914 = vadd.f32 %v3745, %v3913
        %v3915 = vpop.f32.mrf.mxu0
        %v3916 = vadd.f32 %v3747, %v3915
        %3917 = vmatmul.bf16.gmra.mxu0 %v3262
        %v3918 = vpop.f32.mrf.mxu0
        %v3919 = vadd.f32 %v3750, %v3918
        %v3920 = vpop.f32.mrf.mxu0
        %v3921 = vadd.f32 %v3752, %v3920
        %3922 = vmatmul.bf16.gmra.mxu0 %v3263
        %v3923 = vpop.f32.mrf.mxu0
        %v3924 = vadd.f32 %v3755, %v3923
        %v3925 = vpop.f32.mrf.mxu0
        %v3926 = vadd.f32 %v3757, %v3925
        %3927 = vmatmul.bf16.gmra.mxu0 %v3264
        %v3928 = vpop.f32.mrf.mxu0
        %v3929 = vadd.f32 %v3760, %v3928
        %v3930 = vpop.f32.mrf.mxu0
        %v3931 = vadd.f32 %v3762, %v3930
        %3932 = vmatmul.bf16.gmra.mxu0 %v3265
        %v3933 = vpop.f32.mrf.mxu0
        %v3934 = vadd.f32 %v3765, %v3933
        %v3935 = vpop.f32.mrf.mxu0
        %v3936 = vadd.f32 %v3767, %v3935
        %3937 = vmatmul.bf16.gmra.mxu0 %v3266
        %v3938 = vpop.f32.mrf.mxu0
        %v3939 = vadd.f32 %v3770, %v3938
        %v3940 = vpop.f32.mrf.mxu0
        %v3941 = vadd.f32 %v3772, %v3940
        %3942 = vmatmul.bf16.gmra.mxu0 %v3267
        %v3943 = vpop.f32.mrf.mxu0
        %v3944 = vadd.f32 %v3775, %v3943
        %v3945 = vpop.f32.mrf.mxu0
        %v3946 = vadd.f32 %v3777, %v3945
        %3947 = vmatmul.bf16.gmra.mxu0 %v3268
        %v3948 = vpop.f32.mrf.mxu0
        %v3949 = vadd.f32 %v3780, %v3948
        %v3950 = vpop.f32.mrf.mxu0
        %v3951 = vadd.f32 %v3782, %v3950
        %3952 = vmatmul.bf16.gmra.mxu0 %v3269
        %v3953 = vpop.f32.mrf.mxu0
        %v3954 = vadd.f32 %v3785, %v3953
        %v3955 = vpop.f32.mrf.mxu0
        %v3956 = vadd.f32 %v3787, %v3955
        %3957 = vmatmul.bf16.gmra.mxu0 %v3270
        %v3958 = vpop.f32.mrf.mxu0
        %v3959 = vadd.f32 %v3790, %v3958
        %v3960 = vpop.f32.mrf.mxu0
        %v3961 = vadd.f32 %v3792, %v3960
        %3962 = vmatmul.bf16.gmra.mxu0 %v3271
        %v3963 = vpop.f32.mrf.mxu0
        %v3964 = vadd.f32 %v3795, %v3963
        %v3965 = vpop.f32.mrf.mxu0
        %v3966 = vadd.f32 %v3797, %v3965
        %3967 = vmatmul.bf16.gmra.mxu0 %v3272
        %v3968 = vpop.f32.mrf.mxu0
        %v3969 = vadd.f32 %v3800, %v3968
        %v3970 = vpop.f32.mrf.mxu0
        %v3971 = vadd.f32 %v3802, %v3970
        %3972 = vmatmul.bf16.gmra.mxu0 %v3273
        %v3973 = vpop.f32.mrf.mxu0
        %v3974 = vadd.f32 %v3805, %v3973
        %v3975 = vpop.f32.mrf.mxu0
        %v3976 = vadd.f32 %v3807, %v3975
        %3977 = vmatmul.bf16.gmra.mxu0 %v3274
        %v3978 = vpop.f32.mrf.mxu0
        %v3979 = vadd.f32 %v3810, %v3978
        %v3980 = vpop.f32.mrf.mxu0
        %v3981 = vadd.f32 %v3812, %v3980
        %3982 = vmatmul.bf16.gmra.mxu0 %v3275
        %v3983 = vpop.f32.mrf.mxu0
        %v3984 = vadd.f32 %v3815, %v3983
        %v3985 = vpop.f32.mrf.mxu0
        %v3986 = vadd.f32 %v3817, %v3985
        %3987 = vmatmul.bf16.gmra.mxu0 %v3276
        %v3988 = vpop.f32.mrf.mxu0
        %v3989 = vadd.f32 %v3820, %v3988
        %v3990 = vpop.f32.mrf.mxu0
        %v3991 = vadd.f32 %v3822, %v3990
        %3992 = vmatmul.bf16.gmra.mxu0 %v3277
        %v3993 = vpop.f32.mrf.mxu0
        %v3994 = vadd.f32 %v3825, %v3993
        %v3995 = vpop.f32.mrf.mxu0
        %v3996 = vadd.f32 %v3827, %v3995
        %3997 = vmatmul.bf16.gmra.mxu0 %v3278
        %v3998 = vpop.f32.mrf.mxu0
        %v3999 = vadd.f32 %v3830, %v3998
        %v4000 = vpop.f32.mrf.mxu0
        %v4001 = vadd.f32 %v3832, %v4000
        %4002 = vmatmul.bf16.gmra.mxu0 %v3279
        %v4003 = vpop.f32.mrf.mxu0
        %v4004 = vadd.f32 %v3835, %v4003
        %v4005 = vpop.f32.mrf.mxu0
        %v4006 = vadd.f32 %v3837, %v4005
        %4007 = vmatmul.bf16.gmra.mxu0 %v3280
        %v4008 = vpop.f32.mrf.mxu0
        %v4009 = vadd.f32 %v3840, %v4008
        %v4010 = vpop.f32.mrf.mxu0
        %v4011 = vadd.f32 %v3842, %v4010
        %4012 = vmatmul.bf16.gmra.mxu0 %v3281
        %v4013 = vpop.f32.mrf.mxu0
        %v4014 = vadd.f32 %v3845, %v4013
        %v4015 = vpop.f32.mrf.mxu0
        %v4016 = vadd.f32 %v3847, %v4015
        %4017 = vmatmul.bf16.gmra.mxu0 %v3282
        %v4018 = vpop.f32.mrf.mxu0
        %v4019 = vadd.f32 %v3850, %v4018
        %v4020 = vpop.f32.mrf.mxu0
        %v4021 = vadd.f32 %v3852, %v4020
        %4022 = vmatmul.bf16.gmra.mxu0 %v3283
        %v4023 = vpop.f32.mrf.mxu0
        %v4024 = vadd.f32 %v3855, %v4023
        %v4025 = vpop.f32.mrf.mxu0
        %v4026 = vadd.f32 %v3857, %v4025
        %4027 = vmatmul.bf16.gmra.mxu0 %v3284
        %v4028 = vpop.f32.mrf.mxu0
        %v4029 = vadd.f32 %v3860, %v4028
        %v4030 = vpop.f32.mrf.mxu0
        %v4031 = vadd.f32 %v3862, %v4030
        %4032 = vmatmul.bf16.gmra.mxu0 %v3285
        %v4033 = vpop.f32.mrf.mxu0
        %v4034 = vadd.f32 %v3865, %v4033
        %v4035 = vpop.f32.mrf.mxu0
        %v4036 = vadd.f32 %v3867, %v4035
        %4037 = vmatmul.bf16.gmra.mxu0 %v3286
        %v4038 = vpop.f32.mrf.mxu0
        %v4039 = vadd.f32 %v3870, %v4038
        %v4040 = vpop.f32.mrf.mxu0
        %v4041 = vadd.f32 %v3872, %v4040
        %4042 = vmatmul.bf16.gmra.mxu0 %v3287
        %v4043 = vpop.f32.mrf.mxu0
        %v4044 = vadd.f32 %v3875, %v4043
        %v4045 = vpop.f32.mrf.mxu0
        %v4046 = vadd.f32 %v3877, %v4045
        %4047 = vmatmul.bf16.gmra.mxu0 %v3288
        %v4048 = vpop.f32.mrf.mxu0
        %v4049 = vadd.f32 %v3880, %v4048
        %v4050 = vpop.f32.mrf.mxu0
        %v4051 = vadd.f32 %v3882, %v4050
        %4052 = vmatmul.bf16.gmra.mxu0 %v3289
        %v4053 = vpop.f32.mrf.mxu0
        %v4054 = vadd.f32 %v3885, %v4053
        %v4055 = vpop.f32.mrf.mxu0
        %v4056 = vadd.f32 %v3887, %v4055
        %4057 = vmatmul.bf16.gmra.mxu0 %v3290
        %v4058 = vpop.f32.mrf.mxu0
        %v4059 = vadd.f32 %v3890, %v4058
        %v4060 = vpop.f32.mrf.mxu0
        %v4061 = vadd.f32 %v3892, %v4060
        %4062 = vmatmul.bf16.gmra.mxu0 %v3291
        %v4063 = vpop.f32.mrf.mxu0
        %v4064 = vadd.f32 %v3895, %v4063
        %v4065 = vpop.f32.mrf.mxu0
        %v4066 = vadd.f32 %v3897, %v4065
        %4067 = vmatmul.bf16.gmra.mxu0 %v3292
        %v4068 = vpop.f32.mrf.mxu0
        %v4069 = vadd.f32 %v3900, %v4068
        %v4070 = vpop.f32.mrf.mxu0
        %v4071 = vadd.f32 %v3902, %v4070
        %4072 = vdwg.mxu0
        %v4121 = vunpack.c.l.b16 %v3325
        %v4122 = vunpack.c.l.b16 %v3326
        %v4123 = vunpack.c.l.b16 %v3327
        %v4124 = vunpack.c.l.b16 %v3328
        %v4125 = vunpack.c.l.b16 %v3329
        %v4126 = vunpack.c.l.b16 %v3330
        %v4127 = vunpack.c.l.b16 %v3331
        %v4128 = vunpack.c.l.b16 %v3332
        %v4129 = vunpack.c.l.b16 %v3333
        %v4130 = vunpack.c.l.b16 %v3334
        %v4131 = vunpack.c.l.b16 %v3335
        %v4132 = vunpack.c.l.b16 %v3336
        %v4133 = vunpack.c.l.b16 %v3337
        %v4134 = vunpack.c.l.b16 %v3338
        %v4135 = vunpack.c.l.b16 %v3339
        %v4136 = vunpack.c.l.b16 %v3340
        %v4137 = vunpack.c.l.b16 %v3341
        %v4138 = vunpack.c.l.b16 %v3342
        %v4139 = vunpack.c.l.b16 %v3343
        %v4140 = vunpack.c.l.b16 %v3344
        %v4141 = vunpack.c.l.b16 %v3345
        %v4142 = vunpack.c.l.b16 %v3346
        %v4143 = vunpack.c.l.b16 %v3347
        %v4144 = vunpack.c.l.b16 %v3348
        %v4145 = vunpack.c.l.b16 %v3349
        %v4146 = vunpack.c.l.b16 %v3350
        %v4147 = vunpack.c.l.b16 %v3351
        %v4148 = vunpack.c.l.b16 %v3352
        %v4149 = vunpack.c.l.b16 %v3353
        %v4150 = vunpack.c.l.b16 %v3354
        %v4151 = vunpack.c.l.b16 %v3355
        %v4152 = vunpack.c.l.b16 %v3356
        %v4153 = vunpack.c.l.b16 %v3357
        %v4154 = vunpack.c.l.b16 %v3358
        %v4155 = vunpack.c.l.b16 %v3359
        %v4156 = vunpack.c.l.b16 %v3360
        %v4157 = vunpack.c.l.b16 %v3361
        %v4158 = vunpack.c.l.b16 %v3362
        %v4159 = vunpack.c.l.b16 %v3363
        %v4160 = vunpack.c.l.b16 %v3364
        %v4161 = vunpack.c.l.b16 %v3365
        %v4162 = vunpack.c.l.b16 %v3366
        %v4163 = vunpack.c.l.b16 %v3367
        %v4164 = vunpack.c.l.b16 %v3368
        %v4165 = vunpack.c.l.b16 %v3369
        %v4166 = vunpack.c.l.b16 %v3370
        %v4167 = vunpack.c.l.b16 %v3371
        %v4168 = vunpack.c.l.b16 %v3372
        %v4169 = vpack.c.b16 %v4122, %v4121
        %v4170 = vpack.c.b16 %v4124, %v4123
        %v4171 = vpack.c.b16 %v4126, %v4125
        %v4172 = vpack.c.b16 %v4128, %v4127
        %v4173 = vpack.c.b16 %v4130, %v4129
        %v4174 = vpack.c.b16 %v4132, %v4131
        %v4175 = vpack.c.b16 %v4134, %v4133
        %v4176 = vpack.c.b16 %v4136, %v4135
        %v4177 = vpack.c.b16 %v4138, %v4137
        %v4178 = vpack.c.b16 %v4140, %v4139
        %v4179 = vpack.c.b16 %v4142, %v4141
        %v4180 = vpack.c.b16 %v4144, %v4143
        %v4181 = vpack.c.b16 %v4146, %v4145
        %v4182 = vpack.c.b16 %v4148, %v4147
        %v4183 = vpack.c.b16 %v4150, %v4149
        %v4184 = vpack.c.b16 %v4152, %v4151
        %v4185 = vpack.c.b16 %v4154, %v4153
        %v4186 = vpack.c.b16 %v4156, %v4155
        %v4187 = vpack.c.b16 %v4158, %v4157
        %v4188 = vpack.c.b16 %v4160, %v4159
        %v4189 = vpack.c.b16 %v4162, %v4161
        %v4190 = vpack.c.b16 %v4164, %v4163
        %v4191 = vpack.c.b16 %v4166, %v4165
        %v4192 = vpack.c.b16 %v4168, %v4167
        %4217 = vmatpush.bf16.msra.mxu0 %v4176
        %4218 = vmatpush.bf16.msra.mxu0 %v4175
        %4219 = vmatpush.bf16.msra.mxu0 %v4174
        %4220 = vmatpush.bf16.msra.mxu0 %v4173
        %4221 = vmatpush.bf16.msra.mxu0 %v4172
        %4222 = vmatpush.bf16.msra.mxu0 %v4171
        %4223 = vmatpush.bf16.msra.mxu0 %v4170
        %4224 = vmatpush.bf16.msra.mxu0 %v4169
        %4225 = vmatmul.bf16.gmra.mxu0 0
        %v4226 = vpop.f32.mrf.mxu0
        %v4227 = vadd.f32 %v3914, %v4226
        %v4228 = vpop.f32.mrf.mxu0
        %v4229 = vadd.f32 %v3916, %v4228
        %4230 = vmatmul.bf16.gmra.mxu0 %v2877
        %v4231 = vpop.f32.mrf.mxu0
        %v4232 = vadd.f32 %v3919, %v4231
        %v4233 = vpop.f32.mrf.mxu0
        %v4234 = vadd.f32 %v3921, %v4233
        %4235 = vmatmul.bf16.gmra.mxu0 %v2878
        %v4236 = vpop.f32.mrf.mxu0
        %v4237 = vadd.f32 %v3924, %v4236
        %v4238 = vpop.f32.mrf.mxu0
        %v4239 = vadd.f32 %v3926, %v4238
        %4240 = vmatmul.bf16.gmra.mxu0 %v2879
        %v4241 = vpop.f32.mrf.mxu0
        %v4242 = vadd.f32 %v3929, %v4241
        %v4243 = vpop.f32.mrf.mxu0
        %v4244 = vadd.f32 %v3931, %v4243
        %4245 = vmatmul.bf16.gmra.mxu0 %v2880
        %v4246 = vpop.f32.mrf.mxu0
        %v4247 = vadd.f32 %v3934, %v4246
        %v4248 = vpop.f32.mrf.mxu0
        %v4249 = vadd.f32 %v3936, %v4248
        %4250 = vmatmul.bf16.gmra.mxu0 %v2881
        %v4251 = vpop.f32.mrf.mxu0
        %v4252 = vadd.f32 %v3939, %v4251
        %v4253 = vpop.f32.mrf.mxu0
        %v4254 = vadd.f32 %v3941, %v4253
        %4255 = vmatmul.bf16.gmra.mxu0 %v2882
        %v4256 = vpop.f32.mrf.mxu0
        %v4257 = vadd.f32 %v3944, %v4256
        %v4258 = vpop.f32.mrf.mxu0
        %v4259 = vadd.f32 %v3946, %v4258
        %4260 = vmatmul.bf16.gmra.mxu0 %v2883
        %v4261 = vpop.f32.mrf.mxu0
        %v4262 = vadd.f32 %v3949, %v4261
        %v4263 = vpop.f32.mrf.mxu0
        %v4264 = vadd.f32 %v3951, %v4263
        %4265 = vmatmul.bf16.gmra.mxu0 %v2884
        %v4266 = vpop.f32.mrf.mxu0
        %v4267 = vadd.f32 %v3954, %v4266
        %v4268 = vpop.f32.mrf.mxu0
        %v4269 = vadd.f32 %v3956, %v4268
        %4270 = vmatmul.bf16.gmra.mxu0 %v2885
        %v4271 = vpop.f32.mrf.mxu0
        %v4272 = vadd.f32 %v3959, %v4271
        %v4273 = vpop.f32.mrf.mxu0
        %v4274 = vadd.f32 %v3961, %v4273
        %4275 = vmatmul.bf16.gmra.mxu0 %v2886
        %v4276 = vpop.f32.mrf.mxu0
        %v4277 = vadd.f32 %v3964, %v4276
        %v4278 = vpop.f32.mrf.mxu0
        %v4279 = vadd.f32 %v3966, %v4278
        %4280 = vmatmul.bf16.gmra.mxu0 %v2887
        %v4281 = vpop.f32.mrf.mxu0
        %v4282 = vadd.f32 %v3969, %v4281
        %v4283 = vpop.f32.mrf.mxu0
        %v4284 = vadd.f32 %v3971, %v4283
        %4285 = vmatmul.bf16.gmra.mxu0 %v2888
        %v4286 = vpop.f32.mrf.mxu0
        %v4287 = vadd.f32 %v3974, %v4286
        %v4288 = vpop.f32.mrf.mxu0
        %v4289 = vadd.f32 %v3976, %v4288
        %4290 = vmatmul.bf16.gmra.mxu0 %v2889
        %v4291 = vpop.f32.mrf.mxu0
        %v4292 = vadd.f32 %v3979, %v4291
        %v4293 = vpop.f32.mrf.mxu0
        %v4294 = vadd.f32 %v3981, %v4293
        %4295 = vmatmul.bf16.gmra.mxu0 %v2890
        %v4296 = vpop.f32.mrf.mxu0
        %v4297 = vadd.f32 %v3984, %v4296
        %v4298 = vpop.f32.mrf.mxu0
        %v4299 = vadd.f32 %v3986, %v4298
        %4300 = vmatmul.bf16.gmra.mxu0 %v2891
        %v4301 = vpop.f32.mrf.mxu0
        %v4302 = vadd.f32 %v3989, %v4301
        %v4303 = vpop.f32.mrf.mxu0
        %v4304 = vadd.f32 %v3991, %v4303
        %4305 = vmatmul.bf16.gmra.mxu0 0
        %v4306 = vpop.f32.mrf.mxu0
        %v4307 = vadd.f32 %v3994, %v4306
        %v4308 = vpop.f32.mrf.mxu0
        %v4309 = vadd.f32 %v3996, %v4308
        %4310 = vmatmul.bf16.gmra.mxu0 %v2893
        %v4311 = vpop.f32.mrf.mxu0
        %v4312 = vadd.f32 %v3999, %v4311
        %v4313 = vpop.f32.mrf.mxu0
        %v4314 = vadd.f32 %v4001, %v4313
        %4315 = vmatmul.bf16.gmra.mxu0 %v2894
        %v4316 = vpop.f32.mrf.mxu0
        %v4317 = vadd.f32 %v4004, %v4316
        %v4318 = vpop.f32.mrf.mxu0
        %v4319 = vadd.f32 %v4006, %v4318
        %4320 = vmatmul.bf16.gmra.mxu0 %v2895
        %v4321 = vpop.f32.mrf.mxu0
        %v4322 = vadd.f32 %v4009, %v4321
        %v4323 = vpop.f32.mrf.mxu0
        %v4324 = vadd.f32 %v4011, %v4323
        %4325 = vmatmul.bf16.gmra.mxu0 %v2896
        %v4326 = vpop.f32.mrf.mxu0
        %v4327 = vadd.f32 %v4014, %v4326
        %v4328 = vpop.f32.mrf.mxu0
        %v4329 = vadd.f32 %v4016, %v4328
        %4330 = vmatmul.bf16.gmra.mxu0 %v2897
        %v4331 = vpop.f32.mrf.mxu0
        %v4332 = vadd.f32 %v4019, %v4331
        %v4333 = vpop.f32.mrf.mxu0
        %v4334 = vadd.f32 %v4021, %v4333
        %4335 = vmatmul.bf16.gmra.mxu0 %v2898
        %v4336 = vpop.f32.mrf.mxu0
        %v4337 = vadd.f32 %v4024, %v4336
        %v4338 = vpop.f32.mrf.mxu0
        %v4339 = vadd.f32 %v4026, %v4338
        %4340 = vmatmul.bf16.gmra.mxu0 %v2899
        %v4341 = vpop.f32.mrf.mxu0
        %v4342 = vadd.f32 %v4029, %v4341
        %v4343 = vpop.f32.mrf.mxu0
        %v4344 = vadd.f32 %v4031, %v4343
        %4345 = vmatmul.bf16.gmra.mxu0 %v2900
        %v4346 = vpop.f32.mrf.mxu0
        %v4347 = vadd.f32 %v4034, %v4346
        %v4348 = vpop.f32.mrf.mxu0
        %v4349 = vadd.f32 %v4036, %v4348
        %4350 = vmatmul.bf16.gmra.mxu0 %v2901
        %v4351 = vpop.f32.mrf.mxu0
        %v4352 = vadd.f32 %v4039, %v4351
        %v4353 = vpop.f32.mrf.mxu0
        %v4354 = vadd.f32 %v4041, %v4353
        %4355 = vmatmul.bf16.gmra.mxu0 %v2902
        %v4356 = vpop.f32.mrf.mxu0
        %v4357 = vadd.f32 %v4044, %v4356
        %v4358 = vpop.f32.mrf.mxu0
        %v4359 = vadd.f32 %v4046, %v4358
        %4360 = vmatmul.bf16.gmra.mxu0 %v2903
        %v4361 = vpop.f32.mrf.mxu0
        %v4362 = vadd.f32 %v4049, %v4361
        %v4363 = vpop.f32.mrf.mxu0
        %v4364 = vadd.f32 %v4051, %v4363
        %4365 = vmatmul.bf16.gmra.mxu0 %v2904
        %v4366 = vpop.f32.mrf.mxu0
        %v4367 = vadd.f32 %v4054, %v4366
        %v4368 = vpop.f32.mrf.mxu0
        %v4369 = vadd.f32 %v4056, %v4368
        %4370 = vmatmul.bf16.gmra.mxu0 %v2905
        %v4371 = vpop.f32.mrf.mxu0
        %v4372 = vadd.f32 %v4059, %v4371
        %v4373 = vpop.f32.mrf.mxu0
        %v4374 = vadd.f32 %v4061, %v4373
        %4375 = vmatmul.bf16.gmra.mxu0 %v2906
        %v4376 = vpop.f32.mrf.mxu0
        %v4377 = vadd.f32 %v4064, %v4376
        %v4378 = vpop.f32.mrf.mxu0
        %v4379 = vadd.f32 %v4066, %v4378
        %4380 = vmatmul.bf16.gmra.mxu0 %v2907
        %v4381 = vpop.f32.mrf.mxu0
        %v4382 = vadd.f32 %v4069, %v4381
        %v4383 = vpop.f32.mrf.mxu0
        %v4384 = vadd.f32 %v4071, %v4383
        %4385 = vdwg.mxu0
        %4386 = vmatpush.bf16.msra.mxu0 %v4184
        %4387 = vmatpush.bf16.msra.mxu0 %v4183
        %4388 = vmatpush.bf16.msra.mxu0 %v4182
        %4389 = vmatpush.bf16.msra.mxu0 %v4181
        %4390 = vmatpush.bf16.msra.mxu0 %v4180
        %4391 = vmatpush.bf16.msra.mxu0 %v4179
        %4392 = vmatpush.bf16.msra.mxu0 %v4178
        %4393 = vmatpush.bf16.msra.mxu0 %v4177
        %4394 = vmatmul.bf16.gmra.mxu0 0
        %v4395 = vpop.f32.mrf.mxu0
        %v4396 = vadd.f32 %v4227, %v4395
        %v4397 = vpop.f32.mrf.mxu0
        %v4398 = vadd.f32 %v4229, %v4397
        %4399 = vmatmul.bf16.gmra.mxu0 %v3069
        %v4400 = vpop.f32.mrf.mxu0
        %v4401 = vadd.f32 %v4232, %v4400
        %v4402 = vpop.f32.mrf.mxu0
        %v4403 = vadd.f32 %v4234, %v4402
        %4404 = vmatmul.bf16.gmra.mxu0 %v3070
        %v4405 = vpop.f32.mrf.mxu0
        %v4406 = vadd.f32 %v4237, %v4405
        %v4407 = vpop.f32.mrf.mxu0
        %v4408 = vadd.f32 %v4239, %v4407
        %4409 = vmatmul.bf16.gmra.mxu0 %v3071
        %v4410 = vpop.f32.mrf.mxu0
        %v4411 = vadd.f32 %v4242, %v4410
        %v4412 = vpop.f32.mrf.mxu0
        %v4413 = vadd.f32 %v4244, %v4412
        %4414 = vmatmul.bf16.gmra.mxu0 %v3072
        %v4415 = vpop.f32.mrf.mxu0
        %v4416 = vadd.f32 %v4247, %v4415
        %v4417 = vpop.f32.mrf.mxu0
        %v4418 = vadd.f32 %v4249, %v4417
        %4419 = vmatmul.bf16.gmra.mxu0 %v3073
        %v4420 = vpop.f32.mrf.mxu0
        %v4421 = vadd.f32 %v4252, %v4420
        %v4422 = vpop.f32.mrf.mxu0
        %v4423 = vadd.f32 %v4254, %v4422
        %4424 = vmatmul.bf16.gmra.mxu0 %v3074
        %v4425 = vpop.f32.mrf.mxu0
        %v4426 = vadd.f32 %v4257, %v4425
        %v4427 = vpop.f32.mrf.mxu0
        %v4428 = vadd.f32 %v4259, %v4427
        %4429 = vmatmul.bf16.gmra.mxu0 %v3075
        %v4430 = vpop.f32.mrf.mxu0
        %v4431 = vadd.f32 %v4262, %v4430
        %v4432 = vpop.f32.mrf.mxu0
        %v4433 = vadd.f32 %v4264, %v4432
        %4434 = vmatmul.bf16.gmra.mxu0 %v3076
        %v4435 = vpop.f32.mrf.mxu0
        %v4436 = vadd.f32 %v4267, %v4435
        %v4437 = vpop.f32.mrf.mxu0
        %v4438 = vadd.f32 %v4269, %v4437
        %4439 = vmatmul.bf16.gmra.mxu0 %v3077
        %v4440 = vpop.f32.mrf.mxu0
        %v4441 = vadd.f32 %v4272, %v4440
        %v4442 = vpop.f32.mrf.mxu0
        %v4443 = vadd.f32 %v4274, %v4442
        %4444 = vmatmul.bf16.gmra.mxu0 %v3078
        %v4445 = vpop.f32.mrf.mxu0
        %v4446 = vadd.f32 %v4277, %v4445
        %v4447 = vpop.f32.mrf.mxu0
        %v4448 = vadd.f32 %v4279, %v4447
        %4449 = vmatmul.bf16.gmra.mxu0 %v3079
        %v4450 = vpop.f32.mrf.mxu0
        %v4451 = vadd.f32 %v4282, %v4450
        %v4452 = vpop.f32.mrf.mxu0
        %v4453 = vadd.f32 %v4284, %v4452
        %4454 = vmatmul.bf16.gmra.mxu0 %v3080
        %v4455 = vpop.f32.mrf.mxu0
        %v4456 = vadd.f32 %v4287, %v4455
        %v4457 = vpop.f32.mrf.mxu0
        %v4458 = vadd.f32 %v4289, %v4457
        %4459 = vmatmul.bf16.gmra.mxu0 %v3081
        %v4460 = vpop.f32.mrf.mxu0
        %v4461 = vadd.f32 %v4292, %v4460
        %v4462 = vpop.f32.mrf.mxu0
        %v4463 = vadd.f32 %v4294, %v4462
        %4464 = vmatmul.bf16.gmra.mxu0 %v3082
        %v4465 = vpop.f32.mrf.mxu0
        %v4466 = vadd.f32 %v4297, %v4465
        %v4467 = vpop.f32.mrf.mxu0
        %v4468 = vadd.f32 %v4299, %v4467
        %4469 = vmatmul.bf16.gmra.mxu0 %v3083
        %v4470 = vpop.f32.mrf.mxu0
        %v4471 = vadd.f32 %v4302, %v4470
        %v4472 = vpop.f32.mrf.mxu0
        %v4473 = vadd.f32 %v4304, %v4472
        %4474 = vmatmul.bf16.gmra.mxu0 0
        %v4475 = vpop.f32.mrf.mxu0
        %v4476 = vadd.f32 %v4307, %v4475
        %v4477 = vpop.f32.mrf.mxu0
        %v4478 = vadd.f32 %v4309, %v4477
        %4479 = vmatmul.bf16.gmra.mxu0 %v3085
        %v4480 = vpop.f32.mrf.mxu0
        %v4481 = vadd.f32 %v4312, %v4480
        %v4482 = vpop.f32.mrf.mxu0
        %v4483 = vadd.f32 %v4314, %v4482
        %4484 = vmatmul.bf16.gmra.mxu0 %v3086
        %v4485 = vpop.f32.mrf.mxu0
        %v4486 = vadd.f32 %v4317, %v4485
        %v4487 = vpop.f32.mrf.mxu0
        %v4488 = vadd.f32 %v4319, %v4487
        %4489 = vmatmul.bf16.gmra.mxu0 %v3087
        %v4490 = vpop.f32.mrf.mxu0
        %v4491 = vadd.f32 %v4322, %v4490
        %v4492 = vpop.f32.mrf.mxu0
        %v4493 = vadd.f32 %v4324, %v4492
        %4494 = vmatmul.bf16.gmra.mxu0 %v3088
        %v4495 = vpop.f32.mrf.mxu0
        %v4496 = vadd.f32 %v4327, %v4495
        %v4497 = vpop.f32.mrf.mxu0
        %v4498 = vadd.f32 %v4329, %v4497
        %4499 = vmatmul.bf16.gmra.mxu0 %v3089
        %v4500 = vpop.f32.mrf.mxu0
        %v4501 = vadd.f32 %v4332, %v4500
        %v4502 = vpop.f32.mrf.mxu0
        %v4503 = vadd.f32 %v4334, %v4502
        %4504 = vmatmul.bf16.gmra.mxu0 %v3090
        %v4505 = vpop.f32.mrf.mxu0
        %v4506 = vadd.f32 %v4337, %v4505
        %v4507 = vpop.f32.mrf.mxu0
        %v4508 = vadd.f32 %v4339, %v4507
        %4509 = vmatmul.bf16.gmra.mxu0 %v3091
        %v4510 = vpop.f32.mrf.mxu0
        %v4511 = vadd.f32 %v4342, %v4510
        %v4512 = vpop.f32.mrf.mxu0
        %v4513 = vadd.f32 %v4344, %v4512
        %4514 = vmatmul.bf16.gmra.mxu0 %v3092
        %v4515 = vpop.f32.mrf.mxu0
        %v4516 = vadd.f32 %v4347, %v4515
        %v4517 = vpop.f32.mrf.mxu0
        %v4518 = vadd.f32 %v4349, %v4517
        %4519 = vmatmul.bf16.gmra.mxu0 %v3093
        %v4520 = vpop.f32.mrf.mxu0
        %v4521 = vadd.f32 %v4352, %v4520
        %v4522 = vpop.f32.mrf.mxu0
        %v4523 = vadd.f32 %v4354, %v4522
        %4524 = vmatmul.bf16.gmra.mxu0 %v3094
        %v4525 = vpop.f32.mrf.mxu0
        %v4526 = vadd.f32 %v4357, %v4525
        %v4527 = vpop.f32.mrf.mxu0
        %v4528 = vadd.f32 %v4359, %v4527
        %4529 = vmatmul.bf16.gmra.mxu0 %v3095
        %v4530 = vpop.f32.mrf.mxu0
        %v4531 = vadd.f32 %v4362, %v4530
        %v4532 = vpop.f32.mrf.mxu0
        %v4533 = vadd.f32 %v4364, %v4532
        %4534 = vmatmul.bf16.gmra.mxu0 %v3096
        %v4535 = vpop.f32.mrf.mxu0
        %v4536 = vadd.f32 %v4367, %v4535
        %v4537 = vpop.f32.mrf.mxu0
        %v4538 = vadd.f32 %v4369, %v4537
        %4539 = vmatmul.bf16.gmra.mxu0 %v3097
        %v4540 = vpop.f32.mrf.mxu0
        %v4541 = vadd.f32 %v4372, %v4540
        %v4542 = vpop.f32.mrf.mxu0
        %v4543 = vadd.f32 %v4374, %v4542
        %4544 = vmatmul.bf16.gmra.mxu0 %v3098
        %v4545 = vpop.f32.mrf.mxu0
        %v4546 = vadd.f32 %v4377, %v4545
        %v4547 = vpop.f32.mrf.mxu0
        %v4548 = vadd.f32 %v4379, %v4547
        %4549 = vmatmul.bf16.gmra.mxu0 %v3099
        %v4550 = vpop.f32.mrf.mxu0
        %v4551 = vadd.f32 %v4382, %v4550
        %v4552 = vpop.f32.mrf.mxu0
        %v4553 = vadd.f32 %v4384, %v4552
        %4554 = vdwg.mxu0
        %4555 = vmatpush.bf16.msra.mxu0 %v4192
        %4556 = vmatpush.bf16.msra.mxu0 %v4191
        %4557 = vmatpush.bf16.msra.mxu0 %v4190
        %4558 = vmatpush.bf16.msra.mxu0 %v4189
        %4559 = vmatpush.bf16.msra.mxu0 %v4188
        %4560 = vmatpush.bf16.msra.mxu0 %v4187
        %4561 = vmatpush.bf16.msra.mxu0 %v4186
        %4562 = vmatpush.bf16.msra.mxu0 %v4185
        %4563 = vmatmul.bf16.gmra.mxu0 0
        %v4564 = vpop.f32.mrf.mxu0
        %v4565 = vadd.f32 %v4396, %v4564
        %v4566 = vpop.f32.mrf.mxu0
        %v4567 = vadd.f32 %v4398, %v4566
        %4568 = vmatmul.bf16.gmra.mxu0 %v3261
        %v4569 = vpop.f32.mrf.mxu0
        %v4570 = vadd.f32 %v4401, %v4569
        %v4571 = vpop.f32.mrf.mxu0
        %v4572 = vadd.f32 %v4403, %v4571
        %4573 = vmatmul.bf16.gmra.mxu0 %v3262
        %v4574 = vpop.f32.mrf.mxu0
        %v4575 = vadd.f32 %v4406, %v4574
        %v4576 = vpop.f32.mrf.mxu0
        %v4577 = vadd.f32 %v4408, %v4576
        %4578 = vmatmul.bf16.gmra.mxu0 %v3263
        %v4579 = vpop.f32.mrf.mxu0
        %v4580 = vadd.f32 %v4411, %v4579
        %v4581 = vpop.f32.mrf.mxu0
        %v4582 = vadd.f32 %v4413, %v4581
        %4583 = vmatmul.bf16.gmra.mxu0 %v3264
        %v4584 = vpop.f32.mrf.mxu0
        %v4585 = vadd.f32 %v4416, %v4584
        %v4586 = vpop.f32.mrf.mxu0
        %v4587 = vadd.f32 %v4418, %v4586
        %4588 = vmatmul.bf16.gmra.mxu0 %v3265
        %v4589 = vpop.f32.mrf.mxu0
        %v4590 = vadd.f32 %v4421, %v4589
        %v4591 = vpop.f32.mrf.mxu0
        %v4592 = vadd.f32 %v4423, %v4591
        %4593 = vmatmul.bf16.gmra.mxu0 %v3266
        %v4594 = vpop.f32.mrf.mxu0
        %v4595 = vadd.f32 %v4426, %v4594
        %v4596 = vpop.f32.mrf.mxu0
        %v4597 = vadd.f32 %v4428, %v4596
        %4598 = vmatmul.bf16.gmra.mxu0 %v3267
        %v4599 = vpop.f32.mrf.mxu0
        %v4600 = vadd.f32 %v4431, %v4599
        %v4601 = vpop.f32.mrf.mxu0
        %v4602 = vadd.f32 %v4433, %v4601
        %4603 = vmatmul.bf16.gmra.mxu0 %v3268
        %v4604 = vpop.f32.mrf.mxu0
        %v4605 = vadd.f32 %v4436, %v4604
        %v4606 = vpop.f32.mrf.mxu0
        %v4607 = vadd.f32 %v4438, %v4606
        %4608 = vmatmul.bf16.gmra.mxu0 %v3269
        %v4609 = vpop.f32.mrf.mxu0
        %v4610 = vadd.f32 %v4441, %v4609
        %v4611 = vpop.f32.mrf.mxu0
        %v4612 = vadd.f32 %v4443, %v4611
        %4613 = vmatmul.bf16.gmra.mxu0 %v3270
        %v4614 = vpop.f32.mrf.mxu0
        %v4615 = vadd.f32 %v4446, %v4614
        %v4616 = vpop.f32.mrf.mxu0
        %v4617 = vadd.f32 %v4448, %v4616
        %4618 = vmatmul.bf16.gmra.mxu0 %v3271
        %v4619 = vpop.f32.mrf.mxu0
        %v4620 = vadd.f32 %v4451, %v4619
        %v4621 = vpop.f32.mrf.mxu0
        %v4622 = vadd.f32 %v4453, %v4621
        %4623 = vmatmul.bf16.gmra.mxu0 %v3272
        %v4624 = vpop.f32.mrf.mxu0
        %v4625 = vadd.f32 %v4456, %v4624
        %v4626 = vpop.f32.mrf.mxu0
        %v4627 = vadd.f32 %v4458, %v4626
        %4628 = vmatmul.bf16.gmra.mxu0 %v3273
        %v4629 = vpop.f32.mrf.mxu0
        %v4630 = vadd.f32 %v4461, %v4629
        %v4631 = vpop.f32.mrf.mxu0
        %v4632 = vadd.f32 %v4463, %v4631
        %4633 = vmatmul.bf16.gmra.mxu0 %v3274
        %v4634 = vpop.f32.mrf.mxu0
        %v4635 = vadd.f32 %v4466, %v4634
        %v4636 = vpop.f32.mrf.mxu0
        %v4637 = vadd.f32 %v4468, %v4636
        %4638 = vmatmul.bf16.gmra.mxu0 %v3275
        %v4639 = vpop.f32.mrf.mxu0
        %v4640 = vadd.f32 %v4471, %v4639
        %v4641 = vpop.f32.mrf.mxu0
        %v4642 = vadd.f32 %v4473, %v4641
        %4643 = vmatmul.bf16.gmra.mxu0 0
        %v4644 = vpop.f32.mrf.mxu0
        %v4645 = vadd.f32 %v4476, %v4644
        %v4646 = vpop.f32.mrf.mxu0
        %v4647 = vadd.f32 %v4478, %v4646
        %4648 = vmatmul.bf16.gmra.mxu0 %v3277
        %v4649 = vpop.f32.mrf.mxu0
        %v4650 = vadd.f32 %v4481, %v4649
        %v4651 = vpop.f32.mrf.mxu0
        %v4652 = vadd.f32 %v4483, %v4651
        %4653 = vmatmul.bf16.gmra.mxu0 %v3278
        %v4654 = vpop.f32.mrf.mxu0
        %v4655 = vadd.f32 %v4486, %v4654
        %v4656 = vpop.f32.mrf.mxu0
        %v4657 = vadd.f32 %v4488, %v4656
        %4658 = vmatmul.bf16.gmra.mxu0 %v3279
        %v4659 = vpop.f32.mrf.mxu0
        %v4660 = vadd.f32 %v4491, %v4659
        %v4661 = vpop.f32.mrf.mxu0
        %v4662 = vadd.f32 %v4493, %v4661
        %4663 = vmatmul.bf16.gmra.mxu0 %v3280
        %v4664 = vpop.f32.mrf.mxu0
        %v4665 = vadd.f32 %v4496, %v4664
        %v4666 = vpop.f32.mrf.mxu0
        %v4667 = vadd.f32 %v4498, %v4666
        %4668 = vmatmul.bf16.gmra.mxu0 %v3281
        %v4669 = vpop.f32.mrf.mxu0
        %v4670 = vadd.f32 %v4501, %v4669
        %v4671 = vpop.f32.mrf.mxu0
        %v4672 = vadd.f32 %v4503, %v4671
        %4673 = vmatmul.bf16.gmra.mxu0 %v3282
        %v4674 = vpop.f32.mrf.mxu0
        %v4675 = vadd.f32 %v4506, %v4674
        %v4676 = vpop.f32.mrf.mxu0
        %v4677 = vadd.f32 %v4508, %v4676
        %4678 = vmatmul.bf16.gmra.mxu0 %v3283
        %v4679 = vpop.f32.mrf.mxu0
        %v4680 = vadd.f32 %v4511, %v4679
        %v4681 = vpop.f32.mrf.mxu0
        %v4682 = vadd.f32 %v4513, %v4681
        %4683 = vmatmul.bf16.gmra.mxu0 %v3284
        %v4684 = vpop.f32.mrf.mxu0
        %v4685 = vadd.f32 %v4516, %v4684
        %v4686 = vpop.f32.mrf.mxu0
        %v4687 = vadd.f32 %v4518, %v4686
        %4688 = vmatmul.bf16.gmra.mxu0 %v3285
        %v4689 = vpop.f32.mrf.mxu0
        %v4690 = vadd.f32 %v4521, %v4689
        %v4691 = vpop.f32.mrf.mxu0
        %v4692 = vadd.f32 %v4523, %v4691
        %4693 = vmatmul.bf16.gmra.mxu0 %v3286
        %v4694 = vpop.f32.mrf.mxu0
        %v4695 = vadd.f32 %v4526, %v4694
        %v4696 = vpop.f32.mrf.mxu0
        %v4697 = vadd.f32 %v4528, %v4696
        %4698 = vmatmul.bf16.gmra.mxu0 %v3287
        %v4699 = vpop.f32.mrf.mxu0
        %v4700 = vadd.f32 %v4531, %v4699
        %v4701 = vpop.f32.mrf.mxu0
        %v4702 = vadd.f32 %v4533, %v4701
        %4703 = vmatmul.bf16.gmra.mxu0 %v3288
        %v4704 = vpop.f32.mrf.mxu0
        %v4705 = vadd.f32 %v4536, %v4704
        %v4706 = vpop.f32.mrf.mxu0
        %v4707 = vadd.f32 %v4538, %v4706
        %4708 = vmatmul.bf16.gmra.mxu0 %v3289
        %v4709 = vpop.f32.mrf.mxu0
        %v4710 = vadd.f32 %v4541, %v4709
        %v4711 = vpop.f32.mrf.mxu0
        %v4712 = vadd.f32 %v4543, %v4711
        %4713 = vmatmul.bf16.gmra.mxu0 %v3290
        %v4714 = vpop.f32.mrf.mxu0
        %v4715 = vadd.f32 %v4546, %v4714
        %v4716 = vpop.f32.mrf.mxu0
        %v4717 = vadd.f32 %v4548, %v4716
        %4718 = vmatmul.bf16.gmra.mxu0 %v3291
        %v4719 = vpop.f32.mrf.mxu0
        %v4720 = vadd.f32 %v4551, %v4719
        %v4721 = vpop.f32.mrf.mxu0
        %v4722 = vadd.f32 %v4553, %v4721
        %4723 = vdwg.mxu0
        %s4724 = scalar_lea.vmem [#allocation8], 384
        %v4725 = vld [vmem:[%s4724] sm:$0xf]
        %v4726 = vld [vmem:[%s4724 + $0x4] sm:$0xf]
        %v4727 = vld [vmem:[%s4724 + $0x8] sm:$0xf]
        %v4728 = vld [vmem:[%s4724 + $0xc] sm:$0xf]
        %v4729 = vld [vmem:[%s4724 + $0x10] sm:$0xf]
        %v4730 = vld [vmem:[%s4724 + $0x14] sm:$0xf]
        %v4731 = vld [vmem:[%s4724 + $0x18] sm:$0xf]
        %v4732 = vld [vmem:[%s4724 + $0x1c] sm:$0xf]
        %v4733 = vld [vmem:[%s4724 + $0x20] sm:$0xf]
        %v4734 = vld [vmem:[%s4724 + $0x24] sm:$0xf]
        %v4735 = vld [vmem:[%s4724 + $0x28] sm:$0xf]
        %v4736 = vld [vmem:[%s4724 + $0x2c] sm:$0xf]
        %v4737 = vld [vmem:[%s4724 + $0x30] sm:$0xf]
        %v4738 = vld [vmem:[%s4724 + $0x34] sm:$0xf]
        %v4739 = vld [vmem:[%s4724 + $0x38] sm:$0xf]
        %v4740 = vld [vmem:[%s4724 + $0x3c] sm:$0xf]
        %v4741 = vld [vmem:[%s4724 + $0x40] sm:$0xf]
        %v4742 = vld [vmem:[%s4724 + $0x44] sm:$0xf]
        %v4743 = vld [vmem:[%s4724 + $0x48] sm:$0xf]
        %v4744 = vld [vmem:[%s4724 + $0x4c] sm:$0xf]
        %v4745 = vld [vmem:[%s4724 + $0x50] sm:$0xf]
        %v4746 = vld [vmem:[%s4724 + $0x54] sm:$0xf]
        %v4747 = vld [vmem:[%s4724 + $0x58] sm:$0xf]
        %v4748 = vld [vmem:[%s4724 + $0x5c] sm:$0xf]
        %v4749 = vld [vmem:[%s4724 + $0x60] sm:$0xf]
        %v4750 = vld [vmem:[%s4724 + $0x64] sm:$0xf]
        %v4751 = vld [vmem:[%s4724 + $0x68] sm:$0xf]
        %v4752 = vld [vmem:[%s4724 + $0x6c] sm:$0xf]
        %v4753 = vld [vmem:[%s4724 + $0x70] sm:$0xf]
        %v4754 = vld [vmem:[%s4724 + $0x74] sm:$0xf]
        %v4755 = vld [vmem:[%s4724 + $0x78] sm:$0xf]
        %v4756 = vld [vmem:[%s4724 + $0x7c] sm:$0xf]
        %v4757 = vld [vmem:[%s4724 + $0x80] sm:$0xf]
        %v4758 = vld [vmem:[%s4724 + $0x84] sm:$0xf]
        %v4759 = vld [vmem:[%s4724 + $0x88] sm:$0xf]
        %v4760 = vld [vmem:[%s4724 + $0x8c] sm:$0xf]
        %v4761 = vld [vmem:[%s4724 + $0x90] sm:$0xf]
        %v4762 = vld [vmem:[%s4724 + $0x94] sm:$0xf]
        %v4763 = vld [vmem:[%s4724 + $0x98] sm:$0xf]
        %v4764 = vld [vmem:[%s4724 + $0x9c] sm:$0xf]
        %v4765 = vld [vmem:[%s4724 + $0xa0] sm:$0xf]
        %v4766 = vld [vmem:[%s4724 + $0xa4] sm:$0xf]
        %v4767 = vld [vmem:[%s4724 + $0xa8] sm:$0xf]
        %v4768 = vld [vmem:[%s4724 + $0xac] sm:$0xf]
        %v4769 = vld [vmem:[%s4724 + $0xb0] sm:$0xf]
        %v4770 = vld [vmem:[%s4724 + $0xb4] sm:$0xf]
        %v4771 = vld [vmem:[%s4724 + $0xb8] sm:$0xf]
        %v4772 = vld [vmem:[%s4724 + $0xbc] sm:$0xf]
        %v4821 = vunpack.c.l.b16 %v4725
        %v4822 = vunpack.c.l.b16 %v4726
        %v4823 = vunpack.c.l.b16 %v4727
        %v4824 = vunpack.c.l.b16 %v4728
        %v4825 = vunpack.c.l.b16 %v4729
        %v4826 = vunpack.c.l.b16 %v4730
        %v4827 = vunpack.c.l.b16 %v4731
        %v4828 = vunpack.c.l.b16 %v4732
        %v4829 = vunpack.c.l.b16 %v4733
        %v4830 = vunpack.c.l.b16 %v4734
        %v4831 = vunpack.c.l.b16 %v4735
        %v4832 = vunpack.c.l.b16 %v4736
        %v4833 = vunpack.c.l.b16 %v4737
        %v4834 = vunpack.c.l.b16 %v4738
        %v4835 = vunpack.c.l.b16 %v4739
        %v4836 = vunpack.c.l.b16 %v4740
        %v4837 = vunpack.c.l.b16 %v4741
        %v4838 = vunpack.c.l.b16 %v4742
        %v4839 = vunpack.c.l.b16 %v4743
        %v4840 = vunpack.c.l.b16 %v4744
        %v4841 = vunpack.c.l.b16 %v4745
        %v4842 = vunpack.c.l.b16 %v4746
        %v4843 = vunpack.c.l.b16 %v4747
        %v4844 = vunpack.c.l.b16 %v4748
        %v4845 = vunpack.c.l.b16 %v4749
        %v4846 = vunpack.c.l.b16 %v4750
        %v4847 = vunpack.c.l.b16 %v4751
        %v4848 = vunpack.c.l.b16 %v4752
        %v4849 = vunpack.c.l.b16 %v4753
        %v4850 = vunpack.c.l.b16 %v4754
        %v4851 = vunpack.c.l.b16 %v4755
        %v4852 = vunpack.c.l.b16 %v4756
        %v4853 = vunpack.c.l.b16 %v4757
        %v4854 = vunpack.c.l.b16 %v4758
        %v4855 = vunpack.c.l.b16 %v4759
        %v4856 = vunpack.c.l.b16 %v4760
        %v4857 = vunpack.c.l.b16 %v4761
        %v4858 = vunpack.c.l.b16 %v4762
        %v4859 = vunpack.c.l.b16 %v4763
        %v4860 = vunpack.c.l.b16 %v4764
        %v4861 = vunpack.c.l.b16 %v4765
        %v4862 = vunpack.c.l.b16 %v4766
        %v4863 = vunpack.c.l.b16 %v4767
        %v4864 = vunpack.c.l.b16 %v4768
        %v4865 = vunpack.c.l.b16 %v4769
        %v4866 = vunpack.c.l.b16 %v4770
        %v4867 = vunpack.c.l.b16 %v4771
        %v4868 = vunpack.c.l.b16 %v4772
        %v4869 = vpack.c.b16 %v4822, %v4821
        %v4870 = vpack.c.b16 %v4824, %v4823
        %v4871 = vpack.c.b16 %v4826, %v4825
        %v4872 = vpack.c.b16 %v4828, %v4827
        %v4873 = vpack.c.b16 %v4830, %v4829
        %v4874 = vpack.c.b16 %v4832, %v4831
        %v4875 = vpack.c.b16 %v4834, %v4833
        %v4876 = vpack.c.b16 %v4836, %v4835
        %v4877 = vpack.c.b16 %v4838, %v4837
        %v4878 = vpack.c.b16 %v4840, %v4839
        %v4879 = vpack.c.b16 %v4842, %v4841
        %v4880 = vpack.c.b16 %v4844, %v4843
        %v4881 = vpack.c.b16 %v4846, %v4845
        %v4882 = vpack.c.b16 %v4848, %v4847
        %v4883 = vpack.c.b16 %v4850, %v4849
        %v4884 = vpack.c.b16 %v4852, %v4851
        %v4885 = vpack.c.b16 %v4854, %v4853
        %v4886 = vpack.c.b16 %v4856, %v4855
        %v4887 = vpack.c.b16 %v4858, %v4857
        %v4888 = vpack.c.b16 %v4860, %v4859
        %v4889 = vpack.c.b16 %v4862, %v4861
        %v4890 = vpack.c.b16 %v4864, %v4863
        %v4891 = vpack.c.b16 %v4866, %v4865
        %v4892 = vpack.c.b16 %v4868, %v4867
        %4917 = vmatpush.bf16.msra.mxu0 %v4876
        %4918 = vmatpush.bf16.msra.mxu0 %v4875
        %4919 = vmatpush.bf16.msra.mxu0 %v4874
        %4920 = vmatpush.bf16.msra.mxu0 %v4873
        %4921 = vmatpush.bf16.msra.mxu0 %v4872
        %4922 = vmatpush.bf16.msra.mxu0 %v4871
        %4923 = vmatpush.bf16.msra.mxu0 %v4870
        %4924 = vmatpush.bf16.msra.mxu0 %v4869
        %4925 = vmatmul.bf16.gmra.mxu0 %v2878
        %v4926 = vpop.f32.mrf.mxu0
        %v4927 = vadd.f32 0.0, %v4926
        %v4928 = vpop.f32.mrf.mxu0
        %v4929 = vadd.f32 0.0, %v4928
        %4930 = vmatmul.bf16.gmra.mxu0 %v2879
        %v4931 = vpop.f32.mrf.mxu0
        %v4932 = vadd.f32 0.0, %v4931
        %v4933 = vpop.f32.mrf.mxu0
        %v4934 = vadd.f32 0.0, %v4933
        %4935 = vmatmul.bf16.gmra.mxu0 %v2880
        %v4936 = vpop.f32.mrf.mxu0
        %v4937 = vadd.f32 0.0, %v4936
        %v4938 = vpop.f32.mrf.mxu0
        %v4939 = vadd.f32 0.0, %v4938
        %4940 = vmatmul.bf16.gmra.mxu0 %v2881
        %v4941 = vpop.f32.mrf.mxu0
        %v4942 = vadd.f32 0.0, %v4941
        %v4943 = vpop.f32.mrf.mxu0
        %v4944 = vadd.f32 0.0, %v4943
        %4945 = vmatmul.bf16.gmra.mxu0 %v2882
        %v4946 = vpop.f32.mrf.mxu0
        %v4947 = vadd.f32 0.0, %v4946
        %v4948 = vpop.f32.mrf.mxu0
        %v4949 = vadd.f32 0.0, %v4948
        %4950 = vmatmul.bf16.gmra.mxu0 %v2883
        %v4951 = vpop.f32.mrf.mxu0
        %v4952 = vadd.f32 0.0, %v4951
        %v4953 = vpop.f32.mrf.mxu0
        %v4954 = vadd.f32 0.0, %v4953
        %4955 = vmatmul.bf16.gmra.mxu0 %v2884
        %v4956 = vpop.f32.mrf.mxu0
        %v4957 = vadd.f32 0.0, %v4956
        %v4958 = vpop.f32.mrf.mxu0
        %v4959 = vadd.f32 0.0, %v4958
        %4960 = vmatmul.bf16.gmra.mxu0 %v2885
        %v4961 = vpop.f32.mrf.mxu0
        %v4962 = vadd.f32 0.0, %v4961
        %v4963 = vpop.f32.mrf.mxu0
        %v4964 = vadd.f32 0.0, %v4963
        %4965 = vmatmul.bf16.gmra.mxu0 %v2886
        %v4966 = vpop.f32.mrf.mxu0
        %v4967 = vadd.f32 0.0, %v4966
        %v4968 = vpop.f32.mrf.mxu0
        %v4969 = vadd.f32 0.0, %v4968
        %4970 = vmatmul.bf16.gmra.mxu0 %v2887
        %v4971 = vpop.f32.mrf.mxu0
        %v4972 = vadd.f32 0.0, %v4971
        %v4973 = vpop.f32.mrf.mxu0
        %v4974 = vadd.f32 0.0, %v4973
        %4975 = vmatmul.bf16.gmra.mxu0 %v2888
        %v4976 = vpop.f32.mrf.mxu0
        %v4977 = vadd.f32 0.0, %v4976
        %v4978 = vpop.f32.mrf.mxu0
        %v4979 = vadd.f32 0.0, %v4978
        %4980 = vmatmul.bf16.gmra.mxu0 %v2889
        %v4981 = vpop.f32.mrf.mxu0
        %v4982 = vadd.f32 0.0, %v4981
        %v4983 = vpop.f32.mrf.mxu0
        %v4984 = vadd.f32 0.0, %v4983
        %4985 = vmatmul.bf16.gmra.mxu0 %v2890
        %v4986 = vpop.f32.mrf.mxu0
        %v4987 = vadd.f32 0.0, %v4986
        %v4988 = vpop.f32.mrf.mxu0
        %v4989 = vadd.f32 0.0, %v4988
        %4990 = vmatmul.bf16.gmra.mxu0 %v2891
        %v4991 = vpop.f32.mrf.mxu0
        %v4992 = vadd.f32 0.0, %v4991
        %v4993 = vpop.f32.mrf.mxu0
        %v4994 = vadd.f32 0.0, %v4993
        %4995 = vmatmul.bf16.gmra.mxu0 %v2892
        %v4996 = vpop.f32.mrf.mxu0
        %v4997 = vadd.f32 0.0, %v4996
        %v4998 = vpop.f32.mrf.mxu0
        %v4999 = vadd.f32 0.0, %v4998
        %5000 = vmatmul.bf16.gmra.mxu0 0
        %v5001 = vpop.f32.mrf.mxu0
        %v5002 = vadd.f32 0.0, %v5001
        %v5003 = vpop.f32.mrf.mxu0
        %v5004 = vadd.f32 0.0, %v5003
        %5005 = vmatmul.bf16.gmra.mxu0 %v2894
        %v5006 = vpop.f32.mrf.mxu0
        %v5007 = vadd.f32 0.0, %v5006
        %v5008 = vpop.f32.mrf.mxu0
        %v5009 = vadd.f32 0.0, %v5008
        %5010 = vmatmul.bf16.gmra.mxu0 %v2895
        %v5011 = vpop.f32.mrf.mxu0
        %v5012 = vadd.f32 0.0, %v5011
        %v5013 = vpop.f32.mrf.mxu0
        %v5014 = vadd.f32 0.0, %v5013
        %5015 = vmatmul.bf16.gmra.mxu0 %v2896
        %v5016 = vpop.f32.mrf.mxu0
        %v5017 = vadd.f32 0.0, %v5016
        %v5018 = vpop.f32.mrf.mxu0
        %v5019 = vadd.f32 0.0, %v5018
        %5020 = vmatmul.bf16.gmra.mxu0 %v2897
        %v5021 = vpop.f32.mrf.mxu0
        %v5022 = vadd.f32 0.0, %v5021
        %v5023 = vpop.f32.mrf.mxu0
        %v5024 = vadd.f32 0.0, %v5023
        %5025 = vmatmul.bf16.gmra.mxu0 %v2898
        %v5026 = vpop.f32.mrf.mxu0
        %v5027 = vadd.f32 0.0, %v5026
        %v5028 = vpop.f32.mrf.mxu0
        %v5029 = vadd.f32 0.0, %v5028
        %5030 = vmatmul.bf16.gmra.mxu0 %v2899
        %v5031 = vpop.f32.mrf.mxu0
        %v5032 = vadd.f32 0.0, %v5031
        %v5033 = vpop.f32.mrf.mxu0
        %v5034 = vadd.f32 0.0, %v5033
        %5035 = vmatmul.bf16.gmra.mxu0 %v2900
        %v5036 = vpop.f32.mrf.mxu0
        %v5037 = vadd.f32 0.0, %v5036
        %v5038 = vpop.f32.mrf.mxu0
        %v5039 = vadd.f32 0.0, %v5038
        %5040 = vmatmul.bf16.gmra.mxu0 %v2901
        %v5041 = vpop.f32.mrf.mxu0
        %v5042 = vadd.f32 0.0, %v5041
        %v5043 = vpop.f32.mrf.mxu0
        %v5044 = vadd.f32 0.0, %v5043
        %5045 = vmatmul.bf16.gmra.mxu0 %v2902
        %v5046 = vpop.f32.mrf.mxu0
        %v5047 = vadd.f32 0.0, %v5046
        %v5048 = vpop.f32.mrf.mxu0
        %v5049 = vadd.f32 0.0, %v5048
        %5050 = vmatmul.bf16.gmra.mxu0 %v2903
        %v5051 = vpop.f32.mrf.mxu0
        %v5052 = vadd.f32 0.0, %v5051
        %v5053 = vpop.f32.mrf.mxu0
        %v5054 = vadd.f32 0.0, %v5053
        %5055 = vmatmul.bf16.gmra.mxu0 %v2904
        %v5056 = vpop.f32.mrf.mxu0
        %v5057 = vadd.f32 0.0, %v5056
        %v5058 = vpop.f32.mrf.mxu0
        %v5059 = vadd.f32 0.0, %v5058
        %5060 = vmatmul.bf16.gmra.mxu0 %v2905
        %v5061 = vpop.f32.mrf.mxu0
        %v5062 = vadd.f32 0.0, %v5061
        %v5063 = vpop.f32.mrf.mxu0
        %v5064 = vadd.f32 0.0, %v5063
        %5065 = vmatmul.bf16.gmra.mxu0 %v2906
        %v5066 = vpop.f32.mrf.mxu0
        %v5067 = vadd.f32 0.0, %v5066
        %v5068 = vpop.f32.mrf.mxu0
        %v5069 = vadd.f32 0.0, %v5068
        %5070 = vmatmul.bf16.gmra.mxu0 %v2907
        %v5071 = vpop.f32.mrf.mxu0
        %v5072 = vadd.f32 0.0, %v5071
        %v5073 = vpop.f32.mrf.mxu0
        %v5074 = vadd.f32 0.0, %v5073
        %5075 = vmatmul.bf16.gmra.mxu0 %v2908
        %v5076 = vpop.f32.mrf.mxu0
        %v5077 = vadd.f32 0.0, %v5076
        %v5078 = vpop.f32.mrf.mxu0
        %v5079 = vadd.f32 0.0, %v5078
        %5080 = vmatmul.bf16.gmra.mxu0 0
        %v5081 = vpop.f32.mrf.mxu0
        %v5082 = vadd.f32 0.0, %v5081
        %v5083 = vpop.f32.mrf.mxu0
        %v5084 = vadd.f32 0.0, %v5083
        %5085 = vdwg.mxu0
        %5086 = vmatpush.bf16.msra.mxu0 %v4884
        %5087 = vmatpush.bf16.msra.mxu0 %v4883
        %5088 = vmatpush.bf16.msra.mxu0 %v4882
        %5089 = vmatpush.bf16.msra.mxu0 %v4881
        %5090 = vmatpush.bf16.msra.mxu0 %v4880
        %5091 = vmatpush.bf16.msra.mxu0 %v4879
        %5092 = vmatpush.bf16.msra.mxu0 %v4878
        %5093 = vmatpush.bf16.msra.mxu0 %v4877
        %5094 = vmatmul.bf16.gmra.mxu0 %v3070
        %v5095 = vpop.f32.mrf.mxu0
        %v5096 = vadd.f32 %v4927, %v5095
        %v5097 = vpop.f32.mrf.mxu0
        %v5098 = vadd.f32 %v4929, %v5097
        %5099 = vmatmul.bf16.gmra.mxu0 %v3071
        %v5100 = vpop.f32.mrf.mxu0
        %v5101 = vadd.f32 %v4932, %v5100
        %v5102 = vpop.f32.mrf.mxu0
        %v5103 = vadd.f32 %v4934, %v5102
        %5104 = vmatmul.bf16.gmra.mxu0 %v3072
        %v5105 = vpop.f32.mrf.mxu0
        %v5106 = vadd.f32 %v4937, %v5105
        %v5107 = vpop.f32.mrf.mxu0
        %v5108 = vadd.f32 %v4939, %v5107
        %5109 = vmatmul.bf16.gmra.mxu0 %v3073
        %v5110 = vpop.f32.mrf.mxu0
        %v5111 = vadd.f32 %v4942, %v5110
        %v5112 = vpop.f32.mrf.mxu0
        %v5113 = vadd.f32 %v4944, %v5112
        %5114 = vmatmul.bf16.gmra.mxu0 %v3074
        %v5115 = vpop.f32.mrf.mxu0
        %v5116 = vadd.f32 %v4947, %v5115
        %v5117 = vpop.f32.mrf.mxu0
        %v5118 = vadd.f32 %v4949, %v5117
        %5119 = vmatmul.bf16.gmra.mxu0 %v3075
        %v5120 = vpop.f32.mrf.mxu0
        %v5121 = vadd.f32 %v4952, %v5120
        %v5122 = vpop.f32.mrf.mxu0
        %v5123 = vadd.f32 %v4954, %v5122
        %5124 = vmatmul.bf16.gmra.mxu0 %v3076
        %v5125 = vpop.f32.mrf.mxu0
        %v5126 = vadd.f32 %v4957, %v5125
        %v5127 = vpop.f32.mrf.mxu0
        %v5128 = vadd.f32 %v4959, %v5127
        %5129 = vmatmul.bf16.gmra.mxu0 %v3077
        %v5130 = vpop.f32.mrf.mxu0
        %v5131 = vadd.f32 %v4962, %v5130
        %v5132 = vpop.f32.mrf.mxu0
        %v5133 = vadd.f32 %v4964, %v5132
        %5134 = vmatmul.bf16.gmra.mxu0 %v3078
        %v5135 = vpop.f32.mrf.mxu0
        %v5136 = vadd.f32 %v4967, %v5135
        %v5137 = vpop.f32.mrf.mxu0
        %v5138 = vadd.f32 %v4969, %v5137
        %5139 = vmatmul.bf16.gmra.mxu0 %v3079
        %v5140 = vpop.f32.mrf.mxu0
        %v5141 = vadd.f32 %v4972, %v5140
        %v5142 = vpop.f32.mrf.mxu0
        %v5143 = vadd.f32 %v4974, %v5142
        %5144 = vmatmul.bf16.gmra.mxu0 %v3080
        %v5145 = vpop.f32.mrf.mxu0
        %v5146 = vadd.f32 %v4977, %v5145
        %v5147 = vpop.f32.mrf.mxu0
        %v5148 = vadd.f32 %v4979, %v5147
        %5149 = vmatmul.bf16.gmra.mxu0 %v3081
        %v5150 = vpop.f32.mrf.mxu0
        %v5151 = vadd.f32 %v4982, %v5150
        %v5152 = vpop.f32.mrf.mxu0
        %v5153 = vadd.f32 %v4984, %v5152
        %5154 = vmatmul.bf16.gmra.mxu0 %v3082
        %v5155 = vpop.f32.mrf.mxu0
        %v5156 = vadd.f32 %v4987, %v5155
        %v5157 = vpop.f32.mrf.mxu0
        %v5158 = vadd.f32 %v4989, %v5157
        %5159 = vmatmul.bf16.gmra.mxu0 %v3083
        %v5160 = vpop.f32.mrf.mxu0
        %v5161 = vadd.f32 %v4992, %v5160
        %v5162 = vpop.f32.mrf.mxu0
        %v5163 = vadd.f32 %v4994, %v5162
        %5164 = vmatmul.bf16.gmra.mxu0 %v3084
        %v5165 = vpop.f32.mrf.mxu0
        %v5166 = vadd.f32 %v4997, %v5165
        %v5167 = vpop.f32.mrf.mxu0
        %v5168 = vadd.f32 %v4999, %v5167
        %5169 = vmatmul.bf16.gmra.mxu0 0
        %v5170 = vpop.f32.mrf.mxu0
        %v5171 = vadd.f32 %v5002, %v5170
        %v5172 = vpop.f32.mrf.mxu0
        %v5173 = vadd.f32 %v5004, %v5172
        %5174 = vmatmul.bf16.gmra.mxu0 %v3086
        %v5175 = vpop.f32.mrf.mxu0
        %v5176 = vadd.f32 %v5007, %v5175
        %v5177 = vpop.f32.mrf.mxu0
        %v5178 = vadd.f32 %v5009, %v5177
        %5179 = vmatmul.bf16.gmra.mxu0 %v3087
        %v5180 = vpop.f32.mrf.mxu0
        %v5181 = vadd.f32 %v5012, %v5180
        %v5182 = vpop.f32.mrf.mxu0
        %v5183 = vadd.f32 %v5014, %v5182
        %5184 = vmatmul.bf16.gmra.mxu0 %v3088
        %v5185 = vpop.f32.mrf.mxu0
        %v5186 = vadd.f32 %v5017, %v5185
        %v5187 = vpop.f32.mrf.mxu0
        %v5188 = vadd.f32 %v5019, %v5187
        %5189 = vmatmul.bf16.gmra.mxu0 %v3089
        %v5190 = vpop.f32.mrf.mxu0
        %v5191 = vadd.f32 %v5022, %v5190
        %v5192 = vpop.f32.mrf.mxu0
        %v5193 = vadd.f32 %v5024, %v5192
        %5194 = vmatmul.bf16.gmra.mxu0 %v3090
        %v5195 = vpop.f32.mrf.mxu0
        %v5196 = vadd.f32 %v5027, %v5195
        %v5197 = vpop.f32.mrf.mxu0
        %v5198 = vadd.f32 %v5029, %v5197
        %5199 = vmatmul.bf16.gmra.mxu0 %v3091
        %v5200 = vpop.f32.mrf.mxu0
        %v5201 = vadd.f32 %v5032, %v5200
        %v5202 = vpop.f32.mrf.mxu0
        %v5203 = vadd.f32 %v5034, %v5202
        %5204 = vmatmul.bf16.gmra.mxu0 %v3092
        %v5205 = vpop.f32.mrf.mxu0
        %v5206 = vadd.f32 %v5037, %v5205
        %v5207 = vpop.f32.mrf.mxu0
        %v5208 = vadd.f32 %v5039, %v5207
        %5209 = vmatmul.bf16.gmra.mxu0 %v3093
        %v5210 = vpop.f32.mrf.mxu0
        %v5211 = vadd.f32 %v5042, %v5210
        %v5212 = vpop.f32.mrf.mxu0
        %v5213 = vadd.f32 %v5044, %v5212
        %5214 = vmatmul.bf16.gmra.mxu0 %v3094
        %v5215 = vpop.f32.mrf.mxu0
        %v5216 = vadd.f32 %v5047, %v5215
        %v5217 = vpop.f32.mrf.mxu0
        %v5218 = vadd.f32 %v5049, %v5217
        %5219 = vmatmul.bf16.gmra.mxu0 %v3095
        %v5220 = vpop.f32.mrf.mxu0
        %v5221 = vadd.f32 %v5052, %v5220
        %v5222 = vpop.f32.mrf.mxu0
        %v5223 = vadd.f32 %v5054, %v5222
        %5224 = vmatmul.bf16.gmra.mxu0 %v3096
        %v5225 = vpop.f32.mrf.mxu0
        %v5226 = vadd.f32 %v5057, %v5225
        %v5227 = vpop.f32.mrf.mxu0
        %v5228 = vadd.f32 %v5059, %v5227
        %5229 = vmatmul.bf16.gmra.mxu0 %v3097
        %v5230 = vpop.f32.mrf.mxu0
        %v5231 = vadd.f32 %v5062, %v5230
        %v5232 = vpop.f32.mrf.mxu0
        %v5233 = vadd.f32 %v5064, %v5232
        %5234 = vmatmul.bf16.gmra.mxu0 %v3098
        %v5235 = vpop.f32.mrf.mxu0
        %v5236 = vadd.f32 %v5067, %v5235
        %v5237 = vpop.f32.mrf.mxu0
        %v5238 = vadd.f32 %v5069, %v5237
        %5239 = vmatmul.bf16.gmra.mxu0 %v3099
        %v5240 = vpop.f32.mrf.mxu0
        %v5241 = vadd.f32 %v5072, %v5240
        %v5242 = vpop.f32.mrf.mxu0
        %v5243 = vadd.f32 %v5074, %v5242
        %5244 = vmatmul.bf16.gmra.mxu0 %v3100
        %v5245 = vpop.f32.mrf.mxu0
        %v5246 = vadd.f32 %v5077, %v5245
        %v5247 = vpop.f32.mrf.mxu0
        %v5248 = vadd.f32 %v5079, %v5247
        %5249 = vmatmul.bf16.gmra.mxu0 0
        %v5250 = vpop.f32.mrf.mxu0
        %v5251 = vadd.f32 %v5082, %v5250
        %v5252 = vpop.f32.mrf.mxu0
        %v5253 = vadd.f32 %v5084, %v5252
        %5254 = vdwg.mxu0
        %5255 = vmatpush.bf16.msra.mxu0 %v4892
        %5256 = vmatpush.bf16.msra.mxu0 %v4891
        %5257 = vmatpush.bf16.msra.mxu0 %v4890
        %5258 = vmatpush.bf16.msra.mxu0 %v4889
        %5259 = vmatpush.bf16.msra.mxu0 %v4888
        %5260 = vmatpush.bf16.msra.mxu0 %v4887
        %5261 = vmatpush.bf16.msra.mxu0 %v4886
        %5262 = vmatpush.bf16.msra.mxu0 %v4885
        %5263 = vmatmul.bf16.gmra.mxu0 %v3262
        %v5264 = vpop.f32.mrf.mxu0
        %v5265 = vadd.f32 %v5096, %v5264
        %v5266 = vpop.f32.mrf.mxu0
        %v5267 = vadd.f32 %v5098, %v5266
        %5268 = vmatmul.bf16.gmra.mxu0 %v3263
        %v5269 = vpop.f32.mrf.mxu0
        %v5270 = vadd.f32 %v5101, %v5269
        %v5271 = vpop.f32.mrf.mxu0
        %v5272 = vadd.f32 %v5103, %v5271
        %5273 = vmatmul.bf16.gmra.mxu0 %v3264
        %v5274 = vpop.f32.mrf.mxu0
        %v5275 = vadd.f32 %v5106, %v5274
        %v5276 = vpop.f32.mrf.mxu0
        %v5277 = vadd.f32 %v5108, %v5276
        %5278 = vmatmul.bf16.gmra.mxu0 %v3265
        %v5279 = vpop.f32.mrf.mxu0
        %v5280 = vadd.f32 %v5111, %v5279
        %v5281 = vpop.f32.mrf.mxu0
        %v5282 = vadd.f32 %v5113, %v5281
        %5283 = vmatmul.bf16.gmra.mxu0 %v3266
        %v5284 = vpop.f32.mrf.mxu0
        %v5285 = vadd.f32 %v5116, %v5284
        %v5286 = vpop.f32.mrf.mxu0
        %v5287 = vadd.f32 %v5118, %v5286
        %5288 = vmatmul.bf16.gmra.mxu0 %v3267
        %v5289 = vpop.f32.mrf.mxu0
        %v5290 = vadd.f32 %v5121, %v5289
        %v5291 = vpop.f32.mrf.mxu0
        %v5292 = vadd.f32 %v5123, %v5291
        %5293 = vmatmul.bf16.gmra.mxu0 %v3268
        %v5294 = vpop.f32.mrf.mxu0
        %v5295 = vadd.f32 %v5126, %v5294
        %v5296 = vpop.f32.mrf.mxu0
        %v5297 = vadd.f32 %v5128, %v5296
        %5298 = vmatmul.bf16.gmra.mxu0 %v3269
        %v5299 = vpop.f32.mrf.mxu0
        %v5300 = vadd.f32 %v5131, %v5299
        %v5301 = vpop.f32.mrf.mxu0
        %v5302 = vadd.f32 %v5133, %v5301
        %5303 = vmatmul.bf16.gmra.mxu0 %v3270
        %v5304 = vpop.f32.mrf.mxu0
        %v5305 = vadd.f32 %v5136, %v5304
        %v5306 = vpop.f32.mrf.mxu0
        %v5307 = vadd.f32 %v5138, %v5306
        %5308 = vmatmul.bf16.gmra.mxu0 %v3271
        %v5309 = vpop.f32.mrf.mxu0
        %v5310 = vadd.f32 %v5141, %v5309
        %v5311 = vpop.f32.mrf.mxu0
        %v5312 = vadd.f32 %v5143, %v5311
        %5313 = vmatmul.bf16.gmra.mxu0 %v3272
        %v5314 = vpop.f32.mrf.mxu0
        %v5315 = vadd.f32 %v5146, %v5314
        %v5316 = vpop.f32.mrf.mxu0
        %v5317 = vadd.f32 %v5148, %v5316
        %5318 = vmatmul.bf16.gmra.mxu0 %v3273
        %v5319 = vpop.f32.mrf.mxu0
        %v5320 = vadd.f32 %v5151, %v5319
        %v5321 = vpop.f32.mrf.mxu0
        %v5322 = vadd.f32 %v5153, %v5321
        %5323 = vmatmul.bf16.gmra.mxu0 %v3274
        %v5324 = vpop.f32.mrf.mxu0
        %v5325 = vadd.f32 %v5156, %v5324
        %v5326 = vpop.f32.mrf.mxu0
        %v5327 = vadd.f32 %v5158, %v5326
        %5328 = vmatmul.bf16.gmra.mxu0 %v3275
        %v5329 = vpop.f32.mrf.mxu0
        %v5330 = vadd.f32 %v5161, %v5329
        %v5331 = vpop.f32.mrf.mxu0
        %v5332 = vadd.f32 %v5163, %v5331
        %5333 = vmatmul.bf16.gmra.mxu0 %v3276
        %v5334 = vpop.f32.mrf.mxu0
        %v5335 = vadd.f32 %v5166, %v5334
        %v5336 = vpop.f32.mrf.mxu0
        %v5337 = vadd.f32 %v5168, %v5336
        %5338 = vmatmul.bf16.gmra.mxu0 0
        %v5339 = vpop.f32.mrf.mxu0
        %v5340 = vadd.f32 %v5171, %v5339
        %v5341 = vpop.f32.mrf.mxu0
        %v5342 = vadd.f32 %v5173, %v5341
        %5343 = vmatmul.bf16.gmra.mxu0 %v3278
        %v5344 = vpop.f32.mrf.mxu0
        %v5345 = vadd.f32 %v5176, %v5344
        %v5346 = vpop.f32.mrf.mxu0
        %v5347 = vadd.f32 %v5178, %v5346
        %5348 = vmatmul.bf16.gmra.mxu0 %v3279
        %v5349 = vpop.f32.mrf.mxu0
        %v5350 = vadd.f32 %v5181, %v5349
        %v5351 = vpop.f32.mrf.mxu0
        %v5352 = vadd.f32 %v5183, %v5351
        %5353 = vmatmul.bf16.gmra.mxu0 %v3280
        %v5354 = vpop.f32.mrf.mxu0
        %v5355 = vadd.f32 %v5186, %v5354
        %v5356 = vpop.f32.mrf.mxu0
        %v5357 = vadd.f32 %v5188, %v5356
        %5358 = vmatmul.bf16.gmra.mxu0 %v3281
        %v5359 = vpop.f32.mrf.mxu0
        %v5360 = vadd.f32 %v5191, %v5359
        %v5361 = vpop.f32.mrf.mxu0
        %v5362 = vadd.f32 %v5193, %v5361
        %5363 = vmatmul.bf16.gmra.mxu0 %v3282
        %v5364 = vpop.f32.mrf.mxu0
        %v5365 = vadd.f32 %v5196, %v5364
        %v5366 = vpop.f32.mrf.mxu0
        %v5367 = vadd.f32 %v5198, %v5366
        %5368 = vmatmul.bf16.gmra.mxu0 %v3283
        %v5369 = vpop.f32.mrf.mxu0
        %v5370 = vadd.f32 %v5201, %v5369
        %v5371 = vpop.f32.mrf.mxu0
        %v5372 = vadd.f32 %v5203, %v5371
        %5373 = vmatmul.bf16.gmra.mxu0 %v3284
        %v5374 = vpop.f32.mrf.mxu0
        %v5375 = vadd.f32 %v5206, %v5374
        %v5376 = vpop.f32.mrf.mxu0
        %v5377 = vadd.f32 %v5208, %v5376
        %5378 = vmatmul.bf16.gmra.mxu0 %v3285
        %v5379 = vpop.f32.mrf.mxu0
        %v5380 = vadd.f32 %v5211, %v5379
        %v5381 = vpop.f32.mrf.mxu0
        %v5382 = vadd.f32 %v5213, %v5381
        %5383 = vmatmul.bf16.gmra.mxu0 %v3286
        %v5384 = vpop.f32.mrf.mxu0
        %v5385 = vadd.f32 %v5216, %v5384
        %v5386 = vpop.f32.mrf.mxu0
        %v5387 = vadd.f32 %v5218, %v5386
        %5388 = vmatmul.bf16.gmra.mxu0 %v3287
        %v5389 = vpop.f32.mrf.mxu0
        %v5390 = vadd.f32 %v5221, %v5389
        %v5391 = vpop.f32.mrf.mxu0
        %v5392 = vadd.f32 %v5223, %v5391
        %5393 = vmatmul.bf16.gmra.mxu0 %v3288
        %v5394 = vpop.f32.mrf.mxu0
        %v5395 = vadd.f32 %v5226, %v5394
        %v5396 = vpop.f32.mrf.mxu0
        %v5397 = vadd.f32 %v5228, %v5396
        %5398 = vmatmul.bf16.gmra.mxu0 %v3289
        %v5399 = vpop.f32.mrf.mxu0
        %v5400 = vadd.f32 %v5231, %v5399
        %v5401 = vpop.f32.mrf.mxu0
        %v5402 = vadd.f32 %v5233, %v5401
        %5403 = vmatmul.bf16.gmra.mxu0 %v3290
        %v5404 = vpop.f32.mrf.mxu0
        %v5405 = vadd.f32 %v5236, %v5404
        %v5406 = vpop.f32.mrf.mxu0
        %v5407 = vadd.f32 %v5238, %v5406
        %5408 = vmatmul.bf16.gmra.mxu0 %v3291
        %v5409 = vpop.f32.mrf.mxu0
        %v5410 = vadd.f32 %v5241, %v5409
        %v5411 = vpop.f32.mrf.mxu0
        %v5412 = vadd.f32 %v5243, %v5411
        %5413 = vmatmul.bf16.gmra.mxu0 %v3292
        %v5414 = vpop.f32.mrf.mxu0
        %v5415 = vadd.f32 %v5246, %v5414
        %v5416 = vpop.f32.mrf.mxu0
        %v5417 = vadd.f32 %v5248, %v5416
        %5418 = vmatmul.bf16.gmra.mxu0 0
        %v5419 = vpop.f32.mrf.mxu0
        %v5420 = vadd.f32 %v5251, %v5419
        %v5421 = vpop.f32.mrf.mxu0
        %v5422 = vadd.f32 %v5253, %v5421
        %5423 = vdwg.mxu0
        %v5424 = vadd.f32 %v4565, %v5265
        %v5425 = vadd.f32 %v4567, %v5267
        %v5426 = vadd.f32 %v4570, %v5270
        %v5427 = vadd.f32 %v4572, %v5272
        %v5428 = vadd.f32 %v4575, %v5275
        %v5429 = vadd.f32 %v4577, %v5277
        %v5430 = vadd.f32 %v4580, %v5280
        %v5431 = vadd.f32 %v4582, %v5282
        %v5432 = vadd.f32 %v4585, %v5285
        %v5433 = vadd.f32 %v4587, %v5287
        %v5434 = vadd.f32 %v4590, %v5290
        %v5435 = vadd.f32 %v4592, %v5292
        %v5436 = vadd.f32 %v4595, %v5295
        %v5437 = vadd.f32 %v4597, %v5297
        %v5438 = vadd.f32 %v4600, %v5300
        %v5439 = vadd.f32 %v4602, %v5302
        %v5440 = vadd.f32 %v4605, %v5305
        %v5441 = vadd.f32 %v4607, %v5307
        %v5442 = vadd.f32 %v4610, %v5310
        %v5443 = vadd.f32 %v4612, %v5312
        %v5444 = vadd.f32 %v4615, %v5315
        %v5445 = vadd.f32 %v4617, %v5317
        %v5446 = vadd.f32 %v4620, %v5320
        %v5447 = vadd.f32 %v4622, %v5322
        %v5448 = vadd.f32 %v4625, %v5325
        %v5449 = vadd.f32 %v4627, %v5327
        %v5450 = vadd.f32 %v4630, %v5330
        %v5451 = vadd.f32 %v4632, %v5332
        %v5452 = vadd.f32 %v4635, %v5335
        %v5453 = vadd.f32 %v4637, %v5337
        %v5454 = vadd.f32 %v4640, %v5340
        %v5455 = vadd.f32 %v4642, %v5342
        %v5456 = vadd.f32 %v4645, %v5345
        %v5457 = vadd.f32 %v4647, %v5347
        %v5458 = vadd.f32 %v4650, %v5350
        %v5459 = vadd.f32 %v4652, %v5352
        %v5460 = vadd.f32 %v4655, %v5355
        %v5461 = vadd.f32 %v4657, %v5357
        %v5462 = vadd.f32 %v4660, %v5360
        %v5463 = vadd.f32 %v4662, %v5362
        %v5464 = vadd.f32 %v4665, %v5365
        %v5465 = vadd.f32 %v4667, %v5367
        %v5466 = vadd.f32 %v4670, %v5370
        %v5467 = vadd.f32 %v4672, %v5372
        %v5468 = vadd.f32 %v4675, %v5375
        %v5469 = vadd.f32 %v4677, %v5377
        %v5470 = vadd.f32 %v4680, %v5380
        %v5471 = vadd.f32 %v4682, %v5382
        %v5472 = vadd.f32 %v4685, %v5385
        %v5473 = vadd.f32 %v4687, %v5387
        %v5474 = vadd.f32 %v4690, %v5390
        %v5475 = vadd.f32 %v4692, %v5392
        %v5476 = vadd.f32 %v4695, %v5395
        %v5477 = vadd.f32 %v4697, %v5397
        %v5478 = vadd.f32 %v4700, %v5400
        %v5479 = vadd.f32 %v4702, %v5402
        %v5480 = vadd.f32 %v4705, %v5405
        %v5481 = vadd.f32 %v4707, %v5407
        %v5482 = vadd.f32 %v4710, %v5410
        %v5483 = vadd.f32 %v4712, %v5412
        %v5484 = vadd.f32 %v4715, %v5415
        %v5485 = vadd.f32 %v4717, %v5417
        %v5486 = vadd.f32 %v4720, %v5420
        %v5487 = vadd.f32 %v4722, %v5422
        %v5488 = vld [vmem:[#allocation10] sm:$0x1]
        %v5490 = vperm.slane %v5488, 0
        %v5492 = vadd.f32 %v5424, %v5490
        %v5493 = vadd.f32 %v5425, %v5490
        %v5494 = vadd.f32 %v5426, %v5490
        %v5495 = vadd.f32 %v5427, %v5490
        %v5496 = vadd.f32 %v5428, %v5490
        %v5497 = vadd.f32 %v5429, %v5490
        %v5498 = vadd.f32 %v5430, %v5490
        %v5499 = vadd.f32 %v5431, %v5490
        %v5500 = vadd.f32 %v5432, %v5490
        %v5501 = vadd.f32 %v5433, %v5490
        %v5502 = vadd.f32 %v5434, %v5490
        %v5503 = vadd.f32 %v5435, %v5490
        %v5504 = vadd.f32 %v5436, %v5490
        %v5505 = vadd.f32 %v5437, %v5490
        %v5506 = vadd.f32 %v5438, %v5490
        %v5507 = vadd.f32 %v5439, %v5490
        %v5508 = vadd.f32 %v5440, %v5490
        %v5509 = vadd.f32 %v5441, %v5490
        %v5510 = vadd.f32 %v5442, %v5490
        %v5511 = vadd.f32 %v5443, %v5490
        %v5512 = vadd.f32 %v5444, %v5490
        %v5513 = vadd.f32 %v5445, %v5490
        %v5514 = vadd.f32 %v5446, %v5490
        %v5515 = vadd.f32 %v5447, %v5490
        %v5516 = vadd.f32 %v5448, %v5490
        %v5517 = vadd.f32 %v5449, %v5490
        %v5518 = vadd.f32 %v5450, %v5490
        %v5519 = vadd.f32 %v5451, %v5490
        %v5520 = vadd.f32 %v5452, %v5490
        %v5521 = vadd.f32 %v5453, %v5490
        %v5522 = vadd.f32 %v5454, %v5490
        %v5523 = vadd.f32 %v5455, %v5490
        %v5524 = vadd.f32 %v5456, %v5490
        %v5525 = vadd.f32 %v5457, %v5490
        %v5526 = vadd.f32 %v5458, %v5490
        %v5527 = vadd.f32 %v5459, %v5490
        %v5528 = vadd.f32 %v5460, %v5490
        %v5529 = vadd.f32 %v5461, %v5490
        %v5530 = vadd.f32 %v5462, %v5490
        %v5531 = vadd.f32 %v5463, %v5490
        %v5532 = vadd.f32 %v5464, %v5490
        %v5533 = vadd.f32 %v5465, %v5490
        %v5534 = vadd.f32 %v5466, %v5490
        %v5535 = vadd.f32 %v5467, %v5490
        %v5536 = vadd.f32 %v5468, %v5490
        %v5537 = vadd.f32 %v5469, %v5490
        %v5538 = vadd.f32 %v5470, %v5490
        %v5539 = vadd.f32 %v5471, %v5490
        %v5540 = vadd.f32 %v5472, %v5490
        %v5541 = vadd.f32 %v5473, %v5490
        %v5542 = vadd.f32 %v5474, %v5490
        %v5543 = vadd.f32 %v5475, %v5490
        %v5544 = vadd.f32 %v5476, %v5490
        %v5545 = vadd.f32 %v5477, %v5490
        %v5546 = vadd.f32 %v5478, %v5490
        %v5547 = vadd.f32 %v5479, %v5490
        %v5548 = vadd.f32 %v5480, %v5490
        %v5549 = vadd.f32 %v5481, %v5490
        %v5550 = vadd.f32 %v5482, %v5490
        %v5551 = vadd.f32 %v5483, %v5490
        %v5552 = vadd.f32 %v5484, %v5490
        %v5553 = vadd.f32 %v5485, %v5490
        %v5554 = vadd.f32 %v5486, %v5490
        %v5555 = vadd.f32 %v5487, %v5490
        %v5556 = vmax.f32 %v5492, 0.0
        %v5557 = vmax.f32 %v5493, 0.0
        %v5558 = vmax.f32 %v5494, 0.0
        %v5559 = vmax.f32 %v5495, 0.0
        %v5560 = vmax.f32 %v5496, 0.0
        %v5561 = vmax.f32 %v5497, 0.0
        %v5562 = vmax.f32 %v5498, 0.0
        %v5563 = vmax.f32 %v5499, 0.0
        %v5564 = vmax.f32 %v5500, 0.0
        %v5565 = vmax.f32 %v5501, 0.0
        %v5566 = vmax.f32 %v5502, 0.0
        %v5567 = vmax.f32 %v5503, 0.0
        %v5568 = vmax.f32 %v5504, 0.0
        %v5569 = vmax.f32 %v5505, 0.0
        %v5570 = vmax.f32 %v5506, 0.0
        %v5571 = vmax.f32 %v5507, 0.0
        %v5572 = vmax.f32 %v5508, 0.0
        %v5573 = vmax.f32 %v5509, 0.0
        %v5574 = vmax.f32 %v5510, 0.0
        %v5575 = vmax.f32 %v5511, 0.0
        %v5576 = vmax.f32 %v5512, 0.0
        %v5577 = vmax.f32 %v5513, 0.0
        %v5578 = vmax.f32 %v5514, 0.0
        %v5579 = vmax.f32 %v5515, 0.0
        %v5580 = vmax.f32 %v5516, 0.0
        %v5581 = vmax.f32 %v5517, 0.0
        %v5582 = vmax.f32 %v5518, 0.0
        %v5583 = vmax.f32 %v5519, 0.0
        %v5584 = vmax.f32 %v5520, 0.0
        %v5585 = vmax.f32 %v5521, 0.0
        %v5586 = vmax.f32 %v5522, 0.0
        %v5587 = vmax.f32 %v5523, 0.0
        %v5588 = vmax.f32 %v5524, 0.0
        %v5589 = vmax.f32 %v5525, 0.0
        %v5590 = vmax.f32 %v5526, 0.0
        %v5591 = vmax.f32 %v5527, 0.0
        %v5592 = vmax.f32 %v5528, 0.0
        %v5593 = vmax.f32 %v5529, 0.0
        %v5594 = vmax.f32 %v5530, 0.0
        %v5595 = vmax.f32 %v5531, 0.0
        %v5596 = vmax.f32 %v5532, 0.0
        %v5597 = vmax.f32 %v5533, 0.0
        %v5598 = vmax.f32 %v5534, 0.0
        %v5599 = vmax.f32 %v5535, 0.0
        %v5600 = vmax.f32 %v5536, 0.0
        %v5601 = vmax.f32 %v5537, 0.0
        %v5602 = vmax.f32 %v5538, 0.0
        %v5603 = vmax.f32 %v5539, 0.0
        %v5604 = vmax.f32 %v5540, 0.0
        %v5605 = vmax.f32 %v5541, 0.0
        %v5606 = vmax.f32 %v5542, 0.0
        %v5607 = vmax.f32 %v5543, 0.0
        %v5608 = vmax.f32 %v5544, 0.0
        %v5609 = vmax.f32 %v5545, 0.0
        %v5610 = vmax.f32 %v5546, 0.0
        %v5611 = vmax.f32 %v5547, 0.0
        %v5612 = vmax.f32 %v5548, 0.0
        %v5613 = vmax.f32 %v5549, 0.0
        %v5614 = vmax.f32 %v5550, 0.0
        %v5615 = vmax.f32 %v5551, 0.0
        %v5616 = vmax.f32 %v5552, 0.0
        %v5617 = vmax.f32 %v5553, 0.0
        %v5618 = vmax.f32 %v5554, 0.0
        %v5619 = vmax.f32 %v5555, 0.0
        %v5620 = vpack.c.bf16 %v5557, %v5556
        %v5621 = vpack.c.bf16 %v5559, %v5558
        %v5622 = vpack.c.bf16 %v5561, %v5560
        %v5623 = vpack.c.bf16 %v5563, %v5562
        %v5624 = vpack.c.bf16 %v5565, %v5564
        %v5625 = vpack.c.bf16 %v5567, %v5566
        %v5626 = vpack.c.bf16 %v5569, %v5568
        %v5627 = vpack.c.bf16 %v5571, %v5570
        %v5628 = vpack.c.bf16 %v5573, %v5572
        %v5629 = vpack.c.bf16 %v5575, %v5574
        %v5630 = vpack.c.bf16 %v5577, %v5576
        %v5631 = vpack.c.bf16 %v5579, %v5578
        %v5632 = vpack.c.bf16 %v5581, %v5580
        %v5633 = vpack.c.bf16 %v5583, %v5582
        %v5634 = vpack.c.bf16 %v5585, %v5584
        %v5635 = vpack.c.bf16 %v5587, %v5586
        %v5636 = vpack.c.bf16 %v5589, %v5588
        %v5637 = vpack.c.bf16 %v5591, %v5590
        %v5638 = vpack.c.bf16 %v5593, %v5592
        %v5639 = vpack.c.bf16 %v5595, %v5594
        %v5640 = vpack.c.bf16 %v5597, %v5596
        %v5641 = vpack.c.bf16 %v5599, %v5598
        %v5642 = vpack.c.bf16 %v5601, %v5600
        %v5643 = vpack.c.bf16 %v5603, %v5602
        %v5644 = vpack.c.bf16 %v5605, %v5604
        %v5645 = vpack.c.bf16 %v5607, %v5606
        %v5646 = vpack.c.bf16 %v5609, %v5608
        %v5647 = vpack.c.bf16 %v5611, %v5610
        %v5648 = vpack.c.bf16 %v5613, %v5612
        %v5649 = vpack.c.bf16 %v5615, %v5614
        %v5650 = vpack.c.bf16 %v5617, %v5616
        %v5651 = vpack.c.bf16 %v5619, %v5618
        %v5652 = vld [vmem:[#allocation11] sm:$0xff]
        %v5653 = vld [vmem:[#allocation11 + $0x8] sm:$0xff]
        %v5654 = vld [vmem:[#allocation11 + $0x10] sm:$0xff]
        %v5655 = vld [vmem:[#allocation11 + $0x18] sm:$0xff]
        %v5656 = vld [vmem:[#allocation11 + $0x20] sm:$0xff]
        %v5657 = vld [vmem:[#allocation11 + $0x28] sm:$0xff]
        %v5658 = vld [vmem:[#allocation11 + $0x30] sm:$0xff]
        %v5659 = vld [vmem:[#allocation11 + $0x38] sm:$0xff]
        %v5660 = vld [vmem:[#allocation11 + $0x40] sm:$0xff]
        %v5661 = vld [vmem:[#allocation11 + $0x48] sm:$0xff]
        %v5662 = vld [vmem:[#allocation11 + $0x50] sm:$0xff]
        %v5663 = vld [vmem:[#allocation11 + $0x58] sm:$0xff]
        %v5664 = vld [vmem:[#allocation11 + $0x60] sm:$0xff]
        %v5665 = vld [vmem:[#allocation11 + $0x68] sm:$0xff]
        %v5666 = vld [vmem:[#allocation11 + $0x70] sm:$0xff]
        %v5667 = vld [vmem:[#allocation11 + $0x78] sm:$0xff]
        %v5668 = vld [vmem:[#allocation11 + $0x80] sm:$0xff]
        %v5669 = vld [vmem:[#allocation11 + $0x88] sm:$0xff]
        %v5670 = vld [vmem:[#allocation11 + $0x90] sm:$0xff]
        %v5671 = vld [vmem:[#allocation11 + $0x98] sm:$0xff]
        %v5672 = vld [vmem:[#allocation11 + $0xa0] sm:$0xff]
        %v5673 = vld [vmem:[#allocation11 + $0xa8] sm:$0xff]
        %v5674 = vld [vmem:[#allocation11 + $0xb0] sm:$0xff]
        %v5675 = vld [vmem:[#allocation11 + $0xb8] sm:$0xff]
        %v5676 = vld [vmem:[#allocation11 + $0xc0] sm:$0xff]
        %v5677 = vld [vmem:[#allocation11 + $0xc8] sm:$0xff]
        %v5678 = vld [vmem:[#allocation11 + $0xd0] sm:$0xff]
        %v5679 = vld [vmem:[#allocation11 + $0xd8] sm:$0xff]
        %v5680 = vld [vmem:[#allocation11 + $0xe0] sm:$0xff]
        %v5681 = vld [vmem:[#allocation11 + $0xe8] sm:$0xff]
        %v5682 = vld [vmem:[#allocation11 + $0xf0] sm:$0xff]
        %v5683 = vld [vmem:[#allocation11 + $0xf8] sm:$0xff]
        %v5684 = vld [vmem:[#allocation13] sm:$0xf]
        %v5686 = vperm.slane %v5684, 0
        %v5687 = vperm.slane %v5684, 1
        %v5688 = vperm.slane %v5684, 2
        %v5689 = vperm.slane %v5684, 3
        %v5726 = vunpack.c.l.b16 %v5652
        %v5727 = vunpack.c.h.b16 %v5652
        %v5728 = vunpack.c.l.b16 %v5653
        %v5729 = vunpack.c.h.b16 %v5653
        %v5730 = vunpack.c.l.b16 %v5654
        %v5731 = vunpack.c.h.b16 %v5654
        %v5732 = vunpack.c.l.b16 %v5655
        %v5733 = vunpack.c.h.b16 %v5655
        %v5734 = vunpack.c.l.b16 %v5656
        %v5735 = vunpack.c.h.b16 %v5656
        %v5736 = vunpack.c.l.b16 %v5657
        %v5737 = vunpack.c.h.b16 %v5657
        %v5738 = vunpack.c.l.b16 %v5658
        %v5739 = vunpack.c.h.b16 %v5658
        %v5740 = vunpack.c.l.b16 %v5659
        %v5741 = vunpack.c.h.b16 %v5659
        %v5742 = vunpack.c.l.b16 %v5660
        %v5743 = vunpack.c.h.b16 %v5660
        %v5744 = vunpack.c.l.b16 %v5661
        %v5745 = vunpack.c.h.b16 %v5661
        %v5746 = vunpack.c.l.b16 %v5662
        %v5747 = vunpack.c.h.b16 %v5662
        %v5748 = vunpack.c.l.b16 %v5663
        %v5749 = vunpack.c.h.b16 %v5663
        %v5750 = vunpack.c.l.b16 %v5664
        %v5751 = vunpack.c.h.b16 %v5664
        %v5752 = vunpack.c.l.b16 %v5665
        %v5753 = vunpack.c.h.b16 %v5665
        %v5754 = vunpack.c.l.b16 %v5666
        %v5755 = vunpack.c.h.b16 %v5666
        %v5756 = vunpack.c.l.b16 %v5667
        %v5757 = vunpack.c.h.b16 %v5667
        %v5758 = vunpack.c.l.b16 %v5668
        %v5759 = vunpack.c.h.b16 %v5668
        %v5760 = vunpack.c.l.b16 %v5669
        %v5761 = vunpack.c.h.b16 %v5669
        %v5762 = vunpack.c.l.b16 %v5670
        %v5763 = vunpack.c.h.b16 %v5670
        %v5764 = vunpack.c.l.b16 %v5671
        %v5765 = vunpack.c.h.b16 %v5671
        %v5766 = vunpack.c.l.b16 %v5672
        %v5767 = vunpack.c.h.b16 %v5672
        %v5768 = vunpack.c.l.b16 %v5673
        %v5769 = vunpack.c.h.b16 %v5673
        %v5770 = vunpack.c.l.b16 %v5674
        %v5771 = vunpack.c.h.b16 %v5674
        %v5772 = vunpack.c.l.b16 %v5675
        %v5773 = vunpack.c.h.b16 %v5675
        %v5774 = vunpack.c.l.b16 %v5676
        %v5775 = vunpack.c.h.b16 %v5676
        %v5776 = vunpack.c.l.b16 %v5677
        %v5777 = vunpack.c.h.b16 %v5677
        %v5778 = vunpack.c.l.b16 %v5678
        %v5779 = vunpack.c.h.b16 %v5678
        %v5780 = vunpack.c.l.b16 %v5679
        %v5781 = vunpack.c.h.b16 %v5679
        %v5782 = vunpack.c.l.b16 %v5680
        %v5783 = vunpack.c.h.b16 %v5680
        %v5784 = vunpack.c.l.b16 %v5681
        %v5785 = vunpack.c.h.b16 %v5681
        %v5786 = vunpack.c.l.b16 %v5682
        %v5787 = vunpack.c.h.b16 %v5682
        %v5788 = vunpack.c.l.b16 %v5683
        %v5789 = vunpack.c.h.b16 %v5683
        %v5790 = vpack.c.b16 %v5730, %v5726
        %v5791 = vpack.c.b16 %v5731, %v5727
        %v5792 = vpack.c.b16 %v5732, %v5728
        %v5793 = vpack.c.b16 %v5733, %v5729
        %v5794 = vpack.c.b16 %v5738, %v5734
        %v5795 = vpack.c.b16 %v5739, %v5735
        %v5796 = vpack.c.b16 %v5740, %v5736
        %v5797 = vpack.c.b16 %v5741, %v5737
        %v5798 = vpack.c.b16 %v5746, %v5742
        %v5799 = vpack.c.b16 %v5747, %v5743
        %v5800 = vpack.c.b16 %v5748, %v5744
        %v5801 = vpack.c.b16 %v5749, %v5745
        %v5802 = vpack.c.b16 %v5754, %v5750
        %v5803 = vpack.c.b16 %v5755, %v5751
        %v5804 = vpack.c.b16 %v5756, %v5752
        %v5805 = vpack.c.b16 %v5757, %v5753
        %v5806 = vpack.c.b16 %v5762, %v5758
        %v5807 = vpack.c.b16 %v5763, %v5759
        %v5808 = vpack.c.b16 %v5764, %v5760
        %v5809 = vpack.c.b16 %v5765, %v5761
        %v5810 = vpack.c.b16 %v5770, %v5766
        %v5811 = vpack.c.b16 %v5771, %v5767
        %v5812 = vpack.c.b16 %v5772, %v5768
        %v5813 = vpack.c.b16 %v5773, %v5769
        %v5814 = vpack.c.b16 %v5778, %v5774
        %v5815 = vpack.c.b16 %v5779, %v5775
        %v5816 = vpack.c.b16 %v5780, %v5776
        %v5817 = vpack.c.b16 %v5781, %v5777
        %v5818 = vpack.c.b16 %v5786, %v5782
        %v5819 = vpack.c.b16 %v5787, %v5783
        %v5820 = vpack.c.b16 %v5788, %v5784
        %v5821 = vpack.c.b16 %v5789, %v5785
        %5854 = vmatpush.bf16.msra.mxu0 %v5818
        %5855 = vmatpush.bf16.msra.mxu0 %v5814
        %5856 = vmatpush.bf16.msra.mxu0 %v5810
        %5857 = vmatpush.bf16.msra.mxu0 %v5806
        %5858 = vmatpush.bf16.msra.mxu0 %v5802
        %5859 = vmatpush.bf16.msra.mxu0 %v5798
        %5860 = vmatpush.bf16.msra.mxu0 %v5794
        %5861 = vmatpush.bf16.msra.mxu0 %v5790
        %5862 = vmatmul.bf16.gmra.mxu0 %v5620
        %v5863 = vpop.f32.mrf.mxu0
        %v5864 = vadd.f32 %v5686, %v5863
        %v5865 = vpop.f32.mrf.mxu0
        %v5866 = vadd.f32 %v5686, %v5865
        %5867 = vmatmul.bf16.gmra.mxu0 %v5621
        %v5868 = vpop.f32.mrf.mxu0
        %v5869 = vadd.f32 %v5686, %v5868
        %v5870 = vpop.f32.mrf.mxu0
        %v5871 = vadd.f32 %v5686, %v5870
        %5872 = vmatmul.bf16.gmra.mxu0 %v5622
        %v5873 = vpop.f32.mrf.mxu0
        %v5874 = vadd.f32 %v5686, %v5873
        %v5875 = vpop.f32.mrf.mxu0
        %v5876 = vadd.f32 %v5686, %v5875
        %5877 = vmatmul.bf16.gmra.mxu0 %v5623
        %v5878 = vpop.f32.mrf.mxu0
        %v5879 = vadd.f32 %v5686, %v5878
        %v5880 = vpop.f32.mrf.mxu0
        %v5881 = vadd.f32 %v5686, %v5880
        %5882 = vmatmul.bf16.gmra.mxu0 %v5624
        %v5883 = vpop.f32.mrf.mxu0
        %v5884 = vadd.f32 %v5686, %v5883
        %v5885 = vpop.f32.mrf.mxu0
        %v5886 = vadd.f32 %v5686, %v5885
        %5887 = vmatmul.bf16.gmra.mxu0 %v5625
        %v5888 = vpop.f32.mrf.mxu0
        %v5889 = vadd.f32 %v5686, %v5888
        %v5890 = vpop.f32.mrf.mxu0
        %v5891 = vadd.f32 %v5686, %v5890
        %5892 = vmatmul.bf16.gmra.mxu0 %v5626
        %v5893 = vpop.f32.mrf.mxu0
        %v5894 = vadd.f32 %v5686, %v5893
        %v5895 = vpop.f32.mrf.mxu0
        %v5896 = vadd.f32 %v5686, %v5895
        %5897 = vmatmul.bf16.gmra.mxu0 %v5627
        %v5898 = vpop.f32.mrf.mxu0
        %v5899 = vadd.f32 %v5686, %v5898
        %v5900 = vpop.f32.mrf.mxu0
        %v5901 = vadd.f32 %v5686, %v5900
        %5902 = vmatmul.bf16.gmra.mxu0 %v5628
        %v5903 = vpop.f32.mrf.mxu0
        %v5904 = vadd.f32 %v5686, %v5903
        %v5905 = vpop.f32.mrf.mxu0
        %v5906 = vadd.f32 %v5686, %v5905
        %5907 = vmatmul.bf16.gmra.mxu0 %v5629
        %v5908 = vpop.f32.mrf.mxu0
        %v5909 = vadd.f32 %v5686, %v5908
        %v5910 = vpop.f32.mrf.mxu0
        %v5911 = vadd.f32 %v5686, %v5910
        %5912 = vmatmul.bf16.gmra.mxu0 %v5630
        %v5913 = vpop.f32.mrf.mxu0
        %v5914 = vadd.f32 %v5686, %v5913
        %v5915 = vpop.f32.mrf.mxu0
        %v5916 = vadd.f32 %v5686, %v5915
        %5917 = vmatmul.bf16.gmra.mxu0 %v5631
        %v5918 = vpop.f32.mrf.mxu0
        %v5919 = vadd.f32 %v5686, %v5918
        %v5920 = vpop.f32.mrf.mxu0
        %v5921 = vadd.f32 %v5686, %v5920
        %5922 = vmatmul.bf16.gmra.mxu0 %v5632
        %v5923 = vpop.f32.mrf.mxu0
        %v5924 = vadd.f32 %v5686, %v5923
        %v5925 = vpop.f32.mrf.mxu0
        %v5926 = vadd.f32 %v5686, %v5925
        %5927 = vmatmul.bf16.gmra.mxu0 %v5633
        %v5928 = vpop.f32.mrf.mxu0
        %v5929 = vadd.f32 %v5686, %v5928
        %v5930 = vpop.f32.mrf.mxu0
        %v5931 = vadd.f32 %v5686, %v5930
        %5932 = vmatmul.bf16.gmra.mxu0 %v5634
        %v5933 = vpop.f32.mrf.mxu0
        %v5934 = vadd.f32 %v5686, %v5933
        %v5935 = vpop.f32.mrf.mxu0
        %v5936 = vadd.f32 %v5686, %v5935
        %5937 = vmatmul.bf16.gmra.mxu0 %v5635
        %v5938 = vpop.f32.mrf.mxu0
        %v5939 = vadd.f32 %v5686, %v5938
        %v5940 = vpop.f32.mrf.mxu0
        %v5941 = vadd.f32 %v5686, %v5940
        %5942 = vmatmul.bf16.gmra.mxu0 %v5636
        %v5943 = vpop.f32.mrf.mxu0
        %v5944 = vadd.f32 %v5686, %v5943
        %v5945 = vpop.f32.mrf.mxu0
        %v5946 = vadd.f32 %v5686, %v5945
        %5947 = vmatmul.bf16.gmra.mxu0 %v5637
        %v5948 = vpop.f32.mrf.mxu0
        %v5949 = vadd.f32 %v5686, %v5948
        %v5950 = vpop.f32.mrf.mxu0
        %v5951 = vadd.f32 %v5686, %v5950
        %5952 = vmatmul.bf16.gmra.mxu0 %v5638
        %v5953 = vpop.f32.mrf.mxu0
        %v5954 = vadd.f32 %v5686, %v5953
        %v5955 = vpop.f32.mrf.mxu0
        %v5956 = vadd.f32 %v5686, %v5955
        %5957 = vmatmul.bf16.gmra.mxu0 %v5639
        %v5958 = vpop.f32.mrf.mxu0
        %v5959 = vadd.f32 %v5686, %v5958
        %v5960 = vpop.f32.mrf.mxu0
        %v5961 = vadd.f32 %v5686, %v5960
        %5962 = vmatmul.bf16.gmra.mxu0 %v5640
        %v5963 = vpop.f32.mrf.mxu0
        %v5964 = vadd.f32 %v5686, %v5963
        %v5965 = vpop.f32.mrf.mxu0
        %v5966 = vadd.f32 %v5686, %v5965
        %5967 = vmatmul.bf16.gmra.mxu0 %v5641
        %v5968 = vpop.f32.mrf.mxu0
        %v5969 = vadd.f32 %v5686, %v5968
        %v5970 = vpop.f32.mrf.mxu0
        %v5971 = vadd.f32 %v5686, %v5970
        %5972 = vmatmul.bf16.gmra.mxu0 %v5642
        %v5973 = vpop.f32.mrf.mxu0
        %v5974 = vadd.f32 %v5686, %v5973
        %v5975 = vpop.f32.mrf.mxu0
        %v5976 = vadd.f32 %v5686, %v5975
        %5977 = vmatmul.bf16.gmra.mxu0 %v5643
        %v5978 = vpop.f32.mrf.mxu0
        %v5979 = vadd.f32 %v5686, %v5978
        %v5980 = vpop.f32.mrf.mxu0
        %v5981 = vadd.f32 %v5686, %v5980
        %5982 = vmatmul.bf16.gmra.mxu0 %v5644
        %v5983 = vpop.f32.mrf.mxu0
        %v5984 = vadd.f32 %v5686, %v5983
        %v5985 = vpop.f32.mrf.mxu0
        %v5986 = vadd.f32 %v5686, %v5985
        %5987 = vmatmul.bf16.gmra.mxu0 %v5645
        %v5988 = vpop.f32.mrf.mxu0
        %v5989 = vadd.f32 %v5686, %v5988
        %v5990 = vpop.f32.mrf.mxu0
        %v5991 = vadd.f32 %v5686, %v5990
        %5992 = vmatmul.bf16.gmra.mxu0 %v5646
        %v5993 = vpop.f32.mrf.mxu0
        %v5994 = vadd.f32 %v5686, %v5993
        %v5995 = vpop.f32.mrf.mxu0
        %v5996 = vadd.f32 %v5686, %v5995
        %5997 = vmatmul.bf16.gmra.mxu0 %v5647
        %v5998 = vpop.f32.mrf.mxu0
        %v5999 = vadd.f32 %v5686, %v5998
        %v6000 = vpop.f32.mrf.mxu0
        %v6001 = vadd.f32 %v5686, %v6000
        %6002 = vmatmul.bf16.gmra.mxu0 %v5648
        %v6003 = vpop.f32.mrf.mxu0
        %v6004 = vadd.f32 %v5686, %v6003
        %v6005 = vpop.f32.mrf.mxu0
        %v6006 = vadd.f32 %v5686, %v6005
        %6007 = vmatmul.bf16.gmra.mxu0 %v5649
        %v6008 = vpop.f32.mrf.mxu0
        %v6009 = vadd.f32 %v5686, %v6008
        %v6010 = vpop.f32.mrf.mxu0
        %v6011 = vadd.f32 %v5686, %v6010
        %6012 = vmatmul.bf16.gmra.mxu0 %v5650
        %v6013 = vpop.f32.mrf.mxu0
        %v6014 = vadd.f32 %v5686, %v6013
        %v6015 = vpop.f32.mrf.mxu0
        %v6016 = vadd.f32 %v5686, %v6015
        %6017 = vmatmul.bf16.gmra.mxu0 %v5651
        %v6018 = vpop.f32.mrf.mxu0
        %v6019 = vadd.f32 %v5686, %v6018
        %v6020 = vpop.f32.mrf.mxu0
        %v6021 = vadd.f32 %v5686, %v6020
        %6022 = vdwg.mxu0
        %6023 = vmatpush.bf16.msra.mxu0 %v5819
        %6024 = vmatpush.bf16.msra.mxu0 %v5815
        %6025 = vmatpush.bf16.msra.mxu0 %v5811
        %6026 = vmatpush.bf16.msra.mxu0 %v5807
        %6027 = vmatpush.bf16.msra.mxu0 %v5803
        %6028 = vmatpush.bf16.msra.mxu0 %v5799
        %6029 = vmatpush.bf16.msra.mxu0 %v5795
        %6030 = vmatpush.bf16.msra.mxu0 %v5791
        %6031 = vmatmul.bf16.gmra.mxu0 %v5620
        %v6032 = vpop.f32.mrf.mxu0
        %v6033 = vadd.f32 %v5687, %v6032
        %v6034 = vpop.f32.mrf.mxu0
        %v6035 = vadd.f32 %v5687, %v6034
        %6036 = vmatmul.bf16.gmra.mxu0 %v5621
        %v6037 = vpop.f32.mrf.mxu0
        %v6038 = vadd.f32 %v5687, %v6037
        %v6039 = vpop.f32.mrf.mxu0
        %v6040 = vadd.f32 %v5687, %v6039
        %6041 = vmatmul.bf16.gmra.mxu0 %v5622
        %v6042 = vpop.f32.mrf.mxu0
        %v6043 = vadd.f32 %v5687, %v6042
        %v6044 = vpop.f32.mrf.mxu0
        %v6045 = vadd.f32 %v5687, %v6044
        %6046 = vmatmul.bf16.gmra.mxu0 %v5623
        %v6047 = vpop.f32.mrf.mxu0
        %v6048 = vadd.f32 %v5687, %v6047
        %v6049 = vpop.f32.mrf.mxu0
        %v6050 = vadd.f32 %v5687, %v6049
        %6051 = vmatmul.bf16.gmra.mxu0 %v5624
        %v6052 = vpop.f32.mrf.mxu0
        %v6053 = vadd.f32 %v5687, %v6052
        %v6054 = vpop.f32.mrf.mxu0
        %v6055 = vadd.f32 %v5687, %v6054
        %6056 = vmatmul.bf16.gmra.mxu0 %v5625
        %v6057 = vpop.f32.mrf.mxu0
        %v6058 = vadd.f32 %v5687, %v6057
        %v6059 = vpop.f32.mrf.mxu0
        %v6060 = vadd.f32 %v5687, %v6059
        %6061 = vmatmul.bf16.gmra.mxu0 %v5626
        %v6062 = vpop.f32.mrf.mxu0
        %v6063 = vadd.f32 %v5687, %v6062
        %v6064 = vpop.f32.mrf.mxu0
        %v6065 = vadd.f32 %v5687, %v6064
        %6066 = vmatmul.bf16.gmra.mxu0 %v5627
        %v6067 = vpop.f32.mrf.mxu0
        %v6068 = vadd.f32 %v5687, %v6067
        %v6069 = vpop.f32.mrf.mxu0
        %v6070 = vadd.f32 %v5687, %v6069
        %6071 = vmatmul.bf16.gmra.mxu0 %v5628
        %v6072 = vpop.f32.mrf.mxu0
        %v6073 = vadd.f32 %v5687, %v6072
        %v6074 = vpop.f32.mrf.mxu0
        %v6075 = vadd.f32 %v5687, %v6074
        %6076 = vmatmul.bf16.gmra.mxu0 %v5629
        %v6077 = vpop.f32.mrf.mxu0
        %v6078 = vadd.f32 %v5687, %v6077
        %v6079 = vpop.f32.mrf.mxu0
        %v6080 = vadd.f32 %v5687, %v6079
        %6081 = vmatmul.bf16.gmra.mxu0 %v5630
        %v6082 = vpop.f32.mrf.mxu0
        %v6083 = vadd.f32 %v5687, %v6082
        %v6084 = vpop.f32.mrf.mxu0
        %v6085 = vadd.f32 %v5687, %v6084
        %6086 = vmatmul.bf16.gmra.mxu0 %v5631
        %v6087 = vpop.f32.mrf.mxu0
        %v6088 = vadd.f32 %v5687, %v6087
        %v6089 = vpop.f32.mrf.mxu0
        %v6090 = vadd.f32 %v5687, %v6089
        %6091 = vmatmul.bf16.gmra.mxu0 %v5632
        %v6092 = vpop.f32.mrf.mxu0
        %v6093 = vadd.f32 %v5687, %v6092
        %v6094 = vpop.f32.mrf.mxu0
        %v6095 = vadd.f32 %v5687, %v6094
        %6096 = vmatmul.bf16.gmra.mxu0 %v5633
        %v6097 = vpop.f32.mrf.mxu0
        %v6098 = vadd.f32 %v5687, %v6097
        %v6099 = vpop.f32.mrf.mxu0
        %v6100 = vadd.f32 %v5687, %v6099
        %6101 = vmatmul.bf16.gmra.mxu0 %v5634
        %v6102 = vpop.f32.mrf.mxu0
        %v6103 = vadd.f32 %v5687, %v6102
        %v6104 = vpop.f32.mrf.mxu0
        %v6105 = vadd.f32 %v5687, %v6104
        %6106 = vmatmul.bf16.gmra.mxu0 %v5635
        %v6107 = vpop.f32.mrf.mxu0
        %v6108 = vadd.f32 %v5687, %v6107
        %v6109 = vpop.f32.mrf.mxu0
        %v6110 = vadd.f32 %v5687, %v6109
        %6111 = vmatmul.bf16.gmra.mxu0 %v5636
        %v6112 = vpop.f32.mrf.mxu0
        %v6113 = vadd.f32 %v5687, %v6112
        %v6114 = vpop.f32.mrf.mxu0
        %v6115 = vadd.f32 %v5687, %v6114
        %6116 = vmatmul.bf16.gmra.mxu0 %v5637
        %v6117 = vpop.f32.mrf.mxu0
        %v6118 = vadd.f32 %v5687, %v6117
        %v6119 = vpop.f32.mrf.mxu0
        %v6120 = vadd.f32 %v5687, %v6119
        %6121 = vmatmul.bf16.gmra.mxu0 %v5638
        %v6122 = vpop.f32.mrf.mxu0
        %v6123 = vadd.f32 %v5687, %v6122
        %v6124 = vpop.f32.mrf.mxu0
        %v6125 = vadd.f32 %v5687, %v6124
        %6126 = vmatmul.bf16.gmra.mxu0 %v5639
        %v6127 = vpop.f32.mrf.mxu0
        %v6128 = vadd.f32 %v5687, %v6127
        %v6129 = vpop.f32.mrf.mxu0
        %v6130 = vadd.f32 %v5687, %v6129
        %6131 = vmatmul.bf16.gmra.mxu0 %v5640
        %v6132 = vpop.f32.mrf.mxu0
        %v6133 = vadd.f32 %v5687, %v6132
        %v6134 = vpop.f32.mrf.mxu0
        %v6135 = vadd.f32 %v5687, %v6134
        %6136 = vmatmul.bf16.gmra.mxu0 %v5641
        %v6137 = vpop.f32.mrf.mxu0
        %v6138 = vadd.f32 %v5687, %v6137
        %v6139 = vpop.f32.mrf.mxu0
        %v6140 = vadd.f32 %v5687, %v6139
        %6141 = vmatmul.bf16.gmra.mxu0 %v5642
        %v6142 = vpop.f32.mrf.mxu0
        %v6143 = vadd.f32 %v5687, %v6142
        %v6144 = vpop.f32.mrf.mxu0
        %v6145 = vadd.f32 %v5687, %v6144
        %6146 = vmatmul.bf16.gmra.mxu0 %v5643
        %v6147 = vpop.f32.mrf.mxu0
        %v6148 = vadd.f32 %v5687, %v6147
        %v6149 = vpop.f32.mrf.mxu0
        %v6150 = vadd.f32 %v5687, %v6149
        %6151 = vmatmul.bf16.gmra.mxu0 %v5644
        %v6152 = vpop.f32.mrf.mxu0
        %v6153 = vadd.f32 %v5687, %v6152
        %v6154 = vpop.f32.mrf.mxu0
        %v6155 = vadd.f32 %v5687, %v6154
        %6156 = vmatmul.bf16.gmra.mxu0 %v5645
        %v6157 = vpop.f32.mrf.mxu0
        %v6158 = vadd.f32 %v5687, %v6157
        %v6159 = vpop.f32.mrf.mxu0
        %v6160 = vadd.f32 %v5687, %v6159
        %6161 = vmatmul.bf16.gmra.mxu0 %v5646
        %v6162 = vpop.f32.mrf.mxu0
        %v6163 = vadd.f32 %v5687, %v6162
        %v6164 = vpop.f32.mrf.mxu0
        %v6165 = vadd.f32 %v5687, %v6164
        %6166 = vmatmul.bf16.gmra.mxu0 %v5647
        %v6167 = vpop.f32.mrf.mxu0
        %v6168 = vadd.f32 %v5687, %v6167
        %v6169 = vpop.f32.mrf.mxu0
        %v6170 = vadd.f32 %v5687, %v6169
        %6171 = vmatmul.bf16.gmra.mxu0 %v5648
        %v6172 = vpop.f32.mrf.mxu0
        %v6173 = vadd.f32 %v5687, %v6172
        %v6174 = vpop.f32.mrf.mxu0
        %v6175 = vadd.f32 %v5687, %v6174
        %6176 = vmatmul.bf16.gmra.mxu0 %v5649
        %v6177 = vpop.f32.mrf.mxu0
        %v6178 = vadd.f32 %v5687, %v6177
        %v6179 = vpop.f32.mrf.mxu0
        %v6180 = vadd.f32 %v5687, %v6179
        %6181 = vmatmul.bf16.gmra.mxu0 %v5650
        %v6182 = vpop.f32.mrf.mxu0
        %v6183 = vadd.f32 %v5687, %v6182
        %v6184 = vpop.f32.mrf.mxu0
        %v6185 = vadd.f32 %v5687, %v6184
        %6186 = vmatmul.bf16.gmra.mxu0 %v5651
        %v6187 = vpop.f32.mrf.mxu0
        %v6188 = vadd.f32 %v5687, %v6187
        %v6189 = vpop.f32.mrf.mxu0
        %v6190 = vadd.f32 %v5687, %v6189
        %6191 = vdwg.mxu0
        %6192 = vmatpush.bf16.msra.mxu0 %v5820
        %6193 = vmatpush.bf16.msra.mxu0 %v5816
        %6194 = vmatpush.bf16.msra.mxu0 %v5812
        %6195 = vmatpush.bf16.msra.mxu0 %v5808
        %6196 = vmatpush.bf16.msra.mxu0 %v5804
        %6197 = vmatpush.bf16.msra.mxu0 %v5800
        %6198 = vmatpush.bf16.msra.mxu0 %v5796
        %6199 = vmatpush.bf16.msra.mxu0 %v5792
        %6200 = vmatmul.bf16.gmra.mxu0 %v5620
        %v6201 = vpop.f32.mrf.mxu0
        %v6202 = vadd.f32 %v5688, %v6201
        %v6203 = vpop.f32.mrf.mxu0
        %v6204 = vadd.f32 %v5688, %v6203
        %6205 = vmatmul.bf16.gmra.mxu0 %v5621
        %v6206 = vpop.f32.mrf.mxu0
        %v6207 = vadd.f32 %v5688, %v6206
        %v6208 = vpop.f32.mrf.mxu0
        %v6209 = vadd.f32 %v5688, %v6208
        %6210 = vmatmul.bf16.gmra.mxu0 %v5622
        %v6211 = vpop.f32.mrf.mxu0
        %v6212 = vadd.f32 %v5688, %v6211
        %v6213 = vpop.f32.mrf.mxu0
        %v6214 = vadd.f32 %v5688, %v6213
        %6215 = vmatmul.bf16.gmra.mxu0 %v5623
        %v6216 = vpop.f32.mrf.mxu0
        %v6217 = vadd.f32 %v5688, %v6216
        %v6218 = vpop.f32.mrf.mxu0
        %v6219 = vadd.f32 %v5688, %v6218
        %6220 = vmatmul.bf16.gmra.mxu0 %v5624
        %v6221 = vpop.f32.mrf.mxu0
        %v6222 = vadd.f32 %v5688, %v6221
        %v6223 = vpop.f32.mrf.mxu0
        %v6224 = vadd.f32 %v5688, %v6223
        %6225 = vmatmul.bf16.gmra.mxu0 %v5625
        %v6226 = vpop.f32.mrf.mxu0
        %v6227 = vadd.f32 %v5688, %v6226
        %v6228 = vpop.f32.mrf.mxu0
        %v6229 = vadd.f32 %v5688, %v6228
        %6230 = vmatmul.bf16.gmra.mxu0 %v5626
        %v6231 = vpop.f32.mrf.mxu0
        %v6232 = vadd.f32 %v5688, %v6231
        %v6233 = vpop.f32.mrf.mxu0
        %v6234 = vadd.f32 %v5688, %v6233
        %6235 = vmatmul.bf16.gmra.mxu0 %v5627
        %v6236 = vpop.f32.mrf.mxu0
        %v6237 = vadd.f32 %v5688, %v6236
        %v6238 = vpop.f32.mrf.mxu0
        %v6239 = vadd.f32 %v5688, %v6238
        %6240 = vmatmul.bf16.gmra.mxu0 %v5628
        %v6241 = vpop.f32.mrf.mxu0
        %v6242 = vadd.f32 %v5688, %v6241
        %v6243 = vpop.f32.mrf.mxu0
        %v6244 = vadd.f32 %v5688, %v6243
        %6245 = vmatmul.bf16.gmra.mxu0 %v5629
        %v6246 = vpop.f32.mrf.mxu0
        %v6247 = vadd.f32 %v5688, %v6246
        %v6248 = vpop.f32.mrf.mxu0
        %v6249 = vadd.f32 %v5688, %v6248
        %6250 = vmatmul.bf16.gmra.mxu0 %v5630
        %v6251 = vpop.f32.mrf.mxu0
        %v6252 = vadd.f32 %v5688, %v6251
        %v6253 = vpop.f32.mrf.mxu0
        %v6254 = vadd.f32 %v5688, %v6253
        %6255 = vmatmul.bf16.gmra.mxu0 %v5631
        %v6256 = vpop.f32.mrf.mxu0
        %v6257 = vadd.f32 %v5688, %v6256
        %v6258 = vpop.f32.mrf.mxu0
        %v6259 = vadd.f32 %v5688, %v6258
        %6260 = vmatmul.bf16.gmra.mxu0 %v5632
        %v6261 = vpop.f32.mrf.mxu0
        %v6262 = vadd.f32 %v5688, %v6261
        %v6263 = vpop.f32.mrf.mxu0
        %v6264 = vadd.f32 %v5688, %v6263
        %6265 = vmatmul.bf16.gmra.mxu0 %v5633
        %v6266 = vpop.f32.mrf.mxu0
        %v6267 = vadd.f32 %v5688, %v6266
        %v6268 = vpop.f32.mrf.mxu0
        %v6269 = vadd.f32 %v5688, %v6268
        %6270 = vmatmul.bf16.gmra.mxu0 %v5634
        %v6271 = vpop.f32.mrf.mxu0
        %v6272 = vadd.f32 %v5688, %v6271
        %v6273 = vpop.f32.mrf.mxu0
        %v6274 = vadd.f32 %v5688, %v6273
        %6275 = vmatmul.bf16.gmra.mxu0 %v5635
        %v6276 = vpop.f32.mrf.mxu0
        %v6277 = vadd.f32 %v5688, %v6276
        %v6278 = vpop.f32.mrf.mxu0
        %v6279 = vadd.f32 %v5688, %v6278
        %6280 = vmatmul.bf16.gmra.mxu0 %v5636
        %v6281 = vpop.f32.mrf.mxu0
        %v6282 = vadd.f32 %v5688, %v6281
        %v6283 = vpop.f32.mrf.mxu0
        %v6284 = vadd.f32 %v5688, %v6283
        %6285 = vmatmul.bf16.gmra.mxu0 %v5637
        %v6286 = vpop.f32.mrf.mxu0
        %v6287 = vadd.f32 %v5688, %v6286
        %v6288 = vpop.f32.mrf.mxu0
        %v6289 = vadd.f32 %v5688, %v6288
        %6290 = vmatmul.bf16.gmra.mxu0 %v5638
        %v6291 = vpop.f32.mrf.mxu0
        %v6292 = vadd.f32 %v5688, %v6291
        %v6293 = vpop.f32.mrf.mxu0
        %v6294 = vadd.f32 %v5688, %v6293
        %6295 = vmatmul.bf16.gmra.mxu0 %v5639
        %v6296 = vpop.f32.mrf.mxu0
        %v6297 = vadd.f32 %v5688, %v6296
        %v6298 = vpop.f32.mrf.mxu0
        %v6299 = vadd.f32 %v5688, %v6298
        %6300 = vmatmul.bf16.gmra.mxu0 %v5640
        %v6301 = vpop.f32.mrf.mxu0
        %v6302 = vadd.f32 %v5688, %v6301
        %v6303 = vpop.f32.mrf.mxu0
        %v6304 = vadd.f32 %v5688, %v6303
        %6305 = vmatmul.bf16.gmra.mxu0 %v5641
        %v6306 = vpop.f32.mrf.mxu0
        %v6307 = vadd.f32 %v5688, %v6306
        %v6308 = vpop.f32.mrf.mxu0
        %v6309 = vadd.f32 %v5688, %v6308
        %6310 = vmatmul.bf16.gmra.mxu0 %v5642
        %v6311 = vpop.f32.mrf.mxu0
        %v6312 = vadd.f32 %v5688, %v6311
        %v6313 = vpop.f32.mrf.mxu0
        %v6314 = vadd.f32 %v5688, %v6313
        %6315 = vmatmul.bf16.gmra.mxu0 %v5643
        %v6316 = vpop.f32.mrf.mxu0
        %v6317 = vadd.f32 %v5688, %v6316
        %v6318 = vpop.f32.mrf.mxu0
        %v6319 = vadd.f32 %v5688, %v6318
        %6320 = vmatmul.bf16.gmra.mxu0 %v5644
        %v6321 = vpop.f32.mrf.mxu0
        %v6322 = vadd.f32 %v5688, %v6321
        %v6323 = vpop.f32.mrf.mxu0
        %v6324 = vadd.f32 %v5688, %v6323
        %6325 = vmatmul.bf16.gmra.mxu0 %v5645
        %v6326 = vpop.f32.mrf.mxu0
        %v6327 = vadd.f32 %v5688, %v6326
        %v6328 = vpop.f32.mrf.mxu0
        %v6329 = vadd.f32 %v5688, %v6328
        %6330 = vmatmul.bf16.gmra.mxu0 %v5646
        %v6331 = vpop.f32.mrf.mxu0
        %v6332 = vadd.f32 %v5688, %v6331
        %v6333 = vpop.f32.mrf.mxu0
        %v6334 = vadd.f32 %v5688, %v6333
        %6335 = vmatmul.bf16.gmra.mxu0 %v5647
        %v6336 = vpop.f32.mrf.mxu0
        %v6337 = vadd.f32 %v5688, %v6336
        %v6338 = vpop.f32.mrf.mxu0
        %v6339 = vadd.f32 %v5688, %v6338
        %6340 = vmatmul.bf16.gmra.mxu0 %v5648
        %v6341 = vpop.f32.mrf.mxu0
        %v6342 = vadd.f32 %v5688, %v6341
        %v6343 = vpop.f32.mrf.mxu0
        %v6344 = vadd.f32 %v5688, %v6343
        %6345 = vmatmul.bf16.gmra.mxu0 %v5649
        %v6346 = vpop.f32.mrf.mxu0
        %v6347 = vadd.f32 %v5688, %v6346
        %v6348 = vpop.f32.mrf.mxu0
        %v6349 = vadd.f32 %v5688, %v6348
        %6350 = vmatmul.bf16.gmra.mxu0 %v5650
        %v6351 = vpop.f32.mrf.mxu0
        %v6352 = vadd.f32 %v5688, %v6351
        %v6353 = vpop.f32.mrf.mxu0
        %v6354 = vadd.f32 %v5688, %v6353
        %6355 = vmatmul.bf16.gmra.mxu0 %v5651
        %v6356 = vpop.f32.mrf.mxu0
        %v6357 = vadd.f32 %v5688, %v6356
        %v6358 = vpop.f32.mrf.mxu0
        %v6359 = vadd.f32 %v5688, %v6358
        %6360 = vdwg.mxu0
        %6361 = vmatpush.bf16.msra.mxu0 %v5821
        %6362 = vmatpush.bf16.msra.mxu0 %v5817
        %6363 = vmatpush.bf16.msra.mxu0 %v5813
        %6364 = vmatpush.bf16.msra.mxu0 %v5809
        %6365 = vmatpush.bf16.msra.mxu0 %v5805
        %6366 = vmatpush.bf16.msra.mxu0 %v5801
        %6367 = vmatpush.bf16.msra.mxu0 %v5797
        %6368 = vmatpush.bf16.msra.mxu0 %v5793
        %6369 = vmatmul.bf16.gmra.mxu0 %v5620
        %v6370 = vpop.f32.mrf.mxu0
        %v6371 = vadd.f32 %v5689, %v6370
        %v6372 = vpop.f32.mrf.mxu0
        %v6373 = vadd.f32 %v5689, %v6372
        %6374 = vmatmul.bf16.gmra.mxu0 %v5621
        %v6375 = vpop.f32.mrf.mxu0
        %v6376 = vadd.f32 %v5689, %v6375
        %v6377 = vpop.f32.mrf.mxu0
        %v6378 = vadd.f32 %v5689, %v6377
        %6379 = vmatmul.bf16.gmra.mxu0 %v5622
        %v6380 = vpop.f32.mrf.mxu0
        %v6381 = vadd.f32 %v5689, %v6380
        %v6382 = vpop.f32.mrf.mxu0
        %v6383 = vadd.f32 %v5689, %v6382
        %6384 = vmatmul.bf16.gmra.mxu0 %v5623
        %v6385 = vpop.f32.mrf.mxu0
        %v6386 = vadd.f32 %v5689, %v6385
        %v6387 = vpop.f32.mrf.mxu0
        %v6388 = vadd.f32 %v5689, %v6387
        %6389 = vmatmul.bf16.gmra.mxu0 %v5624
        %v6390 = vpop.f32.mrf.mxu0
        %v6391 = vadd.f32 %v5689, %v6390
        %v6392 = vpop.f32.mrf.mxu0
        %v6393 = vadd.f32 %v5689, %v6392
        %6394 = vmatmul.bf16.gmra.mxu0 %v5625
        %v6395 = vpop.f32.mrf.mxu0
        %v6396 = vadd.f32 %v5689, %v6395
        %v6397 = vpop.f32.mrf.mxu0
        %v6398 = vadd.f32 %v5689, %v6397
        %6399 = vmatmul.bf16.gmra.mxu0 %v5626
        %v6400 = vpop.f32.mrf.mxu0
        %v6401 = vadd.f32 %v5689, %v6400
        %v6402 = vpop.f32.mrf.mxu0
        %v6403 = vadd.f32 %v5689, %v6402
        %6404 = vmatmul.bf16.gmra.mxu0 %v5627
        %v6405 = vpop.f32.mrf.mxu0
        %v6406 = vadd.f32 %v5689, %v6405
        %v6407 = vpop.f32.mrf.mxu0
        %v6408 = vadd.f32 %v5689, %v6407
        %6409 = vmatmul.bf16.gmra.mxu0 %v5628
        %v6410 = vpop.f32.mrf.mxu0
        %v6411 = vadd.f32 %v5689, %v6410
        %v6412 = vpop.f32.mrf.mxu0
        %v6413 = vadd.f32 %v5689, %v6412
        %6414 = vmatmul.bf16.gmra.mxu0 %v5629
        %v6415 = vpop.f32.mrf.mxu0
        %v6416 = vadd.f32 %v5689, %v6415
        %v6417 = vpop.f32.mrf.mxu0
        %v6418 = vadd.f32 %v5689, %v6417
        %6419 = vmatmul.bf16.gmra.mxu0 %v5630
        %v6420 = vpop.f32.mrf.mxu0
        %v6421 = vadd.f32 %v5689, %v6420
        %v6422 = vpop.f32.mrf.mxu0
        %v6423 = vadd.f32 %v5689, %v6422
        %6424 = vmatmul.bf16.gmra.mxu0 %v5631
        %v6425 = vpop.f32.mrf.mxu0
        %v6426 = vadd.f32 %v5689, %v6425
        %v6427 = vpop.f32.mrf.mxu0
        %v6428 = vadd.f32 %v5689, %v6427
        %6429 = vmatmul.bf16.gmra.mxu0 %v5632
        %v6430 = vpop.f32.mrf.mxu0
        %v6431 = vadd.f32 %v5689, %v6430
        %v6432 = vpop.f32.mrf.mxu0
        %v6433 = vadd.f32 %v5689, %v6432
        %6434 = vmatmul.bf16.gmra.mxu0 %v5633
        %v6435 = vpop.f32.mrf.mxu0
        %v6436 = vadd.f32 %v5689, %v6435
        %v6437 = vpop.f32.mrf.mxu0
        %v6438 = vadd.f32 %v5689, %v6437
        %6439 = vmatmul.bf16.gmra.mxu0 %v5634
        %v6440 = vpop.f32.mrf.mxu0
        %v6441 = vadd.f32 %v5689, %v6440
        %v6442 = vpop.f32.mrf.mxu0
        %v6443 = vadd.f32 %v5689, %v6442
        %6444 = vmatmul.bf16.gmra.mxu0 %v5635
        %v6445 = vpop.f32.mrf.mxu0
        %v6446 = vadd.f32 %v5689, %v6445
        %v6447 = vpop.f32.mrf.mxu0
        %v6448 = vadd.f32 %v5689, %v6447
        %6449 = vmatmul.bf16.gmra.mxu0 %v5636
        %v6450 = vpop.f32.mrf.mxu0
        %v6451 = vadd.f32 %v5689, %v6450
        %v6452 = vpop.f32.mrf.mxu0
        %v6453 = vadd.f32 %v5689, %v6452
        %6454 = vmatmul.bf16.gmra.mxu0 %v5637
        %v6455 = vpop.f32.mrf.mxu0
        %v6456 = vadd.f32 %v5689, %v6455
        %v6457 = vpop.f32.mrf.mxu0
        %v6458 = vadd.f32 %v5689, %v6457
        %6459 = vmatmul.bf16.gmra.mxu0 %v5638
        %v6460 = vpop.f32.mrf.mxu0
        %v6461 = vadd.f32 %v5689, %v6460
        %v6462 = vpop.f32.mrf.mxu0
        %v6463 = vadd.f32 %v5689, %v6462
        %6464 = vmatmul.bf16.gmra.mxu0 %v5639
        %v6465 = vpop.f32.mrf.mxu0
        %v6466 = vadd.f32 %v5689, %v6465
        %v6467 = vpop.f32.mrf.mxu0
        %v6468 = vadd.f32 %v5689, %v6467
        %6469 = vmatmul.bf16.gmra.mxu0 %v5640
        %v6470 = vpop.f32.mrf.mxu0
        %v6471 = vadd.f32 %v5689, %v6470
        %v6472 = vpop.f32.mrf.mxu0
        %v6473 = vadd.f32 %v5689, %v6472
        %6474 = vmatmul.bf16.gmra.mxu0 %v5641
        %v6475 = vpop.f32.mrf.mxu0
        %v6476 = vadd.f32 %v5689, %v6475
        %v6477 = vpop.f32.mrf.mxu0
        %v6478 = vadd.f32 %v5689, %v6477
        %6479 = vmatmul.bf16.gmra.mxu0 %v5642
        %v6480 = vpop.f32.mrf.mxu0
        %v6481 = vadd.f32 %v5689, %v6480
        %v6482 = vpop.f32.mrf.mxu0
        %v6483 = vadd.f32 %v5689, %v6482
        %6484 = vmatmul.bf16.gmra.mxu0 %v5643
        %v6485 = vpop.f32.mrf.mxu0
        %v6486 = vadd.f32 %v5689, %v6485
        %v6487 = vpop.f32.mrf.mxu0
        %v6488 = vadd.f32 %v5689, %v6487
        %6489 = vmatmul.bf16.gmra.mxu0 %v5644
        %v6490 = vpop.f32.mrf.mxu0
        %v6491 = vadd.f32 %v5689, %v6490
        %v6492 = vpop.f32.mrf.mxu0
        %v6493 = vadd.f32 %v5689, %v6492
        %6494 = vmatmul.bf16.gmra.mxu0 %v5645
        %v6495 = vpop.f32.mrf.mxu0
        %v6496 = vadd.f32 %v5689, %v6495
        %v6497 = vpop.f32.mrf.mxu0
        %v6498 = vadd.f32 %v5689, %v6497
        %6499 = vmatmul.bf16.gmra.mxu0 %v5646
        %v6500 = vpop.f32.mrf.mxu0
        %v6501 = vadd.f32 %v5689, %v6500
        %v6502 = vpop.f32.mrf.mxu0
        %v6503 = vadd.f32 %v5689, %v6502
        %6504 = vmatmul.bf16.gmra.mxu0 %v5647
        %v6505 = vpop.f32.mrf.mxu0
        %v6506 = vadd.f32 %v5689, %v6505
        %v6507 = vpop.f32.mrf.mxu0
        %v6508 = vadd.f32 %v5689, %v6507
        %6509 = vmatmul.bf16.gmra.mxu0 %v5648
        %v6510 = vpop.f32.mrf.mxu0
        %v6511 = vadd.f32 %v5689, %v6510
        %v6512 = vpop.f32.mrf.mxu0
        %v6513 = vadd.f32 %v5689, %v6512
        %6514 = vmatmul.bf16.gmra.mxu0 %v5649
        %v6515 = vpop.f32.mrf.mxu0
        %v6516 = vadd.f32 %v5689, %v6515
        %v6517 = vpop.f32.mrf.mxu0
        %v6518 = vadd.f32 %v5689, %v6517
        %6519 = vmatmul.bf16.gmra.mxu0 %v5650
        %v6520 = vpop.f32.mrf.mxu0
        %v6521 = vadd.f32 %v5689, %v6520
        %v6522 = vpop.f32.mrf.mxu0
        %v6523 = vadd.f32 %v5689, %v6522
        %6524 = vmatmul.bf16.gmra.mxu0 %v5651
        %v6525 = vpop.f32.mrf.mxu0
        %v6526 = vadd.f32 %v5689, %v6525
        %v6527 = vpop.f32.mrf.mxu0
        %v6528 = vadd.f32 %v5689, %v6527
        %6529 = vdwg.mxu0
        %v6530 = vunpack.c.l.bf16 %v396
        %v6531 = vunpack.c.h.bf16 %v396
        %v6532 = vunpack.c.l.bf16 %v397
        %v6533 = vunpack.c.h.bf16 %v397
        %v6534 = vunpack.c.l.bf16 %v398
        %v6535 = vunpack.c.h.bf16 %v398
        %v6536 = vunpack.c.l.bf16 %v399
        %v6537 = vunpack.c.h.bf16 %v399
        %v6538 = vunpack.c.l.bf16 %v400
        %v6539 = vunpack.c.h.bf16 %v400
        %v6540 = vunpack.c.l.bf16 %v401
        %v6541 = vunpack.c.h.bf16 %v401
        %v6542 = vunpack.c.l.bf16 %v402
        %v6543 = vunpack.c.h.bf16 %v402
        %v6544 = vunpack.c.l.bf16 %v403
        %v6545 = vunpack.c.h.bf16 %v403
        %v6546 = vunpack.c.l.bf16 %v404
        %v6547 = vunpack.c.h.bf16 %v404
        %v6548 = vunpack.c.l.bf16 %v405
        %v6549 = vunpack.c.h.bf16 %v405
        %v6550 = vunpack.c.l.bf16 %v406
        %v6551 = vunpack.c.h.bf16 %v406
        %v6552 = vunpack.c.l.bf16 %v407
        %v6553 = vunpack.c.h.bf16 %v407
        %v6554 = vunpack.c.l.bf16 %v408
        %v6555 = vunpack.c.h.bf16 %v408
        %v6556 = vunpack.c.l.bf16 %v409
        %v6557 = vunpack.c.h.bf16 %v409
        %v6558 = vunpack.c.l.bf16 %v410
        %v6559 = vunpack.c.h.bf16 %v410
        %v6560 = vunpack.c.l.bf16 %v411
        %v6561 = vunpack.c.h.bf16 %v411
        %v6562 = vunpack.c.l.bf16 %v412
        %v6563 = vunpack.c.h.bf16 %v412
        %v6564 = vunpack.c.l.bf16 %v413
        %v6565 = vunpack.c.h.bf16 %v413
        %v6566 = vunpack.c.l.bf16 %v414
        %v6567 = vunpack.c.h.bf16 %v414
        %v6568 = vunpack.c.l.bf16 %v415
        %v6569 = vunpack.c.h.bf16 %v415
        %v6570 = vunpack.c.l.bf16 %v416
        %v6571 = vunpack.c.h.bf16 %v416
        %v6572 = vunpack.c.l.bf16 %v417
        %v6573 = vunpack.c.h.bf16 %v417
        %v6574 = vunpack.c.l.bf16 %v418
        %v6575 = vunpack.c.h.bf16 %v418
        %v6576 = vunpack.c.l.bf16 %v419
        %v6577 = vunpack.c.h.bf16 %v419
        %v6578 = vunpack.c.l.bf16 %v420
        %v6579 = vunpack.c.h.bf16 %v420
        %v6580 = vunpack.c.l.bf16 %v421
        %v6581 = vunpack.c.h.bf16 %v421
        %v6582 = vunpack.c.l.bf16 %v422
        %v6583 = vunpack.c.h.bf16 %v422
        %v6584 = vunpack.c.l.bf16 %v423
        %v6585 = vunpack.c.h.bf16 %v423
        %v6586 = vunpack.c.l.bf16 %v424
        %v6587 = vunpack.c.h.bf16 %v424
        %v6588 = vunpack.c.l.bf16 %v425
        %v6589 = vunpack.c.h.bf16 %v425
        %v6590 = vunpack.c.l.bf16 %v426
        %v6591 = vunpack.c.h.bf16 %v426
        %v6592 = vunpack.c.l.bf16 %v427
        %v6593 = vunpack.c.h.bf16 %v427
        %v6594 = vunpack.c.l.bf16 %v428
        %v6595 = vunpack.c.h.bf16 %v428
        %v6596 = vunpack.c.l.bf16 %v429
        %v6597 = vunpack.c.h.bf16 %v429
        %v6598 = vunpack.c.l.bf16 %v430
        %v6599 = vunpack.c.h.bf16 %v430
        %v6600 = vunpack.c.l.bf16 %v431
        %v6601 = vunpack.c.h.bf16 %v431
        %v6602 = vunpack.c.l.bf16 %v432
        %v6603 = vunpack.c.h.bf16 %v432
        %v6604 = vunpack.c.l.bf16 %v433
        %v6605 = vunpack.c.h.bf16 %v433
        %v6606 = vunpack.c.l.bf16 %v434
        %v6607 = vunpack.c.h.bf16 %v434
        %v6608 = vunpack.c.l.bf16 %v435
        %v6609 = vunpack.c.h.bf16 %v435
        %v6610 = vunpack.c.l.bf16 %v436
        %v6611 = vunpack.c.h.bf16 %v436
        %v6612 = vunpack.c.l.bf16 %v437
        %v6613 = vunpack.c.h.bf16 %v437
        %v6614 = vunpack.c.l.bf16 %v438
        %v6615 = vunpack.c.h.bf16 %v438
        %v6616 = vunpack.c.l.bf16 %v439
        %v6617 = vunpack.c.h.bf16 %v439
        %v6618 = vunpack.c.l.bf16 %v440
        %v6619 = vunpack.c.h.bf16 %v440
        %v6620 = vunpack.c.l.bf16 %v441
        %v6621 = vunpack.c.h.bf16 %v441
        %v6622 = vunpack.c.l.bf16 %v442
        %v6623 = vunpack.c.h.bf16 %v442
        %v6624 = vunpack.c.l.bf16 %v443
        %v6625 = vunpack.c.h.bf16 %v443
        %v6626 = vunpack.c.l.bf16 %v444
        %v6627 = vunpack.c.h.bf16 %v444
        %v6628 = vunpack.c.l.bf16 %v445
        %v6629 = vunpack.c.h.bf16 %v445
        %v6630 = vunpack.c.l.bf16 %v446
        %v6631 = vunpack.c.h.bf16 %v446
        %v6632 = vunpack.c.l.bf16 %v447
        %v6633 = vunpack.c.h.bf16 %v447
        %v6634 = vunpack.c.l.bf16 %v448
        %v6635 = vunpack.c.h.bf16 %v448
        %v6636 = vunpack.c.l.bf16 %v449
        %v6637 = vunpack.c.h.bf16 %v449
        %v6638 = vunpack.c.l.bf16 %v450
        %v6639 = vunpack.c.h.bf16 %v450
        %v6640 = vunpack.c.l.bf16 %v451
        %v6641 = vunpack.c.h.bf16 %v451
        %v6642 = vunpack.c.l.bf16 %v452
        %v6643 = vunpack.c.h.bf16 %v452
        %v6644 = vunpack.c.l.bf16 %v453
        %v6645 = vunpack.c.h.bf16 %v453
        %v6646 = vunpack.c.l.bf16 %v454
        %v6647 = vunpack.c.h.bf16 %v454
        %v6648 = vunpack.c.l.bf16 %v455
        %v6649 = vunpack.c.h.bf16 %v455
        %v6650 = vunpack.c.l.bf16 %v456
        %v6651 = vunpack.c.h.bf16 %v456
        %v6652 = vunpack.c.l.bf16 %v457
        %v6653 = vunpack.c.h.bf16 %v457
        %v6654 = vunpack.c.l.bf16 %v458
        %v6655 = vunpack.c.h.bf16 %v458
        %v6656 = vunpack.c.l.bf16 %v459
        %v6657 = vunpack.c.h.bf16 %v459
        %v6658 = vunpack.c.l.bf16 %v460
        %v6659 = vunpack.c.h.bf16 %v460
        %v6660 = vunpack.c.l.bf16 %v461
        %v6661 = vunpack.c.h.bf16 %v461
        %v6662 = vunpack.c.l.bf16 %v462
        %v6663 = vunpack.c.h.bf16 %v462
        %v6664 = vunpack.c.l.bf16 %v463
        %v6665 = vunpack.c.h.bf16 %v463
        %v6666 = vunpack.c.l.bf16 %v464
        %v6667 = vunpack.c.h.bf16 %v464
        %v6668 = vunpack.c.l.bf16 %v465
        %v6669 = vunpack.c.h.bf16 %v465
        %v6670 = vunpack.c.l.bf16 %v466
        %v6671 = vunpack.c.h.bf16 %v466
        %v6672 = vunpack.c.l.bf16 %v467
        %v6673 = vunpack.c.h.bf16 %v467
        %v6674 = vunpack.c.l.bf16 %v468
        %v6675 = vunpack.c.h.bf16 %v468
        %v6676 = vunpack.c.l.bf16 %v469
        %v6677 = vunpack.c.h.bf16 %v469
        %v6678 = vunpack.c.l.bf16 %v470
        %v6679 = vunpack.c.h.bf16 %v470
        %v6680 = vunpack.c.l.bf16 %v471
        %v6681 = vunpack.c.h.bf16 %v471
        %v6682 = vunpack.c.l.bf16 %v472
        %v6683 = vunpack.c.h.bf16 %v472
        %v6684 = vunpack.c.l.bf16 %v473
        %v6685 = vunpack.c.h.bf16 %v473
        %v6686 = vunpack.c.l.bf16 %v474
        %v6687 = vunpack.c.h.bf16 %v474
        %v6688 = vunpack.c.l.bf16 %v475
        %v6689 = vunpack.c.h.bf16 %v475
        %v6690 = vunpack.c.l.bf16 %v476
        %v6691 = vunpack.c.h.bf16 %v476
        %v6692 = vunpack.c.l.bf16 %v477
        %v6693 = vunpack.c.h.bf16 %v477
        %v6694 = vunpack.c.l.bf16 %v478
        %v6695 = vunpack.c.h.bf16 %v478
        %v6696 = vunpack.c.l.bf16 %v479
        %v6697 = vunpack.c.h.bf16 %v479
        %v6698 = vunpack.c.l.bf16 %v480
        %v6699 = vunpack.c.h.bf16 %v480
        %v6700 = vunpack.c.l.bf16 %v481
        %v6701 = vunpack.c.h.bf16 %v481
        %v6702 = vunpack.c.l.bf16 %v482
        %v6703 = vunpack.c.h.bf16 %v482
        %v6704 = vunpack.c.l.bf16 %v483
        %v6705 = vunpack.c.h.bf16 %v483
        %v6706 = vunpack.c.l.bf16 %v484
        %v6707 = vunpack.c.h.bf16 %v484
        %v6708 = vunpack.c.l.bf16 %v485
        %v6709 = vunpack.c.h.bf16 %v485
        %v6710 = vunpack.c.l.bf16 %v486
        %v6711 = vunpack.c.h.bf16 %v486
        %v6712 = vunpack.c.l.bf16 %v487
        %v6713 = vunpack.c.h.bf16 %v487
        %v6714 = vunpack.c.l.bf16 %v488
        %v6715 = vunpack.c.h.bf16 %v488
        %v6716 = vunpack.c.l.bf16 %v489
        %v6717 = vunpack.c.h.bf16 %v489
        %v6718 = vunpack.c.l.bf16 %v490
        %v6719 = vunpack.c.h.bf16 %v490
        %v6720 = vunpack.c.l.bf16 %v491
        %v6721 = vunpack.c.h.bf16 %v491
        %v6722 = vunpack.c.l.bf16 %v492
        %v6723 = vunpack.c.h.bf16 %v492
        %v6724 = vunpack.c.l.bf16 %v493
        %v6725 = vunpack.c.h.bf16 %v493
        %v6726 = vunpack.c.l.bf16 %v494
        %v6727 = vunpack.c.h.bf16 %v494
        %v6728 = vunpack.c.l.bf16 %v495
        %v6729 = vunpack.c.h.bf16 %v495
        %v6730 = vunpack.c.l.bf16 %v496
        %v6731 = vunpack.c.h.bf16 %v496
        %v6732 = vunpack.c.l.bf16 %v497
        %v6733 = vunpack.c.h.bf16 %v497
        %v6734 = vunpack.c.l.bf16 %v498
        %v6735 = vunpack.c.h.bf16 %v498
        %v6736 = vunpack.c.l.bf16 %v499
        %v6737 = vunpack.c.h.bf16 %v499
        %v6738 = vunpack.c.l.bf16 %v500
        %v6739 = vunpack.c.h.bf16 %v500
        %v6740 = vunpack.c.l.bf16 %v501
        %v6741 = vunpack.c.h.bf16 %v501
        %v6742 = vunpack.c.l.bf16 %v502
        %v6743 = vunpack.c.h.bf16 %v502
        %v6744 = vunpack.c.l.bf16 %v503
        %v6745 = vunpack.c.h.bf16 %v503
        %v6746 = vunpack.c.l.bf16 %v504
        %v6747 = vunpack.c.h.bf16 %v504
        %v6748 = vunpack.c.l.bf16 %v505
        %v6749 = vunpack.c.h.bf16 %v505
        %v6750 = vunpack.c.l.bf16 %v506
        %v6751 = vunpack.c.h.bf16 %v506
        %v6752 = vunpack.c.l.bf16 %v507
        %v6753 = vunpack.c.h.bf16 %v507
        %v6754 = vunpack.c.l.bf16 %v508
        %v6755 = vunpack.c.h.bf16 %v508
        %v6756 = vunpack.c.l.bf16 %v509
        %v6757 = vunpack.c.h.bf16 %v509
        %v6758 = vunpack.c.l.bf16 %v510
        %v6759 = vunpack.c.h.bf16 %v510
        %v6760 = vunpack.c.l.bf16 %v511
        %v6761 = vunpack.c.h.bf16 %v511
        %v6762 = vunpack.c.l.bf16 %v512
        %v6763 = vunpack.c.h.bf16 %v512
        %v6764 = vunpack.c.l.bf16 %v513
        %v6765 = vunpack.c.h.bf16 %v513
        %v6766 = vunpack.c.l.bf16 %v514
        %v6767 = vunpack.c.h.bf16 %v514
        %v6768 = vunpack.c.l.bf16 %v515
        %v6769 = vunpack.c.h.bf16 %v515
        %v6770 = vunpack.c.l.bf16 %v516
        %v6771 = vunpack.c.h.bf16 %v516
        %v6772 = vunpack.c.l.bf16 %v517
        %v6773 = vunpack.c.h.bf16 %v517
        %v6774 = vunpack.c.l.bf16 %v518
        %v6775 = vunpack.c.h.bf16 %v518
        %v6776 = vunpack.c.l.bf16 %v519
        %v6777 = vunpack.c.h.bf16 %v519
        %v6778 = vunpack.c.l.bf16 %v520
        %v6779 = vunpack.c.h.bf16 %v520
        %v6780 = vunpack.c.l.bf16 %v521
        %v6781 = vunpack.c.h.bf16 %v521
        %v6782 = vunpack.c.l.bf16 %v522
        %v6783 = vunpack.c.h.bf16 %v522
        %v6784 = vunpack.c.l.bf16 %v523
        %v6785 = vunpack.c.h.bf16 %v523
        %v6786 = vadd.f32 %v5864, %v6530
        %v6787 = vadd.f32 %v6033, %v6531
        %v6788 = vadd.f32 %v6202, %v6532
        %v6789 = vadd.f32 %v6371, %v6533
        %v6790 = vadd.f32 %v5866, %v6534
        %v6791 = vadd.f32 %v6035, %v6535
        %v6792 = vadd.f32 %v6204, %v6536
        %v6793 = vadd.f32 %v6373, %v6537
        %v6794 = vadd.f32 %v5869, %v6538
        %v6795 = vadd.f32 %v6038, %v6539
        %v6796 = vadd.f32 %v6207, %v6540
        %v6797 = vadd.f32 %v6376, %v6541
        %v6798 = vadd.f32 %v5871, %v6542
        %v6799 = vadd.f32 %v6040, %v6543
        %v6800 = vadd.f32 %v6209, %v6544
        %v6801 = vadd.f32 %v6378, %v6545
        %v6802 = vadd.f32 %v5874, %v6546
        %v6803 = vadd.f32 %v6043, %v6547
        %v6804 = vadd.f32 %v6212, %v6548
        %v6805 = vadd.f32 %v6381, %v6549
        %v6806 = vadd.f32 %v5876, %v6550
        %v6807 = vadd.f32 %v6045, %v6551
        %v6808 = vadd.f32 %v6214, %v6552
        %v6809 = vadd.f32 %v6383, %v6553
        %v6810 = vadd.f32 %v5879, %v6554
        %v6811 = vadd.f32 %v6048, %v6555
        %v6812 = vadd.f32 %v6217, %v6556
        %v6813 = vadd.f32 %v6386, %v6557
        %v6814 = vadd.f32 %v5881, %v6558
        %v6815 = vadd.f32 %v6050, %v6559
        %v6816 = vadd.f32 %v6219, %v6560
        %v6817 = vadd.f32 %v6388, %v6561
        %v6818 = vadd.f32 %v5884, %v6562
        %v6819 = vadd.f32 %v6053, %v6563
        %v6820 = vadd.f32 %v6222, %v6564
        %v6821 = vadd.f32 %v6391, %v6565
        %v6822 = vadd.f32 %v5886, %v6566
        %v6823 = vadd.f32 %v6055, %v6567
        %v6824 = vadd.f32 %v6224, %v6568
        %v6825 = vadd.f32 %v6393, %v6569
        %v6826 = vadd.f32 %v5889, %v6570
        %v6827 = vadd.f32 %v6058, %v6571
        %v6828 = vadd.f32 %v6227, %v6572
        %v6829 = vadd.f32 %v6396, %v6573
        %v6830 = vadd.f32 %v5891, %v6574
        %v6831 = vadd.f32 %v6060, %v6575
        %v6832 = vadd.f32 %v6229, %v6576
        %v6833 = vadd.f32 %v6398, %v6577
        %v6834 = vadd.f32 %v5894, %v6578
        %v6835 = vadd.f32 %v6063, %v6579
        %v6836 = vadd.f32 %v6232, %v6580
        %v6837 = vadd.f32 %v6401, %v6581
        %v6838 = vadd.f32 %v5896, %v6582
        %v6839 = vadd.f32 %v6065, %v6583
        %v6840 = vadd.f32 %v6234, %v6584
        %v6841 = vadd.f32 %v6403, %v6585
        %v6842 = vadd.f32 %v5899, %v6586
        %v6843 = vadd.f32 %v6068, %v6587
        %v6844 = vadd.f32 %v6237, %v6588
        %v6845 = vadd.f32 %v6406, %v6589
        %v6846 = vadd.f32 %v5901, %v6590
        %v6847 = vadd.f32 %v6070, %v6591
        %v6848 = vadd.f32 %v6239, %v6592
        %v6849 = vadd.f32 %v6408, %v6593
        %v6850 = vadd.f32 %v5904, %v6594
        %v6851 = vadd.f32 %v6073, %v6595
        %v6852 = vadd.f32 %v6242, %v6596
        %v6853 = vadd.f32 %v6411, %v6597
        %v6854 = vadd.f32 %v5906, %v6598
        %v6855 = vadd.f32 %v6075, %v6599
        %v6856 = vadd.f32 %v6244, %v6600
        %v6857 = vadd.f32 %v6413, %v6601
        %v6858 = vadd.f32 %v5909, %v6602
        %v6859 = vadd.f32 %v6078, %v6603
        %v6860 = vadd.f32 %v6247, %v6604
        %v6861 = vadd.f32 %v6416, %v6605
        %v6862 = vadd.f32 %v5911, %v6606
        %v6863 = vadd.f32 %v6080, %v6607
        %v6864 = vadd.f32 %v6249, %v6608
        %v6865 = vadd.f32 %v6418, %v6609
        %v6866 = vadd.f32 %v5914, %v6610
        %v6867 = vadd.f32 %v6083, %v6611
        %v6868 = vadd.f32 %v6252, %v6612
        %v6869 = vadd.f32 %v6421, %v6613
        %v6870 = vadd.f32 %v5916, %v6614
        %v6871 = vadd.f32 %v6085, %v6615
        %v6872 = vadd.f32 %v6254, %v6616
        %v6873 = vadd.f32 %v6423, %v6617
        %v6874 = vadd.f32 %v5919, %v6618
        %v6875 = vadd.f32 %v6088, %v6619
        %v6876 = vadd.f32 %v6257, %v6620
        %v6877 = vadd.f32 %v6426, %v6621
        %v6878 = vadd.f32 %v5921, %v6622
        %v6879 = vadd.f32 %v6090, %v6623
        %v6880 = vadd.f32 %v6259, %v6624
        %v6881 = vadd.f32 %v6428, %v6625
        %v6882 = vadd.f32 %v5924, %v6626
        %v6883 = vadd.f32 %v6093, %v6627
        %v6884 = vadd.f32 %v6262, %v6628
        %v6885 = vadd.f32 %v6431, %v6629
        %v6886 = vadd.f32 %v5926, %v6630
        %v6887 = vadd.f32 %v6095, %v6631
        %v6888 = vadd.f32 %v6264, %v6632
        %v6889 = vadd.f32 %v6433, %v6633
        %v6890 = vadd.f32 %v5929, %v6634
        %v6891 = vadd.f32 %v6098, %v6635
        %v6892 = vadd.f32 %v6267, %v6636
        %v6893 = vadd.f32 %v6436, %v6637
        %v6894 = vadd.f32 %v5931, %v6638
        %v6895 = vadd.f32 %v6100, %v6639
        %v6896 = vadd.f32 %v6269, %v6640
        %v6897 = vadd.f32 %v6438, %v6641
        %v6898 = vadd.f32 %v5934, %v6642
        %v6899 = vadd.f32 %v6103, %v6643
        %v6900 = vadd.f32 %v6272, %v6644
        %v6901 = vadd.f32 %v6441, %v6645
        %v6902 = vadd.f32 %v5936, %v6646
        %v6903 = vadd.f32 %v6105, %v6647
        %v6904 = vadd.f32 %v6274, %v6648
        %v6905 = vadd.f32 %v6443, %v6649
        %v6906 = vadd.f32 %v5939, %v6650
        %v6907 = vadd.f32 %v6108, %v6651
        %v6908 = vadd.f32 %v6277, %v6652
        %v6909 = vadd.f32 %v6446, %v6653
        %v6910 = vadd.f32 %v5941, %v6654
        %v6911 = vadd.f32 %v6110, %v6655
        %v6912 = vadd.f32 %v6279, %v6656
        %v6913 = vadd.f32 %v6448, %v6657
        %v6914 = vadd.f32 %v5944, %v6658
        %v6915 = vadd.f32 %v6113, %v6659
        %v6916 = vadd.f32 %v6282, %v6660
        %v6917 = vadd.f32 %v6451, %v6661
        %v6918 = vadd.f32 %v5946, %v6662
        %v6919 = vadd.f32 %v6115, %v6663
        %v6920 = vadd.f32 %v6284, %v6664
        %v6921 = vadd.f32 %v6453, %v6665
        %v6922 = vadd.f32 %v5949, %v6666
        %v6923 = vadd.f32 %v6118, %v6667
        %v6924 = vadd.f32 %v6287, %v6668
        %v6925 = vadd.f32 %v6456, %v6669
        %v6926 = vadd.f32 %v5951, %v6670
        %v6927 = vadd.f32 %v6120, %v6671
        %v6928 = vadd.f32 %v6289, %v6672
        %v6929 = vadd.f32 %v6458, %v6673
        %v6930 = vadd.f32 %v5954, %v6674
        %v6931 = vadd.f32 %v6123, %v6675
        %v6932 = vadd.f32 %v6292, %v6676
        %v6933 = vadd.f32 %v6461, %v6677
        %v6934 = vadd.f32 %v5956, %v6678
        %v6935 = vadd.f32 %v6125, %v6679
        %v6936 = vadd.f32 %v6294, %v6680
        %v6937 = vadd.f32 %v6463, %v6681
        %v6938 = vadd.f32 %v5959, %v6682
        %v6939 = vadd.f32 %v6128, %v6683
        %v6940 = vadd.f32 %v6297, %v6684
        %v6941 = vadd.f32 %v6466, %v6685
        %v6942 = vadd.f32 %v5961, %v6686
        %v6943 = vadd.f32 %v6130, %v6687
        %v6944 = vadd.f32 %v6299, %v6688
        %v6945 = vadd.f32 %v6468, %v6689
        %v6946 = vadd.f32 %v5964, %v6690
        %v6947 = vadd.f32 %v6133, %v6691
        %v6948 = vadd.f32 %v6302, %v6692
        %v6949 = vadd.f32 %v6471, %v6693
        %v6950 = vadd.f32 %v5966, %v6694
        %v6951 = vadd.f32 %v6135, %v6695
        %v6952 = vadd.f32 %v6304, %v6696
        %v6953 = vadd.f32 %v6473, %v6697
        %v6954 = vadd.f32 %v5969, %v6698
        %v6955 = vadd.f32 %v6138, %v6699
        %v6956 = vadd.f32 %v6307, %v6700
        %v6957 = vadd.f32 %v6476, %v6701
        %v6958 = vadd.f32 %v5971, %v6702
        %v6959 = vadd.f32 %v6140, %v6703
        %v6960 = vadd.f32 %v6309, %v6704
        %v6961 = vadd.f32 %v6478, %v6705
        %v6962 = vadd.f32 %v5974, %v6706
        %v6963 = vadd.f32 %v6143, %v6707
        %v6964 = vadd.f32 %v6312, %v6708
        %v6965 = vadd.f32 %v6481, %v6709
        %v6966 = vadd.f32 %v5976, %v6710
        %v6967 = vadd.f32 %v6145, %v6711
        %v6968 = vadd.f32 %v6314, %v6712
        %v6969 = vadd.f32 %v6483, %v6713
        %v6970 = vadd.f32 %v5979, %v6714
        %v6971 = vadd.f32 %v6148, %v6715
        %v6972 = vadd.f32 %v6317, %v6716
        %v6973 = vadd.f32 %v6486, %v6717
        %v6974 = vadd.f32 %v5981, %v6718
        %v6975 = vadd.f32 %v6150, %v6719
        %v6976 = vadd.f32 %v6319, %v6720
        %v6977 = vadd.f32 %v6488, %v6721
        %v6978 = vadd.f32 %v5984, %v6722
        %v6979 = vadd.f32 %v6153, %v6723
        %v6980 = vadd.f32 %v6322, %v6724
        %v6981 = vadd.f32 %v6491, %v6725
        %v6982 = vadd.f32 %v5986, %v6726
        %v6983 = vadd.f32 %v6155, %v6727
        %v6984 = vadd.f32 %v6324, %v6728
        %v6985 = vadd.f32 %v6493, %v6729
        %v6986 = vadd.f32 %v5989, %v6730
        %v6987 = vadd.f32 %v6158, %v6731
        %v6988 = vadd.f32 %v6327, %v6732
        %v6989 = vadd.f32 %v6496, %v6733
        %v6990 = vadd.f32 %v5991, %v6734
        %v6991 = vadd.f32 %v6160, %v6735
        %v6992 = vadd.f32 %v6329, %v6736
        %v6993 = vadd.f32 %v6498, %v6737
        %v6994 = vadd.f32 %v5994, %v6738
        %v6995 = vadd.f32 %v6163, %v6739
        %v6996 = vadd.f32 %v6332, %v6740
        %v6997 = vadd.f32 %v6501, %v6741
        %v6998 = vadd.f32 %v5996, %v6742
        %v6999 = vadd.f32 %v6165, %v6743
        %v7000 = vadd.f32 %v6334, %v6744
        %v7001 = vadd.f32 %v6503, %v6745
        %v7002 = vadd.f32 %v5999, %v6746
        %v7003 = vadd.f32 %v6168, %v6747
        %v7004 = vadd.f32 %v6337, %v6748
        %v7005 = vadd.f32 %v6506, %v6749
        %v7006 = vadd.f32 %v6001, %v6750
        %v7007 = vadd.f32 %v6170, %v6751
        %v7008 = vadd.f32 %v6339, %v6752
        %v7009 = vadd.f32 %v6508, %v6753
        %v7010 = vadd.f32 %v6004, %v6754
        %v7011 = vadd.f32 %v6173, %v6755
        %v7012 = vadd.f32 %v6342, %v6756
        %v7013 = vadd.f32 %v6511, %v6757
        %v7014 = vadd.f32 %v6006, %v6758
        %v7015 = vadd.f32 %v6175, %v6759
        %v7016 = vadd.f32 %v6344, %v6760
        %v7017 = vadd.f32 %v6513, %v6761
        %v7018 = vadd.f32 %v6009, %v6762
        %v7019 = vadd.f32 %v6178, %v6763
        %v7020 = vadd.f32 %v6347, %v6764
        %v7021 = vadd.f32 %v6516, %v6765
        %v7022 = vadd.f32 %v6011, %v6766
        %v7023 = vadd.f32 %v6180, %v6767
        %v7024 = vadd.f32 %v6349, %v6768
        %v7025 = vadd.f32 %v6518, %v6769
        %v7026 = vadd.f32 %v6014, %v6770
        %v7027 = vadd.f32 %v6183, %v6771
        %v7028 = vadd.f32 %v6352, %v6772
        %v7029 = vadd.f32 %v6521, %v6773
        %v7030 = vadd.f32 %v6016, %v6774
        %v7031 = vadd.f32 %v6185, %v6775
        %v7032 = vadd.f32 %v6354, %v6776
        %v7033 = vadd.f32 %v6523, %v6777
        %v7034 = vadd.f32 %v6019, %v6778
        %v7035 = vadd.f32 %v6188, %v6779
        %v7036 = vadd.f32 %v6357, %v6780
        %v7037 = vadd.f32 %v6526, %v6781
        %v7038 = vadd.f32 %v6021, %v6782
        %v7039 = vadd.f32 %v6190, %v6783
        %v7040 = vadd.f32 %v6359, %v6784
        %v7041 = vadd.f32 %v6528, %v6785
        %v7042 = vmax.f32 %v6786, 0.0
        %v7043 = vmax.f32 %v6787, 0.0
        %v7044 = vmax.f32 %v6788, 0.0
        %v7045 = vmax.f32 %v6789, 0.0
        %v7046 = vmax.f32 %v6790, 0.0
        %v7047 = vmax.f32 %v6791, 0.0
        %v7048 = vmax.f32 %v6792, 0.0
        %v7049 = vmax.f32 %v6793, 0.0
        %v7050 = vmax.f32 %v6794, 0.0
        %v7051 = vmax.f32 %v6795, 0.0
        %v7052 = vmax.f32 %v6796, 0.0
        %v7053 = vmax.f32 %v6797, 0.0
        %v7054 = vmax.f32 %v6798, 0.0
        %v7055 = vmax.f32 %v6799, 0.0
        %v7056 = vmax.f32 %v6800, 0.0
        %v7057 = vmax.f32 %v6801, 0.0
        %v7058 = vmax.f32 %v6802, 0.0
        %v7059 = vmax.f32 %v6803, 0.0
        %v7060 = vmax.f32 %v6804, 0.0
        %v7061 = vmax.f32 %v6805, 0.0
        %v7062 = vmax.f32 %v6806, 0.0
        %v7063 = vmax.f32 %v6807, 0.0
        %v7064 = vmax.f32 %v6808, 0.0
        %v7065 = vmax.f32 %v6809, 0.0
        %v7066 = vmax.f32 %v6810, 0.0
        %v7067 = vmax.f32 %v6811, 0.0
        %v7068 = vmax.f32 %v6812, 0.0
        %v7069 = vmax.f32 %v6813, 0.0
        %v7070 = vmax.f32 %v6814, 0.0
        %v7071 = vmax.f32 %v6815, 0.0
        %v7072 = vmax.f32 %v6816, 0.0
        %v7073 = vmax.f32 %v6817, 0.0
        %v7074 = vmax.f32 %v6818, 0.0
        %v7075 = vmax.f32 %v6819, 0.0
        %v7076 = vmax.f32 %v6820, 0.0
        %v7077 = vmax.f32 %v6821, 0.0
        %v7078 = vmax.f32 %v6822, 0.0
        %v7079 = vmax.f32 %v6823, 0.0
        %v7080 = vmax.f32 %v6824, 0.0
        %v7081 = vmax.f32 %v6825, 0.0
        %v7082 = vmax.f32 %v6826, 0.0
        %v7083 = vmax.f32 %v6827, 0.0
        %v7084 = vmax.f32 %v6828, 0.0
        %v7085 = vmax.f32 %v6829, 0.0
        %v7086 = vmax.f32 %v6830, 0.0
        %v7087 = vmax.f32 %v6831, 0.0
        %v7088 = vmax.f32 %v6832, 0.0
        %v7089 = vmax.f32 %v6833, 0.0
        %v7090 = vmax.f32 %v6834, 0.0
        %v7091 = vmax.f32 %v6835, 0.0
        %v7092 = vmax.f32 %v6836, 0.0
        %v7093 = vmax.f32 %v6837, 0.0
        %v7094 = vmax.f32 %v6838, 0.0
        %v7095 = vmax.f32 %v6839, 0.0
        %v7096 = vmax.f32 %v6840, 0.0
        %v7097 = vmax.f32 %v6841, 0.0
        %v7098 = vmax.f32 %v6842, 0.0
        %v7099 = vmax.f32 %v6843, 0.0
        %v7100 = vmax.f32 %v6844, 0.0
        %v7101 = vmax.f32 %v6845, 0.0
        %v7102 = vmax.f32 %v6846, 0.0
        %v7103 = vmax.f32 %v6847, 0.0
        %v7104 = vmax.f32 %v6848, 0.0
        %v7105 = vmax.f32 %v6849, 0.0
        %v7106 = vmax.f32 %v6850, 0.0
        %v7107 = vmax.f32 %v6851, 0.0
        %v7108 = vmax.f32 %v6852, 0.0
        %v7109 = vmax.f32 %v6853, 0.0
        %v7110 = vmax.f32 %v6854, 0.0
        %v7111 = vmax.f32 %v6855, 0.0
        %v7112 = vmax.f32 %v6856, 0.0
        %v7113 = vmax.f32 %v6857, 0.0
        %v7114 = vmax.f32 %v6858, 0.0
        %v7115 = vmax.f32 %v6859, 0.0
        %v7116 = vmax.f32 %v6860, 0.0
        %v7117 = vmax.f32 %v6861, 0.0
        %v7118 = vmax.f32 %v6862, 0.0
        %v7119 = vmax.f32 %v6863, 0.0
        %v7120 = vmax.f32 %v6864, 0.0
        %v7121 = vmax.f32 %v6865, 0.0
        %v7122 = vmax.f32 %v6866, 0.0
        %v7123 = vmax.f32 %v6867, 0.0
        %v7124 = vmax.f32 %v6868, 0.0
        %v7125 = vmax.f32 %v6869, 0.0
        %v7126 = vmax.f32 %v6870, 0.0
        %v7127 = vmax.f32 %v6871, 0.0
        %v7128 = vmax.f32 %v6872, 0.0
        %v7129 = vmax.f32 %v6873, 0.0
        %v7130 = vmax.f32 %v6874, 0.0
        %v7131 = vmax.f32 %v6875, 0.0
        %v7132 = vmax.f32 %v6876, 0.0
        %v7133 = vmax.f32 %v6877, 0.0
        %v7134 = vmax.f32 %v6878, 0.0
        %v7135 = vmax.f32 %v6879, 0.0
        %v7136 = vmax.f32 %v6880, 0.0
        %v7137 = vmax.f32 %v6881, 0.0
        %v7138 = vmax.f32 %v6882, 0.0
        %v7139 = vmax.f32 %v6883, 0.0
        %v7140 = vmax.f32 %v6884, 0.0
        %v7141 = vmax.f32 %v6885, 0.0
        %v7142 = vmax.f32 %v6886, 0.0
        %v7143 = vmax.f32 %v6887, 0.0
        %v7144 = vmax.f32 %v6888, 0.0
        %v7145 = vmax.f32 %v6889, 0.0
        %v7146 = vmax.f32 %v6890, 0.0
        %v7147 = vmax.f32 %v6891, 0.0
        %v7148 = vmax.f32 %v6892, 0.0
        %v7149 = vmax.f32 %v6893, 0.0
        %v7150 = vmax.f32 %v6894, 0.0
        %v7151 = vmax.f32 %v6895, 0.0
        %v7152 = vmax.f32 %v6896, 0.0
        %v7153 = vmax.f32 %v6897, 0.0
        %v7154 = vmax.f32 %v6898, 0.0
        %v7155 = vmax.f32 %v6899, 0.0
        %v7156 = vmax.f32 %v6900, 0.0
        %v7157 = vmax.f32 %v6901, 0.0
        %v7158 = vmax.f32 %v6902, 0.0
        %v7159 = vmax.f32 %v6903, 0.0
        %v7160 = vmax.f32 %v6904, 0.0
        %v7161 = vmax.f32 %v6905, 0.0
        %v7162 = vmax.f32 %v6906, 0.0
        %v7163 = vmax.f32 %v6907, 0.0
        %v7164 = vmax.f32 %v6908, 0.0
        %v7165 = vmax.f32 %v6909, 0.0
        %v7166 = vmax.f32 %v6910, 0.0
        %v7167 = vmax.f32 %v6911, 0.0
        %v7168 = vmax.f32 %v6912, 0.0
        %v7169 = vmax.f32 %v6913, 0.0
        %v7170 = vmax.f32 %v6914, 0.0
        %v7171 = vmax.f32 %v6915, 0.0
        %v7172 = vmax.f32 %v6916, 0.0
        %v7173 = vmax.f32 %v6917, 0.0
        %v7174 = vmax.f32 %v6918, 0.0
        %v7175 = vmax.f32 %v6919, 0.0
        %v7176 = vmax.f32 %v6920, 0.0
        %v7177 = vmax.f32 %v6921, 0.0
        %v7178 = vmax.f32 %v6922, 0.0
        %v7179 = vmax.f32 %v6923, 0.0
        %v7180 = vmax.f32 %v6924, 0.0
        %v7181 = vmax.f32 %v6925, 0.0
        %v7182 = vmax.f32 %v6926, 0.0
        %v7183 = vmax.f32 %v6927, 0.0
        %v7184 = vmax.f32 %v6928, 0.0
        %v7185 = vmax.f32 %v6929, 0.0
        %v7186 = vmax.f32 %v6930, 0.0
        %v7187 = vmax.f32 %v6931, 0.0
        %v7188 = vmax.f32 %v6932, 0.0
        %v7189 = vmax.f32 %v6933, 0.0
        %v7190 = vmax.f32 %v6934, 0.0
        %v7191 = vmax.f32 %v6935, 0.0
        %v7192 = vmax.f32 %v6936, 0.0
        %v7193 = vmax.f32 %v6937, 0.0
        %v7194 = vmax.f32 %v6938, 0.0
        %v7195 = vmax.f32 %v6939, 0.0
        %v7196 = vmax.f32 %v6940, 0.0
        %v7197 = vmax.f32 %v6941, 0.0
        %v7198 = vmax.f32 %v6942, 0.0
        %v7199 = vmax.f32 %v6943, 0.0
        %v7200 = vmax.f32 %v6944, 0.0
        %v7201 = vmax.f32 %v6945, 0.0
        %v7202 = vmax.f32 %v6946, 0.0
        %v7203 = vmax.f32 %v6947, 0.0
        %v7204 = vmax.f32 %v6948, 0.0
        %v7205 = vmax.f32 %v6949, 0.0
        %v7206 = vmax.f32 %v6950, 0.0
        %v7207 = vmax.f32 %v6951, 0.0
        %v7208 = vmax.f32 %v6952, 0.0
        %v7209 = vmax.f32 %v6953, 0.0
        %v7210 = vmax.f32 %v6954, 0.0
        %v7211 = vmax.f32 %v6955, 0.0
        %v7212 = vmax.f32 %v6956, 0.0
        %v7213 = vmax.f32 %v6957, 0.0
        %v7214 = vmax.f32 %v6958, 0.0
        %v7215 = vmax.f32 %v6959, 0.0
        %v7216 = vmax.f32 %v6960, 0.0
        %v7217 = vmax.f32 %v6961, 0.0
        %v7218 = vmax.f32 %v6962, 0.0
        %v7219 = vmax.f32 %v6963, 0.0
        %v7220 = vmax.f32 %v6964, 0.0
        %v7221 = vmax.f32 %v6965, 0.0
        %v7222 = vmax.f32 %v6966, 0.0
        %v7223 = vmax.f32 %v6967, 0.0
        %v7224 = vmax.f32 %v6968, 0.0
        %v7225 = vmax.f32 %v6969, 0.0
        %v7226 = vmax.f32 %v6970, 0.0
        %v7227 = vmax.f32 %v6971, 0.0
        %v7228 = vmax.f32 %v6972, 0.0
        %v7229 = vmax.f32 %v6973, 0.0
        %v7230 = vmax.f32 %v6974, 0.0
        %v7231 = vmax.f32 %v6975, 0.0
        %v7232 = vmax.f32 %v6976, 0.0
        %v7233 = vmax.f32 %v6977, 0.0
        %v7234 = vmax.f32 %v6978, 0.0
        %v7235 = vmax.f32 %v6979, 0.0
        %v7236 = vmax.f32 %v6980, 0.0
        %v7237 = vmax.f32 %v6981, 0.0
        %v7238 = vmax.f32 %v6982, 0.0
        %v7239 = vmax.f32 %v6983, 0.0
        %v7240 = vmax.f32 %v6984, 0.0
        %v7241 = vmax.f32 %v6985, 0.0
        %v7242 = vmax.f32 %v6986, 0.0
        %v7243 = vmax.f32 %v6987, 0.0
        %v7244 = vmax.f32 %v6988, 0.0
        %v7245 = vmax.f32 %v6989, 0.0
        %v7246 = vmax.f32 %v6990, 0.0
        %v7247 = vmax.f32 %v6991, 0.0
        %v7248 = vmax.f32 %v6992, 0.0
        %v7249 = vmax.f32 %v6993, 0.0
        %v7250 = vmax.f32 %v6994, 0.0
        %v7251 = vmax.f32 %v6995, 0.0
        %v7252 = vmax.f32 %v6996, 0.0
        %v7253 = vmax.f32 %v6997, 0.0
        %v7254 = vmax.f32 %v6998, 0.0
        %v7255 = vmax.f32 %v6999, 0.0
        %v7256 = vmax.f32 %v7000, 0.0
        %v7257 = vmax.f32 %v7001, 0.0
        %v7258 = vmax.f32 %v7002, 0.0
        %v7259 = vmax.f32 %v7003, 0.0
        %v7260 = vmax.f32 %v7004, 0.0
        %v7261 = vmax.f32 %v7005, 0.0
        %v7262 = vmax.f32 %v7006, 0.0
        %v7263 = vmax.f32 %v7007, 0.0
        %v7264 = vmax.f32 %v7008, 0.0
        %v7265 = vmax.f32 %v7009, 0.0
        %v7266 = vmax.f32 %v7010, 0.0
        %v7267 = vmax.f32 %v7011, 0.0
        %v7268 = vmax.f32 %v7012, 0.0
        %v7269 = vmax.f32 %v7013, 0.0
        %v7270 = vmax.f32 %v7014, 0.0
        %v7271 = vmax.f32 %v7015, 0.0
        %v7272 = vmax.f32 %v7016, 0.0
        %v7273 = vmax.f32 %v7017, 0.0
        %v7274 = vmax.f32 %v7018, 0.0
        %v7275 = vmax.f32 %v7019, 0.0
        %v7276 = vmax.f32 %v7020, 0.0
        %v7277 = vmax.f32 %v7021, 0.0
        %v7278 = vmax.f32 %v7022, 0.0
        %v7279 = vmax.f32 %v7023, 0.0
        %v7280 = vmax.f32 %v7024, 0.0
        %v7281 = vmax.f32 %v7025, 0.0
        %v7282 = vmax.f32 %v7026, 0.0
        %v7283 = vmax.f32 %v7027, 0.0
        %v7284 = vmax.f32 %v7028, 0.0
        %v7285 = vmax.f32 %v7029, 0.0
        %v7286 = vmax.f32 %v7030, 0.0
        %v7287 = vmax.f32 %v7031, 0.0
        %v7288 = vmax.f32 %v7032, 0.0
        %v7289 = vmax.f32 %v7033, 0.0
        %v7290 = vmax.f32 %v7034, 0.0
        %v7291 = vmax.f32 %v7035, 0.0
        %v7292 = vmax.f32 %v7036, 0.0
        %v7293 = vmax.f32 %v7037, 0.0
        %v7294 = vmax.f32 %v7038, 0.0
        %v7295 = vmax.f32 %v7039, 0.0
        %v7296 = vmax.f32 %v7040, 0.0
        %v7297 = vmax.f32 %v7041, 0.0
        %v7298 = vpack.c.bf16 %v7043, %v7042
        %v7299 = vpack.c.bf16 %v7045, %v7044
        %v7300 = vpack.c.bf16 %v7047, %v7046
        %v7301 = vpack.c.bf16 %v7049, %v7048
        %v7302 = vpack.c.bf16 %v7051, %v7050
        %v7303 = vpack.c.bf16 %v7053, %v7052
        %v7304 = vpack.c.bf16 %v7055, %v7054
        %v7305 = vpack.c.bf16 %v7057, %v7056
        %v7306 = vpack.c.bf16 %v7059, %v7058
        %v7307 = vpack.c.bf16 %v7061, %v7060
        %v7308 = vpack.c.bf16 %v7063, %v7062
        %v7309 = vpack.c.bf16 %v7065, %v7064
        %v7310 = vpack.c.bf16 %v7067, %v7066
        %v7311 = vpack.c.bf16 %v7069, %v7068
        %v7312 = vpack.c.bf16 %v7071, %v7070
        %v7313 = vpack.c.bf16 %v7073, %v7072
        %v7314 = vpack.c.bf16 %v7075, %v7074
        %v7315 = vpack.c.bf16 %v7077, %v7076
        %v7316 = vpack.c.bf16 %v7079, %v7078
        %v7317 = vpack.c.bf16 %v7081, %v7080
        %v7318 = vpack.c.bf16 %v7083, %v7082
        %v7319 = vpack.c.bf16 %v7085, %v7084
        %v7320 = vpack.c.bf16 %v7087, %v7086
        %v7321 = vpack.c.bf16 %v7089, %v7088
        %v7322 = vpack.c.bf16 %v7091, %v7090
        %v7323 = vpack.c.bf16 %v7093, %v7092
        %v7324 = vpack.c.bf16 %v7095, %v7094
        %v7325 = vpack.c.bf16 %v7097, %v7096
        %v7326 = vpack.c.bf16 %v7099, %v7098
        %v7327 = vpack.c.bf16 %v7101, %v7100
        %v7328 = vpack.c.bf16 %v7103, %v7102
        %v7329 = vpack.c.bf16 %v7105, %v7104
        %v7330 = vpack.c.bf16 %v7107, %v7106
        %v7331 = vpack.c.bf16 %v7109, %v7108
        %v7332 = vpack.c.bf16 %v7111, %v7110
        %v7333 = vpack.c.bf16 %v7113, %v7112
        %v7334 = vpack.c.bf16 %v7115, %v7114
        %v7335 = vpack.c.bf16 %v7117, %v7116
        %v7336 = vpack.c.bf16 %v7119, %v7118
        %v7337 = vpack.c.bf16 %v7121, %v7120
        %v7338 = vpack.c.bf16 %v7123, %v7122
        %v7339 = vpack.c.bf16 %v7125, %v7124
        %v7340 = vpack.c.bf16 %v7127, %v7126
        %v7341 = vpack.c.bf16 %v7129, %v7128
        %v7342 = vpack.c.bf16 %v7131, %v7130
        %v7343 = vpack.c.bf16 %v7133, %v7132
        %v7344 = vpack.c.bf16 %v7135, %v7134
        %v7345 = vpack.c.bf16 %v7137, %v7136
        %v7346 = vpack.c.bf16 %v7139, %v7138
        %v7347 = vpack.c.bf16 %v7141, %v7140
        %v7348 = vpack.c.bf16 %v7143, %v7142
        %v7349 = vpack.c.bf16 %v7145, %v7144
        %v7350 = vpack.c.bf16 %v7147, %v7146
        %v7351 = vpack.c.bf16 %v7149, %v7148
        %v7352 = vpack.c.bf16 %v7151, %v7150
        %v7353 = vpack.c.bf16 %v7153, %v7152
        %v7354 = vpack.c.bf16 %v7155, %v7154
        %v7355 = vpack.c.bf16 %v7157, %v7156
        %v7356 = vpack.c.bf16 %v7159, %v7158
        %v7357 = vpack.c.bf16 %v7161, %v7160
        %v7358 = vpack.c.bf16 %v7163, %v7162
        %v7359 = vpack.c.bf16 %v7165, %v7164
        %v7360 = vpack.c.bf16 %v7167, %v7166
        %v7361 = vpack.c.bf16 %v7169, %v7168
        %v7362 = vpack.c.bf16 %v7171, %v7170
        %v7363 = vpack.c.bf16 %v7173, %v7172
        %v7364 = vpack.c.bf16 %v7175, %v7174
        %v7365 = vpack.c.bf16 %v7177, %v7176
        %v7366 = vpack.c.bf16 %v7179, %v7178
        %v7367 = vpack.c.bf16 %v7181, %v7180
        %v7368 = vpack.c.bf16 %v7183, %v7182
        %v7369 = vpack.c.bf16 %v7185, %v7184
        %v7370 = vpack.c.bf16 %v7187, %v7186
        %v7371 = vpack.c.bf16 %v7189, %v7188
        %v7372 = vpack.c.bf16 %v7191, %v7190
        %v7373 = vpack.c.bf16 %v7193, %v7192
        %v7374 = vpack.c.bf16 %v7195, %v7194
        %v7375 = vpack.c.bf16 %v7197, %v7196
        %v7376 = vpack.c.bf16 %v7199, %v7198
        %v7377 = vpack.c.bf16 %v7201, %v7200
        %v7378 = vpack.c.bf16 %v7203, %v7202
        %v7379 = vpack.c.bf16 %v7205, %v7204
        %v7380 = vpack.c.bf16 %v7207, %v7206
        %v7381 = vpack.c.bf16 %v7209, %v7208
        %v7382 = vpack.c.bf16 %v7211, %v7210
        %v7383 = vpack.c.bf16 %v7213, %v7212
        %v7384 = vpack.c.bf16 %v7215, %v7214
        %v7385 = vpack.c.bf16 %v7217, %v7216
        %v7386 = vpack.c.bf16 %v7219, %v7218
        %v7387 = vpack.c.bf16 %v7221, %v7220
        %v7388 = vpack.c.bf16 %v7223, %v7222
        %v7389 = vpack.c.bf16 %v7225, %v7224
        %v7390 = vpack.c.bf16 %v7227, %v7226
        %v7391 = vpack.c.bf16 %v7229, %v7228
        %v7392 = vpack.c.bf16 %v7231, %v7230
        %v7393 = vpack.c.bf16 %v7233, %v7232
        %v7394 = vpack.c.bf16 %v7235, %v7234
        %v7395 = vpack.c.bf16 %v7237, %v7236
        %v7396 = vpack.c.bf16 %v7239, %v7238
        %v7397 = vpack.c.bf16 %v7241, %v7240
        %v7398 = vpack.c.bf16 %v7243, %v7242
        %v7399 = vpack.c.bf16 %v7245, %v7244
        %v7400 = vpack.c.bf16 %v7247, %v7246
        %v7401 = vpack.c.bf16 %v7249, %v7248
        %v7402 = vpack.c.bf16 %v7251, %v7250
        %v7403 = vpack.c.bf16 %v7253, %v7252
        %v7404 = vpack.c.bf16 %v7255, %v7254
        %v7405 = vpack.c.bf16 %v7257, %v7256
        %v7406 = vpack.c.bf16 %v7259, %v7258
        %v7407 = vpack.c.bf16 %v7261, %v7260
        %v7408 = vpack.c.bf16 %v7263, %v7262
        %v7409 = vpack.c.bf16 %v7265, %v7264
        %v7410 = vpack.c.bf16 %v7267, %v7266
        %v7411 = vpack.c.bf16 %v7269, %v7268
        %v7412 = vpack.c.bf16 %v7271, %v7270
        %v7413 = vpack.c.bf16 %v7273, %v7272
        %v7414 = vpack.c.bf16 %v7275, %v7274
        %v7415 = vpack.c.bf16 %v7277, %v7276
        %v7416 = vpack.c.bf16 %v7279, %v7278
        %v7417 = vpack.c.bf16 %v7281, %v7280
        %v7418 = vpack.c.bf16 %v7283, %v7282
        %v7419 = vpack.c.bf16 %v7285, %v7284
        %v7420 = vpack.c.bf16 %v7287, %v7286
        %v7421 = vpack.c.bf16 %v7289, %v7288
        %v7422 = vpack.c.bf16 %v7291, %v7290
        %v7423 = vpack.c.bf16 %v7293, %v7292
        %v7424 = vpack.c.bf16 %v7295, %v7294
        %v7425 = vpack.c.bf16 %v7297, %v7296
        %7426 = vst [vmem:[%s392] sm:$0xff] %v7298
        %7427 = vst [vmem:[%s392 + $0x8] sm:$0xff] %v7299
        %7428 = vst [vmem:[%s392 + $0x10] sm:$0xff] %v7300
        %7429 = vst [vmem:[%s392 + $0x18] sm:$0xff] %v7301
        %7430 = vst [vmem:[%s392 + $0x20] sm:$0xff] %v7302
        %7431 = vst [vmem:[%s392 + $0x28] sm:$0xff] %v7303
        %7432 = vst [vmem:[%s392 + $0x30] sm:$0xff] %v7304
        %7433 = vst [vmem:[%s392 + $0x38] sm:$0xff] %v7305
        %7434 = vst [vmem:[%s392 + $0x40] sm:$0xff] %v7306
        %7435 = vst [vmem:[%s392 + $0x48] sm:$0xff] %v7307
        %7436 = vst [vmem:[%s392 + $0x50] sm:$0xff] %v7308
        %7437 = vst [vmem:[%s392 + $0x58] sm:$0xff] %v7309
        %7438 = vst [vmem:[%s392 + $0x60] sm:$0xff] %v7310
        %7439 = vst [vmem:[%s392 + $0x68] sm:$0xff] %v7311
        %7440 = vst [vmem:[%s392 + $0x70] sm:$0xff] %v7312
        %7441 = vst [vmem:[%s392 + $0x78] sm:$0xff] %v7313
        %7442 = vst [vmem:[%s392 + $0x80] sm:$0xff] %v7314
        %7443 = vst [vmem:[%s392 + $0x88] sm:$0xff] %v7315
        %7444 = vst [vmem:[%s392 + $0x90] sm:$0xff] %v7316
        %7445 = vst [vmem:[%s392 + $0x98] sm:$0xff] %v7317
        %7446 = vst [vmem:[%s392 + $0xa0] sm:$0xff] %v7318
        %7447 = vst [vmem:[%s392 + $0xa8] sm:$0xff] %v7319
        %7448 = vst [vmem:[%s392 + $0xb0] sm:$0xff] %v7320
        %7449 = vst [vmem:[%s392 + $0xb8] sm:$0xff] %v7321
        %7450 = vst [vmem:[%s392 + $0xc0] sm:$0xff] %v7322
        %7451 = vst [vmem:[%s392 + $0xc8] sm:$0xff] %v7323
        %7452 = vst [vmem:[%s392 + $0xd0] sm:$0xff] %v7324
        %7453 = vst [vmem:[%s392 + $0xd8] sm:$0xff] %v7325
        %7454 = vst [vmem:[%s392 + $0xe0] sm:$0xff] %v7326
        %7455 = vst [vmem:[%s392 + $0xe8] sm:$0xff] %v7327
        %7456 = vst [vmem:[%s392 + $0xf0] sm:$0xff] %v7328
        %7457 = vst [vmem:[%s392 + $0xf8] sm:$0xff] %v7329
        %7458 = vst [vmem:[%s392 + $0x100] sm:$0xff] %v7330
        %7459 = vst [vmem:[%s392 + $0x108] sm:$0xff] %v7331
        %7460 = vst [vmem:[%s392 + $0x110] sm:$0xff] %v7332
        %7461 = vst [vmem:[%s392 + $0x118] sm:$0xff] %v7333
        %7462 = vst [vmem:[%s392 + $0x120] sm:$0xff] %v7334
        %7463 = vst [vmem:[%s392 + $0x128] sm:$0xff] %v7335
        %7464 = vst [vmem:[%s392 + $0x130] sm:$0xff] %v7336
        %7465 = vst [vmem:[%s392 + $0x138] sm:$0xff] %v7337
        %7466 = vst [vmem:[%s392 + $0x140] sm:$0xff] %v7338
        %7467 = vst [vmem:[%s392 + $0x148] sm:$0xff] %v7339
        %7468 = vst [vmem:[%s392 + $0x150] sm:$0xff] %v7340
        %7469 = vst [vmem:[%s392 + $0x158] sm:$0xff] %v7341
        %7470 = vst [vmem:[%s392 + $0x160] sm:$0xff] %v7342
        %7471 = vst [vmem:[%s392 + $0x168] sm:$0xff] %v7343
        %7472 = vst [vmem:[%s392 + $0x170] sm:$0xff] %v7344
        %7473 = vst [vmem:[%s392 + $0x178] sm:$0xff] %v7345
        %7474 = vst [vmem:[%s392 + $0x180] sm:$0xff] %v7346
        %7475 = vst [vmem:[%s392 + $0x188] sm:$0xff] %v7347
        %7476 = vst [vmem:[%s392 + $0x190] sm:$0xff] %v7348
        %7477 = vst [vmem:[%s392 + $0x198] sm:$0xff] %v7349
        %7478 = vst [vmem:[%s392 + $0x1a0] sm:$0xff] %v7350
        %7479 = vst [vmem:[%s392 + $0x1a8] sm:$0xff] %v7351
        %7480 = vst [vmem:[%s392 + $0x1b0] sm:$0xff] %v7352
        %7481 = vst [vmem:[%s392 + $0x1b8] sm:$0xff] %v7353
        %7482 = vst [vmem:[%s392 + $0x1c0] sm:$0xff] %v7354
        %7483 = vst [vmem:[%s392 + $0x1c8] sm:$0xff] %v7355
        %7484 = vst [vmem:[%s392 + $0x1d0] sm:$0xff] %v7356
        %7485 = vst [vmem:[%s392 + $0x1d8] sm:$0xff] %v7357
        %7486 = vst [vmem:[%s392 + $0x1e0] sm:$0xff] %v7358
        %7487 = vst [vmem:[%s392 + $0x1e8] sm:$0xff] %v7359
        %7488 = vst [vmem:[%s392 + $0x1f0] sm:$0xff] %v7360
        %7489 = vst [vmem:[%s392 + $0x1f8] sm:$0xff] %v7361
        %7490 = vst [vmem:[%s392 + $0x200] sm:$0xff] %v7362
        %7491 = vst [vmem:[%s392 + $0x208] sm:$0xff] %v7363
        %7492 = vst [vmem:[%s392 + $0x210] sm:$0xff] %v7364
        %7493 = vst [vmem:[%s392 + $0x218] sm:$0xff] %v7365
        %7494 = vst [vmem:[%s392 + $0x220] sm:$0xff] %v7366
        %7495 = vst [vmem:[%s392 + $0x228] sm:$0xff] %v7367
        %7496 = vst [vmem:[%s392 + $0x230] sm:$0xff] %v7368
        %7497 = vst [vmem:[%s392 + $0x238] sm:$0xff] %v7369
        %7498 = vst [vmem:[%s392 + $0x240] sm:$0xff] %v7370
        %7499 = vst [vmem:[%s392 + $0x248] sm:$0xff] %v7371
        %7500 = vst [vmem:[%s392 + $0x250] sm:$0xff] %v7372
        %7501 = vst [vmem:[%s392 + $0x258] sm:$0xff] %v7373
        %7502 = vst [vmem:[%s392 + $0x260] sm:$0xff] %v7374
        %7503 = vst [vmem:[%s392 + $0x268] sm:$0xff] %v7375
        %7504 = vst [vmem:[%s392 + $0x270] sm:$0xff] %v7376
        %7505 = vst [vmem:[%s392 + $0x278] sm:$0xff] %v7377
        %7506 = vst [vmem:[%s392 + $0x280] sm:$0xff] %v7378
        %7507 = vst [vmem:[%s392 + $0x288] sm:$0xff] %v7379
        %7508 = vst [vmem:[%s392 + $0x290] sm:$0xff] %v7380
        %7509 = vst [vmem:[%s392 + $0x298] sm:$0xff] %v7381
        %7510 = vst [vmem:[%s392 + $0x2a0] sm:$0xff] %v7382
        %7511 = vst [vmem:[%s392 + $0x2a8] sm:$0xff] %v7383
        %7512 = vst [vmem:[%s392 + $0x2b0] sm:$0xff] %v7384
        %7513 = vst [vmem:[%s392 + $0x2b8] sm:$0xff] %v7385
        %7514 = vst [vmem:[%s392 + $0x2c0] sm:$0xff] %v7386
        %7515 = vst [vmem:[%s392 + $0x2c8] sm:$0xff] %v7387
        %7516 = vst [vmem:[%s392 + $0x2d0] sm:$0xff] %v7388
        %7517 = vst [vmem:[%s392 + $0x2d8] sm:$0xff] %v7389
        %7518 = vst [vmem:[%s392 + $0x2e0] sm:$0xff] %v7390
        %7519 = vst [vmem:[%s392 + $0x2e8] sm:$0xff] %v7391
        %7520 = vst [vmem:[%s392 + $0x2f0] sm:$0xff] %v7392
        %7521 = vst [vmem:[%s392 + $0x2f8] sm:$0xff] %v7393
        %7522 = vst [vmem:[%s392 + $0x300] sm:$0xff] %v7394
        %7523 = vst [vmem:[%s392 + $0x308] sm:$0xff] %v7395
        %7524 = vst [vmem:[%s392 + $0x310] sm:$0xff] %v7396
        %7525 = vst [vmem:[%s392 + $0x318] sm:$0xff] %v7397
        %7526 = vst [vmem:[%s392 + $0x320] sm:$0xff] %v7398
        %7527 = vst [vmem:[%s392 + $0x328] sm:$0xff] %v7399
        %7528 = vst [vmem:[%s392 + $0x330] sm:$0xff] %v7400
        %7529 = vst [vmem:[%s392 + $0x338] sm:$0xff] %v7401
        %7530 = vst [vmem:[%s392 + $0x340] sm:$0xff] %v7402
        %7531 = vst [vmem:[%s392 + $0x348] sm:$0xff] %v7403
        %7532 = vst [vmem:[%s392 + $0x350] sm:$0xff] %v7404
        %7533 = vst [vmem:[%s392 + $0x358] sm:$0xff] %v7405
        %7534 = vst [vmem:[%s392 + $0x360] sm:$0xff] %v7406
        %7535 = vst [vmem:[%s392 + $0x368] sm:$0xff] %v7407
        %7536 = vst [vmem:[%s392 + $0x370] sm:$0xff] %v7408
        %7537 = vst [vmem:[%s392 + $0x378] sm:$0xff] %v7409
        %7538 = vst [vmem:[%s392 + $0x380] sm:$0xff] %v7410
        %7539 = vst [vmem:[%s392 + $0x388] sm:$0xff] %v7411
        %7540 = vst [vmem:[%s392 + $0x390] sm:$0xff] %v7412
        %7541 = vst [vmem:[%s392 + $0x398] sm:$0xff] %v7413
        %7542 = vst [vmem:[%s392 + $0x3a0] sm:$0xff] %v7414
        %7543 = vst [vmem:[%s392 + $0x3a8] sm:$0xff] %v7415
        %7544 = vst [vmem:[%s392 + $0x3b0] sm:$0xff] %v7416
        %7545 = vst [vmem:[%s392 + $0x3b8] sm:$0xff] %v7417
        %7546 = vst [vmem:[%s392 + $0x3c0] sm:$0xff] %v7418
        %7547 = vst [vmem:[%s392 + $0x3c8] sm:$0xff] %v7419
        %7548 = vst [vmem:[%s392 + $0x3d0] sm:$0xff] %v7420
        %7549 = vst [vmem:[%s392 + $0x3d8] sm:$0xff] %v7421
        %7550 = vst [vmem:[%s392 + $0x3e0] sm:$0xff] %v7422
        %7551 = vst [vmem:[%s392 + $0x3e8] sm:$0xff] %v7423
        %7552 = vst [vmem:[%s392 + $0x3f0] sm:$0xff] %v7424
        %7553 = vst [vmem:[%s392 + $0x3f8] sm:$0xff] %v7425
        %s7554 = sand.u32 %s187, 1
        %s7555 = scalar_lea.sflag [#allocation4], %s7554
        %s7556 = sand.u32 %s187, 1
        %s7557 = smul.addr %s7556, 1024
        %s7558 = scalar_lea.vmem [#allocation14], %s7557
        // Predicated region
        $region77: #{tpu_custom_call.1} parent=47 // pred_check
          %p7559 = pneg %p197
        $region78: #{tpu_custom_call.1} parent=47 // pred_check_branch
          %7561 = sbr.rel (%p7559) target = $region80
        $region79: #{tpu_custom_call.1} parent=47 // pred_region
          %s7562 = smul.u32 2, %s27
          %7564 = vsyncadd %s7555, 0
          %s7565 = smul.addr %s7562, 128
          %s7566 = smul.addr %s7565, 4
          %s7567 = scalar_lea.hbm %s7, %s7566
          %s7568 = sshll.u32 %s7558, 4
          %s7569 = int_to_ptr.vmem [resolvable:$true] %s7568
          %s7570 = sshll.u32 %s7567, 4
          %s7571 = int_to_ptr.hbm [resolvable:$true] %s7570
          %7576 = dma.vmem_to_hbm [thread:$0]  %s7569, 16384, %s7571, %s7555, 256, 256, 16
        $region80: #{tpu_custom_call.1} parent=47 // pred_fallthru
          _
      $region48: #{tpu_custom_call.1} parent=5 // pred_fallthru
        _
      %p7577 = scmp.le.s32.totalorder 2, %s22
      // Predicated region
      $region81: #{tpu_custom_call.1} parent=5 // pred_check
        %p7578 = pneg %p7577
      $region82: #{tpu_custom_call.1} parent=5 // pred_check_branch
        %7580 = sbr.rel (%p7578) target = $region84
      $region83: #{tpu_custom_call.1} parent=5 // pred_region
        %s7581 = ssub.s32 %s22, 2
        // Predicated region
        $region85: #{tpu_custom_call.1} parent=83 // pred_check
          %p7582 = pneg %p203
        $region86: #{tpu_custom_call.1} parent=83 // pred_check_branch
          %7584 = sbr.rel (%p7582) target = $region88
        $region87: #{tpu_custom_call.1} parent=83 // pred_region
          %s7585 = sand.u32 %s188, 1
          %s7586 = scalar_lea.sflag [#allocation4], %s7585
          %s7587 = sand.u32 %s188, 1
          %s7588 = smul.addr %s7587, 1024
          %s7589 = scalar_lea.vmem [#allocation14], %s7588
          %7591 = dma.done %s7586, 16384
        $region88: #{tpu_custom_call.1} parent=83 // pred_fallthru
          _
      $region84: #{tpu_custom_call.1} parent=5 // pred_fallthru
        _
    $region6: #{tpu_custom_call.1} parent=1 // loop_footer
      %s26 = sadd.s32 1, %s22
    $region7: #{tpu_custom_call.1} parent=1 // loop_footer_branch
      %21 = sbr.rel target = $region3
    $region8: #{tpu_custom_call.1} parent=1 // loop_exit
      _
    %7592 = vsyncpa [#allocation3], 1
    %s7593 = scalar_lea.sflag [#allocation3], 1
    %7594 = vsyncpa %s7593, 1
    %7595 = vsyncpa [#allocation6], 1
    %7596 = vsyncpa [#allocation9], 1
    %7597 = vsyncpa [#allocation12], 1
    %7598 = vsyncpa [#allocation4], 1
    %s7599 = scalar_lea.sflag [#allocation4], 1
    %7600 = vsyncpa %s7599, 1

</llo_original>
